<compile_context>
chip_gen: v6e
topology: v6e:2x2x1
jax: 0.10.0
libtpu: 0.0.40
codegen_flags: <defaults>
</compile_context>

<pallas_src>
import jax
import jax.numpy as jnp
import numpy as np
from jax.experimental import pallas as pl
from jax.experimental.pallas import tpu as pltpu

# ---------------- small synthetic config (shapes implied by a CLIP ViT) -----
B, C, IMG, P = 2, 3, 16, 8          # batch, channels, image size, patch size
NP = (IMG // P) ** 2                # 4 patches
L = NP + 1                          # 5 tokens (CLS + patches)
D = 32                              # transformer width
HEADS, HD = 4, 8                    # heads, head dim
MLP = 4 * D                         # MLP hidden (=128, one lane tile)
LAYERS = 3                          # "resblocks 9,10,11" analogue
OUT = 16                            # visual.proj output dim
CPP = C * P * P                     # flattened patch size (192)
EPS = 1e-5

# misc-slab row offsets (all 8-aligned)
_A0 = CPP                           # addend (cls+pos) rows, padded to 8
_P0 = CPP + 8                       # ln_pre/ln_post rows, padded to 8
_J0 = CPP + 16                      # visual.proj rows (lane-padded OUT -> D)
MISC_ROWS = _J0 + D                 # 240


def _ln(x, g, b):
    mu = jnp.mean(x, axis=-1, keepdims=True)
    var = jnp.mean((x - mu) ** 2, axis=-1, keepdims=True)
    return (x - mu) * jax.lax.rsqrt(var + EPS) * g + b


# ---------------------------------- kernel ----------------------------------
# vecs slab layout (per layer, rows of width MLP=128, zero lane-padded):
#   row 0: g1 (D)   row 1: b1 (D)   row 2: g2 (D)   row 3: b2 (D)
#   row 4: bo' (D) = bo + bv @ Wo   row 5: bb2 (D)  row 6: bb1 (MLP)  row 7: 0
def fused_kernel(patches_ref, misc_ref, wqkv_ref, bq_ref, wo_ref,
                 w1_ref, w2_ref, vecs_ref, out_ref):
    conv_w = misc_ref[0:CPP, :]                 # (CPP, D)
    addend = misc_ref[_A0:_A0 + L, :]           # (L, D)  row0 = cls + pos[0]
    pre_g = misc_ref[_P0:_P0 + 1, :]
    pre_b = misc_ref[_P0 + 1:_P0 + 2, :]
    post_g = misc_ref[_P0 + 2:_P0 + 3, :]
    post_b = misc_ref[_P0 + 3:_P0 + 4, :]
    proj = misc_ref[_J0:_J0 + D, :]             # (D, D) cols OUT..D-1 are zero

    # ---- patch embed + CLS/pos fold + ln_pre ----
    # patches row 0 is zero (CLS placeholder), so this yields (L, D) directly.
    x = jnp.dot(patches_ref[0], conv_w, preferred_element_type=jnp.float32)
    x = x + addend
    x = _ln(x, pre_g, pre_b)

    for l in range(LAYERS):                     # static unroll (3)
        w3 = wqkv_ref[l]                        # (3*H, D, HD), scale folded in Wq
        wq = w3[0:HEADS]                        # (H, D, HD)
        wk = w3[HEADS:2 * HEADS]
        wv = w3[2 * HEADS:3 * HEADS]
        bq = bq_ref[l]                          # (H, 1, HD), scale folded in
        wo = wo_ref[l]                          # (H, HD, D)
        w1 = w1_ref[l]                          # (D, MLP)
        w2 = w2_ref[l]                          # (MLP, D)
        vec = vecs_ref[l]                       # (8, MLP)
        g1, b1 = vec[0:1, 0:D], vec[1:2, 0:D]
        g2, b2 = vec[2:3, 0:D], vec[3:4, 0:D]
        bo = vec[4:5, 0:D]                      # bo + bv @ Wo (folded)
        bb2 = vec[5:6, 0:D]
        bb1 = vec[6:7, :]                       # (1, MLP)

        # --- multi-head self attention, batched over heads ---
        xn = _ln(x, g1, b1)                     # (L, D)
        xb = jnp.broadcast_to(xn[None], (HEADS, L, D))
        q = jnp.einsum('hld,hde->hle', xb, wq,
                       preferred_element_type=jnp.float32) + bq
        k = jnp.einsum('hld,hde->hle', xb, wk,
                       preferred_element_type=jnp.float32)   # k bias cancels
        v = jnp.einsum('hld,hde->hle', xb, wv,
                       preferred_element_type=jnp.float32)   # v bias folded
        s = jnp.einsum('hqe,hke->hqk', q, k,
                       preferred_element_type=jnp.float32)   # (H, L, L)
        s = s - jnp.max(s, axis=-1, keepdims=True)
        p = jnp.exp(s)
        p = p * pl.reciprocal(jnp.sum(p, axis=-1, keepdims=True), approx=False)
        o = jnp.einsum('hqk,hke->hqe', p, v,
                       preferred_element_type=jnp.float32)   # (H, L, HD)
        attn = jnp.einsum('hqe,hed->hqd', o, wo,
                          preferred_element_type=jnp.float32)  # (H, L, D)
        x = x + jnp.sum(attn, axis=0) + bo

        # --- MLP (QuickGELU, as in CLIP) ---
        xn2 = _ln(x, g2, b2)
        hmid = jnp.dot(xn2, w1, preferred_element_type=jnp.float32) + bb1
        hmid = hmid * jax.nn.sigmoid(1.702 * hmid)
        x = x + jnp.dot(hmid, w2, preferred_element_type=jnp.float32) + bb2

    # ---- ln_post on CLS token + visual.proj (lane-padded to D) ----
    cls_tok = x[0:1, :]
    xc = _ln(cls_tok, post_g, post_b)
    out_ref[0] = jnp.dot(xc, proj, preferred_element_type=jnp.float32)


# ------------------------------- pallas wrapper ------------------------------
def _rep_spec(shape):
    # whole-array block, constant index map -> staged into VMEM once
    n = len(shape)
    return pl.BlockSpec(shape, lambda i, _n=n: (0,) * _n)


def patchify(pixel_values):
    # NCHW -> (B, L, CPP) with row 0 = zeros (CLS placeholder); same (C,Ph,Pw)
    # flattening order as the conv weight.
    x = pixel_values.reshape(B, C, IMG // P, P, IMG // P, P)
    x = x.transpose(0, 2, 4, 1, 3, 5).reshape(B, NP, CPP)
    return jnp.pad(x, ((0, 0), (1, 0), (0, 0)))


@jax.jit
def fungi_embedder_forward(pixel_values, packed):
    """Pallas-backed equivalent of FungiEmbedder.forward -> model.encode_image."""
    patches = patchify(pixel_values)
    out = pl.pallas_call(
        fused_kernel,
        out_shape=jax.ShapeDtypeStruct((B, 1, D), jnp.float32),
        grid=(B,),
        in_specs=[
            pl.BlockSpec((1, L, CPP), lambda i: (i, 0, 0)),   # patches (per batch)
            _rep_spec((MISC_ROWS, D)),                        # conv_w|addend|ln|proj
            _rep_spec((LAYERS, 3 * HEADS, D, HD)),            # per-head Wq|Wk|Wv
            _rep_spec((LAYERS, HEADS, 1, HD)),                # per-head q bias
            _rep_spec((LAYERS, HEADS, HD, D)),                # per-head Wo
            _rep_spec((LAYERS, D, MLP)),                      # stacked W1
            _rep_spec((LAYERS, MLP, D)),                      # stacked W2
            _rep_spec((LAYERS, 8, MLP)),                      # packed bias/gain slab
        ],
        out_specs=pl.BlockSpec((1, 1, D), lambda i: (i, 0, 0)),
        compiler_params=pltpu.CompilerParams(
            dimension_semantics=("parallel",)),               # v7x: 1 batch per TC
    )(patches, packed["misc"], packed["wqkv_h"], packed["bq"],
      packed["wo_h"], packed["w1"], packed["w2"], packed["vecs"])
    return out[:, 0, :OUT]


def pack_params(params):
    """One-time host-side packing: per-head weight slabs, scale/bias folds,
    cls-into-positional fold, and the single misc slab."""
    scale = HD ** -0.5

    def pad_row(v, w=MLP):
        v = v.reshape(1, -1)
        return jnp.pad(v, ((0, 0), (0, w - v.shape[1])))

    addend = params["pos"].at[0].add(params["cls"])                     # (L, D)
    prepost = jnp.concatenate([params["ln_pre_g"], params["ln_pre_b"],
                               params["ln_post_g"], params["ln_post_b"]], axis=0)
    misc = jnp.concatenate([
        params["conv_w"],                                               # (CPP, D)
        jnp.pad(addend, ((0, 8 - L), (0, 0))),                          # (8, D)
        jnp.pad(prepost, ((0, 4), (0, 0))),                             # (8, D)
        jnp.pad(params["proj"], ((0, 0), (0, D - OUT))),                # (D, D)
    ], axis=0)                                                          # (240, D)

    wqkv_h, bq_h, wo_h, vec_slabs = [], [], [], []
    for lp in params["layers"]:
        wqkv = lp["wqkv"]                                               # (D, 3D)

        def per_head(w):                                                # (D, D)->(H, D, HD)
            return w.reshape(D, HEADS, HD).transpose(1, 0, 2)

        wq = per_head(wqkv[:, 0:D]) * scale                             # fold attn scale
        wk = per_head(wqkv[:, D:2 * D])
        wv = per_head(wqkv[:, 2 * D:3 * D])
        wqkv_h.append(jnp.concatenate([wq, wk, wv], axis=0))            # (3H, D, HD)
        bq_h.append((lp["bqkv"][0, 0:D] * scale).reshape(HEADS, 1, HD))
        wo_h.append(lp["wo"].reshape(HEADS, HD, D))
        # k bias cancels in softmax; v bias folds into the output bias.
        bo_fold = lp["bo"] + lp["bqkv"][:, 2 * D:3 * D] @ lp["wo"]      # (1, D)
        vec_slabs.append(jnp.concatenate([
            pad_row(lp["g1"]), pad_row(lp["b1"]),
            pad_row(lp["g2"]), pad_row(lp["b2"]),
            pad_row(bo_fold), pad_row(lp["bb2"]),
            pad_row(lp["bb1"]), jnp.zeros((1, MLP), jnp.float32),
        ], axis=0))                                                     # (8, MLP)

    return {
        "misc": misc,
        "wqkv_h": jnp.stack(wqkv_h),
        "bq": jnp.stack(bq_h),
        "wo_h": jnp.stack(wo_h),
        "w1": jnp.stack([lp["w1"] for lp in params["layers"]]),
        "w2": jnp.stack([lp["w2"] for lp in params["layers"]]),
        "vecs": jnp.stack(vec_slabs),
    }


# ------------------------------ pure-JAX reference ---------------------------
def reference_forward(pixel_values, params):
    patches = patchify(pixel_values)[:, 1:, :]                 # drop zero CLS row
    tok = patches @ params["conv_w"]
    cls = jnp.broadcast_to(params["cls"], (B, 1, D))
    x = jnp.concatenate([cls, tok], axis=1) + params["pos"][None]
    x = _ln(x, params["ln_pre_g"], params["ln_pre_b"])
    for lp in params["layers"]:
        xn = _ln(x, lp["g1"], lp["b1"])
        qkv = xn @ lp["wqkv"] + lp["bqkv"]
        q, k, v = jnp.split(qkv, 3, axis=-1)

        def split_heads(t):
            return t.reshape(B, L, HEADS, HD).transpose(0, 2, 1, 3)
        q, k, v = split_heads(q), split_heads(k), split_heads(v)
        s = jnp.einsum("bhqd,bhkd->bhqk", q, k) * (HD ** -0.5)
        p = jax.nn.softmax(s, axis=-1)
        o = jnp.einsum("bhqk,bhkd->bhqd", p, v).transpose(0, 2, 1, 3).reshape(B, L, D)
        x = x + o @ lp["wo"] + lp["bo"]
        xn2 = _ln(x, lp["g2"], lp["b2"])
        h = xn2 @ lp["w1"] + lp["bb1"]
        h = h * jax.nn.sigmoid(1.702 * h)
        x = x + h @ lp["w2"] + lp["bb2"]
    cls_t = x[:, 0, :]
    return _ln(cls_t, params["ln_post_g"], params["ln_post_b"]) @ params["proj"]


# ------------------------------- param init ----------------------------------
def init_params(key):
    keys = iter(jax.random.split(key, 16 + 8 * LAYERS))
    nrm = lambda shape, s=0.05: (s * jax.random.normal(next(keys), shape)).astype(jnp.float32)
    params = {
        "conv_w": nrm((CPP, D)),               # Conv2d(C, D, P, stride=P, bias=False)
        "cls": nrm((D,)),                      # class_embedding
        "pos": nrm((L, D)),                    # positional_embedding
        "ln_pre_g": jnp.ones((1, D), jnp.float32),
        "ln_pre_b": jnp.zeros((1, D), jnp.float32),
        "ln_post_g": jnp.ones((1, D), jnp.float32),
        "ln_post_b": jnp.zeros((1, D), jnp.float32),
        "proj": nrm((D, OUT)),                 # visual.proj
        "layers": [],
    }
    for _ in range(LAYERS):
        params["layers"].append({
            "wqkv": nrm((D, 3 * D)), "bqkv": nrm((1, 3 * D)),
            "wo": nrm((D, D)), "bo": nrm((1, D)),
            "g1": jnp.ones((1, D), jnp.float32), "b1": jnp.zeros((1, D), jnp.float32),
            "g2": jnp.ones((1, D), jnp.float32), "b2": jnp.zeros((1, D), jnp.float32),
            "w1": nrm((D, MLP)), "bb1": nrm((1, MLP)),
            "w2": nrm((MLP, D)), "bb2": nrm((1, D)),
        })
    return params


# TODO(synk): the PyTorch module only toggles requires_grad on a pre-trained
# CLIP model; gradient-freezing has no kernel-side equivalent, so only the
# forward (encode_image) path is implemented here.

if __name__ == "__main__":
    key = jax.random.PRNGKey(0)
    k_params, k_pix = jax.random.split(key)
    params = init_params(k_params)
    pixel_values = jax.random.normal(k_pix, (B, C, IMG, IMG), dtype=jnp.float32)

    packed = pack_params(params)                 # one-time packing (hoisted)
    out = fungi_embedder_forward(pixel_values, packed)
    out = jax.block_until_ready(out)

    ref = reference_forward(pixel_values, params)
    assert out.shape == (B, OUT), out.shape
    # Tolerance covers XLA's default-precision matmuls in the pure-JAX
    # reference plus the (exact) bias/scale-folding reassociations.
    np.testing.assert_allclose(np.asarray(out), np.asarray(ref), rtol=2e-3, atol=2e-3)

    print("KERNEL_OK")
</pallas_src>

<mosaic_0001>
module attributes {stable_mosaic.version = 11 : i64} {
  func.func @fused_kernel(%arg0: i32, %arg1: memref<1x5x192xf32, #tpu.memory_space<vmem>>, %arg2: memref<240x32xf32, #tpu.memory_space<vmem>>, %arg3: memref<3x12x32x8xf32, #tpu.memory_space<vmem>>, %arg4: memref<3x4x1x8xf32, #tpu.memory_space<vmem>>, %arg5: memref<3x4x8x32xf32, #tpu.memory_space<vmem>>, %arg6: memref<3x32x128xf32, #tpu.memory_space<vmem>>, %arg7: memref<3x128x32xf32, #tpu.memory_space<vmem>>, %arg8: memref<3x8x128xf32, #tpu.memory_space<vmem>>, %arg9: memref<1x1x32xf32, #tpu.memory_space<vmem>>) attributes {dimension_semantics = [#tpu.dimension_semantics<parallel>], iteration_bounds = array<i64: 2>, scalar_prefetch = 0 : i64, scratch_operands = 0 : i64, tpu.core_type = #tpu.core_type<tc>, window_params = [{transform_indices = @transform_0, window_bounds = array<i64: 1, 5, 192>}, {pipeline_mode = #tpu.pipeline_mode<synchronous>, transform_indices = @transform_1, window_bounds = array<i64: 240, 32>}, {pipeline_mode = #tpu.pipeline_mode<synchronous>, transform_indices = @transform_2, window_bounds = array<i64: 3, 12, 32, 8>}, {pipeline_mode = #tpu.pipeline_mode<synchronous>, transform_indices = @transform_3, window_bounds = array<i64: 3, 4, 1, 8>}, {pipeline_mode = #tpu.pipeline_mode<synchronous>, transform_indices = @transform_4, window_bounds = array<i64: 3, 4, 8, 32>}, {pipeline_mode = #tpu.pipeline_mode<synchronous>, transform_indices = @transform_5, window_bounds = array<i64: 3, 32, 128>}, {pipeline_mode = #tpu.pipeline_mode<synchronous>, transform_indices = @transform_6, window_bounds = array<i64: 3, 128, 32>}, {pipeline_mode = #tpu.pipeline_mode<synchronous>, transform_indices = @transform_7, window_bounds = array<i64: 3, 8, 128>}, {transform_indices = @transform_8, window_bounds = array<i64: 1, 1, 32>}]} {
    %c0 = arith.constant 0 : index
    %c0_0 = arith.constant 0 : index
    %0 = vector.load %arg2[%c0, %c0_0] : memref<240x32xf32, #tpu.memory_space<vmem>>, vector<192x32xf32>
    %c192 = arith.constant 192 : index
    %c0_1 = arith.constant 0 : index
    %1 = vector.load %arg2[%c192, %c0_1] : memref<240x32xf32, #tpu.memory_space<vmem>>, vector<5x32xf32>
    %c200 = arith.constant 200 : index
    %c0_2 = arith.constant 0 : index
    %2 = vector.load %arg2[%c200, %c0_2] : memref<240x32xf32, #tpu.memory_space<vmem>>, vector<1x32xf32>
    %c201 = arith.constant 201 : index
    %c0_3 = arith.constant 0 : index
    %3 = vector.load %arg2[%c201, %c0_3] : memref<240x32xf32, #tpu.memory_space<vmem>>, vector<1x32xf32>
    %c202 = arith.constant 202 : index
    %c0_4 = arith.constant 0 : index
    %4 = vector.load %arg2[%c202, %c0_4] : memref<240x32xf32, #tpu.memory_space<vmem>>, vector<1x32xf32>
    %c203 = arith.constant 203 : index
    %c0_5 = arith.constant 0 : index
    %5 = vector.load %arg2[%c203, %c0_5] : memref<240x32xf32, #tpu.memory_space<vmem>>, vector<1x32xf32>
    %c208 = arith.constant 208 : index
    %c0_6 = arith.constant 0 : index
    %6 = vector.load %arg2[%c208, %c0_6] : memref<240x32xf32, #tpu.memory_space<vmem>>, vector<32x32xf32>
    %c0_7 = arith.constant 0 : index
    %c0_8 = arith.constant 0 : index
    %c0_9 = arith.constant 0 : index
    %7 = vector.load %arg1[%c0_7, %c0_8, %c0_9] : memref<1x5x192xf32, #tpu.memory_space<vmem>>, vector<1x5x192xf32>
    %8 = vector.shape_cast %7 : vector<1x5x192xf32> to vector<5x192xf32>
    %cst = arith.constant dense<0.000000e+00> : vector<5x32xf32>
    %9 = tpu.matmul %8, %0, %cst {dimension_numbers = #tpu.dot_dimension_numbers<[1], [0], [0], [1], [0, 0, 1, 1], [], []>} : vector<5x192xf32>, vector<192x32xf32>, vector<5x32xf32> -> vector<5x32xf32>
    %10 = arith.addf %9, %1 : vector<5x32xf32>
    %cst_10 = arith.constant dense<0.000000e+00> : vector<5xf32>
    %11 = vector.multi_reduction <add>, %10, %cst_10 [1] : vector<5x32xf32> to vector<5xf32>
    %12 = vector.shape_cast %11 : vector<5xf32> to vector<5x1xf32>
    %cst_11 = arith.constant 3.200000e+01 : f32
    %13 = vector.broadcast %cst_11 : f32 to vector<5x1xf32>
    %14 = arith.divf %12, %13 : vector<5x1xf32>
    %15 = vector.broadcast %14 : vector<5x1xf32> to vector<5x32xf32>
    %16 = arith.subf %10, %15 : vector<5x32xf32>
    %17 = arith.mulf %16, %16 : vector<5x32xf32>
    %cst_12 = arith.constant dense<0.000000e+00> : vector<5xf32>
    %18 = vector.multi_reduction <add>, %17, %cst_12 [1] : vector<5x32xf32> to vector<5xf32>
    %19 = vector.shape_cast %18 : vector<5xf32> to vector<5x1xf32>
    %cst_13 = arith.constant 3.200000e+01 : f32
    %20 = vector.broadcast %cst_13 : f32 to vector<5x1xf32>
    %21 = arith.divf %19, %20 : vector<5x1xf32>
    %22 = vector.broadcast %14 : vector<5x1xf32> to vector<5x32xf32>
    %23 = arith.subf %10, %22 : vector<5x32xf32>
    %cst_14 = arith.constant 9.99999974E-6 : f32
    %24 = vector.broadcast %cst_14 : f32 to vector<5x1xf32>
    %25 = arith.addf %21, %24 : vector<5x1xf32>
    %26 = math.rsqrt %25 : vector<5x1xf32>
    %27 = vector.broadcast %26 : vector<5x1xf32> to vector<5x32xf32>
    %28 = arith.mulf %23, %27 : vector<5x32xf32>
    %29 = vector.broadcast %2 : vector<1x32xf32> to vector<5x32xf32>
    %30 = arith.mulf %28, %29 : vector<5x32xf32>
    %31 = vector.broadcast %3 : vector<1x32xf32> to vector<5x32xf32>
    %32 = arith.addf %30, %31 : vector<5x32xf32>
    %c0_15 = arith.constant 0 : index
    %c0_16 = arith.constant 0 : index
    %c0_17 = arith.constant 0 : index
    %c0_18 = arith.constant 0 : index
    %33 = vector.load %arg3[%c0_15, %c0_16, %c0_17, %c0_18] : memref<3x12x32x8xf32, #tpu.memory_space<vmem>>, vector<1x12x32x8xf32>
    %34 = vector.shape_cast %33 : vector<1x12x32x8xf32> to vector<12x32x8xf32>
    %35 = vector.extract_strided_slice %34 {offsets = [0, 0, 0], sizes = [4, 32, 8], strides = [1, 1, 1]} : vector<12x32x8xf32> to vector<4x32x8xf32>
    %36 = vector.extract_strided_slice %34 {offsets = [4, 0, 0], sizes = [4, 32, 8], strides = [1, 1, 1]} : vector<12x32x8xf32> to vector<4x32x8xf32>
    %37 = vector.extract_strided_slice %34 {offsets = [8, 0, 0], sizes = [4, 32, 8], strides = [1, 1, 1]} : vector<12x32x8xf32> to vector<4x32x8xf32>
    %c0_19 = arith.constant 0 : index
    %c0_20 = arith.constant 0 : index
    %c0_21 = arith.constant 0 : index
    %c0_22 = arith.constant 0 : index
    %38 = vector.load %arg4[%c0_19, %c0_20, %c0_21, %c0_22] : memref<3x4x1x8xf32, #tpu.memory_space<vmem>>, vector<1x4x1x8xf32>
    %39 = vector.shape_cast %38 : vector<1x4x1x8xf32> to vector<4x1x8xf32>
    %c0_23 = arith.constant 0 : index
    %c0_24 = arith.constant 0 : index
    %c0_25 = arith.constant 0 : index
    %c0_26 = arith.constant 0 : index
    %40 = vector.load %arg5[%c0_23, %c0_24, %c0_25, %c0_26] : memref<3x4x8x32xf32, #tpu.memory_space<vmem>>, vector<1x4x8x32xf32>
    %41 = vector.shape_cast %40 : vector<1x4x8x32xf32> to vector<4x8x32xf32>
    %c0_27 = arith.constant 0 : index
    %c0_28 = arith.constant 0 : index
    %c0_29 = arith.constant 0 : index
    %42 = vector.load %arg6[%c0_27, %c0_28, %c0_29] : memref<3x32x128xf32, #tpu.memory_space<vmem>>, vector<1x32x128xf32>
    %43 = vector.shape_cast %42 : vector<1x32x128xf32> to vector<32x128xf32>
    %c0_30 = arith.constant 0 : index
    %c0_31 = arith.constant 0 : index
    %c0_32 = arith.constant 0 : index
    %44 = vector.load %arg7[%c0_30, %c0_31, %c0_32] : memref<3x128x32xf32, #tpu.memory_space<vmem>>, vector<1x128x32xf32>
    %45 = vector.shape_cast %44 : vector<1x128x32xf32> to vector<128x32xf32>
    %c0_33 = arith.constant 0 : index
    %c0_34 = arith.constant 0 : index
    %c0_35 = arith.constant 0 : index
    %46 = vector.load %arg8[%c0_33, %c0_34, %c0_35] : memref<3x8x128xf32, #tpu.memory_space<vmem>>, vector<1x8x128xf32>
    %47 = vector.shape_cast %46 : vector<1x8x128xf32> to vector<8x128xf32>
    %48 = vector.extract_strided_slice %47 {offsets = [0, 0], sizes = [1, 32], strides = [1, 1]} : vector<8x128xf32> to vector<1x32xf32>
    %49 = vector.extract_strided_slice %47 {offsets = [1, 0], sizes = [1, 32], strides = [1, 1]} : vector<8x128xf32> to vector<1x32xf32>
    %50 = vector.extract_strided_slice %47 {offsets = [2, 0], sizes = [1, 32], strides = [1, 1]} : vector<8x128xf32> to vector<1x32xf32>
    %51 = vector.extract_strided_slice %47 {offsets = [3, 0], sizes = [1, 32], strides = [1, 1]} : vector<8x128xf32> to vector<1x32xf32>
    %52 = vector.extract_strided_slice %47 {offsets = [4, 0], sizes = [1, 32], strides = [1, 1]} : vector<8x128xf32> to vector<1x32xf32>
    %53 = vector.extract_strided_slice %47 {offsets = [5, 0], sizes = [1, 32], strides = [1, 1]} : vector<8x128xf32> to vector<1x32xf32>
    %54 = vector.extract_strided_slice %47 {offsets = [6, 0], sizes = [1, 128], strides = [1, 1]} : vector<8x128xf32> to vector<1x128xf32>
    %cst_36 = arith.constant dense<0.000000e+00> : vector<5xf32>
    %55 = vector.multi_reduction <add>, %32, %cst_36 [1] : vector<5x32xf32> to vector<5xf32>
    %56 = vector.shape_cast %55 : vector<5xf32> to vector<5x1xf32>
    %cst_37 = arith.constant 3.200000e+01 : f32
    %57 = vector.broadcast %cst_37 : f32 to vector<5x1xf32>
    %58 = arith.divf %56, %57 : vector<5x1xf32>
    %59 = vector.broadcast %58 : vector<5x1xf32> to vector<5x32xf32>
    %60 = arith.subf %32, %59 : vector<5x32xf32>
    %61 = arith.mulf %60, %60 : vector<5x32xf32>
    %cst_38 = arith.constant dense<0.000000e+00> : vector<5xf32>
    %62 = vector.multi_reduction <add>, %61, %cst_38 [1] : vector<5x32xf32> to vector<5xf32>
    %63 = vector.shape_cast %62 : vector<5xf32> to vector<5x1xf32>
    %cst_39 = arith.constant 3.200000e+01 : f32
    %64 = vector.broadcast %cst_39 : f32 to vector<5x1xf32>
    %65 = arith.divf %63, %64 : vector<5x1xf32>
    %66 = vector.broadcast %58 : vector<5x1xf32> to vector<5x32xf32>
    %67 = arith.subf %32, %66 : vector<5x32xf32>
    %cst_40 = arith.constant 9.99999974E-6 : f32
    %68 = vector.broadcast %cst_40 : f32 to vector<5x1xf32>
    %69 = arith.addf %65, %68 : vector<5x1xf32>
    %70 = math.rsqrt %69 : vector<5x1xf32>
    %71 = vector.broadcast %70 : vector<5x1xf32> to vector<5x32xf32>
    %72 = arith.mulf %67, %71 : vector<5x32xf32>
    %73 = vector.broadcast %48 : vector<1x32xf32> to vector<5x32xf32>
    %74 = arith.mulf %72, %73 : vector<5x32xf32>
    %75 = vector.broadcast %49 : vector<1x32xf32> to vector<5x32xf32>
    %76 = arith.addf %74, %75 : vector<5x32xf32>
    %77 = vector.shape_cast %76 : vector<5x32xf32> to vector<1x5x32xf32>
    %78 = vector.shape_cast %77 : vector<1x5x32xf32> to vector<1x5x32xf32>
    %79 = vector.broadcast %78 : vector<1x5x32xf32> to vector<4x5x32xf32>
    "tpu.trace_start"() <{level = 10 : i32, message = "hld,hde->hle"}> : () -> ()
    %cst_41 = arith.constant dense<0.000000e+00> : vector<4x5x8xf32>
    %80 = tpu.matmul %79, %35, %cst_41 {dimension_numbers = #tpu.dot_dimension_numbers<[2], [1], [1], [2], [0, 0, 0, 1, 1, 2], [0], [0]>} : vector<4x5x32xf32>, vector<4x32x8xf32>, vector<4x5x8xf32> -> vector<4x5x8xf32>
    "tpu.trace_stop"() : () -> ()
    %81 = vector.broadcast %39 : vector<4x1x8xf32> to vector<4x5x8xf32>
    %82 = arith.addf %80, %81 : vector<4x5x8xf32>
    "tpu.trace_start"() <{level = 10 : i32, message = "hld,hde->hle"}> : () -> ()
    %cst_42 = arith.constant dense<0.000000e+00> : vector<4x5x8xf32>
    %83 = tpu.matmul %79, %36, %cst_42 {dimension_numbers = #tpu.dot_dimension_numbers<[2], [1], [1], [2], [0, 0, 0, 1, 1, 2], [0], [0]>} : vector<4x5x32xf32>, vector<4x32x8xf32>, vector<4x5x8xf32> -> vector<4x5x8xf32>
    %cst_43 = arith.constant dense<0.000000e+00> : vector<4x5x8xf32>
    %84 = tpu.matmul %79, %37, %cst_43 {dimension_numbers = #tpu.dot_dimension_numbers<[2], [1], [1], [2], [0, 0, 0, 1, 1, 2], [0], [0]>} : vector<4x5x32xf32>, vector<4x32x8xf32>, vector<4x5x8xf32> -> vector<4x5x8xf32>
    "tpu.trace_stop"() : () -> ()
    "tpu.trace_start"() <{level = 10 : i32, message = "hqe,hke->hqk"}> : () -> ()
    %cst_44 = arith.constant dense<0.000000e+00> : vector<4x5x5xf32>
    %85 = tpu.matmul %82, %83, %cst_44 {dimension_numbers = #tpu.dot_dimension_numbers<[2], [2], [1], [1], [0, 0, 0, 1, 1, 1], [0], [0]>} : vector<4x5x8xf32>, vector<4x5x8xf32>, vector<4x5x5xf32> -> vector<4x5x5xf32>
    "tpu.trace_stop"() : () -> ()
    %cst_45 = arith.constant dense<0xFF800000> : vector<4x5xf32>
    %86 = vector.multi_reduction <maximumf>, %85, %cst_45 [2] : vector<4x5x5xf32> to vector<4x5xf32>
    %87 = vector.shape_cast %86 : vector<4x5xf32> to vector<4x5x1xf32>
    %88 = vector.broadcast %87 : vector<4x5x1xf32> to vector<4x5x5xf32>
    %89 = arith.subf %85, %88 : vector<4x5x5xf32>
    %90 = math.exp %89 : vector<4x5x5xf32>
    %cst_46 = arith.constant dense<0.000000e+00> : vector<4x5xf32>
    %91 = vector.multi_reduction <add>, %90, %cst_46 [2] : vector<4x5x5xf32> to vector<4x5xf32>
    %92 = vector.shape_cast %91 : vector<4x5xf32> to vector<4x5x1xf32>
    %93 = tpu.reciprocal %92 : vector<4x5x1xf32> -> vector<4x5x1xf32>
    %94 = vector.broadcast %93 : vector<4x5x1xf32> to vector<4x5x5xf32>
    %95 = arith.mulf %90, %94 : vector<4x5x5xf32>
    "tpu.trace_start"() <{level = 10 : i32, message = "hqk,hke->hqe"}> : () -> ()
    %cst_47 = arith.constant dense<0.000000e+00> : vector<4x5x8xf32>
    %96 = tpu.matmul %95, %84, %cst_47 {dimension_numbers = #tpu.dot_dimension_numbers<[2], [1], [1], [2], [0, 0, 0, 1, 1, 2], [0], [0]>} : vector<4x5x5xf32>, vector<4x5x8xf32>, vector<4x5x8xf32> -> vector<4x5x8xf32>
    "tpu.trace_stop"() : () -> ()
    "tpu.trace_start"() <{level = 10 : i32, message = "hqe,hed->hqd"}> : () -> ()
    %cst_48 = arith.constant dense<0.000000e+00> : vector<4x5x32xf32>
    %97 = tpu.matmul %96, %41, %cst_48 {dimension_numbers = #tpu.dot_dimension_numbers<[2], [1], [1], [2], [0, 0, 0, 1, 1, 2], [0], [0]>} : vector<4x5x8xf32>, vector<4x8x32xf32>, vector<4x5x32xf32> -> vector<4x5x32xf32>
    "tpu.trace_stop"() : () -> ()
    %cst_49 = arith.constant dense<0.000000e+00> : vector<5x32xf32>
    %98 = vector.multi_reduction <add>, %97, %cst_49 [0] : vector<4x5x32xf32> to vector<5x32xf32>
    %99 = arith.addf %32, %98 : vector<5x32xf32>
    %100 = vector.broadcast %52 : vector<1x32xf32> to vector<5x32xf32>
    %101 = arith.addf %99, %100 : vector<5x32xf32>
    %cst_50 = arith.constant dense<0.000000e+00> : vector<5xf32>
    %102 = vector.multi_reduction <add>, %101, %cst_50 [1] : vector<5x32xf32> to vector<5xf32>
    %103 = vector.shape_cast %102 : vector<5xf32> to vector<5x1xf32>
    %cst_51 = arith.constant 3.200000e+01 : f32
    %104 = vector.broadcast %cst_51 : f32 to vector<5x1xf32>
    %105 = arith.divf %103, %104 : vector<5x1xf32>
    %106 = vector.broadcast %105 : vector<5x1xf32> to vector<5x32xf32>
    %107 = arith.subf %101, %106 : vector<5x32xf32>
    %108 = arith.mulf %107, %107 : vector<5x32xf32>
    %cst_52 = arith.constant dense<0.000000e+00> : vector<5xf32>
    %109 = vector.multi_reduction <add>, %108, %cst_52 [1] : vector<5x32xf32> to vector<5xf32>
    %110 = vector.shape_cast %109 : vector<5xf32> to vector<5x1xf32>
    %cst_53 = arith.constant 3.200000e+01 : f32
    %111 = vector.broadcast %cst_53 : f32 to vector<5x1xf32>
    %112 = arith.divf %110, %111 : vector<5x1xf32>
    %113 = vector.broadcast %105 : vector<5x1xf32> to vector<5x32xf32>
    %114 = arith.subf %101, %113 : vector<5x32xf32>
    %cst_54 = arith.constant 9.99999974E-6 : f32
    %115 = vector.broadcast %cst_54 : f32 to vector<5x1xf32>
    %116 = arith.addf %112, %115 : vector<5x1xf32>
    %117 = math.rsqrt %116 : vector<5x1xf32>
    %118 = vector.broadcast %117 : vector<5x1xf32> to vector<5x32xf32>
    %119 = arith.mulf %114, %118 : vector<5x32xf32>
    %120 = vector.broadcast %50 : vector<1x32xf32> to vector<5x32xf32>
    %121 = arith.mulf %119, %120 : vector<5x32xf32>
    %122 = vector.broadcast %51 : vector<1x32xf32> to vector<5x32xf32>
    %123 = arith.addf %121, %122 : vector<5x32xf32>
    %cst_55 = arith.constant dense<0.000000e+00> : vector<5x128xf32>
    %124 = tpu.matmul %123, %43, %cst_55 {dimension_numbers = #tpu.dot_dimension_numbers<[1], [0], [0], [1], [0, 0, 1, 1], [], []>} : vector<5x32xf32>, vector<32x128xf32>, vector<5x128xf32> -> vector<5x128xf32>
    %125 = vector.broadcast %54 : vector<1x128xf32> to vector<5x128xf32>
    %126 = arith.addf %124, %125 : vector<5x128xf32>
    %cst_56 = arith.constant 1.702000e+00 : f32
    %127 = vector.broadcast %cst_56 : f32 to vector<5x128xf32>
    %128 = arith.mulf %127, %126 : vector<5x128xf32>
    %129 = arith.negf %128 : vector<5x128xf32>
    %130 = math.exp %129 : vector<5x128xf32>
    %cst_57 = arith.constant 1.000000e+00 : f32
    %131 = vector.broadcast %cst_57 : f32 to vector<5x128xf32>
    %132 = arith.addf %131, %130 : vector<5x128xf32>
    %133 = arith.divf %131, %132 : vector<5x128xf32>
    %134 = arith.mulf %126, %133 : vector<5x128xf32>
    %cst_58 = arith.constant dense<0.000000e+00> : vector<5x32xf32>
    %135 = tpu.matmul %134, %45, %cst_58 {dimension_numbers = #tpu.dot_dimension_numbers<[1], [0], [0], [1], [0, 0, 1, 1], [], []>} : vector<5x128xf32>, vector<128x32xf32>, vector<5x32xf32> -> vector<5x32xf32>
    %136 = arith.addf %101, %135 : vector<5x32xf32>
    %137 = vector.broadcast %53 : vector<1x32xf32> to vector<5x32xf32>
    %138 = arith.addf %136, %137 : vector<5x32xf32>
    %c1 = arith.constant 1 : index
    %c0_59 = arith.constant 0 : index
    %c0_60 = arith.constant 0 : index
    %c0_61 = arith.constant 0 : index
    %139 = vector.load %arg3[%c1, %c0_59, %c0_60, %c0_61] : memref<3x12x32x8xf32, #tpu.memory_space<vmem>>, vector<1x12x32x8xf32>
    %140 = vector.shape_cast %139 : vector<1x12x32x8xf32> to vector<12x32x8xf32>
    %141 = vector.extract_strided_slice %140 {offsets = [0, 0, 0], sizes = [4, 32, 8], strides = [1, 1, 1]} : vector<12x32x8xf32> to vector<4x32x8xf32>
    %142 = vector.extract_strided_slice %140 {offsets = [4, 0, 0], sizes = [4, 32, 8], strides = [1, 1, 1]} : vector<12x32x8xf32> to vector<4x32x8xf32>
    %143 = vector.extract_strided_slice %140 {offsets = [8, 0, 0], sizes = [4, 32, 8], strides = [1, 1, 1]} : vector<12x32x8xf32> to vector<4x32x8xf32>
    %c1_62 = arith.constant 1 : index
    %c0_63 = arith.constant 0 : index
    %c0_64 = arith.constant 0 : index
    %c0_65 = arith.constant 0 : index
    %144 = vector.load %arg4[%c1_62, %c0_63, %c0_64, %c0_65] : memref<3x4x1x8xf32, #tpu.memory_space<vmem>>, vector<1x4x1x8xf32>
    %145 = vector.shape_cast %144 : vector<1x4x1x8xf32> to vector<4x1x8xf32>
    %c1_66 = arith.constant 1 : index
    %c0_67 = arith.constant 0 : index
    %c0_68 = arith.constant 0 : index
    %c0_69 = arith.constant 0 : index
    %146 = vector.load %arg5[%c1_66, %c0_67, %c0_68, %c0_69] : memref<3x4x8x32xf32, #tpu.memory_space<vmem>>, vector<1x4x8x32xf32>
    %147 = vector.shape_cast %146 : vector<1x4x8x32xf32> to vector<4x8x32xf32>
    %c1_70 = arith.constant 1 : index
    %c0_71 = arith.constant 0 : index
    %c0_72 = arith.constant 0 : index
    %148 = vector.load %arg6[%c1_70, %c0_71, %c0_72] : memref<3x32x128xf32, #tpu.memory_space<vmem>>, vector<1x32x128xf32>
    %149 = vector.shape_cast %148 : vector<1x32x128xf32> to vector<32x128xf32>
    %c1_73 = arith.constant 1 : index
    %c0_74 = arith.constant 0 : index
    %c0_75 = arith.constant 0 : index
    %150 = vector.load %arg7[%c1_73, %c0_74, %c0_75] : memref<3x128x32xf32, #tpu.memory_space<vmem>>, vector<1x128x32xf32>
    %151 = vector.shape_cast %150 : vector<1x128x32xf32> to vector<128x32xf32>
    %c1_76 = arith.constant 1 : index
    %c0_77 = arith.constant 0 : index
    %c0_78 = arith.constant 0 : index
    %152 = vector.load %arg8[%c1_76, %c0_77, %c0_78] : memref<3x8x128xf32, #tpu.memory_space<vmem>>, vector<1x8x128xf32>
    %153 = vector.shape_cast %152 : vector<1x8x128xf32> to vector<8x128xf32>
    %154 = vector.extract_strided_slice %153 {offsets = [0, 0], sizes = [1, 32], strides = [1, 1]} : vector<8x128xf32> to vector<1x32xf32>
    %155 = vector.extract_strided_slice %153 {offsets = [1, 0], sizes = [1, 32], strides = [1, 1]} : vector<8x128xf32> to vector<1x32xf32>
    %156 = vector.extract_strided_slice %153 {offsets = [2, 0], sizes = [1, 32], strides = [1, 1]} : vector<8x128xf32> to vector<1x32xf32>
    %157 = vector.extract_strided_slice %153 {offsets = [3, 0], sizes = [1, 32], strides = [1, 1]} : vector<8x128xf32> to vector<1x32xf32>
    %158 = vector.extract_strided_slice %153 {offsets = [4, 0], sizes = [1, 32], strides = [1, 1]} : vector<8x128xf32> to vector<1x32xf32>
    %159 = vector.extract_strided_slice %153 {offsets = [5, 0], sizes = [1, 32], strides = [1, 1]} : vector<8x128xf32> to vector<1x32xf32>
    %160 = vector.extract_strided_slice %153 {offsets = [6, 0], sizes = [1, 128], strides = [1, 1]} : vector<8x128xf32> to vector<1x128xf32>
    %cst_79 = arith.constant dense<0.000000e+00> : vector<5xf32>
    %161 = vector.multi_reduction <add>, %138, %cst_79 [1] : vector<5x32xf32> to vector<5xf32>
    %162 = vector.shape_cast %161 : vector<5xf32> to vector<5x1xf32>
    %cst_80 = arith.constant 3.200000e+01 : f32
    %163 = vector.broadcast %cst_80 : f32 to vector<5x1xf32>
    %164 = arith.divf %162, %163 : vector<5x1xf32>
    %165 = vector.broadcast %164 : vector<5x1xf32> to vector<5x32xf32>
    %166 = arith.subf %138, %165 : vector<5x32xf32>
    %167 = arith.mulf %166, %166 : vector<5x32xf32>
    %cst_81 = arith.constant dense<0.000000e+00> : vector<5xf32>
    %168 = vector.multi_reduction <add>, %167, %cst_81 [1] : vector<5x32xf32> to vector<5xf32>
    %169 = vector.shape_cast %168 : vector<5xf32> to vector<5x1xf32>
    %cst_82 = arith.constant 3.200000e+01 : f32
    %170 = vector.broadcast %cst_82 : f32 to vector<5x1xf32>
    %171 = arith.divf %169, %170 : vector<5x1xf32>
    %172 = vector.broadcast %164 : vector<5x1xf32> to vector<5x32xf32>
    %173 = arith.subf %138, %172 : vector<5x32xf32>
    %cst_83 = arith.constant 9.99999974E-6 : f32
    %174 = vector.broadcast %cst_83 : f32 to vector<5x1xf32>
    %175 = arith.addf %171, %174 : vector<5x1xf32>
    %176 = math.rsqrt %175 : vector<5x1xf32>
    %177 = vector.broadcast %176 : vector<5x1xf32> to vector<5x32xf32>
    %178 = arith.mulf %173, %177 : vector<5x32xf32>
    %179 = vector.broadcast %154 : vector<1x32xf32> to vector<5x32xf32>
    %180 = arith.mulf %178, %179 : vector<5x32xf32>
    %181 = vector.broadcast %155 : vector<1x32xf32> to vector<5x32xf32>
    %182 = arith.addf %180, %181 : vector<5x32xf32>
    %183 = vector.shape_cast %182 : vector<5x32xf32> to vector<1x5x32xf32>
    %184 = vector.shape_cast %183 : vector<1x5x32xf32> to vector<1x5x32xf32>
    %185 = vector.broadcast %184 : vector<1x5x32xf32> to vector<4x5x32xf32>
    "tpu.trace_start"() <{level = 10 : i32, message = "hld,hde->hle"}> : () -> ()
    %cst_84 = arith.constant dense<0.000000e+00> : vector<4x5x8xf32>
    %186 = tpu.matmul %185, %141, %cst_84 {dimension_numbers = #tpu.dot_dimension_numbers<[2], [1], [1], [2], [0, 0, 0, 1, 1, 2], [0], [0]>} : vector<4x5x32xf32>, vector<4x32x8xf32>, vector<4x5x8xf32> -> vector<4x5x8xf32>
    "tpu.trace_stop"() : () -> ()
    %187 = vector.broadcast %145 : vector<4x1x8xf32> to vector<4x5x8xf32>
    %188 = arith.addf %186, %187 : vector<4x5x8xf32>
    "tpu.trace_start"() <{level = 10 : i32, message = "hld,hde->hle"}> : () -> ()
    %cst_85 = arith.constant dense<0.000000e+00> : vector<4x5x8xf32>
    %189 = tpu.matmul %185, %142, %cst_85 {dimension_numbers = #tpu.dot_dimension_numbers<[2], [1], [1], [2], [0, 0, 0, 1, 1, 2], [0], [0]>} : vector<4x5x32xf32>, vector<4x32x8xf32>, vector<4x5x8xf32> -> vector<4x5x8xf32>
    %cst_86 = arith.constant dense<0.000000e+00> : vector<4x5x8xf32>
    %190 = tpu.matmul %185, %143, %cst_86 {dimension_numbers = #tpu.dot_dimension_numbers<[2], [1], [1], [2], [0, 0, 0, 1, 1, 2], [0], [0]>} : vector<4x5x32xf32>, vector<4x32x8xf32>, vector<4x5x8xf32> -> vector<4x5x8xf32>
    "tpu.trace_stop"() : () -> ()
    "tpu.trace_start"() <{level = 10 : i32, message = "hqe,hke->hqk"}> : () -> ()
    %cst_87 = arith.constant dense<0.000000e+00> : vector<4x5x5xf32>
    %191 = tpu.matmul %188, %189, %cst_87 {dimension_numbers = #tpu.dot_dimension_numbers<[2], [2], [1], [1], [0, 0, 0, 1, 1, 1], [0], [0]>} : vector<4x5x8xf32>, vector<4x5x8xf32>, vector<4x5x5xf32> -> vector<4x5x5xf32>
    "tpu.trace_stop"() : () -> ()
    %cst_88 = arith.constant dense<0xFF800000> : vector<4x5xf32>
    %192 = vector.multi_reduction <maximumf>, %191, %cst_88 [2] : vector<4x5x5xf32> to vector<4x5xf32>
    %193 = vector.shape_cast %192 : vector<4x5xf32> to vector<4x5x1xf32>
    %194 = vector.broadcast %193 : vector<4x5x1xf32> to vector<4x5x5xf32>
    %195 = arith.subf %191, %194 : vector<4x5x5xf32>
    %196 = math.exp %195 : vector<4x5x5xf32>
    %cst_89 = arith.constant dense<0.000000e+00> : vector<4x5xf32>
    %197 = vector.multi_reduction <add>, %196, %cst_89 [2] : vector<4x5x5xf32> to vector<4x5xf32>
    %198 = vector.shape_cast %197 : vector<4x5xf32> to vector<4x5x1xf32>
    %199 = tpu.reciprocal %198 : vector<4x5x1xf32> -> vector<4x5x1xf32>
    %200 = vector.broadcast %199 : vector<4x5x1xf32> to vector<4x5x5xf32>
    %201 = arith.mulf %196, %200 : vector<4x5x5xf32>
    "tpu.trace_start"() <{level = 10 : i32, message = "hqk,hke->hqe"}> : () -> ()
    %cst_90 = arith.constant dense<0.000000e+00> : vector<4x5x8xf32>
    %202 = tpu.matmul %201, %190, %cst_90 {dimension_numbers = #tpu.dot_dimension_numbers<[2], [1], [1], [2], [0, 0, 0, 1, 1, 2], [0], [0]>} : vector<4x5x5xf32>, vector<4x5x8xf32>, vector<4x5x8xf32> -> vector<4x5x8xf32>
    "tpu.trace_stop"() : () -> ()
    "tpu.trace_start"() <{level = 10 : i32, message = "hqe,hed->hqd"}> : () -> ()
    %cst_91 = arith.constant dense<0.000000e+00> : vector<4x5x32xf32>
    %203 = tpu.matmul %202, %147, %cst_91 {dimension_numbers = #tpu.dot_dimension_numbers<[2], [1], [1], [2], [0, 0, 0, 1, 1, 2], [0], [0]>} : vector<4x5x8xf32>, vector<4x8x32xf32>, vector<4x5x32xf32> -> vector<4x5x32xf32>
    "tpu.trace_stop"() : () -> ()
    %cst_92 = arith.constant dense<0.000000e+00> : vector<5x32xf32>
    %204 = vector.multi_reduction <add>, %203, %cst_92 [0] : vector<4x5x32xf32> to vector<5x32xf32>
    %205 = arith.addf %138, %204 : vector<5x32xf32>
    %206 = vector.broadcast %158 : vector<1x32xf32> to vector<5x32xf32>
    %207 = arith.addf %205, %206 : vector<5x32xf32>
    %cst_93 = arith.constant dense<0.000000e+00> : vector<5xf32>
    %208 = vector.multi_reduction <add>, %207, %cst_93 [1] : vector<5x32xf32> to vector<5xf32>
    %209 = vector.shape_cast %208 : vector<5xf32> to vector<5x1xf32>
    %cst_94 = arith.constant 3.200000e+01 : f32
    %210 = vector.broadcast %cst_94 : f32 to vector<5x1xf32>
    %211 = arith.divf %209, %210 : vector<5x1xf32>
    %212 = vector.broadcast %211 : vector<5x1xf32> to vector<5x32xf32>
    %213 = arith.subf %207, %212 : vector<5x32xf32>
    %214 = arith.mulf %213, %213 : vector<5x32xf32>
    %cst_95 = arith.constant dense<0.000000e+00> : vector<5xf32>
    %215 = vector.multi_reduction <add>, %214, %cst_95 [1] : vector<5x32xf32> to vector<5xf32>
    %216 = vector.shape_cast %215 : vector<5xf32> to vector<5x1xf32>
    %cst_96 = arith.constant 3.200000e+01 : f32
    %217 = vector.broadcast %cst_96 : f32 to vector<5x1xf32>
    %218 = arith.divf %216, %217 : vector<5x1xf32>
    %219 = vector.broadcast %211 : vector<5x1xf32> to vector<5x32xf32>
    %220 = arith.subf %207, %219 : vector<5x32xf32>
    %cst_97 = arith.constant 9.99999974E-6 : f32
    %221 = vector.broadcast %cst_97 : f32 to vector<5x1xf32>
    %222 = arith.addf %218, %221 : vector<5x1xf32>
    %223 = math.rsqrt %222 : vector<5x1xf32>
    %224 = vector.broadcast %223 : vector<5x1xf32> to vector<5x32xf32>
    %225 = arith.mulf %220, %224 : vector<5x32xf32>
    %226 = vector.broadcast %156 : vector<1x32xf32> to vector<5x32xf32>
    %227 = arith.mulf %225, %226 : vector<5x32xf32>
    %228 = vector.broadcast %157 : vector<1x32xf32> to vector<5x32xf32>
    %229 = arith.addf %227, %228 : vector<5x32xf32>
    %cst_98 = arith.constant dense<0.000000e+00> : vector<5x128xf32>
    %230 = tpu.matmul %229, %149, %cst_98 {dimension_numbers = #tpu.dot_dimension_numbers<[1], [0], [0], [1], [0, 0, 1, 1], [], []>} : vector<5x32xf32>, vector<32x128xf32>, vector<5x128xf32> -> vector<5x128xf32>
    %231 = vector.broadcast %160 : vector<1x128xf32> to vector<5x128xf32>
    %232 = arith.addf %230, %231 : vector<5x128xf32>
    %cst_99 = arith.constant 1.702000e+00 : f32
    %233 = vector.broadcast %cst_99 : f32 to vector<5x128xf32>
    %234 = arith.mulf %233, %232 : vector<5x128xf32>
    %235 = arith.negf %234 : vector<5x128xf32>
    %236 = math.exp %235 : vector<5x128xf32>
    %cst_100 = arith.constant 1.000000e+00 : f32
    %237 = vector.broadcast %cst_100 : f32 to vector<5x128xf32>
    %238 = arith.addf %237, %236 : vector<5x128xf32>
    %239 = arith.divf %237, %238 : vector<5x128xf32>
    %240 = arith.mulf %232, %239 : vector<5x128xf32>
    %cst_101 = arith.constant dense<0.000000e+00> : vector<5x32xf32>
    %241 = tpu.matmul %240, %151, %cst_101 {dimension_numbers = #tpu.dot_dimension_numbers<[1], [0], [0], [1], [0, 0, 1, 1], [], []>} : vector<5x128xf32>, vector<128x32xf32>, vector<5x32xf32> -> vector<5x32xf32>
    %242 = arith.addf %207, %241 : vector<5x32xf32>
    %243 = vector.broadcast %159 : vector<1x32xf32> to vector<5x32xf32>
    %244 = arith.addf %242, %243 : vector<5x32xf32>
    %c2 = arith.constant 2 : index
    %c0_102 = arith.constant 0 : index
    %c0_103 = arith.constant 0 : index
    %c0_104 = arith.constant 0 : index
    %245 = vector.load %arg3[%c2, %c0_102, %c0_103, %c0_104] : memref<3x12x32x8xf32, #tpu.memory_space<vmem>>, vector<1x12x32x8xf32>
    %246 = vector.shape_cast %245 : vector<1x12x32x8xf32> to vector<12x32x8xf32>
    %247 = vector.extract_strided_slice %246 {offsets = [0, 0, 0], sizes = [4, 32, 8], strides = [1, 1, 1]} : vector<12x32x8xf32> to vector<4x32x8xf32>
    %248 = vector.extract_strided_slice %246 {offsets = [4, 0, 0], sizes = [4, 32, 8], strides = [1, 1, 1]} : vector<12x32x8xf32> to vector<4x32x8xf32>
    %249 = vector.extract_strided_slice %246 {offsets = [8, 0, 0], sizes = [4, 32, 8], strides = [1, 1, 1]} : vector<12x32x8xf32> to vector<4x32x8xf32>
    %c2_105 = arith.constant 2 : index
    %c0_106 = arith.constant 0 : index
    %c0_107 = arith.constant 0 : index
    %c0_108 = arith.constant 0 : index
    %250 = vector.load %arg4[%c2_105, %c0_106, %c0_107, %c0_108] : memref<3x4x1x8xf32, #tpu.memory_space<vmem>>, vector<1x4x1x8xf32>
    %251 = vector.shape_cast %250 : vector<1x4x1x8xf32> to vector<4x1x8xf32>
    %c2_109 = arith.constant 2 : index
    %c0_110 = arith.constant 0 : index
    %c0_111 = arith.constant 0 : index
    %c0_112 = arith.constant 0 : index
    %252 = vector.load %arg5[%c2_109, %c0_110, %c0_111, %c0_112] : memref<3x4x8x32xf32, #tpu.memory_space<vmem>>, vector<1x4x8x32xf32>
    %253 = vector.shape_cast %252 : vector<1x4x8x32xf32> to vector<4x8x32xf32>
    %c2_113 = arith.constant 2 : index
    %c0_114 = arith.constant 0 : index
    %c0_115 = arith.constant 0 : index
    %254 = vector.load %arg6[%c2_113, %c0_114, %c0_115] : memref<3x32x128xf32, #tpu.memory_space<vmem>>, vector<1x32x128xf32>
    %255 = vector.shape_cast %254 : vector<1x32x128xf32> to vector<32x128xf32>
    %c2_116 = arith.constant 2 : index
    %c0_117 = arith.constant 0 : index
    %c0_118 = arith.constant 0 : index
    %256 = vector.load %arg7[%c2_116, %c0_117, %c0_118] : memref<3x128x32xf32, #tpu.memory_space<vmem>>, vector<1x128x32xf32>
    %257 = vector.shape_cast %256 : vector<1x128x32xf32> to vector<128x32xf32>
    %c2_119 = arith.constant 2 : index
    %c0_120 = arith.constant 0 : index
    %c0_121 = arith.constant 0 : index
    %258 = vector.load %arg8[%c2_119, %c0_120, %c0_121] : memref<3x8x128xf32, #tpu.memory_space<vmem>>, vector<1x8x128xf32>
    %259 = vector.shape_cast %258 : vector<1x8x128xf32> to vector<8x128xf32>
    %260 = vector.extract_strided_slice %259 {offsets = [0, 0], sizes = [1, 32], strides = [1, 1]} : vector<8x128xf32> to vector<1x32xf32>
    %261 = vector.extract_strided_slice %259 {offsets = [1, 0], sizes = [1, 32], strides = [1, 1]} : vector<8x128xf32> to vector<1x32xf32>
    %262 = vector.extract_strided_slice %259 {offsets = [2, 0], sizes = [1, 32], strides = [1, 1]} : vector<8x128xf32> to vector<1x32xf32>
    %263 = vector.extract_strided_slice %259 {offsets = [3, 0], sizes = [1, 32], strides = [1, 1]} : vector<8x128xf32> to vector<1x32xf32>
    %264 = vector.extract_strided_slice %259 {offsets = [4, 0], sizes = [1, 32], strides = [1, 1]} : vector<8x128xf32> to vector<1x32xf32>
    %265 = vector.extract_strided_slice %259 {offsets = [5, 0], sizes = [1, 32], strides = [1, 1]} : vector<8x128xf32> to vector<1x32xf32>
    %266 = vector.extract_strided_slice %259 {offsets = [6, 0], sizes = [1, 128], strides = [1, 1]} : vector<8x128xf32> to vector<1x128xf32>
    %cst_122 = arith.constant dense<0.000000e+00> : vector<5xf32>
    %267 = vector.multi_reduction <add>, %244, %cst_122 [1] : vector<5x32xf32> to vector<5xf32>
    %268 = vector.shape_cast %267 : vector<5xf32> to vector<5x1xf32>
    %cst_123 = arith.constant 3.200000e+01 : f32
    %269 = vector.broadcast %cst_123 : f32 to vector<5x1xf32>
    %270 = arith.divf %268, %269 : vector<5x1xf32>
    %271 = vector.broadcast %270 : vector<5x1xf32> to vector<5x32xf32>
    %272 = arith.subf %244, %271 : vector<5x32xf32>
    %273 = arith.mulf %272, %272 : vector<5x32xf32>
    %cst_124 = arith.constant dense<0.000000e+00> : vector<5xf32>
    %274 = vector.multi_reduction <add>, %273, %cst_124 [1] : vector<5x32xf32> to vector<5xf32>
    %275 = vector.shape_cast %274 : vector<5xf32> to vector<5x1xf32>
    %cst_125 = arith.constant 3.200000e+01 : f32
    %276 = vector.broadcast %cst_125 : f32 to vector<5x1xf32>
    %277 = arith.divf %275, %276 : vector<5x1xf32>
    %278 = vector.broadcast %270 : vector<5x1xf32> to vector<5x32xf32>
    %279 = arith.subf %244, %278 : vector<5x32xf32>
    %cst_126 = arith.constant 9.99999974E-6 : f32
    %280 = vector.broadcast %cst_126 : f32 to vector<5x1xf32>
    %281 = arith.addf %277, %280 : vector<5x1xf32>
    %282 = math.rsqrt %281 : vector<5x1xf32>
    %283 = vector.broadcast %282 : vector<5x1xf32> to vector<5x32xf32>
    %284 = arith.mulf %279, %283 : vector<5x32xf32>
    %285 = vector.broadcast %260 : vector<1x32xf32> to vector<5x32xf32>
    %286 = arith.mulf %284, %285 : vector<5x32xf32>
    %287 = vector.broadcast %261 : vector<1x32xf32> to vector<5x32xf32>
    %288 = arith.addf %286, %287 : vector<5x32xf32>
    %289 = vector.shape_cast %288 : vector<5x32xf32> to vector<1x5x32xf32>
    %290 = vector.shape_cast %289 : vector<1x5x32xf32> to vector<1x5x32xf32>
    %291 = vector.broadcast %290 : vector<1x5x32xf32> to vector<4x5x32xf32>
    "tpu.trace_start"() <{level = 10 : i32, message = "hld,hde->hle"}> : () -> ()
    %cst_127 = arith.constant dense<0.000000e+00> : vector<4x5x8xf32>
    %292 = tpu.matmul %291, %247, %cst_127 {dimension_numbers = #tpu.dot_dimension_numbers<[2], [1], [1], [2], [0, 0, 0, 1, 1, 2], [0], [0]>} : vector<4x5x32xf32>, vector<4x32x8xf32>, vector<4x5x8xf32> -> vector<4x5x8xf32>
    "tpu.trace_stop"() : () -> ()
    %293 = vector.broadcast %251 : vector<4x1x8xf32> to vector<4x5x8xf32>
    %294 = arith.addf %292, %293 : vector<4x5x8xf32>
    "tpu.trace_start"() <{level = 10 : i32, message = "hld,hde->hle"}> : () -> ()
    %cst_128 = arith.constant dense<0.000000e+00> : vector<4x5x8xf32>
    %295 = tpu.matmul %291, %248, %cst_128 {dimension_numbers = #tpu.dot_dimension_numbers<[2], [1], [1], [2], [0, 0, 0, 1, 1, 2], [0], [0]>} : vector<4x5x32xf32>, vector<4x32x8xf32>, vector<4x5x8xf32> -> vector<4x5x8xf32>
    %cst_129 = arith.constant dense<0.000000e+00> : vector<4x5x8xf32>
    %296 = tpu.matmul %291, %249, %cst_129 {dimension_numbers = #tpu.dot_dimension_numbers<[2], [1], [1], [2], [0, 0, 0, 1, 1, 2], [0], [0]>} : vector<4x5x32xf32>, vector<4x32x8xf32>, vector<4x5x8xf32> -> vector<4x5x8xf32>
    "tpu.trace_stop"() : () -> ()
    "tpu.trace_start"() <{level = 10 : i32, message = "hqe,hke->hqk"}> : () -> ()
    %cst_130 = arith.constant dense<0.000000e+00> : vector<4x5x5xf32>
    %297 = tpu.matmul %294, %295, %cst_130 {dimension_numbers = #tpu.dot_dimension_numbers<[2], [2], [1], [1], [0, 0, 0, 1, 1, 1], [0], [0]>} : vector<4x5x8xf32>, vector<4x5x8xf32>, vector<4x5x5xf32> -> vector<4x5x5xf32>
    "tpu.trace_stop"() : () -> ()
    %cst_131 = arith.constant dense<0xFF800000> : vector<4x5xf32>
    %298 = vector.multi_reduction <maximumf>, %297, %cst_131 [2] : vector<4x5x5xf32> to vector<4x5xf32>
    %299 = vector.shape_cast %298 : vector<4x5xf32> to vector<4x5x1xf32>
    %300 = vector.broadcast %299 : vector<4x5x1xf32> to vector<4x5x5xf32>
    %301 = arith.subf %297, %300 : vector<4x5x5xf32>
    %302 = math.exp %301 : vector<4x5x5xf32>
    %cst_132 = arith.constant dense<0.000000e+00> : vector<4x5xf32>
    %303 = vector.multi_reduction <add>, %302, %cst_132 [2] : vector<4x5x5xf32> to vector<4x5xf32>
    %304 = vector.shape_cast %303 : vector<4x5xf32> to vector<4x5x1xf32>
    %305 = tpu.reciprocal %304 : vector<4x5x1xf32> -> vector<4x5x1xf32>
    %306 = vector.broadcast %305 : vector<4x5x1xf32> to vector<4x5x5xf32>
    %307 = arith.mulf %302, %306 : vector<4x5x5xf32>
    "tpu.trace_start"() <{level = 10 : i32, message = "hqk,hke->hqe"}> : () -> ()
    %cst_133 = arith.constant dense<0.000000e+00> : vector<4x5x8xf32>
    %308 = tpu.matmul %307, %296, %cst_133 {dimension_numbers = #tpu.dot_dimension_numbers<[2], [1], [1], [2], [0, 0, 0, 1, 1, 2], [0], [0]>} : vector<4x5x5xf32>, vector<4x5x8xf32>, vector<4x5x8xf32> -> vector<4x5x8xf32>
    "tpu.trace_stop"() : () -> ()
    "tpu.trace_start"() <{level = 10 : i32, message = "hqe,hed->hqd"}> : () -> ()
    %cst_134 = arith.constant dense<0.000000e+00> : vector<4x5x32xf32>
    %309 = tpu.matmul %308, %253, %cst_134 {dimension_numbers = #tpu.dot_dimension_numbers<[2], [1], [1], [2], [0, 0, 0, 1, 1, 2], [0], [0]>} : vector<4x5x8xf32>, vector<4x8x32xf32>, vector<4x5x32xf32> -> vector<4x5x32xf32>
    "tpu.trace_stop"() : () -> ()
    %cst_135 = arith.constant dense<0.000000e+00> : vector<5x32xf32>
    %310 = vector.multi_reduction <add>, %309, %cst_135 [0] : vector<4x5x32xf32> to vector<5x32xf32>
    %311 = arith.addf %244, %310 : vector<5x32xf32>
    %312 = vector.broadcast %264 : vector<1x32xf32> to vector<5x32xf32>
    %313 = arith.addf %311, %312 : vector<5x32xf32>
    %cst_136 = arith.constant dense<0.000000e+00> : vector<5xf32>
    %314 = vector.multi_reduction <add>, %313, %cst_136 [1] : vector<5x32xf32> to vector<5xf32>
    %315 = vector.shape_cast %314 : vector<5xf32> to vector<5x1xf32>
    %cst_137 = arith.constant 3.200000e+01 : f32
    %316 = vector.broadcast %cst_137 : f32 to vector<5x1xf32>
    %317 = arith.divf %315, %316 : vector<5x1xf32>
    %318 = vector.broadcast %317 : vector<5x1xf32> to vector<5x32xf32>
    %319 = arith.subf %313, %318 : vector<5x32xf32>
    %320 = arith.mulf %319, %319 : vector<5x32xf32>
    %cst_138 = arith.constant dense<0.000000e+00> : vector<5xf32>
    %321 = vector.multi_reduction <add>, %320, %cst_138 [1] : vector<5x32xf32> to vector<5xf32>
    %322 = vector.shape_cast %321 : vector<5xf32> to vector<5x1xf32>
    %cst_139 = arith.constant 3.200000e+01 : f32
    %323 = vector.broadcast %cst_139 : f32 to vector<5x1xf32>
    %324 = arith.divf %322, %323 : vector<5x1xf32>
    %325 = vector.broadcast %317 : vector<5x1xf32> to vector<5x32xf32>
    %326 = arith.subf %313, %325 : vector<5x32xf32>
    %cst_140 = arith.constant 9.99999974E-6 : f32
    %327 = vector.broadcast %cst_140 : f32 to vector<5x1xf32>
    %328 = arith.addf %324, %327 : vector<5x1xf32>
    %329 = math.rsqrt %328 : vector<5x1xf32>
    %330 = vector.broadcast %329 : vector<5x1xf32> to vector<5x32xf32>
    %331 = arith.mulf %326, %330 : vector<5x32xf32>
    %332 = vector.broadcast %262 : vector<1x32xf32> to vector<5x32xf32>
    %333 = arith.mulf %331, %332 : vector<5x32xf32>
    %334 = vector.broadcast %263 : vector<1x32xf32> to vector<5x32xf32>
    %335 = arith.addf %333, %334 : vector<5x32xf32>
    %cst_141 = arith.constant dense<0.000000e+00> : vector<5x128xf32>
    %336 = tpu.matmul %335, %255, %cst_141 {dimension_numbers = #tpu.dot_dimension_numbers<[1], [0], [0], [1], [0, 0, 1, 1], [], []>} : vector<5x32xf32>, vector<32x128xf32>, vector<5x128xf32> -> vector<5x128xf32>
    %337 = vector.broadcast %266 : vector<1x128xf32> to vector<5x128xf32>
    %338 = arith.addf %336, %337 : vector<5x128xf32>
    %cst_142 = arith.constant 1.702000e+00 : f32
    %339 = vector.broadcast %cst_142 : f32 to vector<5x128xf32>
    %340 = arith.mulf %339, %338 : vector<5x128xf32>
    %341 = arith.negf %340 : vector<5x128xf32>
    %342 = math.exp %341 : vector<5x128xf32>
    %cst_143 = arith.constant 1.000000e+00 : f32
    %343 = vector.broadcast %cst_143 : f32 to vector<5x128xf32>
    %344 = arith.addf %343, %342 : vector<5x128xf32>
    %345 = arith.divf %343, %344 : vector<5x128xf32>
    %346 = arith.mulf %338, %345 : vector<5x128xf32>
    %cst_144 = arith.constant dense<0.000000e+00> : vector<5x32xf32>
    %347 = tpu.matmul %346, %257, %cst_144 {dimension_numbers = #tpu.dot_dimension_numbers<[1], [0], [0], [1], [0, 0, 1, 1], [], []>} : vector<5x128xf32>, vector<128x32xf32>, vector<5x32xf32> -> vector<5x32xf32>
    %348 = arith.addf %313, %347 : vector<5x32xf32>
    %349 = vector.broadcast %265 : vector<1x32xf32> to vector<5x32xf32>
    %350 = arith.addf %348, %349 : vector<5x32xf32>
    %351 = vector.extract_strided_slice %350 {offsets = [0, 0], sizes = [1, 32], strides = [1, 1]} : vector<5x32xf32> to vector<1x32xf32>
    %cst_145 = arith.constant dense<0.000000e+00> : vector<1xf32>
    %352 = vector.multi_reduction <add>, %351, %cst_145 [1] : vector<1x32xf32> to vector<1xf32>
    %353 = vector.shape_cast %352 : vector<1xf32> to vector<1x1xf32>
    %cst_146 = arith.constant 3.200000e+01 : f32
    %354 = vector.broadcast %cst_146 : f32 to vector<1x1xf32>
    %355 = arith.divf %353, %354 : vector<1x1xf32>
    %356 = vector.broadcast %355 : vector<1x1xf32> to vector<1x32xf32>
    %357 = arith.subf %351, %356 : vector<1x32xf32>
    %358 = arith.mulf %357, %357 : vector<1x32xf32>
    %cst_147 = arith.constant dense<0.000000e+00> : vector<1xf32>
    %359 = vector.multi_reduction <add>, %358, %cst_147 [1] : vector<1x32xf32> to vector<1xf32>
    %360 = vector.shape_cast %359 : vector<1xf32> to vector<1x1xf32>
    %cst_148 = arith.constant 3.200000e+01 : f32
    %361 = vector.broadcast %cst_148 : f32 to vector<1x1xf32>
    %362 = arith.divf %360, %361 : vector<1x1xf32>
    %363 = vector.broadcast %355 : vector<1x1xf32> to vector<1x32xf32>
    %364 = arith.subf %351, %363 : vector<1x32xf32>
    %cst_149 = arith.constant 9.99999974E-6 : f32
    %365 = vector.broadcast %cst_149 : f32 to vector<1x1xf32>
    %366 = arith.addf %362, %365 : vector<1x1xf32>
    %367 = math.rsqrt %366 : vector<1x1xf32>
    %368 = vector.broadcast %367 : vector<1x1xf32> to vector<1x32xf32>
    %369 = arith.mulf %364, %368 : vector<1x32xf32>
    %370 = arith.mulf %369, %4 : vector<1x32xf32>
    %371 = arith.addf %370, %5 : vector<1x32xf32>
    %cst_150 = arith.constant dense<0.000000e+00> : vector<1x32xf32>
    %372 = tpu.matmul %371, %6, %cst_150 {dimension_numbers = #tpu.dot_dimension_numbers<[1], [0], [0], [1], [0, 0, 1, 1], [], []>} : vector<1x32xf32>, vector<32x32xf32>, vector<1x32xf32> -> vector<1x32xf32>
    %c0_151 = arith.constant 0 : index
    %c0_152 = arith.constant 0 : index
    %c0_153 = arith.constant 0 : index
    %373 = vector.load %arg9[%c0_151, %c0_152, %c0_153] : memref<1x1x32xf32, #tpu.memory_space<vmem>>, vector<1x1x32xf32>
    %374 = vector.shape_cast %373 : vector<1x1x32xf32> to vector<1x32xf32>
    %375 = vector.shape_cast %372 : vector<1x32xf32> to vector<1x1x32xf32>
    tpu.vector_store %arg9[%c0_151, %c0_152, %c0_153], %375 {strides = array<i32>} : memref<1x1x32xf32, #tpu.memory_space<vmem>>, vector<1x1x32xf32>,
    return
  }
  func.func @transform_0(%arg0: i32) -> (i32, i32, i32) {
    %c0_i32 = arith.constant 0 : i32
    %c0_i32_0 = arith.constant 0 : i32
    %c0_i32_1 = arith.constant 0 : i32
    return %arg0, %c0_i32, %c0_i32_0 : i32, i32, i32
  }
  func.func @transform_1(%arg0: i32) -> (i32, i32) {
    %c0_i32 = arith.constant 0 : i32
    %c0_i32_0 = arith.constant 0 : i32
    %c0_i32_1 = arith.constant 0 : i32
    return %c0_i32, %c0_i32_0 : i32, i32
  }
  func.func @transform_2(%arg0: i32) -> (i32, i32, i32, i32) {
    %c0_i32 = arith.constant 0 : i32
    %c0_i32_0 = arith.constant 0 : i32
    %c0_i32_1 = arith.constant 0 : i32
    %c0_i32_2 = arith.constant 0 : i32
    %c0_i32_3 = arith.constant 0 : i32
    return %c0_i32, %c0_i32_0, %c0_i32_1, %c0_i32_2 : i32, i32, i32, i32
  }
  func.func @transform_3(%arg0: i32) -> (i32, i32, i32, i32) {
    %c0_i32 = arith.constant 0 : i32
    %c0_i32_0 = arith.constant 0 : i32
    %c0_i32_1 = arith.constant 0 : i32
    %c0_i32_2 = arith.constant 0 : i32
    %c0_i32_3 = arith.constant 0 : i32
    return %c0_i32, %c0_i32_0, %c0_i32_1, %c0_i32_2 : i32, i32, i32, i32
  }
  func.func @transform_4(%arg0: i32) -> (i32, i32, i32, i32) {
    %c0_i32 = arith.constant 0 : i32
    %c0_i32_0 = arith.constant 0 : i32
    %c0_i32_1 = arith.constant 0 : i32
    %c0_i32_2 = arith.constant 0 : i32
    %c0_i32_3 = arith.constant 0 : i32
    return %c0_i32, %c0_i32_0, %c0_i32_1, %c0_i32_2 : i32, i32, i32, i32
  }
  func.func @transform_5(%arg0: i32) -> (i32, i32, i32) {
    %c0_i32 = arith.constant 0 : i32
    %c0_i32_0 = arith.constant 0 : i32
    %c0_i32_1 = arith.constant 0 : i32
    %c0_i32_2 = arith.constant 0 : i32
    return %c0_i32, %c0_i32_0, %c0_i32_1 : i32, i32, i32
  }
  func.func @transform_6(%arg0: i32) -> (i32, i32, i32) {
    %c0_i32 = arith.constant 0 : i32
    %c0_i32_0 = arith.constant 0 : i32
    %c0_i32_1 = arith.constant 0 : i32
    %c0_i32_2 = arith.constant 0 : i32
    return %c0_i32, %c0_i32_0, %c0_i32_1 : i32, i32, i32
  }
  func.func @transform_7(%arg0: i32) -> (i32, i32, i32) {
    %c0_i32 = arith.constant 0 : i32
    %c0_i32_0 = arith.constant 0 : i32
    %c0_i32_1 = arith.constant 0 : i32
    %c0_i32_2 = arith.constant 0 : i32
    return %c0_i32, %c0_i32_0, %c0_i32_1 : i32, i32, i32
  }
  func.func @transform_8(%arg0: i32) -> (i32, i32, i32) {
    %c0_i32 = arith.constant 0 : i32
    %c0_i32_0 = arith.constant 0 : i32
    %c0_i32_1 = arith.constant 0 : i32
    return %arg0, %c0_i32, %c0_i32_0 : i32, i32, i32
  }
}

</mosaic_0001>

<llo_original>
// kernel: fungi_embedder_forward.1
$region0: #{fungi_embedder_forward.1}
  #allocation0 [shape = 'u32[]', space=smem, size = 0x4, offset = 0x4, fixed_abs, tag = 'smem constant byte address 0x4 - core index']
  #allocation1 [shape = 'u32[144,128]{1,0:T(1,128)}', space=vmem, size = 0x12000, scoped, tag = 'internal scratch']
  %s0 = inlined_call_operand.vmem [shape: f32[2,5,192], index: 0, kind: input, shape index: {}]
  %s1 = inlined_call_operand.vmem [shape: f32[240,32], index: 1, kind: input, shape index: {}]
  %s2 = inlined_call_operand.vmem [shape: f32[3,12,32,8], index: 2, kind: input, shape index: {}]
  %s3 = inlined_call_operand.vmem [shape: f32[3,4,1,8], index: 3, kind: input, shape index: {}]
  %s4 = inlined_call_operand.vmem [shape: f32[3,4,8,32], index: 4, kind: input, shape index: {}]
  %s5 = inlined_call_operand.vmem [shape: f32[3,32,128], index: 5, kind: input, shape index: {}]
  %s6 = inlined_call_operand.vmem [shape: f32[3,128,32], index: 6, kind: input, shape index: {}]
  %s7 = inlined_call_operand.vmem [shape: f32[3,8,128], index: 7, kind: input, shape index: {}]
  %s8 = inlined_call_operand.hbm [shape: f32[2,1,32], index: 8, kind: output, shape index: {}]
  %s9 = sld [smem:[#allocation0]]
  $region65: #{fungi_embedder_forward.1} parent=0
    _
  %s11 = ssub.s32 1, %s9
  %s12 = scalar_select 0, %s11, %s9
  $region1: #{fungi_embedder_forward.1} parent=0
    #allocation2 [shape = 'u8[1024]{0}', space=vmem, size = 0x400, scoped, tag = 'output window, operand 0']
    #allocation3 [shape = 's32[2]{0}', space=sflag, size = 0x8, scoped, tag = 'scoped memory for fungi_embedder_forward.1']
    %13 = vsyncpa [#allocation3], 0
    %s14 = scalar_lea.sflag [#allocation3], 1
    %15 = vsyncpa %s14, 0
    loop: start=0, step=1, limit=4
    $region2: #{fungi_embedder_forward.1} parent=1 // loop_pre_header
      _
    $region3: #{fungi_embedder_forward.1} parent=1 // loop_header
      %s17 = sphi 0, %s21
      %p18 = scmp.ge.s32.totalorder %s17, 4
      %s27 = sphi 0, %s29
      %s30 = sphi 0, %s27
      %s31 = sphi 0, %s30
      %s47 = sphi 0, %s31
      %s51 = sphi 0, %s51
      %s53 = sphi 0, %s51
      %s54 = sphi 0, %s53
      %s68 = sphi 0, %s54
      %s72 = sphi 0, %s72
      %s74 = sphi 0, %s72
      %s75 = sphi 0, %s74
      %s89 = sphi 0, %s75
      %s93 = sphi 0, %s93
      %s95 = sphi 0, %s93
      %s96 = sphi 0, %s95
      %s110 = sphi 0, %s96
      %s114 = sphi 0, %s114
      %s116 = sphi 0, %s114
      %s117 = sphi 0, %s116
      %s131 = sphi 0, %s117
      %s135 = sphi 0, %s135
      %s137 = sphi 0, %s135
      %s138 = sphi 0, %s137
      %s152 = sphi 0, %s138
      %s156 = sphi 0, %s156
      %s158 = sphi 0, %s156
      %s159 = sphi 0, %s158
      %s173 = sphi 0, %s159
      %s177 = sphi 0, %s177
      %s179 = sphi 0, %s177
      %s180 = sphi 0, %s179
      %s194 = sphi 0, %s180
      %s200 = sphi 0, %s202
      %s203 = sphi 0, %s200
      %s204 = sphi 0, %s203
      %s220 = sphi 0, %s204
    $region4: #{fungi_embedder_forward.1} parent=1 // loop_header_branch
      %20 = sbr.rel (%p18) target = $region8
    $region5: #{fungi_embedder_forward.1} parent=1 // loop_body
      %s22 = ssub.s32 %s17, 1
      %s23 = ssub.s32 %s17, 2
      %s24 = sadd.s32 %s17, 1
      %s25 = ssub.s32 %s17, %s24
      %p26 = scmp.eq.s32.totalorder %s25, 0
      %s28 = sadd.s32 %s27, 1
      %s29 = scalar_select %p26, %s27, %s28
      %p32 = pneg %p26
      %p33 = scmp.eq.s32.totalorder %s17, 1
      %p34 = por %p32, %p33
      %p35 = scmp.ne.s32.totalorder %s27, %s30
      %p36 = scmp.eq.s32.totalorder %s17, 0
      %p37 = por %p35, %p36
      %p38 = scmp.ne.s32.totalorder %s27, %s30
      %p39 = scmp.eq.s32.totalorder %s22, 1
      %p40 = por %p38, %p39
      %p41 = scmp.ne.s32.totalorder %s30, %s31
      %p42 = scmp.eq.s32.totalorder %s22, 0
      %p43 = por %p41, %p42
      %p44 = scmp.ne.s32.totalorder %s30, %s31
      %p45 = scmp.eq.s32.totalorder %s23, 1
      %p46 = por %p44, %p45
      %p48 = scmp.ne.s32.totalorder %s31, %s47
      %p49 = scmp.eq.s32.totalorder %s23, 0
      %p50 = por %p48, %p49
      %s52 = sadd.s32 %s51, 1
      %p55 = scmp.eq.s32.totalorder %s17, 1
      %p56 = scmp.ne.s32.totalorder %s51, %s53
      %p57 = scmp.eq.s32.totalorder %s17, 0
      %p58 = por %p56, %p57
      %p59 = scmp.ne.s32.totalorder %s51, %s53
      %p60 = scmp.eq.s32.totalorder %s22, 1
      %p61 = por %p59, %p60
      %p62 = scmp.ne.s32.totalorder %s53, %s54
      %p63 = scmp.eq.s32.totalorder %s22, 0
      %p64 = por %p62, %p63
      %p65 = scmp.ne.s32.totalorder %s53, %s54
      %p66 = scmp.eq.s32.totalorder %s23, 1
      %p67 = por %p65, %p66
      %p69 = scmp.ne.s32.totalorder %s54, %s68
      %p70 = scmp.eq.s32.totalorder %s23, 0
      %p71 = por %p69, %p70
      %s73 = sadd.s32 %s72, 1
      %p76 = scmp.eq.s32.totalorder %s17, 1
      %p77 = scmp.ne.s32.totalorder %s72, %s74
      %p78 = scmp.eq.s32.totalorder %s17, 0
      %p79 = por %p77, %p78
      %p80 = scmp.ne.s32.totalorder %s72, %s74
      %p81 = scmp.eq.s32.totalorder %s22, 1
      %p82 = por %p80, %p81
      %p83 = scmp.ne.s32.totalorder %s74, %s75
      %p84 = scmp.eq.s32.totalorder %s22, 0
      %p85 = por %p83, %p84
      %p86 = scmp.ne.s32.totalorder %s74, %s75
      %p87 = scmp.eq.s32.totalorder %s23, 1
      %p88 = por %p86, %p87
      %p90 = scmp.ne.s32.totalorder %s75, %s89
      %p91 = scmp.eq.s32.totalorder %s23, 0
      %p92 = por %p90, %p91
      %s94 = sadd.s32 %s93, 1
      %p97 = scmp.eq.s32.totalorder %s17, 1
      %p98 = scmp.ne.s32.totalorder %s93, %s95
      %p99 = scmp.eq.s32.totalorder %s17, 0
      %p100 = por %p98, %p99
      %p101 = scmp.ne.s32.totalorder %s93, %s95
      %p102 = scmp.eq.s32.totalorder %s22, 1
      %p103 = por %p101, %p102
      %p104 = scmp.ne.s32.totalorder %s95, %s96
      %p105 = scmp.eq.s32.totalorder %s22, 0
      %p106 = por %p104, %p105
      %p107 = scmp.ne.s32.totalorder %s95, %s96
      %p108 = scmp.eq.s32.totalorder %s23, 1
      %p109 = por %p107, %p108
      %p111 = scmp.ne.s32.totalorder %s96, %s110
      %p112 = scmp.eq.s32.totalorder %s23, 0
      %p113 = por %p111, %p112
      %s115 = sadd.s32 %s114, 1
      %p118 = scmp.eq.s32.totalorder %s17, 1
      %p119 = scmp.ne.s32.totalorder %s114, %s116
      %p120 = scmp.eq.s32.totalorder %s17, 0
      %p121 = por %p119, %p120
      %p122 = scmp.ne.s32.totalorder %s114, %s116
      %p123 = scmp.eq.s32.totalorder %s22, 1
      %p124 = por %p122, %p123
      %p125 = scmp.ne.s32.totalorder %s116, %s117
      %p126 = scmp.eq.s32.totalorder %s22, 0
      %p127 = por %p125, %p126
      %p128 = scmp.ne.s32.totalorder %s116, %s117
      %p129 = scmp.eq.s32.totalorder %s23, 1
      %p130 = por %p128, %p129
      %p132 = scmp.ne.s32.totalorder %s117, %s131
      %p133 = scmp.eq.s32.totalorder %s23, 0
      %p134 = por %p132, %p133
      %s136 = sadd.s32 %s135, 1
      %p139 = scmp.eq.s32.totalorder %s17, 1
      %p140 = scmp.ne.s32.totalorder %s135, %s137
      %p141 = scmp.eq.s32.totalorder %s17, 0
      %p142 = por %p140, %p141
      %p143 = scmp.ne.s32.totalorder %s135, %s137
      %p144 = scmp.eq.s32.totalorder %s22, 1
      %p145 = por %p143, %p144
      %p146 = scmp.ne.s32.totalorder %s137, %s138
      %p147 = scmp.eq.s32.totalorder %s22, 0
      %p148 = por %p146, %p147
      %p149 = scmp.ne.s32.totalorder %s137, %s138
      %p150 = scmp.eq.s32.totalorder %s23, 1
      %p151 = por %p149, %p150
      %p153 = scmp.ne.s32.totalorder %s138, %s152
      %p154 = scmp.eq.s32.totalorder %s23, 0
      %p155 = por %p153, %p154
      %s157 = sadd.s32 %s156, 1
      %p160 = scmp.eq.s32.totalorder %s17, 1
      %p161 = scmp.ne.s32.totalorder %s156, %s158
      %p162 = scmp.eq.s32.totalorder %s17, 0
      %p163 = por %p161, %p162
      %p164 = scmp.ne.s32.totalorder %s156, %s158
      %p165 = scmp.eq.s32.totalorder %s22, 1
      %p166 = por %p164, %p165
      %p167 = scmp.ne.s32.totalorder %s158, %s159
      %p168 = scmp.eq.s32.totalorder %s22, 0
      %p169 = por %p167, %p168
      %p170 = scmp.ne.s32.totalorder %s158, %s159
      %p171 = scmp.eq.s32.totalorder %s23, 1
      %p172 = por %p170, %p171
      %p174 = scmp.ne.s32.totalorder %s159, %s173
      %p175 = scmp.eq.s32.totalorder %s23, 0
      %p176 = por %p174, %p175
      %s178 = sadd.s32 %s177, 1
      %p181 = scmp.eq.s32.totalorder %s17, 1
      %p182 = scmp.ne.s32.totalorder %s177, %s179
      %p183 = scmp.eq.s32.totalorder %s17, 0
      %p184 = por %p182, %p183
      %p185 = scmp.ne.s32.totalorder %s177, %s179
      %p186 = scmp.eq.s32.totalorder %s22, 1
      %p187 = por %p185, %p186
      %p188 = scmp.ne.s32.totalorder %s179, %s180
      %p189 = scmp.eq.s32.totalorder %s22, 0
      %p190 = por %p188, %p189
      %p191 = scmp.ne.s32.totalorder %s179, %s180
      %p192 = scmp.eq.s32.totalorder %s23, 1
      %p193 = por %p191, %p192
      %p195 = scmp.ne.s32.totalorder %s180, %s194
      %p196 = scmp.eq.s32.totalorder %s23, 0
      %p197 = por %p195, %p196
      %s198 = ssub.s32 %s17, %s24
      %p199 = scmp.eq.s32.totalorder %s198, 0
      %s201 = sadd.s32 %s200, 1
      %s202 = scalar_select %p199, %s200, %s201
      %p205 = pneg %p199
      %p206 = scmp.eq.s32.totalorder %s17, 1
      %p207 = por %p205, %p206
      %p208 = scmp.ne.s32.totalorder %s200, %s203
      %p209 = scmp.eq.s32.totalorder %s17, 0
      %p210 = por %p208, %p209
      %p211 = scmp.ne.s32.totalorder %s200, %s203
      %p212 = scmp.eq.s32.totalorder %s22, 1
      %p213 = por %p211, %p212
      %p214 = scmp.ne.s32.totalorder %s203, %s204
      %p215 = scmp.eq.s32.totalorder %s22, 0
      %p216 = por %p214, %p215
      %p217 = scmp.ne.s32.totalorder %s203, %s204
      %p218 = scmp.eq.s32.totalorder %s23, 1
      %p219 = por %p217, %p218
      %p221 = scmp.ne.s32.totalorder %s204, %s220
      %p222 = scmp.eq.s32.totalorder %s23, 0
      %p223 = por %p221, %p222
      %p224 = scmp.le.s32.totalorder 1, %s17
      %p225 = scmp.lt.s32.totalorder %s17, 3
      %p226 = pnand %p224, %p225
      %p227 = pneg %p226
      // Predicated region
      $region9: #{fungi_embedder_forward.1} parent=5 // pred_check
        _
      $region10: #{fungi_embedder_forward.1} parent=5 // pred_check_branch
        %229 = sbr.rel (%p226) target = $region12
      $region11: #{fungi_embedder_forward.1} parent=5 // pred_region
        %s230 = ssub.s32 %s17, 1
        // Predicated region
        $region13: #{fungi_embedder_forward.1} parent=11 // pred_check
          %p231 = pneg %p64
        $region14: #{fungi_embedder_forward.1} parent=11 // pred_check_branch
          %233 = sbr.rel (%p231) target = $region16
        $region15: #{fungi_embedder_forward.1} parent=11 // pred_region
          _
        $region16: #{fungi_embedder_forward.1} parent=11 // pred_fallthru
          _
        // Predicated region
        $region17: #{fungi_embedder_forward.1} parent=11 // pred_check
          %p234 = pneg %p85
        $region18: #{fungi_embedder_forward.1} parent=11 // pred_check_branch
          %236 = sbr.rel (%p234) target = $region20
        $region19: #{fungi_embedder_forward.1} parent=11 // pred_region
          _
        $region20: #{fungi_embedder_forward.1} parent=11 // pred_fallthru
          _
        // Predicated region
        $region21: #{fungi_embedder_forward.1} parent=11 // pred_check
          %p237 = pneg %p106
        $region22: #{fungi_embedder_forward.1} parent=11 // pred_check_branch
          %239 = sbr.rel (%p237) target = $region24
        $region23: #{fungi_embedder_forward.1} parent=11 // pred_region
          _
        $region24: #{fungi_embedder_forward.1} parent=11 // pred_fallthru
          _
        // Predicated region
        $region25: #{fungi_embedder_forward.1} parent=11 // pred_check
          %p240 = pneg %p127
        $region26: #{fungi_embedder_forward.1} parent=11 // pred_check_branch
          %242 = sbr.rel (%p240) target = $region28
        $region27: #{fungi_embedder_forward.1} parent=11 // pred_region
          _
        $region28: #{fungi_embedder_forward.1} parent=11 // pred_fallthru
          _
        // Predicated region
        $region29: #{fungi_embedder_forward.1} parent=11 // pred_check
          %p243 = pneg %p148
        $region30: #{fungi_embedder_forward.1} parent=11 // pred_check_branch
          %245 = sbr.rel (%p243) target = $region32
        $region31: #{fungi_embedder_forward.1} parent=11 // pred_region
          _
        $region32: #{fungi_embedder_forward.1} parent=11 // pred_fallthru
          _
        // Predicated region
        $region33: #{fungi_embedder_forward.1} parent=11 // pred_check
          %p246 = pneg %p169
        $region34: #{fungi_embedder_forward.1} parent=11 // pred_check_branch
          %248 = sbr.rel (%p246) target = $region36
        $region35: #{fungi_embedder_forward.1} parent=11 // pred_region
          _
        $region36: #{fungi_embedder_forward.1} parent=11 // pred_fallthru
          _
        // Predicated region
        $region37: #{fungi_embedder_forward.1} parent=11 // pred_check
          %p249 = pneg %p190
        $region38: #{fungi_embedder_forward.1} parent=11 // pred_check_branch
          %251 = sbr.rel (%p249) target = $region40
        $region39: #{fungi_embedder_forward.1} parent=11 // pred_region
          _
        $region40: #{fungi_embedder_forward.1} parent=11 // pred_fallthru
          _
      $region12: #{fungi_embedder_forward.1} parent=5 // pred_fallthru
        _
      %p252 = scmp.lt.s32.totalorder %s17, 2
      // Predicated region
      $region41: #{fungi_embedder_forward.1} parent=5 // pred_check
        %p253 = pneg %p252
      $region42: #{fungi_embedder_forward.1} parent=5 // pred_check_branch
        %255 = sbr.rel (%p253) target = $region44
      $region43: #{fungi_embedder_forward.1} parent=5 // pred_region
        // Predicated region
        $region45: #{fungi_embedder_forward.1} parent=43 // pred_check
          %p256 = pneg %p37
        $region46: #{fungi_embedder_forward.1} parent=43 // pred_check_branch
          %258 = sbr.rel (%p256) target = $region48
        $region47: #{fungi_embedder_forward.1} parent=43 // pred_region
          %p259 = scmp.lt.s32.totalorder %s17, 1
          %s260 = scalar_select %p259, %s17, 1
          %s261 = smul.addr %s260, 2
          %s262 = smul.addr %s261, 8
          %s263 = scalar_lea.vmem %s0, %s262
        $region48: #{fungi_embedder_forward.1} parent=43 // pred_fallthru
          _
      $region44: #{fungi_embedder_forward.1} parent=5 // pred_fallthru
        _
      %p264 = scmp.le.s32.totalorder 1, %s17
      %p265 = scmp.lt.s32.totalorder %s17, 3
      %p266 = pnand %p264, %p265
      %p267 = pneg %p266
      // Predicated region
      $region49: #{fungi_embedder_forward.1} parent=5 // pred_check
        _
      $region50: #{fungi_embedder_forward.1} parent=5 // pred_check_branch
        %269 = sbr.rel (%p266) target = $region52
      $region51: #{fungi_embedder_forward.1} parent=5 // pred_region
        %s270 = ssub.s32 %s17, 1
        %p271 = scmp.lt.s32.totalorder %s22, 1
        %s272 = scalar_select %p271, %s22, 1
        %s273 = smul.addr %s272, 2
        %s274 = smul.addr %s273, 8
        %s275 = scalar_lea.vmem %s0, %s274
        %p276 = pneg %p43
        %p277 = pneg %p40
        %p278 = pneg %p64
        %p279 = pneg %p61
        %p280 = pneg %p85
        %p281 = pneg %p82
        %p282 = pneg %p106
        %p283 = pneg %p103
        %p284 = pneg %p127
        %p285 = pneg %p124
        %p286 = pneg %p148
        %p287 = pneg %p145
        %p288 = pneg %p169
        %p289 = pneg %p166
        %p290 = pneg %p190
        %p291 = pneg %p187
        %p292 = pneg %p216
        %p293 = pneg %p213
        %s294 = sand.u32 %s203, 1
        %s295 = scalar_lea.sflag [#allocation3], %s294
        %s296 = sand.u32 %s203, 1
        %s297 = scalar_lea.vmem [#allocation2], %s296
        %p298 = scmp.lt.s32.totalorder %s22, 1
        %s299 = scalar_select %p298, %s22, 1
        %s300 = smul.addr %s299, 2
        %s301 = smul.addr %s300, 8
        %s302 = scalar_lea.vmem %s0, %s301
        %v303 = vld [vmem:[%s1] sm:$0xff]
        %v304 = vld [vmem:[%s1 + $0x8] sm:$0xff]
        %v305 = vld [vmem:[%s1 + $0x10] sm:$0xff]
        %v306 = vld [vmem:[%s1 + $0x18] sm:$0xff]
        %v307 = vld [vmem:[%s1 + $0x20] sm:$0xff]
        %v308 = vld [vmem:[%s1 + $0x28] sm:$0xff]
        %v309 = vld [vmem:[%s1 + $0x30] sm:$0xff]
        %v310 = vld [vmem:[%s1 + $0x38] sm:$0xff]
        %v311 = vld [vmem:[%s1 + $0x40] sm:$0xff]
        %v312 = vld [vmem:[%s1 + $0x48] sm:$0xff]
        %v313 = vld [vmem:[%s1 + $0x50] sm:$0xff]
        %v314 = vld [vmem:[%s1 + $0x58] sm:$0xff]
        %v315 = vld [vmem:[%s1 + $0x60] sm:$0xff]
        %v316 = vld [vmem:[%s1 + $0x68] sm:$0xff]
        %v317 = vld [vmem:[%s1 + $0x70] sm:$0xff]
        %v318 = vld [vmem:[%s1 + $0x78] sm:$0xff]
        %v319 = vld [vmem:[%s1 + $0x80] sm:$0xff]
        %v320 = vld [vmem:[%s1 + $0x88] sm:$0xff]
        %v321 = vld [vmem:[%s1 + $0x90] sm:$0xff]
        %v322 = vld [vmem:[%s1 + $0x98] sm:$0xff]
        %v323 = vld [vmem:[%s1 + $0xa0] sm:$0xff]
        %v324 = vld [vmem:[%s1 + $0xa8] sm:$0xff]
        %v325 = vld [vmem:[%s1 + $0xb0] sm:$0xff]
        %v326 = vld [vmem:[%s1 + $0xb8] sm:$0xff]
        %v327 = vld [vmem:[%s1 + $0xc0] sm:$0x1f]
        %v328 = vld [vmem:[%s1 + $0xc8] sm:$0x1]
        %v329 = vld [vmem:[%s1 + $0xc9] sm:$0x1]
        %v330 = vld [vmem:[%s1 + $0xca] sm:$0x1]
        %v331 = vld [vmem:[%s1 + $0xcb] sm:$0x1]
        %v332 = vld [vmem:[%s1 + $0xd0] sm:$0xff]
        %v333 = vld [vmem:[%s1 + $0xd8] sm:$0xff]
        %v334 = vld [vmem:[%s1 + $0xe0] sm:$0xff]
        %v335 = vld [vmem:[%s1 + $0xe8] sm:$0xff]
        %v336 = vld [vmem:[%s302] sm:$0x1f]
        %v337 = vld [vmem:[%s302 + $0x8] sm:$0x1f]
        %vm338 = vcmask 523264
        %v340 = vsel %vm338, %v337, 0
        %342 = vmatprep.subr.mxu0 0.0
        %343 = vmatpush1.msra.mxu0 %v318
        %344 = vmatprep.subr.mxu0 0.0
        %345 = vmatpush1.msra.mxu0 %v317
        %346 = vmatprep.subr.mxu0 0.0
        %347 = vmatpush1.msra.mxu0 %v316
        %348 = vmatprep.subr.mxu0 0.0
        %349 = vmatpush1.msra.mxu0 %v315
        %350 = vmatprep.subr.mxu0 0.0
        %351 = vmatpush1.msra.mxu0 %v314
        %352 = vmatprep.subr.mxu0 0.0
        %353 = vmatpush1.msra.mxu0 %v313
        %354 = vmatprep.subr.mxu0 0.0
        %355 = vmatpush1.msra.mxu0 %v312
        %356 = vmatprep.subr.mxu0 0.0
        %357 = vmatpush1.msra.mxu0 %v311
        %358 = vmatprep.subr.mxu0 0.0
        %359 = vmatpush1.msra.mxu0 %v310
        %360 = vmatprep.subr.mxu0 0.0
        %361 = vmatpush1.msra.mxu0 %v309
        %362 = vmatprep.subr.mxu0 0.0
        %363 = vmatpush1.msra.mxu0 %v308
        %364 = vmatprep.subr.mxu0 0.0
        %365 = vmatpush1.msra.mxu0 %v307
        %366 = vmatprep.subr.mxu0 0.0
        %367 = vmatpush1.msra.mxu0 %v306
        %368 = vmatprep.subr.mxu0 0.0
        %369 = vmatpush1.msra.mxu0 %v305
        %370 = vmatprep.subr.mxu0 0.0
        %371 = vmatpush1.msra.mxu0 %v304
        %372 = vmatprep.subr.mxu0 0.0
        %373 = vmatpush1.msra.mxu0 %v303
        %374 = vmatprep.subr.mxu0 0.0
        %375 = vmatpush2.msra.mxu0 0.0
        %376 = vmatprep.subr.mxu0 0.0
        %377 = vmatpush2.msra.mxu0 0.0
        %378 = vmatprep.subr.mxu0 0.0
        %379 = vmatpush2.msra.mxu0 0.0
        %380 = vmatprep.subr.mxu0 0.0
        %381 = vmatpush2.msra.mxu0 0.0
        %382 = vmatprep.subr.mxu0 0.0
        %383 = vmatpush2.msra.mxu0 0.0
        %384 = vmatprep.subr.mxu0 0.0
        %385 = vmatpush2.msra.mxu0 0.0
        %386 = vmatprep.subr.mxu0 0.0
        %387 = vmatpush2.msra.mxu0 0.0
        %388 = vmatprep.subr.mxu0 0.0
        %389 = vmatpush2.msra.mxu0 0.0
        %390 = vmatprep.subr.mxu0 0.0
        %391 = vmatpush2.msra.mxu0 %v326
        %392 = vmatprep.subr.mxu0 0.0
        %393 = vmatpush2.msra.mxu0 %v325
        %394 = vmatprep.subr.mxu0 0.0
        %395 = vmatpush2.msra.mxu0 %v324
        %396 = vmatprep.subr.mxu0 0.0
        %397 = vmatpush2.msra.mxu0 %v323
        %398 = vmatprep.subr.mxu0 0.0
        %399 = vmatpush2.msra.mxu0 %v322
        %400 = vmatprep.subr.mxu0 0.0
        %401 = vmatpush2.msra.mxu0 %v321
        %402 = vmatprep.subr.mxu0 0.0
        %403 = vmatpush2.msra.mxu0 %v320
        %404 = vmatprep.subr.mxu0 0.0
        %405 = vmatpush2.msra.mxu0 %v319
        %406 = vmatprep.mubr.f32.mxu0 %v340
        %407 = vmatmul.mubr.f32.gmra.mxu0 %v336
        %v408 = vpop.f32.mrf.mxu0
        %v409 = vadd.f32 %v327, %v408
        %v410 = vpop.f32.mrf.mxu0
        %411 = vdwg.mxu0
        %vm412 = vcmask 258048
        %v413 = vsel %vm412, %v409, 0.0
        %414 = vadd.xlane.f32.xlu0 %v413
        %v415 = vpop.xlane.xlu0 %414
        %v416 = vrcp.pop 32.0
        %v417 = vmul.f32 %v415, %v416
        %v418 = vsub.f32 %v409, %v417
        %v419 = vmul.f32 %v418, %v418
        %v420 = vsel %vm412, %v419, 0.0
        %421 = vadd.xlane.f32.xlu0 %v420
        %v422 = vpop.xlane.xlu0 %421
        %v423 = vmul.f32 %v422, %v416
        %v424 = vadd.f32 %v423, 1e-05
        %v425 = vrsqrt.pop %v424
        %v426 = vmul.f32 %v418, %v425
        %v427 = vlaneseq
        %v428 = vshrl.u32 %v427, 7
        %v429 = vsub.s32 0, %v428
        %v430 = vrot.slane %v328, %v429
        %v431 = vmul.f32 %v426, %v430
        %v432 = vlaneseq
        %v433 = vshrl.u32 %v432, 7
        %v434 = vsub.s32 0, %v433
        %v435 = vrot.slane %v329, %v434
        %v436 = vadd.f32 %v431, %v435
        %v437 = vld [vmem:[%s2] sm:$0xff]
        %v438 = vld [vmem:[%s2 + $0x8] sm:$0xff]
        %v439 = vld [vmem:[%s2 + $0x10] sm:$0xff]
        %v440 = vld [vmem:[%s2 + $0x18] sm:$0xff]
        %v441 = vld [vmem:[%s2 + $0x20] sm:$0xff]
        %v442 = vld [vmem:[%s2 + $0x28] sm:$0xff]
        %v443 = vld [vmem:[%s2 + $0x30] sm:$0xff]
        %v444 = vld [vmem:[%s2 + $0x38] sm:$0xff]
        %v445 = vld [vmem:[%s2 + $0x40] sm:$0xff]
        %v446 = vld [vmem:[%s2 + $0x48] sm:$0xff]
        %v447 = vld [vmem:[%s2 + $0x50] sm:$0xff]
        %v448 = vld [vmem:[%s2 + $0x58] sm:$0xff]
        %v449 = vld [vmem:[%s2 + $0x60] sm:$0xff]
        %v450 = vld [vmem:[%s2 + $0x68] sm:$0xff]
        %v451 = vld [vmem:[%s2 + $0x70] sm:$0xff]
        %v452 = vld [vmem:[%s2 + $0x78] sm:$0xff]
        %v453 = vld [vmem:[%s2 + $0x80] sm:$0xff]
        %v454 = vld [vmem:[%s2 + $0x88] sm:$0xff]
        %v455 = vld [vmem:[%s2 + $0x90] sm:$0xff]
        %v456 = vld [vmem:[%s2 + $0x98] sm:$0xff]
        %v457 = vld [vmem:[%s2 + $0xa0] sm:$0xff]
        %v458 = vld [vmem:[%s2 + $0xa8] sm:$0xff]
        %v459 = vld [vmem:[%s2 + $0xb0] sm:$0xff]
        %v460 = vld [vmem:[%s2 + $0xb8] sm:$0xff]
        %v461 = vld [vmem:[%s2 + $0xc0] sm:$0xff]
        %v462 = vld [vmem:[%s2 + $0xc8] sm:$0xff]
        %v463 = vld [vmem:[%s2 + $0xd0] sm:$0xff]
        %v464 = vld [vmem:[%s2 + $0xd8] sm:$0xff]
        %v465 = vld [vmem:[%s2 + $0xe0] sm:$0xff]
        %v466 = vld [vmem:[%s2 + $0xe8] sm:$0xff]
        %v467 = vld [vmem:[%s2 + $0xf0] sm:$0xff]
        %v468 = vld [vmem:[%s2 + $0xf8] sm:$0xff]
        %v469 = vld [vmem:[%s2 + $0x100] sm:$0xff]
        %v470 = vld [vmem:[%s2 + $0x108] sm:$0xff]
        %v471 = vld [vmem:[%s2 + $0x110] sm:$0xff]
        %v472 = vld [vmem:[%s2 + $0x118] sm:$0xff]
        %v473 = vld [vmem:[%s2 + $0x120] sm:$0xff]
        %v474 = vld [vmem:[%s2 + $0x128] sm:$0xff]
        %v475 = vld [vmem:[%s2 + $0x130] sm:$0xff]
        %v476 = vld [vmem:[%s2 + $0x138] sm:$0xff]
        %v477 = vld [vmem:[%s2 + $0x140] sm:$0xff]
        %v478 = vld [vmem:[%s2 + $0x148] sm:$0xff]
        %v479 = vld [vmem:[%s2 + $0x150] sm:$0xff]
        %v480 = vld [vmem:[%s2 + $0x158] sm:$0xff]
        %v481 = vld [vmem:[%s2 + $0x160] sm:$0xff]
        %v482 = vld [vmem:[%s2 + $0x168] sm:$0xff]
        %v483 = vld [vmem:[%s2 + $0x170] sm:$0xff]
        %v484 = vld [vmem:[%s2 + $0x178] sm:$0xff]
        %v485 = vld [vmem:[%s3] sm:$0x1]
        %v486 = vld [vmem:[%s3 + $0x1] sm:$0x1]
        %v487 = vld [vmem:[%s3 + $0x2] sm:$0x1]
        %v488 = vld [vmem:[%s3 + $0x3] sm:$0x1]
        %v489 = vld [vmem:[%s4] sm:$0xff]
        %v490 = vld [vmem:[%s4 + $0x8] sm:$0xff]
        %v491 = vld [vmem:[%s4 + $0x10] sm:$0xff]
        %v492 = vld [vmem:[%s4 + $0x18] sm:$0xff]
        %v493 = vld [vmem:[%s5] sm:$0xff]
        %v494 = vld [vmem:[%s5 + $0x8] sm:$0xff]
        %v495 = vld [vmem:[%s5 + $0x10] sm:$0xff]
        %v496 = vld [vmem:[%s5 + $0x18] sm:$0xff]
        %v497 = vld [vmem:[%s6] sm:$0xff]
        %v498 = vld [vmem:[%s6 + $0x8] sm:$0xff]
        %v499 = vld [vmem:[%s6 + $0x10] sm:$0xff]
        %v500 = vld [vmem:[%s6 + $0x18] sm:$0xff]
        %v501 = vld [vmem:[%s6 + $0x20] sm:$0xff]
        %v502 = vld [vmem:[%s6 + $0x28] sm:$0xff]
        %v503 = vld [vmem:[%s6 + $0x30] sm:$0xff]
        %v504 = vld [vmem:[%s6 + $0x38] sm:$0xff]
        %v505 = vld [vmem:[%s6 + $0x40] sm:$0xff]
        %v506 = vld [vmem:[%s6 + $0x48] sm:$0xff]
        %v507 = vld [vmem:[%s6 + $0x50] sm:$0xff]
        %v508 = vld [vmem:[%s6 + $0x58] sm:$0xff]
        %v509 = vld [vmem:[%s6 + $0x60] sm:$0xff]
        %v510 = vld [vmem:[%s6 + $0x68] sm:$0xff]
        %v511 = vld [vmem:[%s6 + $0x70] sm:$0xff]
        %v512 = vld [vmem:[%s6 + $0x78] sm:$0xff]
        %v513 = vld [vmem:[%s7] sm:$0xff]
        %v514 = vsel %vm412, %v436, 0.0
        %515 = vadd.xlane.f32.xlu0 %v514
        %v516 = vpop.xlane.xlu0 %515
        %v517 = vmul.f32 %v516, %v416
        %v518 = vsub.f32 %v436, %v517
        %v519 = vmul.f32 %v518, %v518
        %v520 = vsel %vm412, %v519, 0.0
        %521 = vadd.xlane.f32.xlu0 %v520
        %v522 = vpop.xlane.xlu0 %521
        %v523 = vmul.f32 %v522, %v416
        %v524 = vadd.f32 %v523, 1e-05
        %v525 = vrsqrt.pop %v524
        %v526 = vmul.f32 %v518, %v525
        %v527 = vlaneseq
        %v528 = vshrl.u32 %v527, 7
        %v529 = vsub.s32 0, %v528
        %v530 = vrot.slane %v513, %v529
        %v531 = vmul.f32 %v526, %v530
        %v532 = vlaneseq
        %v533 = vshrl.u32 %v532, 7
        %v534 = vsub.s32 1, %v533
        %v535 = vrot.slane %v513, %v534
        %v536 = vadd.f32 %v531, %v535
        %v541 = vlaneseq
        %v542 = vshrl.u32 %v541, 7
        %v543 = vsub.s32 0, %v542
        %v544 = vrot.slane %v485, %v543
        %v545 = vlaneseq
        %v546 = vshrl.u32 %v545, 7
        %v547 = vsub.s32 0, %v546
        %v548 = vrot.slane %v486, %v547
        %v549 = vlaneseq
        %v550 = vshrl.u32 %v549, 7
        %v551 = vsub.s32 0, %v550
        %v552 = vrot.slane %v487, %v551
        %v553 = vlaneseq
        %v554 = vshrl.u32 %v553, 7
        %v555 = vsub.s32 0, %v554
        %v556 = vrot.slane %v488, %v555
        %vm561 = vcmask 261120
        %v563 = vsel %vm561, %v536, 0
        %565 = vmatprep.subr.mxu0 0.0
        %566 = vmatpush1.msra.mxu0 0.0
        %567 = vmatprep.subr.mxu0 0.0
        %568 = vmatpush1.msra.mxu0 0.0
        %569 = vmatprep.subr.mxu0 0.0
        %570 = vmatpush1.msra.mxu0 0.0
        %571 = vmatprep.subr.mxu0 0.0
        %572 = vmatpush1.msra.mxu0 0.0
        %573 = vmatprep.subr.mxu0 0.0
        %574 = vmatpush1.msra.mxu0 0.0
        %575 = vmatprep.subr.mxu0 0.0
        %576 = vmatpush1.msra.mxu0 0.0
        %577 = vmatprep.subr.mxu0 0.0
        %578 = vmatpush1.msra.mxu0 0.0
        %579 = vmatprep.subr.mxu0 0.0
        %580 = vmatpush1.msra.mxu0 0.0
        %581 = vmatprep.subr.mxu0 0.0
        %582 = vmatpush1.msra.mxu0 0.0
        %583 = vmatprep.subr.mxu0 0.0
        %584 = vmatpush1.msra.mxu0 0.0
        %585 = vmatprep.subr.mxu0 0.0
        %586 = vmatpush1.msra.mxu0 0.0
        %587 = vmatprep.subr.mxu0 0.0
        %588 = vmatpush1.msra.mxu0 0.0
        %589 = vmatprep.subr.mxu0 0.0
        %590 = vmatpush1.msra.mxu0 %v440
        %591 = vmatprep.subr.mxu0 0.0
        %592 = vmatpush1.msra.mxu0 %v439
        %593 = vmatprep.subr.mxu0 0.0
        %594 = vmatpush1.msra.mxu0 %v438
        %595 = vmatprep.subr.mxu0 0.0
        %596 = vmatpush1.msra.mxu0 %v437
        %597 = vmatprep.subr.mxu0 0.0
        %598 = vmatpush2.msra.mxu0 0.0
        %599 = vmatprep.subr.mxu0 0.0
        %600 = vmatpush2.msra.mxu0 0.0
        %601 = vmatprep.subr.mxu0 0.0
        %602 = vmatpush2.msra.mxu0 0.0
        %603 = vmatprep.subr.mxu0 0.0
        %604 = vmatpush2.msra.mxu0 0.0
        %605 = vmatprep.subr.mxu0 0.0
        %606 = vmatpush2.msra.mxu0 0.0
        %607 = vmatprep.subr.mxu0 0.0
        %608 = vmatpush2.msra.mxu0 0.0
        %609 = vmatprep.subr.mxu0 0.0
        %610 = vmatpush2.msra.mxu0 0.0
        %611 = vmatprep.subr.mxu0 0.0
        %612 = vmatpush2.msra.mxu0 0.0
        %613 = vmatprep.subr.mxu0 0.0
        %614 = vmatpush2.msra.mxu0 0.0
        %615 = vmatprep.subr.mxu0 0.0
        %616 = vmatpush2.msra.mxu0 0.0
        %617 = vmatprep.subr.mxu0 0.0
        %618 = vmatpush2.msra.mxu0 0.0
        %619 = vmatprep.subr.mxu0 0.0
        %620 = vmatpush2.msra.mxu0 0.0
        %621 = vmatprep.subr.mxu0 0.0
        %622 = vmatpush2.msra.mxu0 0.0
        %623 = vmatprep.subr.mxu0 0.0
        %624 = vmatpush2.msra.mxu0 0.0
        %625 = vmatprep.subr.mxu0 0.0
        %626 = vmatpush2.msra.mxu0 0.0
        %627 = vmatprep.subr.mxu0 0.0
        %628 = vmatpush2.msra.mxu0 0.0
        %629 = vmatprep.mubr.f32.mxu0 0.0
        %630 = vmatmul.mubr.f32.gmra.mxu0 %v563
        %v631 = vpop.f32.mrf.mxu0
        %v632 = vadd.f32 %v544, %v631
        %v633 = vpop.f32.mrf.mxu0
        %634 = vdwg.mxu0
        %635 = vmatprep.subr.mxu0 0.0
        %636 = vmatpush1.msra.mxu0 0.0
        %637 = vmatprep.subr.mxu0 0.0
        %638 = vmatpush1.msra.mxu0 0.0
        %639 = vmatprep.subr.mxu0 0.0
        %640 = vmatpush1.msra.mxu0 0.0
        %641 = vmatprep.subr.mxu0 0.0
        %642 = vmatpush1.msra.mxu0 0.0
        %643 = vmatprep.subr.mxu0 0.0
        %644 = vmatpush1.msra.mxu0 0.0
        %645 = vmatprep.subr.mxu0 0.0
        %646 = vmatpush1.msra.mxu0 0.0
        %647 = vmatprep.subr.mxu0 0.0
        %648 = vmatpush1.msra.mxu0 0.0
        %649 = vmatprep.subr.mxu0 0.0
        %650 = vmatpush1.msra.mxu0 0.0
        %651 = vmatprep.subr.mxu0 0.0
        %652 = vmatpush1.msra.mxu0 0.0
        %653 = vmatprep.subr.mxu0 0.0
        %654 = vmatpush1.msra.mxu0 0.0
        %655 = vmatprep.subr.mxu0 0.0
        %656 = vmatpush1.msra.mxu0 0.0
        %657 = vmatprep.subr.mxu0 0.0
        %658 = vmatpush1.msra.mxu0 0.0
        %659 = vmatprep.subr.mxu0 0.0
        %660 = vmatpush1.msra.mxu0 %v444
        %661 = vmatprep.subr.mxu0 0.0
        %662 = vmatpush1.msra.mxu0 %v443
        %663 = vmatprep.subr.mxu0 0.0
        %664 = vmatpush1.msra.mxu0 %v442
        %665 = vmatprep.subr.mxu0 0.0
        %666 = vmatpush1.msra.mxu0 %v441
        %667 = vmatprep.subr.mxu0 0.0
        %668 = vmatpush2.msra.mxu0 0.0
        %669 = vmatprep.subr.mxu0 0.0
        %670 = vmatpush2.msra.mxu0 0.0
        %671 = vmatprep.subr.mxu0 0.0
        %672 = vmatpush2.msra.mxu0 0.0
        %673 = vmatprep.subr.mxu0 0.0
        %674 = vmatpush2.msra.mxu0 0.0
        %675 = vmatprep.subr.mxu0 0.0
        %676 = vmatpush2.msra.mxu0 0.0
        %677 = vmatprep.subr.mxu0 0.0
        %678 = vmatpush2.msra.mxu0 0.0
        %679 = vmatprep.subr.mxu0 0.0
        %680 = vmatpush2.msra.mxu0 0.0
        %681 = vmatprep.subr.mxu0 0.0
        %682 = vmatpush2.msra.mxu0 0.0
        %683 = vmatprep.subr.mxu0 0.0
        %684 = vmatpush2.msra.mxu0 0.0
        %685 = vmatprep.subr.mxu0 0.0
        %686 = vmatpush2.msra.mxu0 0.0
        %687 = vmatprep.subr.mxu0 0.0
        %688 = vmatpush2.msra.mxu0 0.0
        %689 = vmatprep.subr.mxu0 0.0
        %690 = vmatpush2.msra.mxu0 0.0
        %691 = vmatprep.subr.mxu0 0.0
        %692 = vmatpush2.msra.mxu0 0.0
        %693 = vmatprep.subr.mxu0 0.0
        %694 = vmatpush2.msra.mxu0 0.0
        %695 = vmatprep.subr.mxu0 0.0
        %696 = vmatpush2.msra.mxu0 0.0
        %697 = vmatprep.subr.mxu0 0.0
        %698 = vmatpush2.msra.mxu0 0.0
        %699 = vmatprep.mubr.f32.mxu0 0.0
        %700 = vmatmul.mubr.f32.gmra.mxu0 %v563
        %v701 = vpop.f32.mrf.mxu0
        %v702 = vadd.f32 %v548, %v701
        %v703 = vpop.f32.mrf.mxu0
        %704 = vdwg.mxu0
        %705 = vmatprep.subr.mxu0 0.0
        %706 = vmatpush1.msra.mxu0 0.0
        %707 = vmatprep.subr.mxu0 0.0
        %708 = vmatpush1.msra.mxu0 0.0
        %709 = vmatprep.subr.mxu0 0.0
        %710 = vmatpush1.msra.mxu0 0.0
        %711 = vmatprep.subr.mxu0 0.0
        %712 = vmatpush1.msra.mxu0 0.0
        %713 = vmatprep.subr.mxu0 0.0
        %714 = vmatpush1.msra.mxu0 0.0
        %715 = vmatprep.subr.mxu0 0.0
        %716 = vmatpush1.msra.mxu0 0.0
        %717 = vmatprep.subr.mxu0 0.0
        %718 = vmatpush1.msra.mxu0 0.0
        %719 = vmatprep.subr.mxu0 0.0
        %720 = vmatpush1.msra.mxu0 0.0
        %721 = vmatprep.subr.mxu0 0.0
        %722 = vmatpush1.msra.mxu0 0.0
        %723 = vmatprep.subr.mxu0 0.0
        %724 = vmatpush1.msra.mxu0 0.0
        %725 = vmatprep.subr.mxu0 0.0
        %726 = vmatpush1.msra.mxu0 0.0
        %727 = vmatprep.subr.mxu0 0.0
        %728 = vmatpush1.msra.mxu0 0.0
        %729 = vmatprep.subr.mxu0 0.0
        %730 = vmatpush1.msra.mxu0 %v448
        %731 = vmatprep.subr.mxu0 0.0
        %732 = vmatpush1.msra.mxu0 %v447
        %733 = vmatprep.subr.mxu0 0.0
        %734 = vmatpush1.msra.mxu0 %v446
        %735 = vmatprep.subr.mxu0 0.0
        %736 = vmatpush1.msra.mxu0 %v445
        %737 = vmatprep.subr.mxu0 0.0
        %738 = vmatpush2.msra.mxu0 0.0
        %739 = vmatprep.subr.mxu0 0.0
        %740 = vmatpush2.msra.mxu0 0.0
        %741 = vmatprep.subr.mxu0 0.0
        %742 = vmatpush2.msra.mxu0 0.0
        %743 = vmatprep.subr.mxu0 0.0
        %744 = vmatpush2.msra.mxu0 0.0
        %745 = vmatprep.subr.mxu0 0.0
        %746 = vmatpush2.msra.mxu0 0.0
        %747 = vmatprep.subr.mxu0 0.0
        %748 = vmatpush2.msra.mxu0 0.0
        %749 = vmatprep.subr.mxu0 0.0
        %750 = vmatpush2.msra.mxu0 0.0
        %751 = vmatprep.subr.mxu0 0.0
        %752 = vmatpush2.msra.mxu0 0.0
        %753 = vmatprep.subr.mxu0 0.0
        %754 = vmatpush2.msra.mxu0 0.0
        %755 = vmatprep.subr.mxu0 0.0
        %756 = vmatpush2.msra.mxu0 0.0
        %757 = vmatprep.subr.mxu0 0.0
        %758 = vmatpush2.msra.mxu0 0.0
        %759 = vmatprep.subr.mxu0 0.0
        %760 = vmatpush2.msra.mxu0 0.0
        %761 = vmatprep.subr.mxu0 0.0
        %762 = vmatpush2.msra.mxu0 0.0
        %763 = vmatprep.subr.mxu0 0.0
        %764 = vmatpush2.msra.mxu0 0.0
        %765 = vmatprep.subr.mxu0 0.0
        %766 = vmatpush2.msra.mxu0 0.0
        %767 = vmatprep.subr.mxu0 0.0
        %768 = vmatpush2.msra.mxu0 0.0
        %769 = vmatprep.mubr.f32.mxu0 0.0
        %770 = vmatmul.mubr.f32.gmra.mxu0 %v563
        %v771 = vpop.f32.mrf.mxu0
        %v772 = vadd.f32 %v552, %v771
        %v773 = vpop.f32.mrf.mxu0
        %774 = vdwg.mxu0
        %775 = vmatprep.subr.mxu0 0.0
        %776 = vmatpush1.msra.mxu0 0.0
        %777 = vmatprep.subr.mxu0 0.0
        %778 = vmatpush1.msra.mxu0 0.0
        %779 = vmatprep.subr.mxu0 0.0
        %780 = vmatpush1.msra.mxu0 0.0
        %781 = vmatprep.subr.mxu0 0.0
        %782 = vmatpush1.msra.mxu0 0.0
        %783 = vmatprep.subr.mxu0 0.0
        %784 = vmatpush1.msra.mxu0 0.0
        %785 = vmatprep.subr.mxu0 0.0
        %786 = vmatpush1.msra.mxu0 0.0
        %787 = vmatprep.subr.mxu0 0.0
        %788 = vmatpush1.msra.mxu0 0.0
        %789 = vmatprep.subr.mxu0 0.0
        %790 = vmatpush1.msra.mxu0 0.0
        %791 = vmatprep.subr.mxu0 0.0
        %792 = vmatpush1.msra.mxu0 0.0
        %793 = vmatprep.subr.mxu0 0.0
        %794 = vmatpush1.msra.mxu0 0.0
        %795 = vmatprep.subr.mxu0 0.0
        %796 = vmatpush1.msra.mxu0 0.0
        %797 = vmatprep.subr.mxu0 0.0
        %798 = vmatpush1.msra.mxu0 0.0
        %799 = vmatprep.subr.mxu0 0.0
        %800 = vmatpush1.msra.mxu0 %v452
        %801 = vmatprep.subr.mxu0 0.0
        %802 = vmatpush1.msra.mxu0 %v451
        %803 = vmatprep.subr.mxu0 0.0
        %804 = vmatpush1.msra.mxu0 %v450
        %805 = vmatprep.subr.mxu0 0.0
        %806 = vmatpush1.msra.mxu0 %v449
        %807 = vmatprep.subr.mxu0 0.0
        %808 = vmatpush2.msra.mxu0 0.0
        %809 = vmatprep.subr.mxu0 0.0
        %810 = vmatpush2.msra.mxu0 0.0
        %811 = vmatprep.subr.mxu0 0.0
        %812 = vmatpush2.msra.mxu0 0.0
        %813 = vmatprep.subr.mxu0 0.0
        %814 = vmatpush2.msra.mxu0 0.0
        %815 = vmatprep.subr.mxu0 0.0
        %816 = vmatpush2.msra.mxu0 0.0
        %817 = vmatprep.subr.mxu0 0.0
        %818 = vmatpush2.msra.mxu0 0.0
        %819 = vmatprep.subr.mxu0 0.0
        %820 = vmatpush2.msra.mxu0 0.0
        %821 = vmatprep.subr.mxu0 0.0
        %822 = vmatpush2.msra.mxu0 0.0
        %823 = vmatprep.subr.mxu0 0.0
        %824 = vmatpush2.msra.mxu0 0.0
        %825 = vmatprep.subr.mxu0 0.0
        %826 = vmatpush2.msra.mxu0 0.0
        %827 = vmatprep.subr.mxu0 0.0
        %828 = vmatpush2.msra.mxu0 0.0
        %829 = vmatprep.subr.mxu0 0.0
        %830 = vmatpush2.msra.mxu0 0.0
        %831 = vmatprep.subr.mxu0 0.0
        %832 = vmatpush2.msra.mxu0 0.0
        %833 = vmatprep.subr.mxu0 0.0
        %834 = vmatpush2.msra.mxu0 0.0
        %835 = vmatprep.subr.mxu0 0.0
        %836 = vmatpush2.msra.mxu0 0.0
        %837 = vmatprep.subr.mxu0 0.0
        %838 = vmatpush2.msra.mxu0 0.0
        %839 = vmatprep.mubr.f32.mxu0 0.0
        %840 = vmatmul.mubr.f32.gmra.mxu0 %v563
        %v841 = vpop.f32.mrf.mxu0
        %v842 = vadd.f32 %v556, %v841
        %v843 = vpop.f32.mrf.mxu0
        %844 = vdwg.mxu0
        %845 = vmatprep.subr.mxu0 0.0
        %846 = vmatpush1.msra.mxu0 0.0
        %847 = vmatprep.subr.mxu0 0.0
        %848 = vmatpush1.msra.mxu0 0.0
        %849 = vmatprep.subr.mxu0 0.0
        %850 = vmatpush1.msra.mxu0 0.0
        %851 = vmatprep.subr.mxu0 0.0
        %852 = vmatpush1.msra.mxu0 0.0
        %853 = vmatprep.subr.mxu0 0.0
        %854 = vmatpush1.msra.mxu0 0.0
        %855 = vmatprep.subr.mxu0 0.0
        %856 = vmatpush1.msra.mxu0 0.0
        %857 = vmatprep.subr.mxu0 0.0
        %858 = vmatpush1.msra.mxu0 0.0
        %859 = vmatprep.subr.mxu0 0.0
        %860 = vmatpush1.msra.mxu0 0.0
        %861 = vmatprep.subr.mxu0 0.0
        %862 = vmatpush1.msra.mxu0 0.0
        %863 = vmatprep.subr.mxu0 0.0
        %864 = vmatpush1.msra.mxu0 0.0
        %865 = vmatprep.subr.mxu0 0.0
        %866 = vmatpush1.msra.mxu0 0.0
        %867 = vmatprep.subr.mxu0 0.0
        %868 = vmatpush1.msra.mxu0 0.0
        %869 = vmatprep.subr.mxu0 0.0
        %870 = vmatpush1.msra.mxu0 %v456
        %871 = vmatprep.subr.mxu0 0.0
        %872 = vmatpush1.msra.mxu0 %v455
        %873 = vmatprep.subr.mxu0 0.0
        %874 = vmatpush1.msra.mxu0 %v454
        %875 = vmatprep.subr.mxu0 0.0
        %876 = vmatpush1.msra.mxu0 %v453
        %877 = vmatprep.subr.mxu0 0.0
        %878 = vmatpush2.msra.mxu0 0.0
        %879 = vmatprep.subr.mxu0 0.0
        %880 = vmatpush2.msra.mxu0 0.0
        %881 = vmatprep.subr.mxu0 0.0
        %882 = vmatpush2.msra.mxu0 0.0
        %883 = vmatprep.subr.mxu0 0.0
        %884 = vmatpush2.msra.mxu0 0.0
        %885 = vmatprep.subr.mxu0 0.0
        %886 = vmatpush2.msra.mxu0 0.0
        %887 = vmatprep.subr.mxu0 0.0
        %888 = vmatpush2.msra.mxu0 0.0
        %889 = vmatprep.subr.mxu0 0.0
        %890 = vmatpush2.msra.mxu0 0.0
        %891 = vmatprep.subr.mxu0 0.0
        %892 = vmatpush2.msra.mxu0 0.0
        %893 = vmatprep.subr.mxu0 0.0
        %894 = vmatpush2.msra.mxu0 0.0
        %895 = vmatprep.subr.mxu0 0.0
        %896 = vmatpush2.msra.mxu0 0.0
        %897 = vmatprep.subr.mxu0 0.0
        %898 = vmatpush2.msra.mxu0 0.0
        %899 = vmatprep.subr.mxu0 0.0
        %900 = vmatpush2.msra.mxu0 0.0
        %901 = vmatprep.subr.mxu0 0.0
        %902 = vmatpush2.msra.mxu0 0.0
        %903 = vmatprep.subr.mxu0 0.0
        %904 = vmatpush2.msra.mxu0 0.0
        %905 = vmatprep.subr.mxu0 0.0
        %906 = vmatpush2.msra.mxu0 0.0
        %907 = vmatprep.subr.mxu0 0.0
        %908 = vmatpush2.msra.mxu0 0.0
        %909 = vmatprep.mubr.f32.mxu0 0.0
        %910 = vmatmul.mubr.f32.gmra.mxu0 %v563
        %v911 = vpop.f32.mrf.mxu0
        %v912 = vadd.f32 0.0, %v911
        %v913 = vpop.f32.mrf.mxu0
        %914 = vdwg.mxu0
        %915 = vmatprep.subr.mxu0 0.0
        %916 = vmatpush1.msra.mxu0 0.0
        %917 = vmatprep.subr.mxu0 0.0
        %918 = vmatpush1.msra.mxu0 0.0
        %919 = vmatprep.subr.mxu0 0.0
        %920 = vmatpush1.msra.mxu0 0.0
        %921 = vmatprep.subr.mxu0 0.0
        %922 = vmatpush1.msra.mxu0 0.0
        %923 = vmatprep.subr.mxu0 0.0
        %924 = vmatpush1.msra.mxu0 0.0
        %925 = vmatprep.subr.mxu0 0.0
        %926 = vmatpush1.msra.mxu0 0.0
        %927 = vmatprep.subr.mxu0 0.0
        %928 = vmatpush1.msra.mxu0 0.0
        %929 = vmatprep.subr.mxu0 0.0
        %930 = vmatpush1.msra.mxu0 0.0
        %931 = vmatprep.subr.mxu0 0.0
        %932 = vmatpush1.msra.mxu0 0.0
        %933 = vmatprep.subr.mxu0 0.0
        %934 = vmatpush1.msra.mxu0 0.0
        %935 = vmatprep.subr.mxu0 0.0
        %936 = vmatpush1.msra.mxu0 0.0
        %937 = vmatprep.subr.mxu0 0.0
        %938 = vmatpush1.msra.mxu0 0.0
        %939 = vmatprep.subr.mxu0 0.0
        %940 = vmatpush1.msra.mxu0 %v460
        %941 = vmatprep.subr.mxu0 0.0
        %942 = vmatpush1.msra.mxu0 %v459
        %943 = vmatprep.subr.mxu0 0.0
        %944 = vmatpush1.msra.mxu0 %v458
        %945 = vmatprep.subr.mxu0 0.0
        %946 = vmatpush1.msra.mxu0 %v457
        %947 = vmatprep.subr.mxu0 0.0
        %948 = vmatpush2.msra.mxu0 0.0
        %949 = vmatprep.subr.mxu0 0.0
        %950 = vmatpush2.msra.mxu0 0.0
        %951 = vmatprep.subr.mxu0 0.0
        %952 = vmatpush2.msra.mxu0 0.0
        %953 = vmatprep.subr.mxu0 0.0
        %954 = vmatpush2.msra.mxu0 0.0
        %955 = vmatprep.subr.mxu0 0.0
        %956 = vmatpush2.msra.mxu0 0.0
        %957 = vmatprep.subr.mxu0 0.0
        %958 = vmatpush2.msra.mxu0 0.0
        %959 = vmatprep.subr.mxu0 0.0
        %960 = vmatpush2.msra.mxu0 0.0
        %961 = vmatprep.subr.mxu0 0.0
        %962 = vmatpush2.msra.mxu0 0.0
        %963 = vmatprep.subr.mxu0 0.0
        %964 = vmatpush2.msra.mxu0 0.0
        %965 = vmatprep.subr.mxu0 0.0
        %966 = vmatpush2.msra.mxu0 0.0
        %967 = vmatprep.subr.mxu0 0.0
        %968 = vmatpush2.msra.mxu0 0.0
        %969 = vmatprep.subr.mxu0 0.0
        %970 = vmatpush2.msra.mxu0 0.0
        %971 = vmatprep.subr.mxu0 0.0
        %972 = vmatpush2.msra.mxu0 0.0
        %973 = vmatprep.subr.mxu0 0.0
        %974 = vmatpush2.msra.mxu0 0.0
        %975 = vmatprep.subr.mxu0 0.0
        %976 = vmatpush2.msra.mxu0 0.0
        %977 = vmatprep.subr.mxu0 0.0
        %978 = vmatpush2.msra.mxu0 0.0
        %979 = vmatprep.mubr.f32.mxu0 0.0
        %980 = vmatmul.mubr.f32.gmra.mxu0 %v563
        %v981 = vpop.f32.mrf.mxu0
        %v982 = vadd.f32 0.0, %v981
        %v983 = vpop.f32.mrf.mxu0
        %984 = vdwg.mxu0
        %985 = vmatprep.subr.mxu0 0.0
        %986 = vmatpush1.msra.mxu0 0.0
        %987 = vmatprep.subr.mxu0 0.0
        %988 = vmatpush1.msra.mxu0 0.0
        %989 = vmatprep.subr.mxu0 0.0
        %990 = vmatpush1.msra.mxu0 0.0
        %991 = vmatprep.subr.mxu0 0.0
        %992 = vmatpush1.msra.mxu0 0.0
        %993 = vmatprep.subr.mxu0 0.0
        %994 = vmatpush1.msra.mxu0 0.0
        %995 = vmatprep.subr.mxu0 0.0
        %996 = vmatpush1.msra.mxu0 0.0
        %997 = vmatprep.subr.mxu0 0.0
        %998 = vmatpush1.msra.mxu0 0.0
        %999 = vmatprep.subr.mxu0 0.0
        %1000 = vmatpush1.msra.mxu0 0.0
        %1001 = vmatprep.subr.mxu0 0.0
        %1002 = vmatpush1.msra.mxu0 0.0
        %1003 = vmatprep.subr.mxu0 0.0
        %1004 = vmatpush1.msra.mxu0 0.0
        %1005 = vmatprep.subr.mxu0 0.0
        %1006 = vmatpush1.msra.mxu0 0.0
        %1007 = vmatprep.subr.mxu0 0.0
        %1008 = vmatpush1.msra.mxu0 0.0
        %1009 = vmatprep.subr.mxu0 0.0
        %1010 = vmatpush1.msra.mxu0 %v464
        %1011 = vmatprep.subr.mxu0 0.0
        %1012 = vmatpush1.msra.mxu0 %v463
        %1013 = vmatprep.subr.mxu0 0.0
        %1014 = vmatpush1.msra.mxu0 %v462
        %1015 = vmatprep.subr.mxu0 0.0
        %1016 = vmatpush1.msra.mxu0 %v461
        %1017 = vmatprep.subr.mxu0 0.0
        %1018 = vmatpush2.msra.mxu0 0.0
        %1019 = vmatprep.subr.mxu0 0.0
        %1020 = vmatpush2.msra.mxu0 0.0
        %1021 = vmatprep.subr.mxu0 0.0
        %1022 = vmatpush2.msra.mxu0 0.0
        %1023 = vmatprep.subr.mxu0 0.0
        %1024 = vmatpush2.msra.mxu0 0.0
        %1025 = vmatprep.subr.mxu0 0.0
        %1026 = vmatpush2.msra.mxu0 0.0
        %1027 = vmatprep.subr.mxu0 0.0
        %1028 = vmatpush2.msra.mxu0 0.0
        %1029 = vmatprep.subr.mxu0 0.0
        %1030 = vmatpush2.msra.mxu0 0.0
        %1031 = vmatprep.subr.mxu0 0.0
        %1032 = vmatpush2.msra.mxu0 0.0
        %1033 = vmatprep.subr.mxu0 0.0
        %1034 = vmatpush2.msra.mxu0 0.0
        %1035 = vmatprep.subr.mxu0 0.0
        %1036 = vmatpush2.msra.mxu0 0.0
        %1037 = vmatprep.subr.mxu0 0.0
        %1038 = vmatpush2.msra.mxu0 0.0
        %1039 = vmatprep.subr.mxu0 0.0
        %1040 = vmatpush2.msra.mxu0 0.0
        %1041 = vmatprep.subr.mxu0 0.0
        %1042 = vmatpush2.msra.mxu0 0.0
        %1043 = vmatprep.subr.mxu0 0.0
        %1044 = vmatpush2.msra.mxu0 0.0
        %1045 = vmatprep.subr.mxu0 0.0
        %1046 = vmatpush2.msra.mxu0 0.0
        %1047 = vmatprep.subr.mxu0 0.0
        %1048 = vmatpush2.msra.mxu0 0.0
        %1049 = vmatprep.mubr.f32.mxu0 0.0
        %1050 = vmatmul.mubr.f32.gmra.mxu0 %v563
        %v1051 = vpop.f32.mrf.mxu0
        %v1052 = vadd.f32 0.0, %v1051
        %v1053 = vpop.f32.mrf.mxu0
        %1054 = vdwg.mxu0
        %1055 = vmatprep.subr.mxu0 0.0
        %1056 = vmatpush1.msra.mxu0 0.0
        %1057 = vmatprep.subr.mxu0 0.0
        %1058 = vmatpush1.msra.mxu0 0.0
        %1059 = vmatprep.subr.mxu0 0.0
        %1060 = vmatpush1.msra.mxu0 0.0
        %1061 = vmatprep.subr.mxu0 0.0
        %1062 = vmatpush1.msra.mxu0 0.0
        %1063 = vmatprep.subr.mxu0 0.0
        %1064 = vmatpush1.msra.mxu0 0.0
        %1065 = vmatprep.subr.mxu0 0.0
        %1066 = vmatpush1.msra.mxu0 0.0
        %1067 = vmatprep.subr.mxu0 0.0
        %1068 = vmatpush1.msra.mxu0 0.0
        %1069 = vmatprep.subr.mxu0 0.0
        %1070 = vmatpush1.msra.mxu0 0.0
        %1071 = vmatprep.subr.mxu0 0.0
        %1072 = vmatpush1.msra.mxu0 0.0
        %1073 = vmatprep.subr.mxu0 0.0
        %1074 = vmatpush1.msra.mxu0 0.0
        %1075 = vmatprep.subr.mxu0 0.0
        %1076 = vmatpush1.msra.mxu0 0.0
        %1077 = vmatprep.subr.mxu0 0.0
        %1078 = vmatpush1.msra.mxu0 0.0
        %1079 = vmatprep.subr.mxu0 0.0
        %1080 = vmatpush1.msra.mxu0 %v468
        %1081 = vmatprep.subr.mxu0 0.0
        %1082 = vmatpush1.msra.mxu0 %v467
        %1083 = vmatprep.subr.mxu0 0.0
        %1084 = vmatpush1.msra.mxu0 %v466
        %1085 = vmatprep.subr.mxu0 0.0
        %1086 = vmatpush1.msra.mxu0 %v465
        %1087 = vmatprep.subr.mxu0 0.0
        %1088 = vmatpush2.msra.mxu0 0.0
        %1089 = vmatprep.subr.mxu0 0.0
        %1090 = vmatpush2.msra.mxu0 0.0
        %1091 = vmatprep.subr.mxu0 0.0
        %1092 = vmatpush2.msra.mxu0 0.0
        %1093 = vmatprep.subr.mxu0 0.0
        %1094 = vmatpush2.msra.mxu0 0.0
        %1095 = vmatprep.subr.mxu0 0.0
        %1096 = vmatpush2.msra.mxu0 0.0
        %1097 = vmatprep.subr.mxu0 0.0
        %1098 = vmatpush2.msra.mxu0 0.0
        %1099 = vmatprep.subr.mxu0 0.0
        %1100 = vmatpush2.msra.mxu0 0.0
        %1101 = vmatprep.subr.mxu0 0.0
        %1102 = vmatpush2.msra.mxu0 0.0
        %1103 = vmatprep.subr.mxu0 0.0
        %1104 = vmatpush2.msra.mxu0 0.0
        %1105 = vmatprep.subr.mxu0 0.0
        %1106 = vmatpush2.msra.mxu0 0.0
        %1107 = vmatprep.subr.mxu0 0.0
        %1108 = vmatpush2.msra.mxu0 0.0
        %1109 = vmatprep.subr.mxu0 0.0
        %1110 = vmatpush2.msra.mxu0 0.0
        %1111 = vmatprep.subr.mxu0 0.0
        %1112 = vmatpush2.msra.mxu0 0.0
        %1113 = vmatprep.subr.mxu0 0.0
        %1114 = vmatpush2.msra.mxu0 0.0
        %1115 = vmatprep.subr.mxu0 0.0
        %1116 = vmatpush2.msra.mxu0 0.0
        %1117 = vmatprep.subr.mxu0 0.0
        %1118 = vmatpush2.msra.mxu0 0.0
        %1119 = vmatprep.mubr.f32.mxu0 0.0
        %1120 = vmatmul.mubr.f32.gmra.mxu0 %v563
        %v1121 = vpop.f32.mrf.mxu0
        %v1122 = vadd.f32 0.0, %v1121
        %v1123 = vpop.f32.mrf.mxu0
        %1124 = vdwg.mxu0
        %1125 = vmatprep.subr.mxu0 0.0
        %1126 = vmatpush1.msra.mxu0 0.0
        %1127 = vmatprep.subr.mxu0 0.0
        %1128 = vmatpush1.msra.mxu0 0.0
        %1129 = vmatprep.subr.mxu0 0.0
        %1130 = vmatpush1.msra.mxu0 0.0
        %1131 = vmatprep.subr.mxu0 0.0
        %1132 = vmatpush1.msra.mxu0 0.0
        %1133 = vmatprep.subr.mxu0 0.0
        %1134 = vmatpush1.msra.mxu0 0.0
        %1135 = vmatprep.subr.mxu0 0.0
        %1136 = vmatpush1.msra.mxu0 0.0
        %1137 = vmatprep.subr.mxu0 0.0
        %1138 = vmatpush1.msra.mxu0 0.0
        %1139 = vmatprep.subr.mxu0 0.0
        %1140 = vmatpush1.msra.mxu0 0.0
        %1141 = vmatprep.subr.mxu0 0.0
        %1142 = vmatpush1.msra.mxu0 0.0
        %1143 = vmatprep.subr.mxu0 0.0
        %1144 = vmatpush1.msra.mxu0 0.0
        %1145 = vmatprep.subr.mxu0 0.0
        %1146 = vmatpush1.msra.mxu0 0.0
        %1147 = vmatprep.subr.mxu0 0.0
        %1148 = vmatpush1.msra.mxu0 0.0
        %1149 = vmatprep.subr.mxu0 0.0
        %1150 = vmatpush1.msra.mxu0 %v472
        %1151 = vmatprep.subr.mxu0 0.0
        %1152 = vmatpush1.msra.mxu0 %v471
        %1153 = vmatprep.subr.mxu0 0.0
        %1154 = vmatpush1.msra.mxu0 %v470
        %1155 = vmatprep.subr.mxu0 0.0
        %1156 = vmatpush1.msra.mxu0 %v469
        %1157 = vmatprep.subr.mxu0 0.0
        %1158 = vmatpush2.msra.mxu0 0.0
        %1159 = vmatprep.subr.mxu0 0.0
        %1160 = vmatpush2.msra.mxu0 0.0
        %1161 = vmatprep.subr.mxu0 0.0
        %1162 = vmatpush2.msra.mxu0 0.0
        %1163 = vmatprep.subr.mxu0 0.0
        %1164 = vmatpush2.msra.mxu0 0.0
        %1165 = vmatprep.subr.mxu0 0.0
        %1166 = vmatpush2.msra.mxu0 0.0
        %1167 = vmatprep.subr.mxu0 0.0
        %1168 = vmatpush2.msra.mxu0 0.0
        %1169 = vmatprep.subr.mxu0 0.0
        %1170 = vmatpush2.msra.mxu0 0.0
        %1171 = vmatprep.subr.mxu0 0.0
        %1172 = vmatpush2.msra.mxu0 0.0
        %1173 = vmatprep.subr.mxu0 0.0
        %1174 = vmatpush2.msra.mxu0 0.0
        %1175 = vmatprep.subr.mxu0 0.0
        %1176 = vmatpush2.msra.mxu0 0.0
        %1177 = vmatprep.subr.mxu0 0.0
        %1178 = vmatpush2.msra.mxu0 0.0
        %1179 = vmatprep.subr.mxu0 0.0
        %1180 = vmatpush2.msra.mxu0 0.0
        %1181 = vmatprep.subr.mxu0 0.0
        %1182 = vmatpush2.msra.mxu0 0.0
        %1183 = vmatprep.subr.mxu0 0.0
        %1184 = vmatpush2.msra.mxu0 0.0
        %1185 = vmatprep.subr.mxu0 0.0
        %1186 = vmatpush2.msra.mxu0 0.0
        %1187 = vmatprep.subr.mxu0 0.0
        %1188 = vmatpush2.msra.mxu0 0.0
        %1189 = vmatprep.mubr.f32.mxu0 0.0
        %1190 = vmatmul.mubr.f32.gmra.mxu0 %v563
        %v1191 = vpop.f32.mrf.mxu0
        %v1192 = vadd.f32 0.0, %v1191
        %v1193 = vpop.f32.mrf.mxu0
        %1194 = vdwg.mxu0
        %1195 = vmatprep.subr.mxu0 0.0
        %1196 = vmatpush1.msra.mxu0 0.0
        %1197 = vmatprep.subr.mxu0 0.0
        %1198 = vmatpush1.msra.mxu0 0.0
        %1199 = vmatprep.subr.mxu0 0.0
        %1200 = vmatpush1.msra.mxu0 0.0
        %1201 = vmatprep.subr.mxu0 0.0
        %1202 = vmatpush1.msra.mxu0 0.0
        %1203 = vmatprep.subr.mxu0 0.0
        %1204 = vmatpush1.msra.mxu0 0.0
        %1205 = vmatprep.subr.mxu0 0.0
        %1206 = vmatpush1.msra.mxu0 0.0
        %1207 = vmatprep.subr.mxu0 0.0
        %1208 = vmatpush1.msra.mxu0 0.0
        %1209 = vmatprep.subr.mxu0 0.0
        %1210 = vmatpush1.msra.mxu0 0.0
        %1211 = vmatprep.subr.mxu0 0.0
        %1212 = vmatpush1.msra.mxu0 0.0
        %1213 = vmatprep.subr.mxu0 0.0
        %1214 = vmatpush1.msra.mxu0 0.0
        %1215 = vmatprep.subr.mxu0 0.0
        %1216 = vmatpush1.msra.mxu0 0.0
        %1217 = vmatprep.subr.mxu0 0.0
        %1218 = vmatpush1.msra.mxu0 0.0
        %1219 = vmatprep.subr.mxu0 0.0
        %1220 = vmatpush1.msra.mxu0 %v476
        %1221 = vmatprep.subr.mxu0 0.0
        %1222 = vmatpush1.msra.mxu0 %v475
        %1223 = vmatprep.subr.mxu0 0.0
        %1224 = vmatpush1.msra.mxu0 %v474
        %1225 = vmatprep.subr.mxu0 0.0
        %1226 = vmatpush1.msra.mxu0 %v473
        %1227 = vmatprep.subr.mxu0 0.0
        %1228 = vmatpush2.msra.mxu0 0.0
        %1229 = vmatprep.subr.mxu0 0.0
        %1230 = vmatpush2.msra.mxu0 0.0
        %1231 = vmatprep.subr.mxu0 0.0
        %1232 = vmatpush2.msra.mxu0 0.0
        %1233 = vmatprep.subr.mxu0 0.0
        %1234 = vmatpush2.msra.mxu0 0.0
        %1235 = vmatprep.subr.mxu0 0.0
        %1236 = vmatpush2.msra.mxu0 0.0
        %1237 = vmatprep.subr.mxu0 0.0
        %1238 = vmatpush2.msra.mxu0 0.0
        %1239 = vmatprep.subr.mxu0 0.0
        %1240 = vmatpush2.msra.mxu0 0.0
        %1241 = vmatprep.subr.mxu0 0.0
        %1242 = vmatpush2.msra.mxu0 0.0
        %1243 = vmatprep.subr.mxu0 0.0
        %1244 = vmatpush2.msra.mxu0 0.0
        %1245 = vmatprep.subr.mxu0 0.0
        %1246 = vmatpush2.msra.mxu0 0.0
        %1247 = vmatprep.subr.mxu0 0.0
        %1248 = vmatpush2.msra.mxu0 0.0
        %1249 = vmatprep.subr.mxu0 0.0
        %1250 = vmatpush2.msra.mxu0 0.0
        %1251 = vmatprep.subr.mxu0 0.0
        %1252 = vmatpush2.msra.mxu0 0.0
        %1253 = vmatprep.subr.mxu0 0.0
        %1254 = vmatpush2.msra.mxu0 0.0
        %1255 = vmatprep.subr.mxu0 0.0
        %1256 = vmatpush2.msra.mxu0 0.0
        %1257 = vmatprep.subr.mxu0 0.0
        %1258 = vmatpush2.msra.mxu0 0.0
        %1259 = vmatprep.mubr.f32.mxu0 0.0
        %1260 = vmatmul.mubr.f32.gmra.mxu0 %v563
        %v1261 = vpop.f32.mrf.mxu0
        %v1262 = vadd.f32 0.0, %v1261
        %v1263 = vpop.f32.mrf.mxu0
        %1264 = vdwg.mxu0
        %1265 = vmatprep.subr.mxu0 0.0
        %1266 = vmatpush1.msra.mxu0 0.0
        %1267 = vmatprep.subr.mxu0 0.0
        %1268 = vmatpush1.msra.mxu0 0.0
        %1269 = vmatprep.subr.mxu0 0.0
        %1270 = vmatpush1.msra.mxu0 0.0
        %1271 = vmatprep.subr.mxu0 0.0
        %1272 = vmatpush1.msra.mxu0 0.0
        %1273 = vmatprep.subr.mxu0 0.0
        %1274 = vmatpush1.msra.mxu0 0.0
        %1275 = vmatprep.subr.mxu0 0.0
        %1276 = vmatpush1.msra.mxu0 0.0
        %1277 = vmatprep.subr.mxu0 0.0
        %1278 = vmatpush1.msra.mxu0 0.0
        %1279 = vmatprep.subr.mxu0 0.0
        %1280 = vmatpush1.msra.mxu0 0.0
        %1281 = vmatprep.subr.mxu0 0.0
        %1282 = vmatpush1.msra.mxu0 0.0
        %1283 = vmatprep.subr.mxu0 0.0
        %1284 = vmatpush1.msra.mxu0 0.0
        %1285 = vmatprep.subr.mxu0 0.0
        %1286 = vmatpush1.msra.mxu0 0.0
        %1287 = vmatprep.subr.mxu0 0.0
        %1288 = vmatpush1.msra.mxu0 0.0
        %1289 = vmatprep.subr.mxu0 0.0
        %1290 = vmatpush1.msra.mxu0 %v480
        %1291 = vmatprep.subr.mxu0 0.0
        %1292 = vmatpush1.msra.mxu0 %v479
        %1293 = vmatprep.subr.mxu0 0.0
        %1294 = vmatpush1.msra.mxu0 %v478
        %1295 = vmatprep.subr.mxu0 0.0
        %1296 = vmatpush1.msra.mxu0 %v477
        %1297 = vmatprep.subr.mxu0 0.0
        %1298 = vmatpush2.msra.mxu0 0.0
        %1299 = vmatprep.subr.mxu0 0.0
        %1300 = vmatpush2.msra.mxu0 0.0
        %1301 = vmatprep.subr.mxu0 0.0
        %1302 = vmatpush2.msra.mxu0 0.0
        %1303 = vmatprep.subr.mxu0 0.0
        %1304 = vmatpush2.msra.mxu0 0.0
        %1305 = vmatprep.subr.mxu0 0.0
        %1306 = vmatpush2.msra.mxu0 0.0
        %1307 = vmatprep.subr.mxu0 0.0
        %1308 = vmatpush2.msra.mxu0 0.0
        %1309 = vmatprep.subr.mxu0 0.0
        %1310 = vmatpush2.msra.mxu0 0.0
        %1311 = vmatprep.subr.mxu0 0.0
        %1312 = vmatpush2.msra.mxu0 0.0
        %1313 = vmatprep.subr.mxu0 0.0
        %1314 = vmatpush2.msra.mxu0 0.0
        %1315 = vmatprep.subr.mxu0 0.0
        %1316 = vmatpush2.msra.mxu0 0.0
        %1317 = vmatprep.subr.mxu0 0.0
        %1318 = vmatpush2.msra.mxu0 0.0
        %1319 = vmatprep.subr.mxu0 0.0
        %1320 = vmatpush2.msra.mxu0 0.0
        %1321 = vmatprep.subr.mxu0 0.0
        %1322 = vmatpush2.msra.mxu0 0.0
        %1323 = vmatprep.subr.mxu0 0.0
        %1324 = vmatpush2.msra.mxu0 0.0
        %1325 = vmatprep.subr.mxu0 0.0
        %1326 = vmatpush2.msra.mxu0 0.0
        %1327 = vmatprep.subr.mxu0 0.0
        %1328 = vmatpush2.msra.mxu0 0.0
        %1329 = vmatprep.mubr.f32.mxu0 0.0
        %1330 = vmatmul.mubr.f32.gmra.mxu0 %v563
        %v1331 = vpop.f32.mrf.mxu0
        %v1332 = vadd.f32 0.0, %v1331
        %v1333 = vpop.f32.mrf.mxu0
        %1334 = vdwg.mxu0
        %1335 = vmatprep.subr.mxu0 0.0
        %1336 = vmatpush1.msra.mxu0 0.0
        %1337 = vmatprep.subr.mxu0 0.0
        %1338 = vmatpush1.msra.mxu0 0.0
        %1339 = vmatprep.subr.mxu0 0.0
        %1340 = vmatpush1.msra.mxu0 0.0
        %1341 = vmatprep.subr.mxu0 0.0
        %1342 = vmatpush1.msra.mxu0 0.0
        %1343 = vmatprep.subr.mxu0 0.0
        %1344 = vmatpush1.msra.mxu0 0.0
        %1345 = vmatprep.subr.mxu0 0.0
        %1346 = vmatpush1.msra.mxu0 0.0
        %1347 = vmatprep.subr.mxu0 0.0
        %1348 = vmatpush1.msra.mxu0 0.0
        %1349 = vmatprep.subr.mxu0 0.0
        %1350 = vmatpush1.msra.mxu0 0.0
        %1351 = vmatprep.subr.mxu0 0.0
        %1352 = vmatpush1.msra.mxu0 0.0
        %1353 = vmatprep.subr.mxu0 0.0
        %1354 = vmatpush1.msra.mxu0 0.0
        %1355 = vmatprep.subr.mxu0 0.0
        %1356 = vmatpush1.msra.mxu0 0.0
        %1357 = vmatprep.subr.mxu0 0.0
        %1358 = vmatpush1.msra.mxu0 0.0
        %1359 = vmatprep.subr.mxu0 0.0
        %1360 = vmatpush1.msra.mxu0 %v484
        %1361 = vmatprep.subr.mxu0 0.0
        %1362 = vmatpush1.msra.mxu0 %v483
        %1363 = vmatprep.subr.mxu0 0.0
        %1364 = vmatpush1.msra.mxu0 %v482
        %1365 = vmatprep.subr.mxu0 0.0
        %1366 = vmatpush1.msra.mxu0 %v481
        %1367 = vmatprep.subr.mxu0 0.0
        %1368 = vmatpush2.msra.mxu0 0.0
        %1369 = vmatprep.subr.mxu0 0.0
        %1370 = vmatpush2.msra.mxu0 0.0
        %1371 = vmatprep.subr.mxu0 0.0
        %1372 = vmatpush2.msra.mxu0 0.0
        %1373 = vmatprep.subr.mxu0 0.0
        %1374 = vmatpush2.msra.mxu0 0.0
        %1375 = vmatprep.subr.mxu0 0.0
        %1376 = vmatpush2.msra.mxu0 0.0
        %1377 = vmatprep.subr.mxu0 0.0
        %1378 = vmatpush2.msra.mxu0 0.0
        %1379 = vmatprep.subr.mxu0 0.0
        %1380 = vmatpush2.msra.mxu0 0.0
        %1381 = vmatprep.subr.mxu0 0.0
        %1382 = vmatpush2.msra.mxu0 0.0
        %1383 = vmatprep.subr.mxu0 0.0
        %1384 = vmatpush2.msra.mxu0 0.0
        %1385 = vmatprep.subr.mxu0 0.0
        %1386 = vmatpush2.msra.mxu0 0.0
        %1387 = vmatprep.subr.mxu0 0.0
        %1388 = vmatpush2.msra.mxu0 0.0
        %1389 = vmatprep.subr.mxu0 0.0
        %1390 = vmatpush2.msra.mxu0 0.0
        %1391 = vmatprep.subr.mxu0 0.0
        %1392 = vmatpush2.msra.mxu0 0.0
        %1393 = vmatprep.subr.mxu0 0.0
        %1394 = vmatpush2.msra.mxu0 0.0
        %1395 = vmatprep.subr.mxu0 0.0
        %1396 = vmatpush2.msra.mxu0 0.0
        %1397 = vmatprep.subr.mxu0 0.0
        %1398 = vmatpush2.msra.mxu0 0.0
        %1399 = vmatprep.mubr.f32.mxu0 0.0
        %1400 = vmatmul.mubr.f32.gmra.mxu0 %v563
        %v1401 = vpop.f32.mrf.mxu0
        %v1402 = vadd.f32 0.0, %v1401
        %v1403 = vpop.f32.mrf.mxu0
        %1404 = vdwg.mxu0
        %vm1405 = vcmask 64512
        %v1407 = vsel %vm1405, %v632, 0
        %v1410 = vsel %vm1405, %v912, 0
        %1412 = vmatprep.subr.mxu0 0.0
        %1413 = vmatpush1.xpose.msra.mxu0 0.0
        %1414 = vmatprep.subr.mxu0 0.0
        %1415 = vmatpush1.xpose.msra.mxu0 0.0
        %1416 = vmatprep.subr.mxu0 0.0
        %1417 = vmatpush1.xpose.msra.mxu0 0.0
        %1418 = vmatprep.subr.mxu0 0.0
        %1419 = vmatpush1.xpose.msra.mxu0 0.0
        %1420 = vmatprep.subr.mxu0 0.0
        %1421 = vmatpush1.xpose.msra.mxu0 0.0
        %1422 = vmatprep.subr.mxu0 0.0
        %1423 = vmatpush1.xpose.msra.mxu0 0.0
        %1424 = vmatprep.subr.mxu0 0.0
        %1425 = vmatpush1.xpose.msra.mxu0 0.0
        %1426 = vmatprep.subr.mxu0 0.0
        %1427 = vmatpush1.xpose.msra.mxu0 0.0
        %1428 = vmatprep.subr.mxu0 0.0
        %1429 = vmatpush1.xpose.msra.mxu0 0.0
        %1430 = vmatprep.subr.mxu0 0.0
        %1431 = vmatpush1.xpose.msra.mxu0 0.0
        %1432 = vmatprep.subr.mxu0 0.0
        %1433 = vmatpush1.xpose.msra.mxu0 0.0
        %1434 = vmatprep.subr.mxu0 0.0
        %1435 = vmatpush1.xpose.msra.mxu0 0.0
        %1436 = vmatprep.subr.mxu0 0.0
        %1437 = vmatpush1.xpose.msra.mxu0 0.0
        %1438 = vmatprep.subr.mxu0 0.0
        %1439 = vmatpush1.xpose.msra.mxu0 0.0
        %1440 = vmatprep.subr.mxu0 0.0
        %1441 = vmatpush1.xpose.msra.mxu0 0.0
        %1442 = vmatprep.subr.mxu0 0.0
        %1443 = vmatpush1.xpose.msra.mxu0 %v1410
        %1444 = vmatprep.subr.mxu0 0.0
        %1445 = vmatpush2.xpose.msra.mxu0 0.0
        %1446 = vmatprep.subr.mxu0 0.0
        %1447 = vmatpush2.xpose.msra.mxu0 0.0
        %1448 = vmatprep.subr.mxu0 0.0
        %1449 = vmatpush2.xpose.msra.mxu0 0.0
        %1450 = vmatprep.subr.mxu0 0.0
        %1451 = vmatpush2.xpose.msra.mxu0 0.0
        %1452 = vmatprep.subr.mxu0 0.0
        %1453 = vmatpush2.xpose.msra.mxu0 0.0
        %1454 = vmatprep.subr.mxu0 0.0
        %1455 = vmatpush2.xpose.msra.mxu0 0.0
        %1456 = vmatprep.subr.mxu0 0.0
        %1457 = vmatpush2.xpose.msra.mxu0 0.0
        %1458 = vmatprep.subr.mxu0 0.0
        %1459 = vmatpush2.xpose.msra.mxu0 0.0
        %1460 = vmatprep.subr.mxu0 0.0
        %1461 = vmatpush2.xpose.msra.mxu0 0.0
        %1462 = vmatprep.subr.mxu0 0.0
        %1463 = vmatpush2.xpose.msra.mxu0 0.0
        %1464 = vmatprep.subr.mxu0 0.0
        %1465 = vmatpush2.xpose.msra.mxu0 0.0
        %1466 = vmatprep.subr.mxu0 0.0
        %1467 = vmatpush2.xpose.msra.mxu0 0.0
        %1468 = vmatprep.subr.mxu0 0.0
        %1469 = vmatpush2.xpose.msra.mxu0 0.0
        %1470 = vmatprep.subr.mxu0 0.0
        %1471 = vmatpush2.xpose.msra.mxu0 0.0
        %1472 = vmatprep.subr.mxu0 0.0
        %1473 = vmatpush2.xpose.msra.mxu0 0.0
        %1474 = vmatprep.subr.mxu0 0.0
        %1475 = vmatpush2.xpose.msra.mxu0 0.0
        %1476 = vmatprep.mubr.f32.mxu0 0.0
        %1477 = vmatmul.mubr.f32.gmra.mxu0 %v1407
        %v1478 = vpop.f32.mrf.mxu0
        %v1479 = vadd.f32 0.0, %v1478
        %v1480 = vpop.f32.mrf.mxu0
        %1481 = vdwg.mxu0
        %v1483 = vsel %vm1405, %v702, 0
        %v1486 = vsel %vm1405, %v982, 0
        %1488 = vmatprep.subr.mxu0 0.0
        %1489 = vmatpush1.xpose.msra.mxu0 0.0
        %1490 = vmatprep.subr.mxu0 0.0
        %1491 = vmatpush1.xpose.msra.mxu0 0.0
        %1492 = vmatprep.subr.mxu0 0.0
        %1493 = vmatpush1.xpose.msra.mxu0 0.0
        %1494 = vmatprep.subr.mxu0 0.0
        %1495 = vmatpush1.xpose.msra.mxu0 0.0
        %1496 = vmatprep.subr.mxu0 0.0
        %1497 = vmatpush1.xpose.msra.mxu0 0.0
        %1498 = vmatprep.subr.mxu0 0.0
        %1499 = vmatpush1.xpose.msra.mxu0 0.0
        %1500 = vmatprep.subr.mxu0 0.0
        %1501 = vmatpush1.xpose.msra.mxu0 0.0
        %1502 = vmatprep.subr.mxu0 0.0
        %1503 = vmatpush1.xpose.msra.mxu0 0.0
        %1504 = vmatprep.subr.mxu0 0.0
        %1505 = vmatpush1.xpose.msra.mxu0 0.0
        %1506 = vmatprep.subr.mxu0 0.0
        %1507 = vmatpush1.xpose.msra.mxu0 0.0
        %1508 = vmatprep.subr.mxu0 0.0
        %1509 = vmatpush1.xpose.msra.mxu0 0.0
        %1510 = vmatprep.subr.mxu0 0.0
        %1511 = vmatpush1.xpose.msra.mxu0 0.0
        %1512 = vmatprep.subr.mxu0 0.0
        %1513 = vmatpush1.xpose.msra.mxu0 0.0
        %1514 = vmatprep.subr.mxu0 0.0
        %1515 = vmatpush1.xpose.msra.mxu0 0.0
        %1516 = vmatprep.subr.mxu0 0.0
        %1517 = vmatpush1.xpose.msra.mxu0 0.0
        %1518 = vmatprep.subr.mxu0 0.0
        %1519 = vmatpush1.xpose.msra.mxu0 %v1486
        %1520 = vmatprep.subr.mxu0 0.0
        %1521 = vmatpush2.xpose.msra.mxu0 0.0
        %1522 = vmatprep.subr.mxu0 0.0
        %1523 = vmatpush2.xpose.msra.mxu0 0.0
        %1524 = vmatprep.subr.mxu0 0.0
        %1525 = vmatpush2.xpose.msra.mxu0 0.0
        %1526 = vmatprep.subr.mxu0 0.0
        %1527 = vmatpush2.xpose.msra.mxu0 0.0
        %1528 = vmatprep.subr.mxu0 0.0
        %1529 = vmatpush2.xpose.msra.mxu0 0.0
        %1530 = vmatprep.subr.mxu0 0.0
        %1531 = vmatpush2.xpose.msra.mxu0 0.0
        %1532 = vmatprep.subr.mxu0 0.0
        %1533 = vmatpush2.xpose.msra.mxu0 0.0
        %1534 = vmatprep.subr.mxu0 0.0
        %1535 = vmatpush2.xpose.msra.mxu0 0.0
        %1536 = vmatprep.subr.mxu0 0.0
        %1537 = vmatpush2.xpose.msra.mxu0 0.0
        %1538 = vmatprep.subr.mxu0 0.0
        %1539 = vmatpush2.xpose.msra.mxu0 0.0
        %1540 = vmatprep.subr.mxu0 0.0
        %1541 = vmatpush2.xpose.msra.mxu0 0.0
        %1542 = vmatprep.subr.mxu0 0.0
        %1543 = vmatpush2.xpose.msra.mxu0 0.0
        %1544 = vmatprep.subr.mxu0 0.0
        %1545 = vmatpush2.xpose.msra.mxu0 0.0
        %1546 = vmatprep.subr.mxu0 0.0
        %1547 = vmatpush2.xpose.msra.mxu0 0.0
        %1548 = vmatprep.subr.mxu0 0.0
        %1549 = vmatpush2.xpose.msra.mxu0 0.0
        %1550 = vmatprep.subr.mxu0 0.0
        %1551 = vmatpush2.xpose.msra.mxu0 0.0
        %1552 = vmatprep.mubr.f32.mxu0 0.0
        %1553 = vmatmul.mubr.f32.gmra.mxu0 %v1483
        %v1554 = vpop.f32.mrf.mxu0
        %v1555 = vadd.f32 0.0, %v1554
        %v1556 = vpop.f32.mrf.mxu0
        %1557 = vdwg.mxu0
        %v1559 = vsel %vm1405, %v772, 0
        %v1562 = vsel %vm1405, %v1052, 0
        %1564 = vmatprep.subr.mxu0 0.0
        %1565 = vmatpush1.xpose.msra.mxu0 0.0
        %1566 = vmatprep.subr.mxu0 0.0
        %1567 = vmatpush1.xpose.msra.mxu0 0.0
        %1568 = vmatprep.subr.mxu0 0.0
        %1569 = vmatpush1.xpose.msra.mxu0 0.0
        %1570 = vmatprep.subr.mxu0 0.0
        %1571 = vmatpush1.xpose.msra.mxu0 0.0
        %1572 = vmatprep.subr.mxu0 0.0
        %1573 = vmatpush1.xpose.msra.mxu0 0.0
        %1574 = vmatprep.subr.mxu0 0.0
        %1575 = vmatpush1.xpose.msra.mxu0 0.0
        %1576 = vmatprep.subr.mxu0 0.0
        %1577 = vmatpush1.xpose.msra.mxu0 0.0
        %1578 = vmatprep.subr.mxu0 0.0
        %1579 = vmatpush1.xpose.msra.mxu0 0.0
        %1580 = vmatprep.subr.mxu0 0.0
        %1581 = vmatpush1.xpose.msra.mxu0 0.0
        %1582 = vmatprep.subr.mxu0 0.0
        %1583 = vmatpush1.xpose.msra.mxu0 0.0
        %1584 = vmatprep.subr.mxu0 0.0
        %1585 = vmatpush1.xpose.msra.mxu0 0.0
        %1586 = vmatprep.subr.mxu0 0.0
        %1587 = vmatpush1.xpose.msra.mxu0 0.0
        %1588 = vmatprep.subr.mxu0 0.0
        %1589 = vmatpush1.xpose.msra.mxu0 0.0
        %1590 = vmatprep.subr.mxu0 0.0
        %1591 = vmatpush1.xpose.msra.mxu0 0.0
        %1592 = vmatprep.subr.mxu0 0.0
        %1593 = vmatpush1.xpose.msra.mxu0 0.0
        %1594 = vmatprep.subr.mxu0 0.0
        %1595 = vmatpush1.xpose.msra.mxu0 %v1562
        %1596 = vmatprep.subr.mxu0 0.0
        %1597 = vmatpush2.xpose.msra.mxu0 0.0
        %1598 = vmatprep.subr.mxu0 0.0
        %1599 = vmatpush2.xpose.msra.mxu0 0.0
        %1600 = vmatprep.subr.mxu0 0.0
        %1601 = vmatpush2.xpose.msra.mxu0 0.0
        %1602 = vmatprep.subr.mxu0 0.0
        %1603 = vmatpush2.xpose.msra.mxu0 0.0
        %1604 = vmatprep.subr.mxu0 0.0
        %1605 = vmatpush2.xpose.msra.mxu0 0.0
        %1606 = vmatprep.subr.mxu0 0.0
        %1607 = vmatpush2.xpose.msra.mxu0 0.0
        %1608 = vmatprep.subr.mxu0 0.0
        %1609 = vmatpush2.xpose.msra.mxu0 0.0
        %1610 = vmatprep.subr.mxu0 0.0
        %1611 = vmatpush2.xpose.msra.mxu0 0.0
        %1612 = vmatprep.subr.mxu0 0.0
        %1613 = vmatpush2.xpose.msra.mxu0 0.0
        %1614 = vmatprep.subr.mxu0 0.0
        %1615 = vmatpush2.xpose.msra.mxu0 0.0
        %1616 = vmatprep.subr.mxu0 0.0
        %1617 = vmatpush2.xpose.msra.mxu0 0.0
        %1618 = vmatprep.subr.mxu0 0.0
        %1619 = vmatpush2.xpose.msra.mxu0 0.0
        %1620 = vmatprep.subr.mxu0 0.0
        %1621 = vmatpush2.xpose.msra.mxu0 0.0
        %1622 = vmatprep.subr.mxu0 0.0
        %1623 = vmatpush2.xpose.msra.mxu0 0.0
        %1624 = vmatprep.subr.mxu0 0.0
        %1625 = vmatpush2.xpose.msra.mxu0 0.0
        %1626 = vmatprep.subr.mxu0 0.0
        %1627 = vmatpush2.xpose.msra.mxu0 0.0
        %1628 = vmatprep.mubr.f32.mxu0 0.0
        %1629 = vmatmul.mubr.f32.gmra.mxu0 %v1559
        %v1630 = vpop.f32.mrf.mxu0
        %v1631 = vadd.f32 0.0, %v1630
        %v1632 = vpop.f32.mrf.mxu0
        %1633 = vdwg.mxu0
        %v1635 = vsel %vm1405, %v842, 0
        %v1638 = vsel %vm1405, %v1122, 0
        %1640 = vmatprep.subr.mxu0 0.0
        %1641 = vmatpush1.xpose.msra.mxu0 0.0
        %1642 = vmatprep.subr.mxu0 0.0
        %1643 = vmatpush1.xpose.msra.mxu0 0.0
        %1644 = vmatprep.subr.mxu0 0.0
        %1645 = vmatpush1.xpose.msra.mxu0 0.0
        %1646 = vmatprep.subr.mxu0 0.0
        %1647 = vmatpush1.xpose.msra.mxu0 0.0
        %1648 = vmatprep.subr.mxu0 0.0
        %1649 = vmatpush1.xpose.msra.mxu0 0.0
        %1650 = vmatprep.subr.mxu0 0.0
        %1651 = vmatpush1.xpose.msra.mxu0 0.0
        %1652 = vmatprep.subr.mxu0 0.0
        %1653 = vmatpush1.xpose.msra.mxu0 0.0
        %1654 = vmatprep.subr.mxu0 0.0
        %1655 = vmatpush1.xpose.msra.mxu0 0.0
        %1656 = vmatprep.subr.mxu0 0.0
        %1657 = vmatpush1.xpose.msra.mxu0 0.0
        %1658 = vmatprep.subr.mxu0 0.0
        %1659 = vmatpush1.xpose.msra.mxu0 0.0
        %1660 = vmatprep.subr.mxu0 0.0
        %1661 = vmatpush1.xpose.msra.mxu0 0.0
        %1662 = vmatprep.subr.mxu0 0.0
        %1663 = vmatpush1.xpose.msra.mxu0 0.0
        %1664 = vmatprep.subr.mxu0 0.0
        %1665 = vmatpush1.xpose.msra.mxu0 0.0
        %1666 = vmatprep.subr.mxu0 0.0
        %1667 = vmatpush1.xpose.msra.mxu0 0.0
        %1668 = vmatprep.subr.mxu0 0.0
        %1669 = vmatpush1.xpose.msra.mxu0 0.0
        %1670 = vmatprep.subr.mxu0 0.0
        %1671 = vmatpush1.xpose.msra.mxu0 %v1638
        %1672 = vmatprep.subr.mxu0 0.0
        %1673 = vmatpush2.xpose.msra.mxu0 0.0
        %1674 = vmatprep.subr.mxu0 0.0
        %1675 = vmatpush2.xpose.msra.mxu0 0.0
        %1676 = vmatprep.subr.mxu0 0.0
        %1677 = vmatpush2.xpose.msra.mxu0 0.0
        %1678 = vmatprep.subr.mxu0 0.0
        %1679 = vmatpush2.xpose.msra.mxu0 0.0
        %1680 = vmatprep.subr.mxu0 0.0
        %1681 = vmatpush2.xpose.msra.mxu0 0.0
        %1682 = vmatprep.subr.mxu0 0.0
        %1683 = vmatpush2.xpose.msra.mxu0 0.0
        %1684 = vmatprep.subr.mxu0 0.0
        %1685 = vmatpush2.xpose.msra.mxu0 0.0
        %1686 = vmatprep.subr.mxu0 0.0
        %1687 = vmatpush2.xpose.msra.mxu0 0.0
        %1688 = vmatprep.subr.mxu0 0.0
        %1689 = vmatpush2.xpose.msra.mxu0 0.0
        %1690 = vmatprep.subr.mxu0 0.0
        %1691 = vmatpush2.xpose.msra.mxu0 0.0
        %1692 = vmatprep.subr.mxu0 0.0
        %1693 = vmatpush2.xpose.msra.mxu0 0.0
        %1694 = vmatprep.subr.mxu0 0.0
        %1695 = vmatpush2.xpose.msra.mxu0 0.0
        %1696 = vmatprep.subr.mxu0 0.0
        %1697 = vmatpush2.xpose.msra.mxu0 0.0
        %1698 = vmatprep.subr.mxu0 0.0
        %1699 = vmatpush2.xpose.msra.mxu0 0.0
        %1700 = vmatprep.subr.mxu0 0.0
        %1701 = vmatpush2.xpose.msra.mxu0 0.0
        %1702 = vmatprep.subr.mxu0 0.0
        %1703 = vmatpush2.xpose.msra.mxu0 0.0
        %1704 = vmatprep.mubr.f32.mxu0 0.0
        %1705 = vmatmul.mubr.f32.gmra.mxu0 %v1635
        %v1706 = vpop.f32.mrf.mxu0
        %v1707 = vadd.f32 0.0, %v1706
        %v1708 = vpop.f32.mrf.mxu0
        %1709 = vdwg.mxu0
        %vm1710 = vcmask 36864
        %v1711 = vsel %vm1710, %v1479, -inf
        %1712 = vmax.xlane.f32.xlu0 %v1711
        %v1713 = vpop.xlane.xlu0 %1712
        %v1714 = vsel %vm1710, %v1555, -inf
        %1715 = vmax.xlane.f32.xlu0 %v1714
        %v1716 = vpop.xlane.xlu0 %1715
        %v1717 = vsel %vm1710, %v1631, -inf
        %1718 = vmax.xlane.f32.xlu0 %v1717
        %v1719 = vpop.xlane.xlu0 %1718
        %v1720 = vsel %vm1710, %v1707, -inf
        %1721 = vmax.xlane.f32.xlu0 %v1720
        %v1722 = vpop.xlane.xlu0 %1721
        %v1723 = vsub.f32 %v1479, %v1713
        %v1724 = vsub.f32 %v1555, %v1716
        %v1725 = vsub.f32 %v1631, %v1719
        %v1726 = vsub.f32 %v1707, %v1722
        %v1727 = vmul.f32 %v1723, 1.442695
        %v1728 = vpow.pop %v1727
        %v1729 = vmul.f32 %v1724, 1.442695
        %v1730 = vpow.pop %v1729
        %v1731 = vmul.f32 %v1725, 1.442695
        %v1732 = vpow.pop %v1731
        %v1733 = vmul.f32 %v1726, 1.442695
        %v1734 = vpow.pop %v1733
        %v1735 = vsel %vm1710, %v1728, 0.0
        %1736 = vadd.xlane.f32.xlu0 %v1735
        %v1737 = vpop.xlane.xlu0 %1736
        %v1738 = vsel %vm1710, %v1730, 0.0
        %1739 = vadd.xlane.f32.xlu0 %v1738
        %v1740 = vpop.xlane.xlu0 %1739
        %v1741 = vsel %vm1710, %v1732, 0.0
        %1742 = vadd.xlane.f32.xlu0 %v1741
        %v1743 = vpop.xlane.xlu0 %1742
        %v1744 = vsel %vm1710, %v1734, 0.0
        %1745 = vadd.xlane.f32.xlu0 %v1744
        %v1746 = vpop.xlane.xlu0 %1745
        %v1747 = vrcp.pop %v1737
        %v1748 = vrcp.pop %v1740
        %v1749 = vrcp.pop %v1743
        %v1750 = vrcp.pop %v1746
        %v1751 = vmul.f32 %v1728, %v1747
        %v1752 = vmul.f32 %v1730, %v1748
        %v1753 = vmul.f32 %v1732, %v1749
        %v1754 = vmul.f32 %v1734, %v1750
        %vm1755 = vcmask 39936
        %v1757 = vsel %vm1755, %v1751, 0
        %vm1759 = vcmask 1044480
        %v1761 = vsel %vm1759, %v1192, 0
        %1763 = vmatprep.subr.mxu0 0.0
        %1764 = vmatpush1.msra.mxu0 0.0
        %1765 = vmatprep.subr.mxu0 0.0
        %1766 = vmatpush1.msra.mxu0 0.0
        %1767 = vmatprep.subr.mxu0 0.0
        %1768 = vmatpush1.msra.mxu0 0.0
        %1769 = vmatprep.subr.mxu0 0.0
        %1770 = vmatpush1.msra.mxu0 0.0
        %1771 = vmatprep.subr.mxu0 0.0
        %1772 = vmatpush1.msra.mxu0 0.0
        %1773 = vmatprep.subr.mxu0 0.0
        %1774 = vmatpush1.msra.mxu0 0.0
        %1775 = vmatprep.subr.mxu0 0.0
        %1776 = vmatpush1.msra.mxu0 0.0
        %1777 = vmatprep.subr.mxu0 0.0
        %1778 = vmatpush1.msra.mxu0 0.0
        %1779 = vmatprep.subr.mxu0 0.0
        %1780 = vmatpush1.msra.mxu0 0.0
        %1781 = vmatprep.subr.mxu0 0.0
        %1782 = vmatpush1.msra.mxu0 0.0
        %1783 = vmatprep.subr.mxu0 0.0
        %1784 = vmatpush1.msra.mxu0 0.0
        %1785 = vmatprep.subr.mxu0 0.0
        %1786 = vmatpush1.msra.mxu0 0.0
        %1787 = vmatprep.subr.mxu0 0.0
        %1788 = vmatpush1.msra.mxu0 0.0
        %1789 = vmatprep.subr.mxu0 0.0
        %1790 = vmatpush1.msra.mxu0 0.0
        %1791 = vmatprep.subr.mxu0 0.0
        %1792 = vmatpush1.msra.mxu0 0.0
        %1793 = vmatprep.subr.mxu0 0.0
        %1794 = vmatpush1.msra.mxu0 %v1761
        %1795 = vmatprep.subr.mxu0 0.0
        %1796 = vmatpush2.msra.mxu0 0.0
        %1797 = vmatprep.subr.mxu0 0.0
        %1798 = vmatpush2.msra.mxu0 0.0
        %1799 = vmatprep.subr.mxu0 0.0
        %1800 = vmatpush2.msra.mxu0 0.0
        %1801 = vmatprep.subr.mxu0 0.0
        %1802 = vmatpush2.msra.mxu0 0.0
        %1803 = vmatprep.subr.mxu0 0.0
        %1804 = vmatpush2.msra.mxu0 0.0
        %1805 = vmatprep.subr.mxu0 0.0
        %1806 = vmatpush2.msra.mxu0 0.0
        %1807 = vmatprep.subr.mxu0 0.0
        %1808 = vmatpush2.msra.mxu0 0.0
        %1809 = vmatprep.subr.mxu0 0.0
        %1810 = vmatpush2.msra.mxu0 0.0
        %1811 = vmatprep.subr.mxu0 0.0
        %1812 = vmatpush2.msra.mxu0 0.0
        %1813 = vmatprep.subr.mxu0 0.0
        %1814 = vmatpush2.msra.mxu0 0.0
        %1815 = vmatprep.subr.mxu0 0.0
        %1816 = vmatpush2.msra.mxu0 0.0
        %1817 = vmatprep.subr.mxu0 0.0
        %1818 = vmatpush2.msra.mxu0 0.0
        %1819 = vmatprep.subr.mxu0 0.0
        %1820 = vmatpush2.msra.mxu0 0.0
        %1821 = vmatprep.subr.mxu0 0.0
        %1822 = vmatpush2.msra.mxu0 0.0
        %1823 = vmatprep.subr.mxu0 0.0
        %1824 = vmatpush2.msra.mxu0 0.0
        %1825 = vmatprep.subr.mxu0 0.0
        %1826 = vmatpush2.msra.mxu0 0.0
        %1827 = vmatprep.mubr.f32.mxu0 0.0
        %1828 = vmatmul.mubr.f32.gmra.mxu0 %v1757
        %v1829 = vpop.f32.mrf.mxu0
        %v1830 = vadd.f32 0.0, %v1829
        %v1831 = vpop.f32.mrf.mxu0
        %1832 = vdwg.mxu0
        %v1834 = vsel %vm1755, %v1752, 0
        %v1837 = vsel %vm1759, %v1262, 0
        %1839 = vmatprep.subr.mxu0 0.0
        %1840 = vmatpush1.msra.mxu0 0.0
        %1841 = vmatprep.subr.mxu0 0.0
        %1842 = vmatpush1.msra.mxu0 0.0
        %1843 = vmatprep.subr.mxu0 0.0
        %1844 = vmatpush1.msra.mxu0 0.0
        %1845 = vmatprep.subr.mxu0 0.0
        %1846 = vmatpush1.msra.mxu0 0.0
        %1847 = vmatprep.subr.mxu0 0.0
        %1848 = vmatpush1.msra.mxu0 0.0
        %1849 = vmatprep.subr.mxu0 0.0
        %1850 = vmatpush1.msra.mxu0 0.0
        %1851 = vmatprep.subr.mxu0 0.0
        %1852 = vmatpush1.msra.mxu0 0.0
        %1853 = vmatprep.subr.mxu0 0.0
        %1854 = vmatpush1.msra.mxu0 0.0
        %1855 = vmatprep.subr.mxu0 0.0
        %1856 = vmatpush1.msra.mxu0 0.0
        %1857 = vmatprep.subr.mxu0 0.0
        %1858 = vmatpush1.msra.mxu0 0.0
        %1859 = vmatprep.subr.mxu0 0.0
        %1860 = vmatpush1.msra.mxu0 0.0
        %1861 = vmatprep.subr.mxu0 0.0
        %1862 = vmatpush1.msra.mxu0 0.0
        %1863 = vmatprep.subr.mxu0 0.0
        %1864 = vmatpush1.msra.mxu0 0.0
        %1865 = vmatprep.subr.mxu0 0.0
        %1866 = vmatpush1.msra.mxu0 0.0
        %1867 = vmatprep.subr.mxu0 0.0
        %1868 = vmatpush1.msra.mxu0 0.0
        %1869 = vmatprep.subr.mxu0 0.0
        %1870 = vmatpush1.msra.mxu0 %v1837
        %1871 = vmatprep.subr.mxu0 0.0
        %1872 = vmatpush2.msra.mxu0 0.0
        %1873 = vmatprep.subr.mxu0 0.0
        %1874 = vmatpush2.msra.mxu0 0.0
        %1875 = vmatprep.subr.mxu0 0.0
        %1876 = vmatpush2.msra.mxu0 0.0
        %1877 = vmatprep.subr.mxu0 0.0
        %1878 = vmatpush2.msra.mxu0 0.0
        %1879 = vmatprep.subr.mxu0 0.0
        %1880 = vmatpush2.msra.mxu0 0.0
        %1881 = vmatprep.subr.mxu0 0.0
        %1882 = vmatpush2.msra.mxu0 0.0
        %1883 = vmatprep.subr.mxu0 0.0
        %1884 = vmatpush2.msra.mxu0 0.0
        %1885 = vmatprep.subr.mxu0 0.0
        %1886 = vmatpush2.msra.mxu0 0.0
        %1887 = vmatprep.subr.mxu0 0.0
        %1888 = vmatpush2.msra.mxu0 0.0
        %1889 = vmatprep.subr.mxu0 0.0
        %1890 = vmatpush2.msra.mxu0 0.0
        %1891 = vmatprep.subr.mxu0 0.0
        %1892 = vmatpush2.msra.mxu0 0.0
        %1893 = vmatprep.subr.mxu0 0.0
        %1894 = vmatpush2.msra.mxu0 0.0
        %1895 = vmatprep.subr.mxu0 0.0
        %1896 = vmatpush2.msra.mxu0 0.0
        %1897 = vmatprep.subr.mxu0 0.0
        %1898 = vmatpush2.msra.mxu0 0.0
        %1899 = vmatprep.subr.mxu0 0.0
        %1900 = vmatpush2.msra.mxu0 0.0
        %1901 = vmatprep.subr.mxu0 0.0
        %1902 = vmatpush2.msra.mxu0 0.0
        %1903 = vmatprep.mubr.f32.mxu0 0.0
        %1904 = vmatmul.mubr.f32.gmra.mxu0 %v1834
        %v1905 = vpop.f32.mrf.mxu0
        %v1906 = vadd.f32 0.0, %v1905
        %v1907 = vpop.f32.mrf.mxu0
        %1908 = vdwg.mxu0
        %v1910 = vsel %vm1755, %v1753, 0
        %v1913 = vsel %vm1759, %v1332, 0
        %1915 = vmatprep.subr.mxu0 0.0
        %1916 = vmatpush1.msra.mxu0 0.0
        %1917 = vmatprep.subr.mxu0 0.0
        %1918 = vmatpush1.msra.mxu0 0.0
        %1919 = vmatprep.subr.mxu0 0.0
        %1920 = vmatpush1.msra.mxu0 0.0
        %1921 = vmatprep.subr.mxu0 0.0
        %1922 = vmatpush1.msra.mxu0 0.0
        %1923 = vmatprep.subr.mxu0 0.0
        %1924 = vmatpush1.msra.mxu0 0.0
        %1925 = vmatprep.subr.mxu0 0.0
        %1926 = vmatpush1.msra.mxu0 0.0
        %1927 = vmatprep.subr.mxu0 0.0
        %1928 = vmatpush1.msra.mxu0 0.0
        %1929 = vmatprep.subr.mxu0 0.0
        %1930 = vmatpush1.msra.mxu0 0.0
        %1931 = vmatprep.subr.mxu0 0.0
        %1932 = vmatpush1.msra.mxu0 0.0
        %1933 = vmatprep.subr.mxu0 0.0
        %1934 = vmatpush1.msra.mxu0 0.0
        %1935 = vmatprep.subr.mxu0 0.0
        %1936 = vmatpush1.msra.mxu0 0.0
        %1937 = vmatprep.subr.mxu0 0.0
        %1938 = vmatpush1.msra.mxu0 0.0
        %1939 = vmatprep.subr.mxu0 0.0
        %1940 = vmatpush1.msra.mxu0 0.0
        %1941 = vmatprep.subr.mxu0 0.0
        %1942 = vmatpush1.msra.mxu0 0.0
        %1943 = vmatprep.subr.mxu0 0.0
        %1944 = vmatpush1.msra.mxu0 0.0
        %1945 = vmatprep.subr.mxu0 0.0
        %1946 = vmatpush1.msra.mxu0 %v1913
        %1947 = vmatprep.subr.mxu0 0.0
        %1948 = vmatpush2.msra.mxu0 0.0
        %1949 = vmatprep.subr.mxu0 0.0
        %1950 = vmatpush2.msra.mxu0 0.0
        %1951 = vmatprep.subr.mxu0 0.0
        %1952 = vmatpush2.msra.mxu0 0.0
        %1953 = vmatprep.subr.mxu0 0.0
        %1954 = vmatpush2.msra.mxu0 0.0
        %1955 = vmatprep.subr.mxu0 0.0
        %1956 = vmatpush2.msra.mxu0 0.0
        %1957 = vmatprep.subr.mxu0 0.0
        %1958 = vmatpush2.msra.mxu0 0.0
        %1959 = vmatprep.subr.mxu0 0.0
        %1960 = vmatpush2.msra.mxu0 0.0
        %1961 = vmatprep.subr.mxu0 0.0
        %1962 = vmatpush2.msra.mxu0 0.0
        %1963 = vmatprep.subr.mxu0 0.0
        %1964 = vmatpush2.msra.mxu0 0.0
        %1965 = vmatprep.subr.mxu0 0.0
        %1966 = vmatpush2.msra.mxu0 0.0
        %1967 = vmatprep.subr.mxu0 0.0
        %1968 = vmatpush2.msra.mxu0 0.0
        %1969 = vmatprep.subr.mxu0 0.0
        %1970 = vmatpush2.msra.mxu0 0.0
        %1971 = vmatprep.subr.mxu0 0.0
        %1972 = vmatpush2.msra.mxu0 0.0
        %1973 = vmatprep.subr.mxu0 0.0
        %1974 = vmatpush2.msra.mxu0 0.0
        %1975 = vmatprep.subr.mxu0 0.0
        %1976 = vmatpush2.msra.mxu0 0.0
        %1977 = vmatprep.subr.mxu0 0.0
        %1978 = vmatpush2.msra.mxu0 0.0
        %1979 = vmatprep.mubr.f32.mxu0 0.0
        %1980 = vmatmul.mubr.f32.gmra.mxu0 %v1910
        %v1981 = vpop.f32.mrf.mxu0
        %v1982 = vadd.f32 0.0, %v1981
        %v1983 = vpop.f32.mrf.mxu0
        %1984 = vdwg.mxu0
        %v1986 = vsel %vm1755, %v1754, 0
        %v1989 = vsel %vm1759, %v1402, 0
        %1991 = vmatprep.subr.mxu0 0.0
        %1992 = vmatpush1.msra.mxu0 0.0
        %1993 = vmatprep.subr.mxu0 0.0
        %1994 = vmatpush1.msra.mxu0 0.0
        %1995 = vmatprep.subr.mxu0 0.0
        %1996 = vmatpush1.msra.mxu0 0.0
        %1997 = vmatprep.subr.mxu0 0.0
        %1998 = vmatpush1.msra.mxu0 0.0
        %1999 = vmatprep.subr.mxu0 0.0
        %2000 = vmatpush1.msra.mxu0 0.0
        %2001 = vmatprep.subr.mxu0 0.0
        %2002 = vmatpush1.msra.mxu0 0.0
        %2003 = vmatprep.subr.mxu0 0.0
        %2004 = vmatpush1.msra.mxu0 0.0
        %2005 = vmatprep.subr.mxu0 0.0
        %2006 = vmatpush1.msra.mxu0 0.0
        %2007 = vmatprep.subr.mxu0 0.0
        %2008 = vmatpush1.msra.mxu0 0.0
        %2009 = vmatprep.subr.mxu0 0.0
        %2010 = vmatpush1.msra.mxu0 0.0
        %2011 = vmatprep.subr.mxu0 0.0
        %2012 = vmatpush1.msra.mxu0 0.0
        %2013 = vmatprep.subr.mxu0 0.0
        %2014 = vmatpush1.msra.mxu0 0.0
        %2015 = vmatprep.subr.mxu0 0.0
        %2016 = vmatpush1.msra.mxu0 0.0
        %2017 = vmatprep.subr.mxu0 0.0
        %2018 = vmatpush1.msra.mxu0 0.0
        %2019 = vmatprep.subr.mxu0 0.0
        %2020 = vmatpush1.msra.mxu0 0.0
        %2021 = vmatprep.subr.mxu0 0.0
        %2022 = vmatpush1.msra.mxu0 %v1989
        %2023 = vmatprep.subr.mxu0 0.0
        %2024 = vmatpush2.msra.mxu0 0.0
        %2025 = vmatprep.subr.mxu0 0.0
        %2026 = vmatpush2.msra.mxu0 0.0
        %2027 = vmatprep.subr.mxu0 0.0
        %2028 = vmatpush2.msra.mxu0 0.0
        %2029 = vmatprep.subr.mxu0 0.0
        %2030 = vmatpush2.msra.mxu0 0.0
        %2031 = vmatprep.subr.mxu0 0.0
        %2032 = vmatpush2.msra.mxu0 0.0
        %2033 = vmatprep.subr.mxu0 0.0
        %2034 = vmatpush2.msra.mxu0 0.0
        %2035 = vmatprep.subr.mxu0 0.0
        %2036 = vmatpush2.msra.mxu0 0.0
        %2037 = vmatprep.subr.mxu0 0.0
        %2038 = vmatpush2.msra.mxu0 0.0
        %2039 = vmatprep.subr.mxu0 0.0
        %2040 = vmatpush2.msra.mxu0 0.0
        %2041 = vmatprep.subr.mxu0 0.0
        %2042 = vmatpush2.msra.mxu0 0.0
        %2043 = vmatprep.subr.mxu0 0.0
        %2044 = vmatpush2.msra.mxu0 0.0
        %2045 = vmatprep.subr.mxu0 0.0
        %2046 = vmatpush2.msra.mxu0 0.0
        %2047 = vmatprep.subr.mxu0 0.0
        %2048 = vmatpush2.msra.mxu0 0.0
        %2049 = vmatprep.subr.mxu0 0.0
        %2050 = vmatpush2.msra.mxu0 0.0
        %2051 = vmatprep.subr.mxu0 0.0
        %2052 = vmatpush2.msra.mxu0 0.0
        %2053 = vmatprep.subr.mxu0 0.0
        %2054 = vmatpush2.msra.mxu0 0.0
        %2055 = vmatprep.mubr.f32.mxu0 0.0
        %2056 = vmatmul.mubr.f32.gmra.mxu0 %v1986
        %v2057 = vpop.f32.mrf.mxu0
        %v2058 = vadd.f32 0.0, %v2057
        %v2059 = vpop.f32.mrf.mxu0
        %2060 = vdwg.mxu0
        %v2062 = vsel %vm1405, %v1830, 0
        %2064 = vmatprep.subr.mxu0 0.0
        %2065 = vmatpush1.msra.mxu0 0.0
        %2066 = vmatprep.subr.mxu0 0.0
        %2067 = vmatpush1.msra.mxu0 0.0
        %2068 = vmatprep.subr.mxu0 0.0
        %2069 = vmatpush1.msra.mxu0 0.0
        %2070 = vmatprep.subr.mxu0 0.0
        %2071 = vmatpush1.msra.mxu0 0.0
        %2072 = vmatprep.subr.mxu0 0.0
        %2073 = vmatpush1.msra.mxu0 0.0
        %2074 = vmatprep.subr.mxu0 0.0
        %2075 = vmatpush1.msra.mxu0 0.0
        %2076 = vmatprep.subr.mxu0 0.0
        %2077 = vmatpush1.msra.mxu0 0.0
        %2078 = vmatprep.subr.mxu0 0.0
        %2079 = vmatpush1.msra.mxu0 0.0
        %2080 = vmatprep.subr.mxu0 0.0
        %2081 = vmatpush1.msra.mxu0 0.0
        %2082 = vmatprep.subr.mxu0 0.0
        %2083 = vmatpush1.msra.mxu0 0.0
        %2084 = vmatprep.subr.mxu0 0.0
        %2085 = vmatpush1.msra.mxu0 0.0
        %2086 = vmatprep.subr.mxu0 0.0
        %2087 = vmatpush1.msra.mxu0 0.0
        %2088 = vmatprep.subr.mxu0 0.0
        %2089 = vmatpush1.msra.mxu0 0.0
        %2090 = vmatprep.subr.mxu0 0.0
        %2091 = vmatpush1.msra.mxu0 0.0
        %2092 = vmatprep.subr.mxu0 0.0
        %2093 = vmatpush1.msra.mxu0 0.0
        %2094 = vmatprep.subr.mxu0 0.0
        %2095 = vmatpush1.msra.mxu0 %v489
        %2096 = vmatprep.subr.mxu0 0.0
        %2097 = vmatpush2.msra.mxu0 0.0
        %2098 = vmatprep.subr.mxu0 0.0
        %2099 = vmatpush2.msra.mxu0 0.0
        %2100 = vmatprep.subr.mxu0 0.0
        %2101 = vmatpush2.msra.mxu0 0.0
        %2102 = vmatprep.subr.mxu0 0.0
        %2103 = vmatpush2.msra.mxu0 0.0
        %2104 = vmatprep.subr.mxu0 0.0
        %2105 = vmatpush2.msra.mxu0 0.0
        %2106 = vmatprep.subr.mxu0 0.0
        %2107 = vmatpush2.msra.mxu0 0.0
        %2108 = vmatprep.subr.mxu0 0.0
        %2109 = vmatpush2.msra.mxu0 0.0
        %2110 = vmatprep.subr.mxu0 0.0
        %2111 = vmatpush2.msra.mxu0 0.0
        %2112 = vmatprep.subr.mxu0 0.0
        %2113 = vmatpush2.msra.mxu0 0.0
        %2114 = vmatprep.subr.mxu0 0.0
        %2115 = vmatpush2.msra.mxu0 0.0
        %2116 = vmatprep.subr.mxu0 0.0
        %2117 = vmatpush2.msra.mxu0 0.0
        %2118 = vmatprep.subr.mxu0 0.0
        %2119 = vmatpush2.msra.mxu0 0.0
        %2120 = vmatprep.subr.mxu0 0.0
        %2121 = vmatpush2.msra.mxu0 0.0
        %2122 = vmatprep.subr.mxu0 0.0
        %2123 = vmatpush2.msra.mxu0 0.0
        %2124 = vmatprep.subr.mxu0 0.0
        %2125 = vmatpush2.msra.mxu0 0.0
        %2126 = vmatprep.subr.mxu0 0.0
        %2127 = vmatpush2.msra.mxu0 0.0
        %2128 = vmatprep.mubr.f32.mxu0 0.0
        %2129 = vmatmul.mubr.f32.gmra.mxu0 %v2062
        %v2130 = vpop.f32.mrf.mxu0
        %v2131 = vadd.f32 0.0, %v2130
        %v2132 = vpop.f32.mrf.mxu0
        %2133 = vdwg.mxu0
        %v2135 = vsel %vm1405, %v1906, 0
        %2137 = vmatprep.subr.mxu0 0.0
        %2138 = vmatpush1.msra.mxu0 0.0
        %2139 = vmatprep.subr.mxu0 0.0
        %2140 = vmatpush1.msra.mxu0 0.0
        %2141 = vmatprep.subr.mxu0 0.0
        %2142 = vmatpush1.msra.mxu0 0.0
        %2143 = vmatprep.subr.mxu0 0.0
        %2144 = vmatpush1.msra.mxu0 0.0
        %2145 = vmatprep.subr.mxu0 0.0
        %2146 = vmatpush1.msra.mxu0 0.0
        %2147 = vmatprep.subr.mxu0 0.0
        %2148 = vmatpush1.msra.mxu0 0.0
        %2149 = vmatprep.subr.mxu0 0.0
        %2150 = vmatpush1.msra.mxu0 0.0
        %2151 = vmatprep.subr.mxu0 0.0
        %2152 = vmatpush1.msra.mxu0 0.0
        %2153 = vmatprep.subr.mxu0 0.0
        %2154 = vmatpush1.msra.mxu0 0.0
        %2155 = vmatprep.subr.mxu0 0.0
        %2156 = vmatpush1.msra.mxu0 0.0
        %2157 = vmatprep.subr.mxu0 0.0
        %2158 = vmatpush1.msra.mxu0 0.0
        %2159 = vmatprep.subr.mxu0 0.0
        %2160 = vmatpush1.msra.mxu0 0.0
        %2161 = vmatprep.subr.mxu0 0.0
        %2162 = vmatpush1.msra.mxu0 0.0
        %2163 = vmatprep.subr.mxu0 0.0
        %2164 = vmatpush1.msra.mxu0 0.0
        %2165 = vmatprep.subr.mxu0 0.0
        %2166 = vmatpush1.msra.mxu0 0.0
        %2167 = vmatprep.subr.mxu0 0.0
        %2168 = vmatpush1.msra.mxu0 %v490
        %2169 = vmatprep.subr.mxu0 0.0
        %2170 = vmatpush2.msra.mxu0 0.0
        %2171 = vmatprep.subr.mxu0 0.0
        %2172 = vmatpush2.msra.mxu0 0.0
        %2173 = vmatprep.subr.mxu0 0.0
        %2174 = vmatpush2.msra.mxu0 0.0
        %2175 = vmatprep.subr.mxu0 0.0
        %2176 = vmatpush2.msra.mxu0 0.0
        %2177 = vmatprep.subr.mxu0 0.0
        %2178 = vmatpush2.msra.mxu0 0.0
        %2179 = vmatprep.subr.mxu0 0.0
        %2180 = vmatpush2.msra.mxu0 0.0
        %2181 = vmatprep.subr.mxu0 0.0
        %2182 = vmatpush2.msra.mxu0 0.0
        %2183 = vmatprep.subr.mxu0 0.0
        %2184 = vmatpush2.msra.mxu0 0.0
        %2185 = vmatprep.subr.mxu0 0.0
        %2186 = vmatpush2.msra.mxu0 0.0
        %2187 = vmatprep.subr.mxu0 0.0
        %2188 = vmatpush2.msra.mxu0 0.0
        %2189 = vmatprep.subr.mxu0 0.0
        %2190 = vmatpush2.msra.mxu0 0.0
        %2191 = vmatprep.subr.mxu0 0.0
        %2192 = vmatpush2.msra.mxu0 0.0
        %2193 = vmatprep.subr.mxu0 0.0
        %2194 = vmatpush2.msra.mxu0 0.0
        %2195 = vmatprep.subr.mxu0 0.0
        %2196 = vmatpush2.msra.mxu0 0.0
        %2197 = vmatprep.subr.mxu0 0.0
        %2198 = vmatpush2.msra.mxu0 0.0
        %2199 = vmatprep.subr.mxu0 0.0
        %2200 = vmatpush2.msra.mxu0 0.0
        %2201 = vmatprep.mubr.f32.mxu0 0.0
        %2202 = vmatmul.mubr.f32.gmra.mxu0 %v2135
        %v2203 = vpop.f32.mrf.mxu0
        %v2204 = vadd.f32 0.0, %v2203
        %v2205 = vpop.f32.mrf.mxu0
        %2206 = vdwg.mxu0
        %v2208 = vsel %vm1405, %v1982, 0
        %2210 = vmatprep.subr.mxu0 0.0
        %2211 = vmatpush1.msra.mxu0 0.0
        %2212 = vmatprep.subr.mxu0 0.0
        %2213 = vmatpush1.msra.mxu0 0.0
        %2214 = vmatprep.subr.mxu0 0.0
        %2215 = vmatpush1.msra.mxu0 0.0
        %2216 = vmatprep.subr.mxu0 0.0
        %2217 = vmatpush1.msra.mxu0 0.0
        %2218 = vmatprep.subr.mxu0 0.0
        %2219 = vmatpush1.msra.mxu0 0.0
        %2220 = vmatprep.subr.mxu0 0.0
        %2221 = vmatpush1.msra.mxu0 0.0
        %2222 = vmatprep.subr.mxu0 0.0
        %2223 = vmatpush1.msra.mxu0 0.0
        %2224 = vmatprep.subr.mxu0 0.0
        %2225 = vmatpush1.msra.mxu0 0.0
        %2226 = vmatprep.subr.mxu0 0.0
        %2227 = vmatpush1.msra.mxu0 0.0
        %2228 = vmatprep.subr.mxu0 0.0
        %2229 = vmatpush1.msra.mxu0 0.0
        %2230 = vmatprep.subr.mxu0 0.0
        %2231 = vmatpush1.msra.mxu0 0.0
        %2232 = vmatprep.subr.mxu0 0.0
        %2233 = vmatpush1.msra.mxu0 0.0
        %2234 = vmatprep.subr.mxu0 0.0
        %2235 = vmatpush1.msra.mxu0 0.0
        %2236 = vmatprep.subr.mxu0 0.0
        %2237 = vmatpush1.msra.mxu0 0.0
        %2238 = vmatprep.subr.mxu0 0.0
        %2239 = vmatpush1.msra.mxu0 0.0
        %2240 = vmatprep.subr.mxu0 0.0
        %2241 = vmatpush1.msra.mxu0 %v491
        %2242 = vmatprep.subr.mxu0 0.0
        %2243 = vmatpush2.msra.mxu0 0.0
        %2244 = vmatprep.subr.mxu0 0.0
        %2245 = vmatpush2.msra.mxu0 0.0
        %2246 = vmatprep.subr.mxu0 0.0
        %2247 = vmatpush2.msra.mxu0 0.0
        %2248 = vmatprep.subr.mxu0 0.0
        %2249 = vmatpush2.msra.mxu0 0.0
        %2250 = vmatprep.subr.mxu0 0.0
        %2251 = vmatpush2.msra.mxu0 0.0
        %2252 = vmatprep.subr.mxu0 0.0
        %2253 = vmatpush2.msra.mxu0 0.0
        %2254 = vmatprep.subr.mxu0 0.0
        %2255 = vmatpush2.msra.mxu0 0.0
        %2256 = vmatprep.subr.mxu0 0.0
        %2257 = vmatpush2.msra.mxu0 0.0
        %2258 = vmatprep.subr.mxu0 0.0
        %2259 = vmatpush2.msra.mxu0 0.0
        %2260 = vmatprep.subr.mxu0 0.0
        %2261 = vmatpush2.msra.mxu0 0.0
        %2262 = vmatprep.subr.mxu0 0.0
        %2263 = vmatpush2.msra.mxu0 0.0
        %2264 = vmatprep.subr.mxu0 0.0
        %2265 = vmatpush2.msra.mxu0 0.0
        %2266 = vmatprep.subr.mxu0 0.0
        %2267 = vmatpush2.msra.mxu0 0.0
        %2268 = vmatprep.subr.mxu0 0.0
        %2269 = vmatpush2.msra.mxu0 0.0
        %2270 = vmatprep.subr.mxu0 0.0
        %2271 = vmatpush2.msra.mxu0 0.0
        %2272 = vmatprep.subr.mxu0 0.0
        %2273 = vmatpush2.msra.mxu0 0.0
        %2274 = vmatprep.mubr.f32.mxu0 0.0
        %2275 = vmatmul.mubr.f32.gmra.mxu0 %v2208
        %v2276 = vpop.f32.mrf.mxu0
        %v2277 = vadd.f32 0.0, %v2276
        %v2278 = vpop.f32.mrf.mxu0
        %2279 = vdwg.mxu0
        %v2281 = vsel %vm1405, %v2058, 0
        %2283 = vmatprep.subr.mxu0 0.0
        %2284 = vmatpush1.msra.mxu0 0.0
        %2285 = vmatprep.subr.mxu0 0.0
        %2286 = vmatpush1.msra.mxu0 0.0
        %2287 = vmatprep.subr.mxu0 0.0
        %2288 = vmatpush1.msra.mxu0 0.0
        %2289 = vmatprep.subr.mxu0 0.0
        %2290 = vmatpush1.msra.mxu0 0.0
        %2291 = vmatprep.subr.mxu0 0.0
        %2292 = vmatpush1.msra.mxu0 0.0
        %2293 = vmatprep.subr.mxu0 0.0
        %2294 = vmatpush1.msra.mxu0 0.0
        %2295 = vmatprep.subr.mxu0 0.0
        %2296 = vmatpush1.msra.mxu0 0.0
        %2297 = vmatprep.subr.mxu0 0.0
        %2298 = vmatpush1.msra.mxu0 0.0
        %2299 = vmatprep.subr.mxu0 0.0
        %2300 = vmatpush1.msra.mxu0 0.0
        %2301 = vmatprep.subr.mxu0 0.0
        %2302 = vmatpush1.msra.mxu0 0.0
        %2303 = vmatprep.subr.mxu0 0.0
        %2304 = vmatpush1.msra.mxu0 0.0
        %2305 = vmatprep.subr.mxu0 0.0
        %2306 = vmatpush1.msra.mxu0 0.0
        %2307 = vmatprep.subr.mxu0 0.0
        %2308 = vmatpush1.msra.mxu0 0.0
        %2309 = vmatprep.subr.mxu0 0.0
        %2310 = vmatpush1.msra.mxu0 0.0
        %2311 = vmatprep.subr.mxu0 0.0
        %2312 = vmatpush1.msra.mxu0 0.0
        %2313 = vmatprep.subr.mxu0 0.0
        %2314 = vmatpush1.msra.mxu0 %v492
        %2315 = vmatprep.subr.mxu0 0.0
        %2316 = vmatpush2.msra.mxu0 0.0
        %2317 = vmatprep.subr.mxu0 0.0
        %2318 = vmatpush2.msra.mxu0 0.0
        %2319 = vmatprep.subr.mxu0 0.0
        %2320 = vmatpush2.msra.mxu0 0.0
        %2321 = vmatprep.subr.mxu0 0.0
        %2322 = vmatpush2.msra.mxu0 0.0
        %2323 = vmatprep.subr.mxu0 0.0
        %2324 = vmatpush2.msra.mxu0 0.0
        %2325 = vmatprep.subr.mxu0 0.0
        %2326 = vmatpush2.msra.mxu0 0.0
        %2327 = vmatprep.subr.mxu0 0.0
        %2328 = vmatpush2.msra.mxu0 0.0
        %2329 = vmatprep.subr.mxu0 0.0
        %2330 = vmatpush2.msra.mxu0 0.0
        %2331 = vmatprep.subr.mxu0 0.0
        %2332 = vmatpush2.msra.mxu0 0.0
        %2333 = vmatprep.subr.mxu0 0.0
        %2334 = vmatpush2.msra.mxu0 0.0
        %2335 = vmatprep.subr.mxu0 0.0
        %2336 = vmatpush2.msra.mxu0 0.0
        %2337 = vmatprep.subr.mxu0 0.0
        %2338 = vmatpush2.msra.mxu0 0.0
        %2339 = vmatprep.subr.mxu0 0.0
        %2340 = vmatpush2.msra.mxu0 0.0
        %2341 = vmatprep.subr.mxu0 0.0
        %2342 = vmatpush2.msra.mxu0 0.0
        %2343 = vmatprep.subr.mxu0 0.0
        %2344 = vmatpush2.msra.mxu0 0.0
        %2345 = vmatprep.subr.mxu0 0.0
        %2346 = vmatpush2.msra.mxu0 0.0
        %2347 = vmatprep.mubr.f32.mxu0 0.0
        %2348 = vmatmul.mubr.f32.gmra.mxu0 %v2281
        %v2349 = vpop.f32.mrf.mxu0
        %v2350 = vadd.f32 0.0, %v2349
        %v2351 = vpop.f32.mrf.mxu0
        %2352 = vdwg.mxu0
        %v2353 = vsel %vm412, %v2131, 0.0
        %v2354 = vsel %vm412, %v2204, 0.0
        %v2355 = vadd.f32 %v2353, %v2354
        %v2356 = vsel %vm412, %v2277, 0.0
        %v2357 = vadd.f32 %v2355, %v2356
        %v2358 = vsel %vm412, %v2350, 0.0
        %v2359 = vadd.f32 %v2357, %v2358
        %v2360 = vadd.f32 %v436, %v2359
        %v2361 = vlaneseq
        %v2362 = vshrl.u32 %v2361, 7
        %v2363 = vsub.s32 4, %v2362
        %v2364 = vrot.slane %v513, %v2363
        %v2365 = vadd.f32 %v2360, %v2364
        %v2366 = vsel %vm412, %v2365, 0.0
        %2367 = vadd.xlane.f32.xlu0 %v2366
        %v2368 = vpop.xlane.xlu0 %2367
        %v2369 = vmul.f32 %v2368, %v416
        %v2370 = vsub.f32 %v2365, %v2369
        %v2371 = vmul.f32 %v2370, %v2370
        %v2372 = vsel %vm412, %v2371, 0.0
        %2373 = vadd.xlane.f32.xlu0 %v2372
        %v2374 = vpop.xlane.xlu0 %2373
        %v2375 = vmul.f32 %v2374, %v416
        %v2376 = vadd.f32 %v2375, 1e-05
        %v2377 = vrsqrt.pop %v2376
        %v2378 = vmul.f32 %v2370, %v2377
        %v2379 = vlaneseq
        %v2380 = vshrl.u32 %v2379, 7
        %v2381 = vsub.s32 2, %v2380
        %v2382 = vrot.slane %v513, %v2381
        %v2383 = vmul.f32 %v2378, %v2382
        %v2384 = vlaneseq
        %v2385 = vshrl.u32 %v2384, 7
        %v2386 = vsub.s32 3, %v2385
        %v2387 = vrot.slane %v513, %v2386
        %v2388 = vadd.f32 %v2383, %v2387
        %v2389 = vlaneseq
        %v2390 = vshrl.u32 %v2389, 7
        %v2391 = vsub.s32 6, %v2390
        %v2392 = vrot.slane %v513, %v2391
        %v2394 = vsel %vm561, %v2388, 0
        %2396 = vmatprep.subr.mxu0 0.0
        %2397 = vmatpush1.msra.mxu0 0.0
        %2398 = vmatprep.subr.mxu0 0.0
        %2399 = vmatpush1.msra.mxu0 0.0
        %2400 = vmatprep.subr.mxu0 0.0
        %2401 = vmatpush1.msra.mxu0 0.0
        %2402 = vmatprep.subr.mxu0 0.0
        %2403 = vmatpush1.msra.mxu0 0.0
        %2404 = vmatprep.subr.mxu0 0.0
        %2405 = vmatpush1.msra.mxu0 0.0
        %2406 = vmatprep.subr.mxu0 0.0
        %2407 = vmatpush1.msra.mxu0 0.0
        %2408 = vmatprep.subr.mxu0 0.0
        %2409 = vmatpush1.msra.mxu0 0.0
        %2410 = vmatprep.subr.mxu0 0.0
        %2411 = vmatpush1.msra.mxu0 0.0
        %2412 = vmatprep.subr.mxu0 0.0
        %2413 = vmatpush1.msra.mxu0 0.0
        %2414 = vmatprep.subr.mxu0 0.0
        %2415 = vmatpush1.msra.mxu0 0.0
        %2416 = vmatprep.subr.mxu0 0.0
        %2417 = vmatpush1.msra.mxu0 0.0
        %2418 = vmatprep.subr.mxu0 0.0
        %2419 = vmatpush1.msra.mxu0 0.0
        %2420 = vmatprep.subr.mxu0 0.0
        %2421 = vmatpush1.msra.mxu0 %v496
        %2422 = vmatprep.subr.mxu0 0.0
        %2423 = vmatpush1.msra.mxu0 %v495
        %2424 = vmatprep.subr.mxu0 0.0
        %2425 = vmatpush1.msra.mxu0 %v494
        %2426 = vmatprep.subr.mxu0 0.0
        %2427 = vmatpush1.msra.mxu0 %v493
        %2428 = vmatprep.subr.mxu0 0.0
        %2429 = vmatpush2.msra.mxu0 0.0
        %2430 = vmatprep.subr.mxu0 0.0
        %2431 = vmatpush2.msra.mxu0 0.0
        %2432 = vmatprep.subr.mxu0 0.0
        %2433 = vmatpush2.msra.mxu0 0.0
        %2434 = vmatprep.subr.mxu0 0.0
        %2435 = vmatpush2.msra.mxu0 0.0
        %2436 = vmatprep.subr.mxu0 0.0
        %2437 = vmatpush2.msra.mxu0 0.0
        %2438 = vmatprep.subr.mxu0 0.0
        %2439 = vmatpush2.msra.mxu0 0.0
        %2440 = vmatprep.subr.mxu0 0.0
        %2441 = vmatpush2.msra.mxu0 0.0
        %2442 = vmatprep.subr.mxu0 0.0
        %2443 = vmatpush2.msra.mxu0 0.0
        %2444 = vmatprep.subr.mxu0 0.0
        %2445 = vmatpush2.msra.mxu0 0.0
        %2446 = vmatprep.subr.mxu0 0.0
        %2447 = vmatpush2.msra.mxu0 0.0
        %2448 = vmatprep.subr.mxu0 0.0
        %2449 = vmatpush2.msra.mxu0 0.0
        %2450 = vmatprep.subr.mxu0 0.0
        %2451 = vmatpush2.msra.mxu0 0.0
        %2452 = vmatprep.subr.mxu0 0.0
        %2453 = vmatpush2.msra.mxu0 0.0
        %2454 = vmatprep.subr.mxu0 0.0
        %2455 = vmatpush2.msra.mxu0 0.0
        %2456 = vmatprep.subr.mxu0 0.0
        %2457 = vmatpush2.msra.mxu0 0.0
        %2458 = vmatprep.subr.mxu0 0.0
        %2459 = vmatpush2.msra.mxu0 0.0
        %2460 = vmatprep.mubr.f32.mxu0 0.0
        %2461 = vmatmul.mubr.f32.gmra.mxu0 %v2394
        %v2462 = vpop.f32.mrf.mxu0
        %v2463 = vadd.f32 %v2392, %v2462
        %v2464 = vpop.f32.mrf.mxu0
        %2465 = vdwg.mxu0
        %v2466 = vmul.f32 %v2463, 1.702
        %v2467 = vxor.u32 %v2466, 2147483648
        %v2468 = vmul.f32 %v2467, 1.442695
        %v2469 = vpow.pop %v2468
        %v2470 = vadd.f32 %v2469, 1.0
        %v2471 = vrcp.pop %v2470
        %v2472 = vmul.f32 1.0, %v2471
        %v2473 = vmul.f32 %v2463, %v2472
        %2474 = vmatprep.subr.mxu0 0.0
        %2475 = vmatpush1.msra.mxu0 %v512
        %2476 = vmatprep.subr.mxu0 0.0
        %2477 = vmatpush1.msra.mxu0 %v511
        %2478 = vmatprep.subr.mxu0 0.0
        %2479 = vmatpush1.msra.mxu0 %v510
        %2480 = vmatprep.subr.mxu0 0.0
        %2481 = vmatpush1.msra.mxu0 %v509
        %2482 = vmatprep.subr.mxu0 0.0
        %2483 = vmatpush1.msra.mxu0 %v508
        %2484 = vmatprep.subr.mxu0 0.0
        %2485 = vmatpush1.msra.mxu0 %v507
        %2486 = vmatprep.subr.mxu0 0.0
        %2487 = vmatpush1.msra.mxu0 %v506
        %2488 = vmatprep.subr.mxu0 0.0
        %2489 = vmatpush1.msra.mxu0 %v505
        %2490 = vmatprep.subr.mxu0 0.0
        %2491 = vmatpush1.msra.mxu0 %v504
        %2492 = vmatprep.subr.mxu0 0.0
        %2493 = vmatpush1.msra.mxu0 %v503
        %2494 = vmatprep.subr.mxu0 0.0
        %2495 = vmatpush1.msra.mxu0 %v502
        %2496 = vmatprep.subr.mxu0 0.0
        %2497 = vmatpush1.msra.mxu0 %v501
        %2498 = vmatprep.subr.mxu0 0.0
        %2499 = vmatpush1.msra.mxu0 %v500
        %2500 = vmatprep.subr.mxu0 0.0
        %2501 = vmatpush1.msra.mxu0 %v499
        %2502 = vmatprep.subr.mxu0 0.0
        %2503 = vmatpush1.msra.mxu0 %v498
        %2504 = vmatprep.subr.mxu0 0.0
        %2505 = vmatpush1.msra.mxu0 %v497
        %2506 = vmatprep.subr.mxu0 0.0
        %2507 = vmatpush2.msra.mxu0 0.0
        %2508 = vmatprep.subr.mxu0 0.0
        %2509 = vmatpush2.msra.mxu0 0.0
        %2510 = vmatprep.subr.mxu0 0.0
        %2511 = vmatpush2.msra.mxu0 0.0
        %2512 = vmatprep.subr.mxu0 0.0
        %2513 = vmatpush2.msra.mxu0 0.0
        %2514 = vmatprep.subr.mxu0 0.0
        %2515 = vmatpush2.msra.mxu0 0.0
        %2516 = vmatprep.subr.mxu0 0.0
        %2517 = vmatpush2.msra.mxu0 0.0
        %2518 = vmatprep.subr.mxu0 0.0
        %2519 = vmatpush2.msra.mxu0 0.0
        %2520 = vmatprep.subr.mxu0 0.0
        %2521 = vmatpush2.msra.mxu0 0.0
        %2522 = vmatprep.subr.mxu0 0.0
        %2523 = vmatpush2.msra.mxu0 0.0
        %2524 = vmatprep.subr.mxu0 0.0
        %2525 = vmatpush2.msra.mxu0 0.0
        %2526 = vmatprep.subr.mxu0 0.0
        %2527 = vmatpush2.msra.mxu0 0.0
        %2528 = vmatprep.subr.mxu0 0.0
        %2529 = vmatpush2.msra.mxu0 0.0
        %2530 = vmatprep.subr.mxu0 0.0
        %2531 = vmatpush2.msra.mxu0 0.0
        %2532 = vmatprep.subr.mxu0 0.0
        %2533 = vmatpush2.msra.mxu0 0.0
        %2534 = vmatprep.subr.mxu0 0.0
        %2535 = vmatpush2.msra.mxu0 0.0
        %2536 = vmatprep.subr.mxu0 0.0
        %2537 = vmatpush2.msra.mxu0 0.0
        %2538 = vmatprep.mubr.f32.mxu0 0.0
        %2539 = vmatmul.mubr.f32.gmra.mxu0 %v2473
        %v2540 = vpop.f32.mrf.mxu0
        %v2541 = vadd.f32 0.0, %v2540
        %v2542 = vpop.f32.mrf.mxu0
        %2543 = vdwg.mxu0
        %v2544 = vadd.f32 %v2365, %v2541
        %v2545 = vlaneseq
        %v2546 = vshrl.u32 %v2545, 7
        %v2547 = vsub.s32 5, %v2546
        %v2548 = vrot.slane %v513, %v2547
        %v2549 = vadd.f32 %v2544, %v2548
        %s2550 = scalar_lea.vmem %s2, 384
        %v2551 = vld [vmem:[%s2550] sm:$0xff]
        %v2552 = vld [vmem:[%s2550 + $0x8] sm:$0xff]
        %v2553 = vld [vmem:[%s2550 + $0x10] sm:$0xff]
        %v2554 = vld [vmem:[%s2550 + $0x18] sm:$0xff]
        %v2555 = vld [vmem:[%s2550 + $0x20] sm:$0xff]
        %v2556 = vld [vmem:[%s2550 + $0x28] sm:$0xff]
        %v2557 = vld [vmem:[%s2550 + $0x30] sm:$0xff]
        %v2558 = vld [vmem:[%s2550 + $0x38] sm:$0xff]
        %v2559 = vld [vmem:[%s2550 + $0x40] sm:$0xff]
        %v2560 = vld [vmem:[%s2550 + $0x48] sm:$0xff]
        %v2561 = vld [vmem:[%s2550 + $0x50] sm:$0xff]
        %v2562 = vld [vmem:[%s2550 + $0x58] sm:$0xff]
        %v2563 = vld [vmem:[%s2550 + $0x60] sm:$0xff]
        %v2564 = vld [vmem:[%s2550 + $0x68] sm:$0xff]
        %v2565 = vld [vmem:[%s2550 + $0x70] sm:$0xff]
        %v2566 = vld [vmem:[%s2550 + $0x78] sm:$0xff]
        %v2567 = vld [vmem:[%s2550 + $0x80] sm:$0xff]
        %v2568 = vld [vmem:[%s2550 + $0x88] sm:$0xff]
        %v2569 = vld [vmem:[%s2550 + $0x90] sm:$0xff]
        %v2570 = vld [vmem:[%s2550 + $0x98] sm:$0xff]
        %v2571 = vld [vmem:[%s2550 + $0xa0] sm:$0xff]
        %v2572 = vld [vmem:[%s2550 + $0xa8] sm:$0xff]
        %v2573 = vld [vmem:[%s2550 + $0xb0] sm:$0xff]
        %v2574 = vld [vmem:[%s2550 + $0xb8] sm:$0xff]
        %v2575 = vld [vmem:[%s2550 + $0xc0] sm:$0xff]
        %v2576 = vld [vmem:[%s2550 + $0xc8] sm:$0xff]
        %v2577 = vld [vmem:[%s2550 + $0xd0] sm:$0xff]
        %v2578 = vld [vmem:[%s2550 + $0xd8] sm:$0xff]
        %v2579 = vld [vmem:[%s2550 + $0xe0] sm:$0xff]
        %v2580 = vld [vmem:[%s2550 + $0xe8] sm:$0xff]
        %v2581 = vld [vmem:[%s2550 + $0xf0] sm:$0xff]
        %v2582 = vld [vmem:[%s2550 + $0xf8] sm:$0xff]
        %v2583 = vld [vmem:[%s2550 + $0x100] sm:$0xff]
        %v2584 = vld [vmem:[%s2550 + $0x108] sm:$0xff]
        %v2585 = vld [vmem:[%s2550 + $0x110] sm:$0xff]
        %v2586 = vld [vmem:[%s2550 + $0x118] sm:$0xff]
        %v2587 = vld [vmem:[%s2550 + $0x120] sm:$0xff]
        %v2588 = vld [vmem:[%s2550 + $0x128] sm:$0xff]
        %v2589 = vld [vmem:[%s2550 + $0x130] sm:$0xff]
        %v2590 = vld [vmem:[%s2550 + $0x138] sm:$0xff]
        %v2591 = vld [vmem:[%s2550 + $0x140] sm:$0xff]
        %v2592 = vld [vmem:[%s2550 + $0x148] sm:$0xff]
        %v2593 = vld [vmem:[%s2550 + $0x150] sm:$0xff]
        %v2594 = vld [vmem:[%s2550 + $0x158] sm:$0xff]
        %v2595 = vld [vmem:[%s2550 + $0x160] sm:$0xff]
        %v2596 = vld [vmem:[%s2550 + $0x168] sm:$0xff]
        %v2597 = vld [vmem:[%s2550 + $0x170] sm:$0xff]
        %v2598 = vld [vmem:[%s2550 + $0x178] sm:$0xff]
        %s2599 = scalar_lea.vmem %s3, 4
        %v2600 = vld [vmem:[%s2599] sm:$0x1]
        %v2601 = vld [vmem:[%s2599 + $0x1] sm:$0x1]
        %v2602 = vld [vmem:[%s2599 + $0x2] sm:$0x1]
        %v2603 = vld [vmem:[%s2599 + $0x3] sm:$0x1]
        %s2604 = scalar_lea.vmem %s4, 32
        %v2605 = vld [vmem:[%s2604] sm:$0xff]
        %v2606 = vld [vmem:[%s2604 + $0x8] sm:$0xff]
        %v2607 = vld [vmem:[%s2604 + $0x10] sm:$0xff]
        %v2608 = vld [vmem:[%s2604 + $0x18] sm:$0xff]
        %s2609 = scalar_lea.vmem %s5, 32
        %v2610 = vld [vmem:[%s2609] sm:$0xff]
        %v2611 = vld [vmem:[%s2609 + $0x8] sm:$0xff]
        %v2612 = vld [vmem:[%s2609 + $0x10] sm:$0xff]
        %v2613 = vld [vmem:[%s2609 + $0x18] sm:$0xff]
        %s2614 = scalar_lea.vmem %s6, 128
        %v2615 = vld [vmem:[%s2614] sm:$0xff]
        %v2616 = vld [vmem:[%s2614 + $0x8] sm:$0xff]
        %v2617 = vld [vmem:[%s2614 + $0x10] sm:$0xff]
        %v2618 = vld [vmem:[%s2614 + $0x18] sm:$0xff]
        %v2619 = vld [vmem:[%s2614 + $0x20] sm:$0xff]
        %v2620 = vld [vmem:[%s2614 + $0x28] sm:$0xff]
        %v2621 = vld [vmem:[%s2614 + $0x30] sm:$0xff]
        %v2622 = vld [vmem:[%s2614 + $0x38] sm:$0xff]
        %v2623 = vld [vmem:[%s2614 + $0x40] sm:$0xff]
        %v2624 = vld [vmem:[%s2614 + $0x48] sm:$0xff]
        %v2625 = vld [vmem:[%s2614 + $0x50] sm:$0xff]
        %v2626 = vld [vmem:[%s2614 + $0x58] sm:$0xff]
        %v2627 = vld [vmem:[%s2614 + $0x60] sm:$0xff]
        %v2628 = vld [vmem:[%s2614 + $0x68] sm:$0xff]
        %v2629 = vld [vmem:[%s2614 + $0x70] sm:$0xff]
        %v2630 = vld [vmem:[%s2614 + $0x78] sm:$0xff]
        %s2631 = scalar_lea.vmem %s7, 8
        %v2632 = vld [vmem:[%s2631] sm:$0xff]
        %v2633 = vsel %vm412, %v2549, 0.0
        %2634 = vadd.xlane.f32.xlu0 %v2633
        %v2635 = vpop.xlane.xlu0 %2634
        %v2636 = vmul.f32 %v2635, %v416
        %v2637 = vsub.f32 %v2549, %v2636
        %v2638 = vmul.f32 %v2637, %v2637
        %v2639 = vsel %vm412, %v2638, 0.0
        %2640 = vadd.xlane.f32.xlu0 %v2639
        %v2641 = vpop.xlane.xlu0 %2640
        %v2642 = vmul.f32 %v2641, %v416
        %v2643 = vadd.f32 %v2642, 1e-05
        %v2644 = vrsqrt.pop %v2643
        %v2645 = vmul.f32 %v2637, %v2644
        %v2646 = vlaneseq
        %v2647 = vshrl.u32 %v2646, 7
        %v2648 = vsub.s32 0, %v2647
        %v2649 = vrot.slane %v2632, %v2648
        %v2650 = vmul.f32 %v2645, %v2649
        %v2651 = vlaneseq
        %v2652 = vshrl.u32 %v2651, 7
        %v2653 = vsub.s32 1, %v2652
        %v2654 = vrot.slane %v2632, %v2653
        %v2655 = vadd.f32 %v2650, %v2654
        %v2660 = vlaneseq
        %v2661 = vshrl.u32 %v2660, 7
        %v2662 = vsub.s32 0, %v2661
        %v2663 = vrot.slane %v2600, %v2662
        %v2664 = vlaneseq
        %v2665 = vshrl.u32 %v2664, 7
        %v2666 = vsub.s32 0, %v2665
        %v2667 = vrot.slane %v2601, %v2666
        %v2668 = vlaneseq
        %v2669 = vshrl.u32 %v2668, 7
        %v2670 = vsub.s32 0, %v2669
        %v2671 = vrot.slane %v2602, %v2670
        %v2672 = vlaneseq
        %v2673 = vshrl.u32 %v2672, 7
        %v2674 = vsub.s32 0, %v2673
        %v2675 = vrot.slane %v2603, %v2674
        %v2681 = vsel %vm561, %v2655, 0
        %2683 = vmatprep.subr.mxu0 0.0
        %2684 = vmatpush1.msra.mxu0 0.0
        %2685 = vmatprep.subr.mxu0 0.0
        %2686 = vmatpush1.msra.mxu0 0.0
        %2687 = vmatprep.subr.mxu0 0.0
        %2688 = vmatpush1.msra.mxu0 0.0
        %2689 = vmatprep.subr.mxu0 0.0
        %2690 = vmatpush1.msra.mxu0 0.0
        %2691 = vmatprep.subr.mxu0 0.0
        %2692 = vmatpush1.msra.mxu0 0.0
        %2693 = vmatprep.subr.mxu0 0.0
        %2694 = vmatpush1.msra.mxu0 0.0
        %2695 = vmatprep.subr.mxu0 0.0
        %2696 = vmatpush1.msra.mxu0 0.0
        %2697 = vmatprep.subr.mxu0 0.0
        %2698 = vmatpush1.msra.mxu0 0.0
        %2699 = vmatprep.subr.mxu0 0.0
        %2700 = vmatpush1.msra.mxu0 0.0
        %2701 = vmatprep.subr.mxu0 0.0
        %2702 = vmatpush1.msra.mxu0 0.0
        %2703 = vmatprep.subr.mxu0 0.0
        %2704 = vmatpush1.msra.mxu0 0.0
        %2705 = vmatprep.subr.mxu0 0.0
        %2706 = vmatpush1.msra.mxu0 0.0
        %2707 = vmatprep.subr.mxu0 0.0
        %2708 = vmatpush1.msra.mxu0 %v2554
        %2709 = vmatprep.subr.mxu0 0.0
        %2710 = vmatpush1.msra.mxu0 %v2553
        %2711 = vmatprep.subr.mxu0 0.0
        %2712 = vmatpush1.msra.mxu0 %v2552
        %2713 = vmatprep.subr.mxu0 0.0
        %2714 = vmatpush1.msra.mxu0 %v2551
        %2715 = vmatprep.subr.mxu0 0.0
        %2716 = vmatpush2.msra.mxu0 0.0
        %2717 = vmatprep.subr.mxu0 0.0
        %2718 = vmatpush2.msra.mxu0 0.0
        %2719 = vmatprep.subr.mxu0 0.0
        %2720 = vmatpush2.msra.mxu0 0.0
        %2721 = vmatprep.subr.mxu0 0.0
        %2722 = vmatpush2.msra.mxu0 0.0
        %2723 = vmatprep.subr.mxu0 0.0
        %2724 = vmatpush2.msra.mxu0 0.0
        %2725 = vmatprep.subr.mxu0 0.0
        %2726 = vmatpush2.msra.mxu0 0.0
        %2727 = vmatprep.subr.mxu0 0.0
        %2728 = vmatpush2.msra.mxu0 0.0
        %2729 = vmatprep.subr.mxu0 0.0
        %2730 = vmatpush2.msra.mxu0 0.0
        %2731 = vmatprep.subr.mxu0 0.0
        %2732 = vmatpush2.msra.mxu0 0.0
        %2733 = vmatprep.subr.mxu0 0.0
        %2734 = vmatpush2.msra.mxu0 0.0
        %2735 = vmatprep.subr.mxu0 0.0
        %2736 = vmatpush2.msra.mxu0 0.0
        %2737 = vmatprep.subr.mxu0 0.0
        %2738 = vmatpush2.msra.mxu0 0.0
        %2739 = vmatprep.subr.mxu0 0.0
        %2740 = vmatpush2.msra.mxu0 0.0
        %2741 = vmatprep.subr.mxu0 0.0
        %2742 = vmatpush2.msra.mxu0 0.0
        %2743 = vmatprep.subr.mxu0 0.0
        %2744 = vmatpush2.msra.mxu0 0.0
        %2745 = vmatprep.subr.mxu0 0.0
        %2746 = vmatpush2.msra.mxu0 0.0
        %2747 = vmatprep.mubr.f32.mxu0 0.0
        %2748 = vmatmul.mubr.f32.gmra.mxu0 %v2681
        %v2749 = vpop.f32.mrf.mxu0
        %v2750 = vadd.f32 %v2663, %v2749
        %v2751 = vpop.f32.mrf.mxu0
        %2752 = vdwg.mxu0
        %2753 = vmatprep.subr.mxu0 0.0
        %2754 = vmatpush1.msra.mxu0 0.0
        %2755 = vmatprep.subr.mxu0 0.0
        %2756 = vmatpush1.msra.mxu0 0.0
        %2757 = vmatprep.subr.mxu0 0.0
        %2758 = vmatpush1.msra.mxu0 0.0
        %2759 = vmatprep.subr.mxu0 0.0
        %2760 = vmatpush1.msra.mxu0 0.0
        %2761 = vmatprep.subr.mxu0 0.0
        %2762 = vmatpush1.msra.mxu0 0.0
        %2763 = vmatprep.subr.mxu0 0.0
        %2764 = vmatpush1.msra.mxu0 0.0
        %2765 = vmatprep.subr.mxu0 0.0
        %2766 = vmatpush1.msra.mxu0 0.0
        %2767 = vmatprep.subr.mxu0 0.0
        %2768 = vmatpush1.msra.mxu0 0.0
        %2769 = vmatprep.subr.mxu0 0.0
        %2770 = vmatpush1.msra.mxu0 0.0
        %2771 = vmatprep.subr.mxu0 0.0
        %2772 = vmatpush1.msra.mxu0 0.0
        %2773 = vmatprep.subr.mxu0 0.0
        %2774 = vmatpush1.msra.mxu0 0.0
        %2775 = vmatprep.subr.mxu0 0.0
        %2776 = vmatpush1.msra.mxu0 0.0
        %2777 = vmatprep.subr.mxu0 0.0
        %2778 = vmatpush1.msra.mxu0 %v2558
        %2779 = vmatprep.subr.mxu0 0.0
        %2780 = vmatpush1.msra.mxu0 %v2557
        %2781 = vmatprep.subr.mxu0 0.0
        %2782 = vmatpush1.msra.mxu0 %v2556
        %2783 = vmatprep.subr.mxu0 0.0
        %2784 = vmatpush1.msra.mxu0 %v2555
        %2785 = vmatprep.subr.mxu0 0.0
        %2786 = vmatpush2.msra.mxu0 0.0
        %2787 = vmatprep.subr.mxu0 0.0
        %2788 = vmatpush2.msra.mxu0 0.0
        %2789 = vmatprep.subr.mxu0 0.0
        %2790 = vmatpush2.msra.mxu0 0.0
        %2791 = vmatprep.subr.mxu0 0.0
        %2792 = vmatpush2.msra.mxu0 0.0
        %2793 = vmatprep.subr.mxu0 0.0
        %2794 = vmatpush2.msra.mxu0 0.0
        %2795 = vmatprep.subr.mxu0 0.0
        %2796 = vmatpush2.msra.mxu0 0.0
        %2797 = vmatprep.subr.mxu0 0.0
        %2798 = vmatpush2.msra.mxu0 0.0
        %2799 = vmatprep.subr.mxu0 0.0
        %2800 = vmatpush2.msra.mxu0 0.0
        %2801 = vmatprep.subr.mxu0 0.0
        %2802 = vmatpush2.msra.mxu0 0.0
        %2803 = vmatprep.subr.mxu0 0.0
        %2804 = vmatpush2.msra.mxu0 0.0
        %2805 = vmatprep.subr.mxu0 0.0
        %2806 = vmatpush2.msra.mxu0 0.0
        %2807 = vmatprep.subr.mxu0 0.0
        %2808 = vmatpush2.msra.mxu0 0.0
        %2809 = vmatprep.subr.mxu0 0.0
        %2810 = vmatpush2.msra.mxu0 0.0
        %2811 = vmatprep.subr.mxu0 0.0
        %2812 = vmatpush2.msra.mxu0 0.0
        %2813 = vmatprep.subr.mxu0 0.0
        %2814 = vmatpush2.msra.mxu0 0.0
        %2815 = vmatprep.subr.mxu0 0.0
        %2816 = vmatpush2.msra.mxu0 0.0
        %2817 = vmatprep.mubr.f32.mxu0 0.0
        %2818 = vmatmul.mubr.f32.gmra.mxu0 %v2681
        %v2819 = vpop.f32.mrf.mxu0
        %v2820 = vadd.f32 %v2667, %v2819
        %v2821 = vpop.f32.mrf.mxu0
        %2822 = vdwg.mxu0
        %2823 = vmatprep.subr.mxu0 0.0
        %2824 = vmatpush1.msra.mxu0 0.0
        %2825 = vmatprep.subr.mxu0 0.0
        %2826 = vmatpush1.msra.mxu0 0.0
        %2827 = vmatprep.subr.mxu0 0.0
        %2828 = vmatpush1.msra.mxu0 0.0
        %2829 = vmatprep.subr.mxu0 0.0
        %2830 = vmatpush1.msra.mxu0 0.0
        %2831 = vmatprep.subr.mxu0 0.0
        %2832 = vmatpush1.msra.mxu0 0.0
        %2833 = vmatprep.subr.mxu0 0.0
        %2834 = vmatpush1.msra.mxu0 0.0
        %2835 = vmatprep.subr.mxu0 0.0
        %2836 = vmatpush1.msra.mxu0 0.0
        %2837 = vmatprep.subr.mxu0 0.0
        %2838 = vmatpush1.msra.mxu0 0.0
        %2839 = vmatprep.subr.mxu0 0.0
        %2840 = vmatpush1.msra.mxu0 0.0
        %2841 = vmatprep.subr.mxu0 0.0
        %2842 = vmatpush1.msra.mxu0 0.0
        %2843 = vmatprep.subr.mxu0 0.0
        %2844 = vmatpush1.msra.mxu0 0.0
        %2845 = vmatprep.subr.mxu0 0.0
        %2846 = vmatpush1.msra.mxu0 0.0
        %2847 = vmatprep.subr.mxu0 0.0
        %2848 = vmatpush1.msra.mxu0 %v2562
        %2849 = vmatprep.subr.mxu0 0.0
        %2850 = vmatpush1.msra.mxu0 %v2561
        %2851 = vmatprep.subr.mxu0 0.0
        %2852 = vmatpush1.msra.mxu0 %v2560
        %2853 = vmatprep.subr.mxu0 0.0
        %2854 = vmatpush1.msra.mxu0 %v2559
        %2855 = vmatprep.subr.mxu0 0.0
        %2856 = vmatpush2.msra.mxu0 0.0
        %2857 = vmatprep.subr.mxu0 0.0
        %2858 = vmatpush2.msra.mxu0 0.0
        %2859 = vmatprep.subr.mxu0 0.0
        %2860 = vmatpush2.msra.mxu0 0.0
        %2861 = vmatprep.subr.mxu0 0.0
        %2862 = vmatpush2.msra.mxu0 0.0
        %2863 = vmatprep.subr.mxu0 0.0
        %2864 = vmatpush2.msra.mxu0 0.0
        %2865 = vmatprep.subr.mxu0 0.0
        %2866 = vmatpush2.msra.mxu0 0.0
        %2867 = vmatprep.subr.mxu0 0.0
        %2868 = vmatpush2.msra.mxu0 0.0
        %2869 = vmatprep.subr.mxu0 0.0
        %2870 = vmatpush2.msra.mxu0 0.0
        %2871 = vmatprep.subr.mxu0 0.0
        %2872 = vmatpush2.msra.mxu0 0.0
        %2873 = vmatprep.subr.mxu0 0.0
        %2874 = vmatpush2.msra.mxu0 0.0
        %2875 = vmatprep.subr.mxu0 0.0
        %2876 = vmatpush2.msra.mxu0 0.0
        %2877 = vmatprep.subr.mxu0 0.0
        %2878 = vmatpush2.msra.mxu0 0.0
        %2879 = vmatprep.subr.mxu0 0.0
        %2880 = vmatpush2.msra.mxu0 0.0
        %2881 = vmatprep.subr.mxu0 0.0
        %2882 = vmatpush2.msra.mxu0 0.0
        %2883 = vmatprep.subr.mxu0 0.0
        %2884 = vmatpush2.msra.mxu0 0.0
        %2885 = vmatprep.subr.mxu0 0.0
        %2886 = vmatpush2.msra.mxu0 0.0
        %2887 = vmatprep.mubr.f32.mxu0 0.0
        %2888 = vmatmul.mubr.f32.gmra.mxu0 %v2681
        %v2889 = vpop.f32.mrf.mxu0
        %v2890 = vadd.f32 %v2671, %v2889
        %v2891 = vpop.f32.mrf.mxu0
        %2892 = vdwg.mxu0
        %2893 = vmatprep.subr.mxu0 0.0
        %2894 = vmatpush1.msra.mxu0 0.0
        %2895 = vmatprep.subr.mxu0 0.0
        %2896 = vmatpush1.msra.mxu0 0.0
        %2897 = vmatprep.subr.mxu0 0.0
        %2898 = vmatpush1.msra.mxu0 0.0
        %2899 = vmatprep.subr.mxu0 0.0
        %2900 = vmatpush1.msra.mxu0 0.0
        %2901 = vmatprep.subr.mxu0 0.0
        %2902 = vmatpush1.msra.mxu0 0.0
        %2903 = vmatprep.subr.mxu0 0.0
        %2904 = vmatpush1.msra.mxu0 0.0
        %2905 = vmatprep.subr.mxu0 0.0
        %2906 = vmatpush1.msra.mxu0 0.0
        %2907 = vmatprep.subr.mxu0 0.0
        %2908 = vmatpush1.msra.mxu0 0.0
        %2909 = vmatprep.subr.mxu0 0.0
        %2910 = vmatpush1.msra.mxu0 0.0
        %2911 = vmatprep.subr.mxu0 0.0
        %2912 = vmatpush1.msra.mxu0 0.0
        %2913 = vmatprep.subr.mxu0 0.0
        %2914 = vmatpush1.msra.mxu0 0.0
        %2915 = vmatprep.subr.mxu0 0.0
        %2916 = vmatpush1.msra.mxu0 0.0
        %2917 = vmatprep.subr.mxu0 0.0
        %2918 = vmatpush1.msra.mxu0 %v2566
        %2919 = vmatprep.subr.mxu0 0.0
        %2920 = vmatpush1.msra.mxu0 %v2565
        %2921 = vmatprep.subr.mxu0 0.0
        %2922 = vmatpush1.msra.mxu0 %v2564
        %2923 = vmatprep.subr.mxu0 0.0
        %2924 = vmatpush1.msra.mxu0 %v2563
        %2925 = vmatprep.subr.mxu0 0.0
        %2926 = vmatpush2.msra.mxu0 0.0
        %2927 = vmatprep.subr.mxu0 0.0
        %2928 = vmatpush2.msra.mxu0 0.0
        %2929 = vmatprep.subr.mxu0 0.0
        %2930 = vmatpush2.msra.mxu0 0.0
        %2931 = vmatprep.subr.mxu0 0.0
        %2932 = vmatpush2.msra.mxu0 0.0
        %2933 = vmatprep.subr.mxu0 0.0
        %2934 = vmatpush2.msra.mxu0 0.0
        %2935 = vmatprep.subr.mxu0 0.0
        %2936 = vmatpush2.msra.mxu0 0.0
        %2937 = vmatprep.subr.mxu0 0.0
        %2938 = vmatpush2.msra.mxu0 0.0
        %2939 = vmatprep.subr.mxu0 0.0
        %2940 = vmatpush2.msra.mxu0 0.0
        %2941 = vmatprep.subr.mxu0 0.0
        %2942 = vmatpush2.msra.mxu0 0.0
        %2943 = vmatprep.subr.mxu0 0.0
        %2944 = vmatpush2.msra.mxu0 0.0
        %2945 = vmatprep.subr.mxu0 0.0
        %2946 = vmatpush2.msra.mxu0 0.0
        %2947 = vmatprep.subr.mxu0 0.0
        %2948 = vmatpush2.msra.mxu0 0.0
        %2949 = vmatprep.subr.mxu0 0.0
        %2950 = vmatpush2.msra.mxu0 0.0
        %2951 = vmatprep.subr.mxu0 0.0
        %2952 = vmatpush2.msra.mxu0 0.0
        %2953 = vmatprep.subr.mxu0 0.0
        %2954 = vmatpush2.msra.mxu0 0.0
        %2955 = vmatprep.subr.mxu0 0.0
        %2956 = vmatpush2.msra.mxu0 0.0
        %2957 = vmatprep.mubr.f32.mxu0 0.0
        %2958 = vmatmul.mubr.f32.gmra.mxu0 %v2681
        %v2959 = vpop.f32.mrf.mxu0
        %v2960 = vadd.f32 %v2675, %v2959
        %v2961 = vpop.f32.mrf.mxu0
        %2962 = vdwg.mxu0
        %2963 = vmatprep.subr.mxu0 0.0
        %2964 = vmatpush1.msra.mxu0 0.0
        %2965 = vmatprep.subr.mxu0 0.0
        %2966 = vmatpush1.msra.mxu0 0.0
        %2967 = vmatprep.subr.mxu0 0.0
        %2968 = vmatpush1.msra.mxu0 0.0
        %2969 = vmatprep.subr.mxu0 0.0
        %2970 = vmatpush1.msra.mxu0 0.0
        %2971 = vmatprep.subr.mxu0 0.0
        %2972 = vmatpush1.msra.mxu0 0.0
        %2973 = vmatprep.subr.mxu0 0.0
        %2974 = vmatpush1.msra.mxu0 0.0
        %2975 = vmatprep.subr.mxu0 0.0
        %2976 = vmatpush1.msra.mxu0 0.0
        %2977 = vmatprep.subr.mxu0 0.0
        %2978 = vmatpush1.msra.mxu0 0.0
        %2979 = vmatprep.subr.mxu0 0.0
        %2980 = vmatpush1.msra.mxu0 0.0
        %2981 = vmatprep.subr.mxu0 0.0
        %2982 = vmatpush1.msra.mxu0 0.0
        %2983 = vmatprep.subr.mxu0 0.0
        %2984 = vmatpush1.msra.mxu0 0.0
        %2985 = vmatprep.subr.mxu0 0.0
        %2986 = vmatpush1.msra.mxu0 0.0
        %2987 = vmatprep.subr.mxu0 0.0
        %2988 = vmatpush1.msra.mxu0 %v2570
        %2989 = vmatprep.subr.mxu0 0.0
        %2990 = vmatpush1.msra.mxu0 %v2569
        %2991 = vmatprep.subr.mxu0 0.0
        %2992 = vmatpush1.msra.mxu0 %v2568
        %2993 = vmatprep.subr.mxu0 0.0
        %2994 = vmatpush1.msra.mxu0 %v2567
        %2995 = vmatprep.subr.mxu0 0.0
        %2996 = vmatpush2.msra.mxu0 0.0
        %2997 = vmatprep.subr.mxu0 0.0
        %2998 = vmatpush2.msra.mxu0 0.0
        %2999 = vmatprep.subr.mxu0 0.0
        %3000 = vmatpush2.msra.mxu0 0.0
        %3001 = vmatprep.subr.mxu0 0.0
        %3002 = vmatpush2.msra.mxu0 0.0
        %3003 = vmatprep.subr.mxu0 0.0
        %3004 = vmatpush2.msra.mxu0 0.0
        %3005 = vmatprep.subr.mxu0 0.0
        %3006 = vmatpush2.msra.mxu0 0.0
        %3007 = vmatprep.subr.mxu0 0.0
        %3008 = vmatpush2.msra.mxu0 0.0
        %3009 = vmatprep.subr.mxu0 0.0
        %3010 = vmatpush2.msra.mxu0 0.0
        %3011 = vmatprep.subr.mxu0 0.0
        %3012 = vmatpush2.msra.mxu0 0.0
        %3013 = vmatprep.subr.mxu0 0.0
        %3014 = vmatpush2.msra.mxu0 0.0
        %3015 = vmatprep.subr.mxu0 0.0
        %3016 = vmatpush2.msra.mxu0 0.0
        %3017 = vmatprep.subr.mxu0 0.0
        %3018 = vmatpush2.msra.mxu0 0.0
        %3019 = vmatprep.subr.mxu0 0.0
        %3020 = vmatpush2.msra.mxu0 0.0
        %3021 = vmatprep.subr.mxu0 0.0
        %3022 = vmatpush2.msra.mxu0 0.0
        %3023 = vmatprep.subr.mxu0 0.0
        %3024 = vmatpush2.msra.mxu0 0.0
        %3025 = vmatprep.subr.mxu0 0.0
        %3026 = vmatpush2.msra.mxu0 0.0
        %3027 = vmatprep.mubr.f32.mxu0 0.0
        %3028 = vmatmul.mubr.f32.gmra.mxu0 %v2681
        %v3029 = vpop.f32.mrf.mxu0
        %v3030 = vadd.f32 0.0, %v3029
        %v3031 = vpop.f32.mrf.mxu0
        %3032 = vdwg.mxu0
        %3033 = vmatprep.subr.mxu0 0.0
        %3034 = vmatpush1.msra.mxu0 0.0
        %3035 = vmatprep.subr.mxu0 0.0
        %3036 = vmatpush1.msra.mxu0 0.0
        %3037 = vmatprep.subr.mxu0 0.0
        %3038 = vmatpush1.msra.mxu0 0.0
        %3039 = vmatprep.subr.mxu0 0.0
        %3040 = vmatpush1.msra.mxu0 0.0
        %3041 = vmatprep.subr.mxu0 0.0
        %3042 = vmatpush1.msra.mxu0 0.0
        %3043 = vmatprep.subr.mxu0 0.0
        %3044 = vmatpush1.msra.mxu0 0.0
        %3045 = vmatprep.subr.mxu0 0.0
        %3046 = vmatpush1.msra.mxu0 0.0
        %3047 = vmatprep.subr.mxu0 0.0
        %3048 = vmatpush1.msra.mxu0 0.0
        %3049 = vmatprep.subr.mxu0 0.0
        %3050 = vmatpush1.msra.mxu0 0.0
        %3051 = vmatprep.subr.mxu0 0.0
        %3052 = vmatpush1.msra.mxu0 0.0
        %3053 = vmatprep.subr.mxu0 0.0
        %3054 = vmatpush1.msra.mxu0 0.0
        %3055 = vmatprep.subr.mxu0 0.0
        %3056 = vmatpush1.msra.mxu0 0.0
        %3057 = vmatprep.subr.mxu0 0.0
        %3058 = vmatpush1.msra.mxu0 %v2574
        %3059 = vmatprep.subr.mxu0 0.0
        %3060 = vmatpush1.msra.mxu0 %v2573
        %3061 = vmatprep.subr.mxu0 0.0
        %3062 = vmatpush1.msra.mxu0 %v2572
        %3063 = vmatprep.subr.mxu0 0.0
        %3064 = vmatpush1.msra.mxu0 %v2571
        %3065 = vmatprep.subr.mxu0 0.0
        %3066 = vmatpush2.msra.mxu0 0.0
        %3067 = vmatprep.subr.mxu0 0.0
        %3068 = vmatpush2.msra.mxu0 0.0
        %3069 = vmatprep.subr.mxu0 0.0
        %3070 = vmatpush2.msra.mxu0 0.0
        %3071 = vmatprep.subr.mxu0 0.0
        %3072 = vmatpush2.msra.mxu0 0.0
        %3073 = vmatprep.subr.mxu0 0.0
        %3074 = vmatpush2.msra.mxu0 0.0
        %3075 = vmatprep.subr.mxu0 0.0
        %3076 = vmatpush2.msra.mxu0 0.0
        %3077 = vmatprep.subr.mxu0 0.0
        %3078 = vmatpush2.msra.mxu0 0.0
        %3079 = vmatprep.subr.mxu0 0.0
        %3080 = vmatpush2.msra.mxu0 0.0
        %3081 = vmatprep.subr.mxu0 0.0
        %3082 = vmatpush2.msra.mxu0 0.0
        %3083 = vmatprep.subr.mxu0 0.0
        %3084 = vmatpush2.msra.mxu0 0.0
        %3085 = vmatprep.subr.mxu0 0.0
        %3086 = vmatpush2.msra.mxu0 0.0
        %3087 = vmatprep.subr.mxu0 0.0
        %3088 = vmatpush2.msra.mxu0 0.0
        %3089 = vmatprep.subr.mxu0 0.0
        %3090 = vmatpush2.msra.mxu0 0.0
        %3091 = vmatprep.subr.mxu0 0.0
        %3092 = vmatpush2.msra.mxu0 0.0
        %3093 = vmatprep.subr.mxu0 0.0
        %3094 = vmatpush2.msra.mxu0 0.0
        %3095 = vmatprep.subr.mxu0 0.0
        %3096 = vmatpush2.msra.mxu0 0.0
        %3097 = vmatprep.mubr.f32.mxu0 0.0
        %3098 = vmatmul.mubr.f32.gmra.mxu0 %v2681
        %v3099 = vpop.f32.mrf.mxu0
        %v3100 = vadd.f32 0.0, %v3099
        %v3101 = vpop.f32.mrf.mxu0
        %3102 = vdwg.mxu0
        %3103 = vmatprep.subr.mxu0 0.0
        %3104 = vmatpush1.msra.mxu0 0.0
        %3105 = vmatprep.subr.mxu0 0.0
        %3106 = vmatpush1.msra.mxu0 0.0
        %3107 = vmatprep.subr.mxu0 0.0
        %3108 = vmatpush1.msra.mxu0 0.0
        %3109 = vmatprep.subr.mxu0 0.0
        %3110 = vmatpush1.msra.mxu0 0.0
        %3111 = vmatprep.subr.mxu0 0.0
        %3112 = vmatpush1.msra.mxu0 0.0
        %3113 = vmatprep.subr.mxu0 0.0
        %3114 = vmatpush1.msra.mxu0 0.0
        %3115 = vmatprep.subr.mxu0 0.0
        %3116 = vmatpush1.msra.mxu0 0.0
        %3117 = vmatprep.subr.mxu0 0.0
        %3118 = vmatpush1.msra.mxu0 0.0
        %3119 = vmatprep.subr.mxu0 0.0
        %3120 = vmatpush1.msra.mxu0 0.0
        %3121 = vmatprep.subr.mxu0 0.0
        %3122 = vmatpush1.msra.mxu0 0.0
        %3123 = vmatprep.subr.mxu0 0.0
        %3124 = vmatpush1.msra.mxu0 0.0
        %3125 = vmatprep.subr.mxu0 0.0
        %3126 = vmatpush1.msra.mxu0 0.0
        %3127 = vmatprep.subr.mxu0 0.0
        %3128 = vmatpush1.msra.mxu0 %v2578
        %3129 = vmatprep.subr.mxu0 0.0
        %3130 = vmatpush1.msra.mxu0 %v2577
        %3131 = vmatprep.subr.mxu0 0.0
        %3132 = vmatpush1.msra.mxu0 %v2576
        %3133 = vmatprep.subr.mxu0 0.0
        %3134 = vmatpush1.msra.mxu0 %v2575
        %3135 = vmatprep.subr.mxu0 0.0
        %3136 = vmatpush2.msra.mxu0 0.0
        %3137 = vmatprep.subr.mxu0 0.0
        %3138 = vmatpush2.msra.mxu0 0.0
        %3139 = vmatprep.subr.mxu0 0.0
        %3140 = vmatpush2.msra.mxu0 0.0
        %3141 = vmatprep.subr.mxu0 0.0
        %3142 = vmatpush2.msra.mxu0 0.0
        %3143 = vmatprep.subr.mxu0 0.0
        %3144 = vmatpush2.msra.mxu0 0.0
        %3145 = vmatprep.subr.mxu0 0.0
        %3146 = vmatpush2.msra.mxu0 0.0
        %3147 = vmatprep.subr.mxu0 0.0
        %3148 = vmatpush2.msra.mxu0 0.0
        %3149 = vmatprep.subr.mxu0 0.0
        %3150 = vmatpush2.msra.mxu0 0.0
        %3151 = vmatprep.subr.mxu0 0.0
        %3152 = vmatpush2.msra.mxu0 0.0
        %3153 = vmatprep.subr.mxu0 0.0
        %3154 = vmatpush2.msra.mxu0 0.0
        %3155 = vmatprep.subr.mxu0 0.0
        %3156 = vmatpush2.msra.mxu0 0.0
        %3157 = vmatprep.subr.mxu0 0.0
        %3158 = vmatpush2.msra.mxu0 0.0
        %3159 = vmatprep.subr.mxu0 0.0
        %3160 = vmatpush2.msra.mxu0 0.0
        %3161 = vmatprep.subr.mxu0 0.0
        %3162 = vmatpush2.msra.mxu0 0.0
        %3163 = vmatprep.subr.mxu0 0.0
        %3164 = vmatpush2.msra.mxu0 0.0
        %3165 = vmatprep.subr.mxu0 0.0
        %3166 = vmatpush2.msra.mxu0 0.0
        %3167 = vmatprep.mubr.f32.mxu0 0.0
        %3168 = vmatmul.mubr.f32.gmra.mxu0 %v2681
        %v3169 = vpop.f32.mrf.mxu0
        %v3170 = vadd.f32 0.0, %v3169
        %v3171 = vpop.f32.mrf.mxu0
        %3172 = vdwg.mxu0
        %3173 = vmatprep.subr.mxu0 0.0
        %3174 = vmatpush1.msra.mxu0 0.0
        %3175 = vmatprep.subr.mxu0 0.0
        %3176 = vmatpush1.msra.mxu0 0.0
        %3177 = vmatprep.subr.mxu0 0.0
        %3178 = vmatpush1.msra.mxu0 0.0
        %3179 = vmatprep.subr.mxu0 0.0
        %3180 = vmatpush1.msra.mxu0 0.0
        %3181 = vmatprep.subr.mxu0 0.0
        %3182 = vmatpush1.msra.mxu0 0.0
        %3183 = vmatprep.subr.mxu0 0.0
        %3184 = vmatpush1.msra.mxu0 0.0
        %3185 = vmatprep.subr.mxu0 0.0
        %3186 = vmatpush1.msra.mxu0 0.0
        %3187 = vmatprep.subr.mxu0 0.0
        %3188 = vmatpush1.msra.mxu0 0.0
        %3189 = vmatprep.subr.mxu0 0.0
        %3190 = vmatpush1.msra.mxu0 0.0
        %3191 = vmatprep.subr.mxu0 0.0
        %3192 = vmatpush1.msra.mxu0 0.0
        %3193 = vmatprep.subr.mxu0 0.0
        %3194 = vmatpush1.msra.mxu0 0.0
        %3195 = vmatprep.subr.mxu0 0.0
        %3196 = vmatpush1.msra.mxu0 0.0
        %3197 = vmatprep.subr.mxu0 0.0
        %3198 = vmatpush1.msra.mxu0 %v2582
        %3199 = vmatprep.subr.mxu0 0.0
        %3200 = vmatpush1.msra.mxu0 %v2581
        %3201 = vmatprep.subr.mxu0 0.0
        %3202 = vmatpush1.msra.mxu0 %v2580
        %3203 = vmatprep.subr.mxu0 0.0
        %3204 = vmatpush1.msra.mxu0 %v2579
        %3205 = vmatprep.subr.mxu0 0.0
        %3206 = vmatpush2.msra.mxu0 0.0
        %3207 = vmatprep.subr.mxu0 0.0
        %3208 = vmatpush2.msra.mxu0 0.0
        %3209 = vmatprep.subr.mxu0 0.0
        %3210 = vmatpush2.msra.mxu0 0.0
        %3211 = vmatprep.subr.mxu0 0.0
        %3212 = vmatpush2.msra.mxu0 0.0
        %3213 = vmatprep.subr.mxu0 0.0
        %3214 = vmatpush2.msra.mxu0 0.0
        %3215 = vmatprep.subr.mxu0 0.0
        %3216 = vmatpush2.msra.mxu0 0.0
        %3217 = vmatprep.subr.mxu0 0.0
        %3218 = vmatpush2.msra.mxu0 0.0
        %3219 = vmatprep.subr.mxu0 0.0
        %3220 = vmatpush2.msra.mxu0 0.0
        %3221 = vmatprep.subr.mxu0 0.0
        %3222 = vmatpush2.msra.mxu0 0.0
        %3223 = vmatprep.subr.mxu0 0.0
        %3224 = vmatpush2.msra.mxu0 0.0
        %3225 = vmatprep.subr.mxu0 0.0
        %3226 = vmatpush2.msra.mxu0 0.0
        %3227 = vmatprep.subr.mxu0 0.0
        %3228 = vmatpush2.msra.mxu0 0.0
        %3229 = vmatprep.subr.mxu0 0.0
        %3230 = vmatpush2.msra.mxu0 0.0
        %3231 = vmatprep.subr.mxu0 0.0
        %3232 = vmatpush2.msra.mxu0 0.0
        %3233 = vmatprep.subr.mxu0 0.0
        %3234 = vmatpush2.msra.mxu0 0.0
        %3235 = vmatprep.subr.mxu0 0.0
        %3236 = vmatpush2.msra.mxu0 0.0
        %3237 = vmatprep.mubr.f32.mxu0 0.0
        %3238 = vmatmul.mubr.f32.gmra.mxu0 %v2681
        %v3239 = vpop.f32.mrf.mxu0
        %v3240 = vadd.f32 0.0, %v3239
        %v3241 = vpop.f32.mrf.mxu0
        %3242 = vdwg.mxu0
        %3243 = vmatprep.subr.mxu0 0.0
        %3244 = vmatpush1.msra.mxu0 0.0
        %3245 = vmatprep.subr.mxu0 0.0
        %3246 = vmatpush1.msra.mxu0 0.0
        %3247 = vmatprep.subr.mxu0 0.0
        %3248 = vmatpush1.msra.mxu0 0.0
        %3249 = vmatprep.subr.mxu0 0.0
        %3250 = vmatpush1.msra.mxu0 0.0
        %3251 = vmatprep.subr.mxu0 0.0
        %3252 = vmatpush1.msra.mxu0 0.0
        %3253 = vmatprep.subr.mxu0 0.0
        %3254 = vmatpush1.msra.mxu0 0.0
        %3255 = vmatprep.subr.mxu0 0.0
        %3256 = vmatpush1.msra.mxu0 0.0
        %3257 = vmatprep.subr.mxu0 0.0
        %3258 = vmatpush1.msra.mxu0 0.0
        %3259 = vmatprep.subr.mxu0 0.0
        %3260 = vmatpush1.msra.mxu0 0.0
        %3261 = vmatprep.subr.mxu0 0.0
        %3262 = vmatpush1.msra.mxu0 0.0
        %3263 = vmatprep.subr.mxu0 0.0
        %3264 = vmatpush1.msra.mxu0 0.0
        %3265 = vmatprep.subr.mxu0 0.0
        %3266 = vmatpush1.msra.mxu0 0.0
        %3267 = vmatprep.subr.mxu0 0.0
        %3268 = vmatpush1.msra.mxu0 %v2586
        %3269 = vmatprep.subr.mxu0 0.0
        %3270 = vmatpush1.msra.mxu0 %v2585
        %3271 = vmatprep.subr.mxu0 0.0
        %3272 = vmatpush1.msra.mxu0 %v2584
        %3273 = vmatprep.subr.mxu0 0.0
        %3274 = vmatpush1.msra.mxu0 %v2583
        %3275 = vmatprep.subr.mxu0 0.0
        %3276 = vmatpush2.msra.mxu0 0.0
        %3277 = vmatprep.subr.mxu0 0.0
        %3278 = vmatpush2.msra.mxu0 0.0
        %3279 = vmatprep.subr.mxu0 0.0
        %3280 = vmatpush2.msra.mxu0 0.0
        %3281 = vmatprep.subr.mxu0 0.0
        %3282 = vmatpush2.msra.mxu0 0.0
        %3283 = vmatprep.subr.mxu0 0.0
        %3284 = vmatpush2.msra.mxu0 0.0
        %3285 = vmatprep.subr.mxu0 0.0
        %3286 = vmatpush2.msra.mxu0 0.0
        %3287 = vmatprep.subr.mxu0 0.0
        %3288 = vmatpush2.msra.mxu0 0.0
        %3289 = vmatprep.subr.mxu0 0.0
        %3290 = vmatpush2.msra.mxu0 0.0
        %3291 = vmatprep.subr.mxu0 0.0
        %3292 = vmatpush2.msra.mxu0 0.0
        %3293 = vmatprep.subr.mxu0 0.0
        %3294 = vmatpush2.msra.mxu0 0.0
        %3295 = vmatprep.subr.mxu0 0.0
        %3296 = vmatpush2.msra.mxu0 0.0
        %3297 = vmatprep.subr.mxu0 0.0
        %3298 = vmatpush2.msra.mxu0 0.0
        %3299 = vmatprep.subr.mxu0 0.0
        %3300 = vmatpush2.msra.mxu0 0.0
        %3301 = vmatprep.subr.mxu0 0.0
        %3302 = vmatpush2.msra.mxu0 0.0
        %3303 = vmatprep.subr.mxu0 0.0
        %3304 = vmatpush2.msra.mxu0 0.0
        %3305 = vmatprep.subr.mxu0 0.0
        %3306 = vmatpush2.msra.mxu0 0.0
        %3307 = vmatprep.mubr.f32.mxu0 0.0
        %3308 = vmatmul.mubr.f32.gmra.mxu0 %v2681
        %v3309 = vpop.f32.mrf.mxu0
        %v3310 = vadd.f32 0.0, %v3309
        %v3311 = vpop.f32.mrf.mxu0
        %3312 = vdwg.mxu0
        %3313 = vmatprep.subr.mxu0 0.0
        %3314 = vmatpush1.msra.mxu0 0.0
        %3315 = vmatprep.subr.mxu0 0.0
        %3316 = vmatpush1.msra.mxu0 0.0
        %3317 = vmatprep.subr.mxu0 0.0
        %3318 = vmatpush1.msra.mxu0 0.0
        %3319 = vmatprep.subr.mxu0 0.0
        %3320 = vmatpush1.msra.mxu0 0.0
        %3321 = vmatprep.subr.mxu0 0.0
        %3322 = vmatpush1.msra.mxu0 0.0
        %3323 = vmatprep.subr.mxu0 0.0
        %3324 = vmatpush1.msra.mxu0 0.0
        %3325 = vmatprep.subr.mxu0 0.0
        %3326 = vmatpush1.msra.mxu0 0.0
        %3327 = vmatprep.subr.mxu0 0.0
        %3328 = vmatpush1.msra.mxu0 0.0
        %3329 = vmatprep.subr.mxu0 0.0
        %3330 = vmatpush1.msra.mxu0 0.0
        %3331 = vmatprep.subr.mxu0 0.0
        %3332 = vmatpush1.msra.mxu0 0.0
        %3333 = vmatprep.subr.mxu0 0.0
        %3334 = vmatpush1.msra.mxu0 0.0
        %3335 = vmatprep.subr.mxu0 0.0
        %3336 = vmatpush1.msra.mxu0 0.0
        %3337 = vmatprep.subr.mxu0 0.0
        %3338 = vmatpush1.msra.mxu0 %v2590
        %3339 = vmatprep.subr.mxu0 0.0
        %3340 = vmatpush1.msra.mxu0 %v2589
        %3341 = vmatprep.subr.mxu0 0.0
        %3342 = vmatpush1.msra.mxu0 %v2588
        %3343 = vmatprep.subr.mxu0 0.0
        %3344 = vmatpush1.msra.mxu0 %v2587
        %3345 = vmatprep.subr.mxu0 0.0
        %3346 = vmatpush2.msra.mxu0 0.0
        %3347 = vmatprep.subr.mxu0 0.0
        %3348 = vmatpush2.msra.mxu0 0.0
        %3349 = vmatprep.subr.mxu0 0.0
        %3350 = vmatpush2.msra.mxu0 0.0
        %3351 = vmatprep.subr.mxu0 0.0
        %3352 = vmatpush2.msra.mxu0 0.0
        %3353 = vmatprep.subr.mxu0 0.0
        %3354 = vmatpush2.msra.mxu0 0.0
        %3355 = vmatprep.subr.mxu0 0.0
        %3356 = vmatpush2.msra.mxu0 0.0
        %3357 = vmatprep.subr.mxu0 0.0
        %3358 = vmatpush2.msra.mxu0 0.0
        %3359 = vmatprep.subr.mxu0 0.0
        %3360 = vmatpush2.msra.mxu0 0.0
        %3361 = vmatprep.subr.mxu0 0.0
        %3362 = vmatpush2.msra.mxu0 0.0
        %3363 = vmatprep.subr.mxu0 0.0
        %3364 = vmatpush2.msra.mxu0 0.0
        %3365 = vmatprep.subr.mxu0 0.0
        %3366 = vmatpush2.msra.mxu0 0.0
        %3367 = vmatprep.subr.mxu0 0.0
        %3368 = vmatpush2.msra.mxu0 0.0
        %3369 = vmatprep.subr.mxu0 0.0
        %3370 = vmatpush2.msra.mxu0 0.0
        %3371 = vmatprep.subr.mxu0 0.0
        %3372 = vmatpush2.msra.mxu0 0.0
        %3373 = vmatprep.subr.mxu0 0.0
        %3374 = vmatpush2.msra.mxu0 0.0
        %3375 = vmatprep.subr.mxu0 0.0
        %3376 = vmatpush2.msra.mxu0 0.0
        %3377 = vmatprep.mubr.f32.mxu0 0.0
        %3378 = vmatmul.mubr.f32.gmra.mxu0 %v2681
        %v3379 = vpop.f32.mrf.mxu0
        %v3380 = vadd.f32 0.0, %v3379
        %v3381 = vpop.f32.mrf.mxu0
        %3382 = vdwg.mxu0
        %3383 = vmatprep.subr.mxu0 0.0
        %3384 = vmatpush1.msra.mxu0 0.0
        %3385 = vmatprep.subr.mxu0 0.0
        %3386 = vmatpush1.msra.mxu0 0.0
        %3387 = vmatprep.subr.mxu0 0.0
        %3388 = vmatpush1.msra.mxu0 0.0
        %3389 = vmatprep.subr.mxu0 0.0
        %3390 = vmatpush1.msra.mxu0 0.0
        %3391 = vmatprep.subr.mxu0 0.0
        %3392 = vmatpush1.msra.mxu0 0.0
        %3393 = vmatprep.subr.mxu0 0.0
        %3394 = vmatpush1.msra.mxu0 0.0
        %3395 = vmatprep.subr.mxu0 0.0
        %3396 = vmatpush1.msra.mxu0 0.0
        %3397 = vmatprep.subr.mxu0 0.0
        %3398 = vmatpush1.msra.mxu0 0.0
        %3399 = vmatprep.subr.mxu0 0.0
        %3400 = vmatpush1.msra.mxu0 0.0
        %3401 = vmatprep.subr.mxu0 0.0
        %3402 = vmatpush1.msra.mxu0 0.0
        %3403 = vmatprep.subr.mxu0 0.0
        %3404 = vmatpush1.msra.mxu0 0.0
        %3405 = vmatprep.subr.mxu0 0.0
        %3406 = vmatpush1.msra.mxu0 0.0
        %3407 = vmatprep.subr.mxu0 0.0
        %3408 = vmatpush1.msra.mxu0 %v2594
        %3409 = vmatprep.subr.mxu0 0.0
        %3410 = vmatpush1.msra.mxu0 %v2593
        %3411 = vmatprep.subr.mxu0 0.0
        %3412 = vmatpush1.msra.mxu0 %v2592
        %3413 = vmatprep.subr.mxu0 0.0
        %3414 = vmatpush1.msra.mxu0 %v2591
        %3415 = vmatprep.subr.mxu0 0.0
        %3416 = vmatpush2.msra.mxu0 0.0
        %3417 = vmatprep.subr.mxu0 0.0
        %3418 = vmatpush2.msra.mxu0 0.0
        %3419 = vmatprep.subr.mxu0 0.0
        %3420 = vmatpush2.msra.mxu0 0.0
        %3421 = vmatprep.subr.mxu0 0.0
        %3422 = vmatpush2.msra.mxu0 0.0
        %3423 = vmatprep.subr.mxu0 0.0
        %3424 = vmatpush2.msra.mxu0 0.0
        %3425 = vmatprep.subr.mxu0 0.0
        %3426 = vmatpush2.msra.mxu0 0.0
        %3427 = vmatprep.subr.mxu0 0.0
        %3428 = vmatpush2.msra.mxu0 0.0
        %3429 = vmatprep.subr.mxu0 0.0
        %3430 = vmatpush2.msra.mxu0 0.0
        %3431 = vmatprep.subr.mxu0 0.0
        %3432 = vmatpush2.msra.mxu0 0.0
        %3433 = vmatprep.subr.mxu0 0.0
        %3434 = vmatpush2.msra.mxu0 0.0
        %3435 = vmatprep.subr.mxu0 0.0
        %3436 = vmatpush2.msra.mxu0 0.0
        %3437 = vmatprep.subr.mxu0 0.0
        %3438 = vmatpush2.msra.mxu0 0.0
        %3439 = vmatprep.subr.mxu0 0.0
        %3440 = vmatpush2.msra.mxu0 0.0
        %3441 = vmatprep.subr.mxu0 0.0
        %3442 = vmatpush2.msra.mxu0 0.0
        %3443 = vmatprep.subr.mxu0 0.0
        %3444 = vmatpush2.msra.mxu0 0.0
        %3445 = vmatprep.subr.mxu0 0.0
        %3446 = vmatpush2.msra.mxu0 0.0
        %3447 = vmatprep.mubr.f32.mxu0 0.0
        %3448 = vmatmul.mubr.f32.gmra.mxu0 %v2681
        %v3449 = vpop.f32.mrf.mxu0
        %v3450 = vadd.f32 0.0, %v3449
        %v3451 = vpop.f32.mrf.mxu0
        %3452 = vdwg.mxu0
        %3453 = vmatprep.subr.mxu0 0.0
        %3454 = vmatpush1.msra.mxu0 0.0
        %3455 = vmatprep.subr.mxu0 0.0
        %3456 = vmatpush1.msra.mxu0 0.0
        %3457 = vmatprep.subr.mxu0 0.0
        %3458 = vmatpush1.msra.mxu0 0.0
        %3459 = vmatprep.subr.mxu0 0.0
        %3460 = vmatpush1.msra.mxu0 0.0
        %3461 = vmatprep.subr.mxu0 0.0
        %3462 = vmatpush1.msra.mxu0 0.0
        %3463 = vmatprep.subr.mxu0 0.0
        %3464 = vmatpush1.msra.mxu0 0.0
        %3465 = vmatprep.subr.mxu0 0.0
        %3466 = vmatpush1.msra.mxu0 0.0
        %3467 = vmatprep.subr.mxu0 0.0
        %3468 = vmatpush1.msra.mxu0 0.0
        %3469 = vmatprep.subr.mxu0 0.0
        %3470 = vmatpush1.msra.mxu0 0.0
        %3471 = vmatprep.subr.mxu0 0.0
        %3472 = vmatpush1.msra.mxu0 0.0
        %3473 = vmatprep.subr.mxu0 0.0
        %3474 = vmatpush1.msra.mxu0 0.0
        %3475 = vmatprep.subr.mxu0 0.0
        %3476 = vmatpush1.msra.mxu0 0.0
        %3477 = vmatprep.subr.mxu0 0.0
        %3478 = vmatpush1.msra.mxu0 %v2598
        %3479 = vmatprep.subr.mxu0 0.0
        %3480 = vmatpush1.msra.mxu0 %v2597
        %3481 = vmatprep.subr.mxu0 0.0
        %3482 = vmatpush1.msra.mxu0 %v2596
        %3483 = vmatprep.subr.mxu0 0.0
        %3484 = vmatpush1.msra.mxu0 %v2595
        %3485 = vmatprep.subr.mxu0 0.0
        %3486 = vmatpush2.msra.mxu0 0.0
        %3487 = vmatprep.subr.mxu0 0.0
        %3488 = vmatpush2.msra.mxu0 0.0
        %3489 = vmatprep.subr.mxu0 0.0
        %3490 = vmatpush2.msra.mxu0 0.0
        %3491 = vmatprep.subr.mxu0 0.0
        %3492 = vmatpush2.msra.mxu0 0.0
        %3493 = vmatprep.subr.mxu0 0.0
        %3494 = vmatpush2.msra.mxu0 0.0
        %3495 = vmatprep.subr.mxu0 0.0
        %3496 = vmatpush2.msra.mxu0 0.0
        %3497 = vmatprep.subr.mxu0 0.0
        %3498 = vmatpush2.msra.mxu0 0.0
        %3499 = vmatprep.subr.mxu0 0.0
        %3500 = vmatpush2.msra.mxu0 0.0
        %3501 = vmatprep.subr.mxu0 0.0
        %3502 = vmatpush2.msra.mxu0 0.0
        %3503 = vmatprep.subr.mxu0 0.0
        %3504 = vmatpush2.msra.mxu0 0.0
        %3505 = vmatprep.subr.mxu0 0.0
        %3506 = vmatpush2.msra.mxu0 0.0
        %3507 = vmatprep.subr.mxu0 0.0
        %3508 = vmatpush2.msra.mxu0 0.0
        %3509 = vmatprep.subr.mxu0 0.0
        %3510 = vmatpush2.msra.mxu0 0.0
        %3511 = vmatprep.subr.mxu0 0.0
        %3512 = vmatpush2.msra.mxu0 0.0
        %3513 = vmatprep.subr.mxu0 0.0
        %3514 = vmatpush2.msra.mxu0 0.0
        %3515 = vmatprep.subr.mxu0 0.0
        %3516 = vmatpush2.msra.mxu0 0.0
        %3517 = vmatprep.mubr.f32.mxu0 0.0
        %3518 = vmatmul.mubr.f32.gmra.mxu0 %v2681
        %v3519 = vpop.f32.mrf.mxu0
        %v3520 = vadd.f32 0.0, %v3519
        %v3521 = vpop.f32.mrf.mxu0
        %3522 = vdwg.mxu0
        %v3524 = vsel %vm1405, %v2750, 0
        %v3527 = vsel %vm1405, %v3030, 0
        %3529 = vmatprep.subr.mxu0 0.0
        %3530 = vmatpush1.xpose.msra.mxu0 0.0
        %3531 = vmatprep.subr.mxu0 0.0
        %3532 = vmatpush1.xpose.msra.mxu0 0.0
        %3533 = vmatprep.subr.mxu0 0.0
        %3534 = vmatpush1.xpose.msra.mxu0 0.0
        %3535 = vmatprep.subr.mxu0 0.0
        %3536 = vmatpush1.xpose.msra.mxu0 0.0
        %3537 = vmatprep.subr.mxu0 0.0
        %3538 = vmatpush1.xpose.msra.mxu0 0.0
        %3539 = vmatprep.subr.mxu0 0.0
        %3540 = vmatpush1.xpose.msra.mxu0 0.0
        %3541 = vmatprep.subr.mxu0 0.0
        %3542 = vmatpush1.xpose.msra.mxu0 0.0
        %3543 = vmatprep.subr.mxu0 0.0
        %3544 = vmatpush1.xpose.msra.mxu0 0.0
        %3545 = vmatprep.subr.mxu0 0.0
        %3546 = vmatpush1.xpose.msra.mxu0 0.0
        %3547 = vmatprep.subr.mxu0 0.0
        %3548 = vmatpush1.xpose.msra.mxu0 0.0
        %3549 = vmatprep.subr.mxu0 0.0
        %3550 = vmatpush1.xpose.msra.mxu0 0.0
        %3551 = vmatprep.subr.mxu0 0.0
        %3552 = vmatpush1.xpose.msra.mxu0 0.0
        %3553 = vmatprep.subr.mxu0 0.0
        %3554 = vmatpush1.xpose.msra.mxu0 0.0
        %3555 = vmatprep.subr.mxu0 0.0
        %3556 = vmatpush1.xpose.msra.mxu0 0.0
        %3557 = vmatprep.subr.mxu0 0.0
        %3558 = vmatpush1.xpose.msra.mxu0 0.0
        %3559 = vmatprep.subr.mxu0 0.0
        %3560 = vmatpush1.xpose.msra.mxu0 %v3527
        %3561 = vmatprep.subr.mxu0 0.0
        %3562 = vmatpush2.xpose.msra.mxu0 0.0
        %3563 = vmatprep.subr.mxu0 0.0
        %3564 = vmatpush2.xpose.msra.mxu0 0.0
        %3565 = vmatprep.subr.mxu0 0.0
        %3566 = vmatpush2.xpose.msra.mxu0 0.0
        %3567 = vmatprep.subr.mxu0 0.0
        %3568 = vmatpush2.xpose.msra.mxu0 0.0
        %3569 = vmatprep.subr.mxu0 0.0
        %3570 = vmatpush2.xpose.msra.mxu0 0.0
        %3571 = vmatprep.subr.mxu0 0.0
        %3572 = vmatpush2.xpose.msra.mxu0 0.0
        %3573 = vmatprep.subr.mxu0 0.0
        %3574 = vmatpush2.xpose.msra.mxu0 0.0
        %3575 = vmatprep.subr.mxu0 0.0
        %3576 = vmatpush2.xpose.msra.mxu0 0.0
        %3577 = vmatprep.subr.mxu0 0.0
        %3578 = vmatpush2.xpose.msra.mxu0 0.0
        %3579 = vmatprep.subr.mxu0 0.0
        %3580 = vmatpush2.xpose.msra.mxu0 0.0
        %3581 = vmatprep.subr.mxu0 0.0
        %3582 = vmatpush2.xpose.msra.mxu0 0.0
        %3583 = vmatprep.subr.mxu0 0.0
        %3584 = vmatpush2.xpose.msra.mxu0 0.0
        %3585 = vmatprep.subr.mxu0 0.0
        %3586 = vmatpush2.xpose.msra.mxu0 0.0
        %3587 = vmatprep.subr.mxu0 0.0
        %3588 = vmatpush2.xpose.msra.mxu0 0.0
        %3589 = vmatprep.subr.mxu0 0.0
        %3590 = vmatpush2.xpose.msra.mxu0 0.0
        %3591 = vmatprep.subr.mxu0 0.0
        %3592 = vmatpush2.xpose.msra.mxu0 0.0
        %3593 = vmatprep.mubr.f32.mxu0 0.0
        %3594 = vmatmul.mubr.f32.gmra.mxu0 %v3524
        %v3595 = vpop.f32.mrf.mxu0
        %v3596 = vadd.f32 0.0, %v3595
        %v3597 = vpop.f32.mrf.mxu0
        %3598 = vdwg.mxu0
        %v3600 = vsel %vm1405, %v2820, 0
        %v3603 = vsel %vm1405, %v3100, 0
        %3605 = vmatprep.subr.mxu0 0.0
        %3606 = vmatpush1.xpose.msra.mxu0 0.0
        %3607 = vmatprep.subr.mxu0 0.0
        %3608 = vmatpush1.xpose.msra.mxu0 0.0
        %3609 = vmatprep.subr.mxu0 0.0
        %3610 = vmatpush1.xpose.msra.mxu0 0.0
        %3611 = vmatprep.subr.mxu0 0.0
        %3612 = vmatpush1.xpose.msra.mxu0 0.0
        %3613 = vmatprep.subr.mxu0 0.0
        %3614 = vmatpush1.xpose.msra.mxu0 0.0
        %3615 = vmatprep.subr.mxu0 0.0
        %3616 = vmatpush1.xpose.msra.mxu0 0.0
        %3617 = vmatprep.subr.mxu0 0.0
        %3618 = vmatpush1.xpose.msra.mxu0 0.0
        %3619 = vmatprep.subr.mxu0 0.0
        %3620 = vmatpush1.xpose.msra.mxu0 0.0
        %3621 = vmatprep.subr.mxu0 0.0
        %3622 = vmatpush1.xpose.msra.mxu0 0.0
        %3623 = vmatprep.subr.mxu0 0.0
        %3624 = vmatpush1.xpose.msra.mxu0 0.0
        %3625 = vmatprep.subr.mxu0 0.0
        %3626 = vmatpush1.xpose.msra.mxu0 0.0
        %3627 = vmatprep.subr.mxu0 0.0
        %3628 = vmatpush1.xpose.msra.mxu0 0.0
        %3629 = vmatprep.subr.mxu0 0.0
        %3630 = vmatpush1.xpose.msra.mxu0 0.0
        %3631 = vmatprep.subr.mxu0 0.0
        %3632 = vmatpush1.xpose.msra.mxu0 0.0
        %3633 = vmatprep.subr.mxu0 0.0
        %3634 = vmatpush1.xpose.msra.mxu0 0.0
        %3635 = vmatprep.subr.mxu0 0.0
        %3636 = vmatpush1.xpose.msra.mxu0 %v3603
        %3637 = vmatprep.subr.mxu0 0.0
        %3638 = vmatpush2.xpose.msra.mxu0 0.0
        %3639 = vmatprep.subr.mxu0 0.0
        %3640 = vmatpush2.xpose.msra.mxu0 0.0
        %3641 = vmatprep.subr.mxu0 0.0
        %3642 = vmatpush2.xpose.msra.mxu0 0.0
        %3643 = vmatprep.subr.mxu0 0.0
        %3644 = vmatpush2.xpose.msra.mxu0 0.0
        %3645 = vmatprep.subr.mxu0 0.0
        %3646 = vmatpush2.xpose.msra.mxu0 0.0
        %3647 = vmatprep.subr.mxu0 0.0
        %3648 = vmatpush2.xpose.msra.mxu0 0.0
        %3649 = vmatprep.subr.mxu0 0.0
        %3650 = vmatpush2.xpose.msra.mxu0 0.0
        %3651 = vmatprep.subr.mxu0 0.0
        %3652 = vmatpush2.xpose.msra.mxu0 0.0
        %3653 = vmatprep.subr.mxu0 0.0
        %3654 = vmatpush2.xpose.msra.mxu0 0.0
        %3655 = vmatprep.subr.mxu0 0.0
        %3656 = vmatpush2.xpose.msra.mxu0 0.0
        %3657 = vmatprep.subr.mxu0 0.0
        %3658 = vmatpush2.xpose.msra.mxu0 0.0
        %3659 = vmatprep.subr.mxu0 0.0
        %3660 = vmatpush2.xpose.msra.mxu0 0.0
        %3661 = vmatprep.subr.mxu0 0.0
        %3662 = vmatpush2.xpose.msra.mxu0 0.0
        %3663 = vmatprep.subr.mxu0 0.0
        %3664 = vmatpush2.xpose.msra.mxu0 0.0
        %3665 = vmatprep.subr.mxu0 0.0
        %3666 = vmatpush2.xpose.msra.mxu0 0.0
        %3667 = vmatprep.subr.mxu0 0.0
        %3668 = vmatpush2.xpose.msra.mxu0 0.0
        %3669 = vmatprep.mubr.f32.mxu0 0.0
        %3670 = vmatmul.mubr.f32.gmra.mxu0 %v3600
        %v3671 = vpop.f32.mrf.mxu0
        %v3672 = vadd.f32 0.0, %v3671
        %v3673 = vpop.f32.mrf.mxu0
        %3674 = vdwg.mxu0
        %v3676 = vsel %vm1405, %v2890, 0
        %v3679 = vsel %vm1405, %v3170, 0
        %3681 = vmatprep.subr.mxu0 0.0
        %3682 = vmatpush1.xpose.msra.mxu0 0.0
        %3683 = vmatprep.subr.mxu0 0.0
        %3684 = vmatpush1.xpose.msra.mxu0 0.0
        %3685 = vmatprep.subr.mxu0 0.0
        %3686 = vmatpush1.xpose.msra.mxu0 0.0
        %3687 = vmatprep.subr.mxu0 0.0
        %3688 = vmatpush1.xpose.msra.mxu0 0.0
        %3689 = vmatprep.subr.mxu0 0.0
        %3690 = vmatpush1.xpose.msra.mxu0 0.0
        %3691 = vmatprep.subr.mxu0 0.0
        %3692 = vmatpush1.xpose.msra.mxu0 0.0
        %3693 = vmatprep.subr.mxu0 0.0
        %3694 = vmatpush1.xpose.msra.mxu0 0.0
        %3695 = vmatprep.subr.mxu0 0.0
        %3696 = vmatpush1.xpose.msra.mxu0 0.0
        %3697 = vmatprep.subr.mxu0 0.0
        %3698 = vmatpush1.xpose.msra.mxu0 0.0
        %3699 = vmatprep.subr.mxu0 0.0
        %3700 = vmatpush1.xpose.msra.mxu0 0.0
        %3701 = vmatprep.subr.mxu0 0.0
        %3702 = vmatpush1.xpose.msra.mxu0 0.0
        %3703 = vmatprep.subr.mxu0 0.0
        %3704 = vmatpush1.xpose.msra.mxu0 0.0
        %3705 = vmatprep.subr.mxu0 0.0
        %3706 = vmatpush1.xpose.msra.mxu0 0.0
        %3707 = vmatprep.subr.mxu0 0.0
        %3708 = vmatpush1.xpose.msra.mxu0 0.0
        %3709 = vmatprep.subr.mxu0 0.0
        %3710 = vmatpush1.xpose.msra.mxu0 0.0
        %3711 = vmatprep.subr.mxu0 0.0
        %3712 = vmatpush1.xpose.msra.mxu0 %v3679
        %3713 = vmatprep.subr.mxu0 0.0
        %3714 = vmatpush2.xpose.msra.mxu0 0.0
        %3715 = vmatprep.subr.mxu0 0.0
        %3716 = vmatpush2.xpose.msra.mxu0 0.0
        %3717 = vmatprep.subr.mxu0 0.0
        %3718 = vmatpush2.xpose.msra.mxu0 0.0
        %3719 = vmatprep.subr.mxu0 0.0
        %3720 = vmatpush2.xpose.msra.mxu0 0.0
        %3721 = vmatprep.subr.mxu0 0.0
        %3722 = vmatpush2.xpose.msra.mxu0 0.0
        %3723 = vmatprep.subr.mxu0 0.0
        %3724 = vmatpush2.xpose.msra.mxu0 0.0
        %3725 = vmatprep.subr.mxu0 0.0
        %3726 = vmatpush2.xpose.msra.mxu0 0.0
        %3727 = vmatprep.subr.mxu0 0.0
        %3728 = vmatpush2.xpose.msra.mxu0 0.0
        %3729 = vmatprep.subr.mxu0 0.0
        %3730 = vmatpush2.xpose.msra.mxu0 0.0
        %3731 = vmatprep.subr.mxu0 0.0
        %3732 = vmatpush2.xpose.msra.mxu0 0.0
        %3733 = vmatprep.subr.mxu0 0.0
        %3734 = vmatpush2.xpose.msra.mxu0 0.0
        %3735 = vmatprep.subr.mxu0 0.0
        %3736 = vmatpush2.xpose.msra.mxu0 0.0
        %3737 = vmatprep.subr.mxu0 0.0
        %3738 = vmatpush2.xpose.msra.mxu0 0.0
        %3739 = vmatprep.subr.mxu0 0.0
        %3740 = vmatpush2.xpose.msra.mxu0 0.0
        %3741 = vmatprep.subr.mxu0 0.0
        %3742 = vmatpush2.xpose.msra.mxu0 0.0
        %3743 = vmatprep.subr.mxu0 0.0
        %3744 = vmatpush2.xpose.msra.mxu0 0.0
        %3745 = vmatprep.mubr.f32.mxu0 0.0
        %3746 = vmatmul.mubr.f32.gmra.mxu0 %v3676
        %v3747 = vpop.f32.mrf.mxu0
        %v3748 = vadd.f32 0.0, %v3747
        %v3749 = vpop.f32.mrf.mxu0
        %3750 = vdwg.mxu0
        %v3752 = vsel %vm1405, %v2960, 0
        %v3755 = vsel %vm1405, %v3240, 0
        %3757 = vmatprep.subr.mxu0 0.0
        %3758 = vmatpush1.xpose.msra.mxu0 0.0
        %3759 = vmatprep.subr.mxu0 0.0
        %3760 = vmatpush1.xpose.msra.mxu0 0.0
        %3761 = vmatprep.subr.mxu0 0.0
        %3762 = vmatpush1.xpose.msra.mxu0 0.0
        %3763 = vmatprep.subr.mxu0 0.0
        %3764 = vmatpush1.xpose.msra.mxu0 0.0
        %3765 = vmatprep.subr.mxu0 0.0
        %3766 = vmatpush1.xpose.msra.mxu0 0.0
        %3767 = vmatprep.subr.mxu0 0.0
        %3768 = vmatpush1.xpose.msra.mxu0 0.0
        %3769 = vmatprep.subr.mxu0 0.0
        %3770 = vmatpush1.xpose.msra.mxu0 0.0
        %3771 = vmatprep.subr.mxu0 0.0
        %3772 = vmatpush1.xpose.msra.mxu0 0.0
        %3773 = vmatprep.subr.mxu0 0.0
        %3774 = vmatpush1.xpose.msra.mxu0 0.0
        %3775 = vmatprep.subr.mxu0 0.0
        %3776 = vmatpush1.xpose.msra.mxu0 0.0
        %3777 = vmatprep.subr.mxu0 0.0
        %3778 = vmatpush1.xpose.msra.mxu0 0.0
        %3779 = vmatprep.subr.mxu0 0.0
        %3780 = vmatpush1.xpose.msra.mxu0 0.0
        %3781 = vmatprep.subr.mxu0 0.0
        %3782 = vmatpush1.xpose.msra.mxu0 0.0
        %3783 = vmatprep.subr.mxu0 0.0
        %3784 = vmatpush1.xpose.msra.mxu0 0.0
        %3785 = vmatprep.subr.mxu0 0.0
        %3786 = vmatpush1.xpose.msra.mxu0 0.0
        %3787 = vmatprep.subr.mxu0 0.0
        %3788 = vmatpush1.xpose.msra.mxu0 %v3755
        %3789 = vmatprep.subr.mxu0 0.0
        %3790 = vmatpush2.xpose.msra.mxu0 0.0
        %3791 = vmatprep.subr.mxu0 0.0
        %3792 = vmatpush2.xpose.msra.mxu0 0.0
        %3793 = vmatprep.subr.mxu0 0.0
        %3794 = vmatpush2.xpose.msra.mxu0 0.0
        %3795 = vmatprep.subr.mxu0 0.0
        %3796 = vmatpush2.xpose.msra.mxu0 0.0
        %3797 = vmatprep.subr.mxu0 0.0
        %3798 = vmatpush2.xpose.msra.mxu0 0.0
        %3799 = vmatprep.subr.mxu0 0.0
        %3800 = vmatpush2.xpose.msra.mxu0 0.0
        %3801 = vmatprep.subr.mxu0 0.0
        %3802 = vmatpush2.xpose.msra.mxu0 0.0
        %3803 = vmatprep.subr.mxu0 0.0
        %3804 = vmatpush2.xpose.msra.mxu0 0.0
        %3805 = vmatprep.subr.mxu0 0.0
        %3806 = vmatpush2.xpose.msra.mxu0 0.0
        %3807 = vmatprep.subr.mxu0 0.0
        %3808 = vmatpush2.xpose.msra.mxu0 0.0
        %3809 = vmatprep.subr.mxu0 0.0
        %3810 = vmatpush2.xpose.msra.mxu0 0.0
        %3811 = vmatprep.subr.mxu0 0.0
        %3812 = vmatpush2.xpose.msra.mxu0 0.0
        %3813 = vmatprep.subr.mxu0 0.0
        %3814 = vmatpush2.xpose.msra.mxu0 0.0
        %3815 = vmatprep.subr.mxu0 0.0
        %3816 = vmatpush2.xpose.msra.mxu0 0.0
        %3817 = vmatprep.subr.mxu0 0.0
        %3818 = vmatpush2.xpose.msra.mxu0 0.0
        %3819 = vmatprep.subr.mxu0 0.0
        %3820 = vmatpush2.xpose.msra.mxu0 0.0
        %3821 = vmatprep.mubr.f32.mxu0 0.0
        %3822 = vmatmul.mubr.f32.gmra.mxu0 %v3752
        %v3823 = vpop.f32.mrf.mxu0
        %v3824 = vadd.f32 0.0, %v3823
        %v3825 = vpop.f32.mrf.mxu0
        %3826 = vdwg.mxu0
        %v3827 = vsel %vm1710, %v3596, -inf
        %3828 = vmax.xlane.f32.xlu0 %v3827
        %v3829 = vpop.xlane.xlu0 %3828
        %v3830 = vsel %vm1710, %v3672, -inf
        %3831 = vmax.xlane.f32.xlu0 %v3830
        %v3832 = vpop.xlane.xlu0 %3831
        %v3833 = vsel %vm1710, %v3748, -inf
        %3834 = vmax.xlane.f32.xlu0 %v3833
        %v3835 = vpop.xlane.xlu0 %3834
        %v3836 = vsel %vm1710, %v3824, -inf
        %3837 = vmax.xlane.f32.xlu0 %v3836
        %v3838 = vpop.xlane.xlu0 %3837
        %v3839 = vsub.f32 %v3596, %v3829
        %v3840 = vsub.f32 %v3672, %v3832
        %v3841 = vsub.f32 %v3748, %v3835
        %v3842 = vsub.f32 %v3824, %v3838
        %v3843 = vmul.f32 %v3839, 1.442695
        %v3844 = vpow.pop %v3843
        %v3845 = vmul.f32 %v3840, 1.442695
        %v3846 = vpow.pop %v3845
        %v3847 = vmul.f32 %v3841, 1.442695
        %v3848 = vpow.pop %v3847
        %v3849 = vmul.f32 %v3842, 1.442695
        %v3850 = vpow.pop %v3849
        %v3851 = vsel %vm1710, %v3844, 0.0
        %3852 = vadd.xlane.f32.xlu0 %v3851
        %v3853 = vpop.xlane.xlu0 %3852
        %v3854 = vsel %vm1710, %v3846, 0.0
        %3855 = vadd.xlane.f32.xlu0 %v3854
        %v3856 = vpop.xlane.xlu0 %3855
        %v3857 = vsel %vm1710, %v3848, 0.0
        %3858 = vadd.xlane.f32.xlu0 %v3857
        %v3859 = vpop.xlane.xlu0 %3858
        %v3860 = vsel %vm1710, %v3850, 0.0
        %3861 = vadd.xlane.f32.xlu0 %v3860
        %v3862 = vpop.xlane.xlu0 %3861
        %v3863 = vrcp.pop %v3853
        %v3864 = vrcp.pop %v3856
        %v3865 = vrcp.pop %v3859
        %v3866 = vrcp.pop %v3862
        %v3867 = vmul.f32 %v3844, %v3863
        %v3868 = vmul.f32 %v3846, %v3864
        %v3869 = vmul.f32 %v3848, %v3865
        %v3870 = vmul.f32 %v3850, %v3866
        %v3872 = vsel %vm1755, %v3867, 0
        %v3875 = vsel %vm1759, %v3310, 0
        %3877 = vmatprep.subr.mxu0 0.0
        %3878 = vmatpush1.msra.mxu0 0.0
        %3879 = vmatprep.subr.mxu0 0.0
        %3880 = vmatpush1.msra.mxu0 0.0
        %3881 = vmatprep.subr.mxu0 0.0
        %3882 = vmatpush1.msra.mxu0 0.0
        %3883 = vmatprep.subr.mxu0 0.0
        %3884 = vmatpush1.msra.mxu0 0.0
        %3885 = vmatprep.subr.mxu0 0.0
        %3886 = vmatpush1.msra.mxu0 0.0
        %3887 = vmatprep.subr.mxu0 0.0
        %3888 = vmatpush1.msra.mxu0 0.0
        %3889 = vmatprep.subr.mxu0 0.0
        %3890 = vmatpush1.msra.mxu0 0.0
        %3891 = vmatprep.subr.mxu0 0.0
        %3892 = vmatpush1.msra.mxu0 0.0
        %3893 = vmatprep.subr.mxu0 0.0
        %3894 = vmatpush1.msra.mxu0 0.0
        %3895 = vmatprep.subr.mxu0 0.0
        %3896 = vmatpush1.msra.mxu0 0.0
        %3897 = vmatprep.subr.mxu0 0.0
        %3898 = vmatpush1.msra.mxu0 0.0
        %3899 = vmatprep.subr.mxu0 0.0
        %3900 = vmatpush1.msra.mxu0 0.0
        %3901 = vmatprep.subr.mxu0 0.0
        %3902 = vmatpush1.msra.mxu0 0.0
        %3903 = vmatprep.subr.mxu0 0.0
        %3904 = vmatpush1.msra.mxu0 0.0
        %3905 = vmatprep.subr.mxu0 0.0
        %3906 = vmatpush1.msra.mxu0 0.0
        %3907 = vmatprep.subr.mxu0 0.0
        %3908 = vmatpush1.msra.mxu0 %v3875
        %3909 = vmatprep.subr.mxu0 0.0
        %3910 = vmatpush2.msra.mxu0 0.0
        %3911 = vmatprep.subr.mxu0 0.0
        %3912 = vmatpush2.msra.mxu0 0.0
        %3913 = vmatprep.subr.mxu0 0.0
        %3914 = vmatpush2.msra.mxu0 0.0
        %3915 = vmatprep.subr.mxu0 0.0
        %3916 = vmatpush2.msra.mxu0 0.0
        %3917 = vmatprep.subr.mxu0 0.0
        %3918 = vmatpush2.msra.mxu0 0.0
        %3919 = vmatprep.subr.mxu0 0.0
        %3920 = vmatpush2.msra.mxu0 0.0
        %3921 = vmatprep.subr.mxu0 0.0
        %3922 = vmatpush2.msra.mxu0 0.0
        %3923 = vmatprep.subr.mxu0 0.0
        %3924 = vmatpush2.msra.mxu0 0.0
        %3925 = vmatprep.subr.mxu0 0.0
        %3926 = vmatpush2.msra.mxu0 0.0
        %3927 = vmatprep.subr.mxu0 0.0
        %3928 = vmatpush2.msra.mxu0 0.0
        %3929 = vmatprep.subr.mxu0 0.0
        %3930 = vmatpush2.msra.mxu0 0.0
        %3931 = vmatprep.subr.mxu0 0.0
        %3932 = vmatpush2.msra.mxu0 0.0
        %3933 = vmatprep.subr.mxu0 0.0
        %3934 = vmatpush2.msra.mxu0 0.0
        %3935 = vmatprep.subr.mxu0 0.0
        %3936 = vmatpush2.msra.mxu0 0.0
        %3937 = vmatprep.subr.mxu0 0.0
        %3938 = vmatpush2.msra.mxu0 0.0
        %3939 = vmatprep.subr.mxu0 0.0
        %3940 = vmatpush2.msra.mxu0 0.0
        %3941 = vmatprep.mubr.f32.mxu0 0.0
        %3942 = vmatmul.mubr.f32.gmra.mxu0 %v3872
        %v3943 = vpop.f32.mrf.mxu0
        %v3944 = vadd.f32 0.0, %v3943
        %v3945 = vpop.f32.mrf.mxu0
        %3946 = vdwg.mxu0
        %v3948 = vsel %vm1755, %v3868, 0
        %v3951 = vsel %vm1759, %v3380, 0
        %3953 = vmatprep.subr.mxu0 0.0
        %3954 = vmatpush1.msra.mxu0 0.0
        %3955 = vmatprep.subr.mxu0 0.0
        %3956 = vmatpush1.msra.mxu0 0.0
        %3957 = vmatprep.subr.mxu0 0.0
        %3958 = vmatpush1.msra.mxu0 0.0
        %3959 = vmatprep.subr.mxu0 0.0
        %3960 = vmatpush1.msra.mxu0 0.0
        %3961 = vmatprep.subr.mxu0 0.0
        %3962 = vmatpush1.msra.mxu0 0.0
        %3963 = vmatprep.subr.mxu0 0.0
        %3964 = vmatpush1.msra.mxu0 0.0
        %3965 = vmatprep.subr.mxu0 0.0
        %3966 = vmatpush1.msra.mxu0 0.0
        %3967 = vmatprep.subr.mxu0 0.0
        %3968 = vmatpush1.msra.mxu0 0.0
        %3969 = vmatprep.subr.mxu0 0.0
        %3970 = vmatpush1.msra.mxu0 0.0
        %3971 = vmatprep.subr.mxu0 0.0
        %3972 = vmatpush1.msra.mxu0 0.0
        %3973 = vmatprep.subr.mxu0 0.0
        %3974 = vmatpush1.msra.mxu0 0.0
        %3975 = vmatprep.subr.mxu0 0.0
        %3976 = vmatpush1.msra.mxu0 0.0
        %3977 = vmatprep.subr.mxu0 0.0
        %3978 = vmatpush1.msra.mxu0 0.0
        %3979 = vmatprep.subr.mxu0 0.0
        %3980 = vmatpush1.msra.mxu0 0.0
        %3981 = vmatprep.subr.mxu0 0.0
        %3982 = vmatpush1.msra.mxu0 0.0
        %3983 = vmatprep.subr.mxu0 0.0
        %3984 = vmatpush1.msra.mxu0 %v3951
        %3985 = vmatprep.subr.mxu0 0.0
        %3986 = vmatpush2.msra.mxu0 0.0
        %3987 = vmatprep.subr.mxu0 0.0
        %3988 = vmatpush2.msra.mxu0 0.0
        %3989 = vmatprep.subr.mxu0 0.0
        %3990 = vmatpush2.msra.mxu0 0.0
        %3991 = vmatprep.subr.mxu0 0.0
        %3992 = vmatpush2.msra.mxu0 0.0
        %3993 = vmatprep.subr.mxu0 0.0
        %3994 = vmatpush2.msra.mxu0 0.0
        %3995 = vmatprep.subr.mxu0 0.0
        %3996 = vmatpush2.msra.mxu0 0.0
        %3997 = vmatprep.subr.mxu0 0.0
        %3998 = vmatpush2.msra.mxu0 0.0
        %3999 = vmatprep.subr.mxu0 0.0
        %4000 = vmatpush2.msra.mxu0 0.0
        %4001 = vmatprep.subr.mxu0 0.0
        %4002 = vmatpush2.msra.mxu0 0.0
        %4003 = vmatprep.subr.mxu0 0.0
        %4004 = vmatpush2.msra.mxu0 0.0
        %4005 = vmatprep.subr.mxu0 0.0
        %4006 = vmatpush2.msra.mxu0 0.0
        %4007 = vmatprep.subr.mxu0 0.0
        %4008 = vmatpush2.msra.mxu0 0.0
        %4009 = vmatprep.subr.mxu0 0.0
        %4010 = vmatpush2.msra.mxu0 0.0
        %4011 = vmatprep.subr.mxu0 0.0
        %4012 = vmatpush2.msra.mxu0 0.0
        %4013 = vmatprep.subr.mxu0 0.0
        %4014 = vmatpush2.msra.mxu0 0.0
        %4015 = vmatprep.subr.mxu0 0.0
        %4016 = vmatpush2.msra.mxu0 0.0
        %4017 = vmatprep.mubr.f32.mxu0 0.0
        %4018 = vmatmul.mubr.f32.gmra.mxu0 %v3948
        %v4019 = vpop.f32.mrf.mxu0
        %v4020 = vadd.f32 0.0, %v4019
        %v4021 = vpop.f32.mrf.mxu0
        %4022 = vdwg.mxu0
        %v4024 = vsel %vm1755, %v3869, 0
        %v4027 = vsel %vm1759, %v3450, 0
        %4029 = vmatprep.subr.mxu0 0.0
        %4030 = vmatpush1.msra.mxu0 0.0
        %4031 = vmatprep.subr.mxu0 0.0
        %4032 = vmatpush1.msra.mxu0 0.0
        %4033 = vmatprep.subr.mxu0 0.0
        %4034 = vmatpush1.msra.mxu0 0.0
        %4035 = vmatprep.subr.mxu0 0.0
        %4036 = vmatpush1.msra.mxu0 0.0
        %4037 = vmatprep.subr.mxu0 0.0
        %4038 = vmatpush1.msra.mxu0 0.0
        %4039 = vmatprep.subr.mxu0 0.0
        %4040 = vmatpush1.msra.mxu0 0.0
        %4041 = vmatprep.subr.mxu0 0.0
        %4042 = vmatpush1.msra.mxu0 0.0
        %4043 = vmatprep.subr.mxu0 0.0
        %4044 = vmatpush1.msra.mxu0 0.0
        %4045 = vmatprep.subr.mxu0 0.0
        %4046 = vmatpush1.msra.mxu0 0.0
        %4047 = vmatprep.subr.mxu0 0.0
        %4048 = vmatpush1.msra.mxu0 0.0
        %4049 = vmatprep.subr.mxu0 0.0
        %4050 = vmatpush1.msra.mxu0 0.0
        %4051 = vmatprep.subr.mxu0 0.0
        %4052 = vmatpush1.msra.mxu0 0.0
        %4053 = vmatprep.subr.mxu0 0.0
        %4054 = vmatpush1.msra.mxu0 0.0
        %4055 = vmatprep.subr.mxu0 0.0
        %4056 = vmatpush1.msra.mxu0 0.0
        %4057 = vmatprep.subr.mxu0 0.0
        %4058 = vmatpush1.msra.mxu0 0.0
        %4059 = vmatprep.subr.mxu0 0.0
        %4060 = vmatpush1.msra.mxu0 %v4027
        %4061 = vmatprep.subr.mxu0 0.0
        %4062 = vmatpush2.msra.mxu0 0.0
        %4063 = vmatprep.subr.mxu0 0.0
        %4064 = vmatpush2.msra.mxu0 0.0
        %4065 = vmatprep.subr.mxu0 0.0
        %4066 = vmatpush2.msra.mxu0 0.0
        %4067 = vmatprep.subr.mxu0 0.0
        %4068 = vmatpush2.msra.mxu0 0.0
        %4069 = vmatprep.subr.mxu0 0.0
        %4070 = vmatpush2.msra.mxu0 0.0
        %4071 = vmatprep.subr.mxu0 0.0
        %4072 = vmatpush2.msra.mxu0 0.0
        %4073 = vmatprep.subr.mxu0 0.0
        %4074 = vmatpush2.msra.mxu0 0.0
        %4075 = vmatprep.subr.mxu0 0.0
        %4076 = vmatpush2.msra.mxu0 0.0
        %4077 = vmatprep.subr.mxu0 0.0
        %4078 = vmatpush2.msra.mxu0 0.0
        %4079 = vmatprep.subr.mxu0 0.0
        %4080 = vmatpush2.msra.mxu0 0.0
        %4081 = vmatprep.subr.mxu0 0.0
        %4082 = vmatpush2.msra.mxu0 0.0
        %4083 = vmatprep.subr.mxu0 0.0
        %4084 = vmatpush2.msra.mxu0 0.0
        %4085 = vmatprep.subr.mxu0 0.0
        %4086 = vmatpush2.msra.mxu0 0.0
        %4087 = vmatprep.subr.mxu0 0.0
        %4088 = vmatpush2.msra.mxu0 0.0
        %4089 = vmatprep.subr.mxu0 0.0
        %4090 = vmatpush2.msra.mxu0 0.0
        %4091 = vmatprep.subr.mxu0 0.0
        %4092 = vmatpush2.msra.mxu0 0.0
        %4093 = vmatprep.mubr.f32.mxu0 0.0
        %4094 = vmatmul.mubr.f32.gmra.mxu0 %v4024
        %v4095 = vpop.f32.mrf.mxu0
        %v4096 = vadd.f32 0.0, %v4095
        %v4097 = vpop.f32.mrf.mxu0
        %4098 = vdwg.mxu0
        %v4100 = vsel %vm1755, %v3870, 0
        %v4103 = vsel %vm1759, %v3520, 0
        %4105 = vmatprep.subr.mxu0 0.0
        %4106 = vmatpush1.msra.mxu0 0.0
        %4107 = vmatprep.subr.mxu0 0.0
        %4108 = vmatpush1.msra.mxu0 0.0
        %4109 = vmatprep.subr.mxu0 0.0
        %4110 = vmatpush1.msra.mxu0 0.0
        %4111 = vmatprep.subr.mxu0 0.0
        %4112 = vmatpush1.msra.mxu0 0.0
        %4113 = vmatprep.subr.mxu0 0.0
        %4114 = vmatpush1.msra.mxu0 0.0
        %4115 = vmatprep.subr.mxu0 0.0
        %4116 = vmatpush1.msra.mxu0 0.0
        %4117 = vmatprep.subr.mxu0 0.0
        %4118 = vmatpush1.msra.mxu0 0.0
        %4119 = vmatprep.subr.mxu0 0.0
        %4120 = vmatpush1.msra.mxu0 0.0
        %4121 = vmatprep.subr.mxu0 0.0
        %4122 = vmatpush1.msra.mxu0 0.0
        %4123 = vmatprep.subr.mxu0 0.0
        %4124 = vmatpush1.msra.mxu0 0.0
        %4125 = vmatprep.subr.mxu0 0.0
        %4126 = vmatpush1.msra.mxu0 0.0
        %4127 = vmatprep.subr.mxu0 0.0
        %4128 = vmatpush1.msra.mxu0 0.0
        %4129 = vmatprep.subr.mxu0 0.0
        %4130 = vmatpush1.msra.mxu0 0.0
        %4131 = vmatprep.subr.mxu0 0.0
        %4132 = vmatpush1.msra.mxu0 0.0
        %4133 = vmatprep.subr.mxu0 0.0
        %4134 = vmatpush1.msra.mxu0 0.0
        %4135 = vmatprep.subr.mxu0 0.0
        %4136 = vmatpush1.msra.mxu0 %v4103
        %4137 = vmatprep.subr.mxu0 0.0
        %4138 = vmatpush2.msra.mxu0 0.0
        %4139 = vmatprep.subr.mxu0 0.0
        %4140 = vmatpush2.msra.mxu0 0.0
        %4141 = vmatprep.subr.mxu0 0.0
        %4142 = vmatpush2.msra.mxu0 0.0
        %4143 = vmatprep.subr.mxu0 0.0
        %4144 = vmatpush2.msra.mxu0 0.0
        %4145 = vmatprep.subr.mxu0 0.0
        %4146 = vmatpush2.msra.mxu0 0.0
        %4147 = vmatprep.subr.mxu0 0.0
        %4148 = vmatpush2.msra.mxu0 0.0
        %4149 = vmatprep.subr.mxu0 0.0
        %4150 = vmatpush2.msra.mxu0 0.0
        %4151 = vmatprep.subr.mxu0 0.0
        %4152 = vmatpush2.msra.mxu0 0.0
        %4153 = vmatprep.subr.mxu0 0.0
        %4154 = vmatpush2.msra.mxu0 0.0
        %4155 = vmatprep.subr.mxu0 0.0
        %4156 = vmatpush2.msra.mxu0 0.0
        %4157 = vmatprep.subr.mxu0 0.0
        %4158 = vmatpush2.msra.mxu0 0.0
        %4159 = vmatprep.subr.mxu0 0.0
        %4160 = vmatpush2.msra.mxu0 0.0
        %4161 = vmatprep.subr.mxu0 0.0
        %4162 = vmatpush2.msra.mxu0 0.0
        %4163 = vmatprep.subr.mxu0 0.0
        %4164 = vmatpush2.msra.mxu0 0.0
        %4165 = vmatprep.subr.mxu0 0.0
        %4166 = vmatpush2.msra.mxu0 0.0
        %4167 = vmatprep.subr.mxu0 0.0
        %4168 = vmatpush2.msra.mxu0 0.0
        %4169 = vmatprep.mubr.f32.mxu0 0.0
        %4170 = vmatmul.mubr.f32.gmra.mxu0 %v4100
        %v4171 = vpop.f32.mrf.mxu0
        %v4172 = vadd.f32 0.0, %v4171
        %v4173 = vpop.f32.mrf.mxu0
        %4174 = vdwg.mxu0
        %v4176 = vsel %vm1405, %v3944, 0
        %4178 = vmatprep.subr.mxu0 0.0
        %4179 = vmatpush1.msra.mxu0 0.0
        %4180 = vmatprep.subr.mxu0 0.0
        %4181 = vmatpush1.msra.mxu0 0.0
        %4182 = vmatprep.subr.mxu0 0.0
        %4183 = vmatpush1.msra.mxu0 0.0
        %4184 = vmatprep.subr.mxu0 0.0
        %4185 = vmatpush1.msra.mxu0 0.0
        %4186 = vmatprep.subr.mxu0 0.0
        %4187 = vmatpush1.msra.mxu0 0.0
        %4188 = vmatprep.subr.mxu0 0.0
        %4189 = vmatpush1.msra.mxu0 0.0
        %4190 = vmatprep.subr.mxu0 0.0
        %4191 = vmatpush1.msra.mxu0 0.0
        %4192 = vmatprep.subr.mxu0 0.0
        %4193 = vmatpush1.msra.mxu0 0.0
        %4194 = vmatprep.subr.mxu0 0.0
        %4195 = vmatpush1.msra.mxu0 0.0
        %4196 = vmatprep.subr.mxu0 0.0
        %4197 = vmatpush1.msra.mxu0 0.0
        %4198 = vmatprep.subr.mxu0 0.0
        %4199 = vmatpush1.msra.mxu0 0.0
        %4200 = vmatprep.subr.mxu0 0.0
        %4201 = vmatpush1.msra.mxu0 0.0
        %4202 = vmatprep.subr.mxu0 0.0
        %4203 = vmatpush1.msra.mxu0 0.0
        %4204 = vmatprep.subr.mxu0 0.0
        %4205 = vmatpush1.msra.mxu0 0.0
        %4206 = vmatprep.subr.mxu0 0.0
        %4207 = vmatpush1.msra.mxu0 0.0
        %4208 = vmatprep.subr.mxu0 0.0
        %4209 = vmatpush1.msra.mxu0 %v2605
        %4210 = vmatprep.subr.mxu0 0.0
        %4211 = vmatpush2.msra.mxu0 0.0
        %4212 = vmatprep.subr.mxu0 0.0
        %4213 = vmatpush2.msra.mxu0 0.0
        %4214 = vmatprep.subr.mxu0 0.0
        %4215 = vmatpush2.msra.mxu0 0.0
        %4216 = vmatprep.subr.mxu0 0.0
        %4217 = vmatpush2.msra.mxu0 0.0
        %4218 = vmatprep.subr.mxu0 0.0
        %4219 = vmatpush2.msra.mxu0 0.0
        %4220 = vmatprep.subr.mxu0 0.0
        %4221 = vmatpush2.msra.mxu0 0.0
        %4222 = vmatprep.subr.mxu0 0.0
        %4223 = vmatpush2.msra.mxu0 0.0
        %4224 = vmatprep.subr.mxu0 0.0
        %4225 = vmatpush2.msra.mxu0 0.0
        %4226 = vmatprep.subr.mxu0 0.0
        %4227 = vmatpush2.msra.mxu0 0.0
        %4228 = vmatprep.subr.mxu0 0.0
        %4229 = vmatpush2.msra.mxu0 0.0
        %4230 = vmatprep.subr.mxu0 0.0
        %4231 = vmatpush2.msra.mxu0 0.0
        %4232 = vmatprep.subr.mxu0 0.0
        %4233 = vmatpush2.msra.mxu0 0.0
        %4234 = vmatprep.subr.mxu0 0.0
        %4235 = vmatpush2.msra.mxu0 0.0
        %4236 = vmatprep.subr.mxu0 0.0
        %4237 = vmatpush2.msra.mxu0 0.0
        %4238 = vmatprep.subr.mxu0 0.0
        %4239 = vmatpush2.msra.mxu0 0.0
        %4240 = vmatprep.subr.mxu0 0.0
        %4241 = vmatpush2.msra.mxu0 0.0
        %4242 = vmatprep.mubr.f32.mxu0 0.0
        %4243 = vmatmul.mubr.f32.gmra.mxu0 %v4176
        %v4244 = vpop.f32.mrf.mxu0
        %v4245 = vadd.f32 0.0, %v4244
        %v4246 = vpop.f32.mrf.mxu0
        %4247 = vdwg.mxu0
        %v4249 = vsel %vm1405, %v4020, 0
        %4251 = vmatprep.subr.mxu0 0.0
        %4252 = vmatpush1.msra.mxu0 0.0
        %4253 = vmatprep.subr.mxu0 0.0
        %4254 = vmatpush1.msra.mxu0 0.0
        %4255 = vmatprep.subr.mxu0 0.0
        %4256 = vmatpush1.msra.mxu0 0.0
        %4257 = vmatprep.subr.mxu0 0.0
        %4258 = vmatpush1.msra.mxu0 0.0
        %4259 = vmatprep.subr.mxu0 0.0
        %4260 = vmatpush1.msra.mxu0 0.0
        %4261 = vmatprep.subr.mxu0 0.0
        %4262 = vmatpush1.msra.mxu0 0.0
        %4263 = vmatprep.subr.mxu0 0.0
        %4264 = vmatpush1.msra.mxu0 0.0
        %4265 = vmatprep.subr.mxu0 0.0
        %4266 = vmatpush1.msra.mxu0 0.0
        %4267 = vmatprep.subr.mxu0 0.0
        %4268 = vmatpush1.msra.mxu0 0.0
        %4269 = vmatprep.subr.mxu0 0.0
        %4270 = vmatpush1.msra.mxu0 0.0
        %4271 = vmatprep.subr.mxu0 0.0
        %4272 = vmatpush1.msra.mxu0 0.0
        %4273 = vmatprep.subr.mxu0 0.0
        %4274 = vmatpush1.msra.mxu0 0.0
        %4275 = vmatprep.subr.mxu0 0.0
        %4276 = vmatpush1.msra.mxu0 0.0
        %4277 = vmatprep.subr.mxu0 0.0
        %4278 = vmatpush1.msra.mxu0 0.0
        %4279 = vmatprep.subr.mxu0 0.0
        %4280 = vmatpush1.msra.mxu0 0.0
        %4281 = vmatprep.subr.mxu0 0.0
        %4282 = vmatpush1.msra.mxu0 %v2606
        %4283 = vmatprep.subr.mxu0 0.0
        %4284 = vmatpush2.msra.mxu0 0.0
        %4285 = vmatprep.subr.mxu0 0.0
        %4286 = vmatpush2.msra.mxu0 0.0
        %4287 = vmatprep.subr.mxu0 0.0
        %4288 = vmatpush2.msra.mxu0 0.0
        %4289 = vmatprep.subr.mxu0 0.0
        %4290 = vmatpush2.msra.mxu0 0.0
        %4291 = vmatprep.subr.mxu0 0.0
        %4292 = vmatpush2.msra.mxu0 0.0
        %4293 = vmatprep.subr.mxu0 0.0
        %4294 = vmatpush2.msra.mxu0 0.0
        %4295 = vmatprep.subr.mxu0 0.0
        %4296 = vmatpush2.msra.mxu0 0.0
        %4297 = vmatprep.subr.mxu0 0.0
        %4298 = vmatpush2.msra.mxu0 0.0
        %4299 = vmatprep.subr.mxu0 0.0
        %4300 = vmatpush2.msra.mxu0 0.0
        %4301 = vmatprep.subr.mxu0 0.0
        %4302 = vmatpush2.msra.mxu0 0.0
        %4303 = vmatprep.subr.mxu0 0.0
        %4304 = vmatpush2.msra.mxu0 0.0
        %4305 = vmatprep.subr.mxu0 0.0
        %4306 = vmatpush2.msra.mxu0 0.0
        %4307 = vmatprep.subr.mxu0 0.0
        %4308 = vmatpush2.msra.mxu0 0.0
        %4309 = vmatprep.subr.mxu0 0.0
        %4310 = vmatpush2.msra.mxu0 0.0
        %4311 = vmatprep.subr.mxu0 0.0
        %4312 = vmatpush2.msra.mxu0 0.0
        %4313 = vmatprep.subr.mxu0 0.0
        %4314 = vmatpush2.msra.mxu0 0.0
        %4315 = vmatprep.mubr.f32.mxu0 0.0
        %4316 = vmatmul.mubr.f32.gmra.mxu0 %v4249
        %v4317 = vpop.f32.mrf.mxu0
        %v4318 = vadd.f32 0.0, %v4317
        %v4319 = vpop.f32.mrf.mxu0
        %4320 = vdwg.mxu0
        %v4322 = vsel %vm1405, %v4096, 0
        %4324 = vmatprep.subr.mxu0 0.0
        %4325 = vmatpush1.msra.mxu0 0.0
        %4326 = vmatprep.subr.mxu0 0.0
        %4327 = vmatpush1.msra.mxu0 0.0
        %4328 = vmatprep.subr.mxu0 0.0
        %4329 = vmatpush1.msra.mxu0 0.0
        %4330 = vmatprep.subr.mxu0 0.0
        %4331 = vmatpush1.msra.mxu0 0.0
        %4332 = vmatprep.subr.mxu0 0.0
        %4333 = vmatpush1.msra.mxu0 0.0
        %4334 = vmatprep.subr.mxu0 0.0
        %4335 = vmatpush1.msra.mxu0 0.0
        %4336 = vmatprep.subr.mxu0 0.0
        %4337 = vmatpush1.msra.mxu0 0.0
        %4338 = vmatprep.subr.mxu0 0.0
        %4339 = vmatpush1.msra.mxu0 0.0
        %4340 = vmatprep.subr.mxu0 0.0
        %4341 = vmatpush1.msra.mxu0 0.0
        %4342 = vmatprep.subr.mxu0 0.0
        %4343 = vmatpush1.msra.mxu0 0.0
        %4344 = vmatprep.subr.mxu0 0.0
        %4345 = vmatpush1.msra.mxu0 0.0
        %4346 = vmatprep.subr.mxu0 0.0
        %4347 = vmatpush1.msra.mxu0 0.0
        %4348 = vmatprep.subr.mxu0 0.0
        %4349 = vmatpush1.msra.mxu0 0.0
        %4350 = vmatprep.subr.mxu0 0.0
        %4351 = vmatpush1.msra.mxu0 0.0
        %4352 = vmatprep.subr.mxu0 0.0
        %4353 = vmatpush1.msra.mxu0 0.0
        %4354 = vmatprep.subr.mxu0 0.0
        %4355 = vmatpush1.msra.mxu0 %v2607
        %4356 = vmatprep.subr.mxu0 0.0
        %4357 = vmatpush2.msra.mxu0 0.0
        %4358 = vmatprep.subr.mxu0 0.0
        %4359 = vmatpush2.msra.mxu0 0.0
        %4360 = vmatprep.subr.mxu0 0.0
        %4361 = vmatpush2.msra.mxu0 0.0
        %4362 = vmatprep.subr.mxu0 0.0
        %4363 = vmatpush2.msra.mxu0 0.0
        %4364 = vmatprep.subr.mxu0 0.0
        %4365 = vmatpush2.msra.mxu0 0.0
        %4366 = vmatprep.subr.mxu0 0.0
        %4367 = vmatpush2.msra.mxu0 0.0
        %4368 = vmatprep.subr.mxu0 0.0
        %4369 = vmatpush2.msra.mxu0 0.0
        %4370 = vmatprep.subr.mxu0 0.0
        %4371 = vmatpush2.msra.mxu0 0.0
        %4372 = vmatprep.subr.mxu0 0.0
        %4373 = vmatpush2.msra.mxu0 0.0
        %4374 = vmatprep.subr.mxu0 0.0
        %4375 = vmatpush2.msra.mxu0 0.0
        %4376 = vmatprep.subr.mxu0 0.0
        %4377 = vmatpush2.msra.mxu0 0.0
        %4378 = vmatprep.subr.mxu0 0.0
        %4379 = vmatpush2.msra.mxu0 0.0
        %4380 = vmatprep.subr.mxu0 0.0
        %4381 = vmatpush2.msra.mxu0 0.0
        %4382 = vmatprep.subr.mxu0 0.0
        %4383 = vmatpush2.msra.mxu0 0.0
        %4384 = vmatprep.subr.mxu0 0.0
        %4385 = vmatpush2.msra.mxu0 0.0
        %4386 = vmatprep.subr.mxu0 0.0
        %4387 = vmatpush2.msra.mxu0 0.0
        %4388 = vmatprep.mubr.f32.mxu0 0.0
        %4389 = vmatmul.mubr.f32.gmra.mxu0 %v4322
        %v4390 = vpop.f32.mrf.mxu0
        %v4391 = vadd.f32 0.0, %v4390
        %v4392 = vpop.f32.mrf.mxu0
        %4393 = vdwg.mxu0
        %v4395 = vsel %vm1405, %v4172, 0
        %4397 = vmatprep.subr.mxu0 0.0
        %4398 = vmatpush1.msra.mxu0 0.0
        %4399 = vmatprep.subr.mxu0 0.0
        %4400 = vmatpush1.msra.mxu0 0.0
        %4401 = vmatprep.subr.mxu0 0.0
        %4402 = vmatpush1.msra.mxu0 0.0
        %4403 = vmatprep.subr.mxu0 0.0
        %4404 = vmatpush1.msra.mxu0 0.0
        %4405 = vmatprep.subr.mxu0 0.0
        %4406 = vmatpush1.msra.mxu0 0.0
        %4407 = vmatprep.subr.mxu0 0.0
        %4408 = vmatpush1.msra.mxu0 0.0
        %4409 = vmatprep.subr.mxu0 0.0
        %4410 = vmatpush1.msra.mxu0 0.0
        %4411 = vmatprep.subr.mxu0 0.0
        %4412 = vmatpush1.msra.mxu0 0.0
        %4413 = vmatprep.subr.mxu0 0.0
        %4414 = vmatpush1.msra.mxu0 0.0
        %4415 = vmatprep.subr.mxu0 0.0
        %4416 = vmatpush1.msra.mxu0 0.0
        %4417 = vmatprep.subr.mxu0 0.0
        %4418 = vmatpush1.msra.mxu0 0.0
        %4419 = vmatprep.subr.mxu0 0.0
        %4420 = vmatpush1.msra.mxu0 0.0
        %4421 = vmatprep.subr.mxu0 0.0
        %4422 = vmatpush1.msra.mxu0 0.0
        %4423 = vmatprep.subr.mxu0 0.0
        %4424 = vmatpush1.msra.mxu0 0.0
        %4425 = vmatprep.subr.mxu0 0.0
        %4426 = vmatpush1.msra.mxu0 0.0
        %4427 = vmatprep.subr.mxu0 0.0
        %4428 = vmatpush1.msra.mxu0 %v2608
        %4429 = vmatprep.subr.mxu0 0.0
        %4430 = vmatpush2.msra.mxu0 0.0
        %4431 = vmatprep.subr.mxu0 0.0
        %4432 = vmatpush2.msra.mxu0 0.0
        %4433 = vmatprep.subr.mxu0 0.0
        %4434 = vmatpush2.msra.mxu0 0.0
        %4435 = vmatprep.subr.mxu0 0.0
        %4436 = vmatpush2.msra.mxu0 0.0
        %4437 = vmatprep.subr.mxu0 0.0
        %4438 = vmatpush2.msra.mxu0 0.0
        %4439 = vmatprep.subr.mxu0 0.0
        %4440 = vmatpush2.msra.mxu0 0.0
        %4441 = vmatprep.subr.mxu0 0.0
        %4442 = vmatpush2.msra.mxu0 0.0
        %4443 = vmatprep.subr.mxu0 0.0
        %4444 = vmatpush2.msra.mxu0 0.0
        %4445 = vmatprep.subr.mxu0 0.0
        %4446 = vmatpush2.msra.mxu0 0.0
        %4447 = vmatprep.subr.mxu0 0.0
        %4448 = vmatpush2.msra.mxu0 0.0
        %4449 = vmatprep.subr.mxu0 0.0
        %4450 = vmatpush2.msra.mxu0 0.0
        %4451 = vmatprep.subr.mxu0 0.0
        %4452 = vmatpush2.msra.mxu0 0.0
        %4453 = vmatprep.subr.mxu0 0.0
        %4454 = vmatpush2.msra.mxu0 0.0
        %4455 = vmatprep.subr.mxu0 0.0
        %4456 = vmatpush2.msra.mxu0 0.0
        %4457 = vmatprep.subr.mxu0 0.0
        %4458 = vmatpush2.msra.mxu0 0.0
        %4459 = vmatprep.subr.mxu0 0.0
        %4460 = vmatpush2.msra.mxu0 0.0
        %4461 = vmatprep.mubr.f32.mxu0 0.0
        %4462 = vmatmul.mubr.f32.gmra.mxu0 %v4395
        %v4463 = vpop.f32.mrf.mxu0
        %v4464 = vadd.f32 0.0, %v4463
        %v4465 = vpop.f32.mrf.mxu0
        %4466 = vdwg.mxu0
        %v4467 = vsel %vm412, %v4245, 0.0
        %v4468 = vsel %vm412, %v4318, 0.0
        %v4469 = vadd.f32 %v4467, %v4468
        %v4470 = vsel %vm412, %v4391, 0.0
        %v4471 = vadd.f32 %v4469, %v4470
        %v4472 = vsel %vm412, %v4464, 0.0
        %v4473 = vadd.f32 %v4471, %v4472
        %v4474 = vadd.f32 %v2549, %v4473
        %v4475 = vlaneseq
        %v4476 = vshrl.u32 %v4475, 7
        %v4477 = vsub.s32 4, %v4476
        %v4478 = vrot.slane %v2632, %v4477
        %v4479 = vadd.f32 %v4474, %v4478
        %v4480 = vsel %vm412, %v4479, 0.0
        %4481 = vadd.xlane.f32.xlu0 %v4480
        %v4482 = vpop.xlane.xlu0 %4481
        %v4483 = vmul.f32 %v4482, %v416
        %v4484 = vsub.f32 %v4479, %v4483
        %v4485 = vmul.f32 %v4484, %v4484
        %v4486 = vsel %vm412, %v4485, 0.0
        %4487 = vadd.xlane.f32.xlu0 %v4486
        %v4488 = vpop.xlane.xlu0 %4487
        %v4489 = vmul.f32 %v4488, %v416
        %v4490 = vadd.f32 %v4489, 1e-05
        %v4491 = vrsqrt.pop %v4490
        %v4492 = vmul.f32 %v4484, %v4491
        %v4493 = vlaneseq
        %v4494 = vshrl.u32 %v4493, 7
        %v4495 = vsub.s32 2, %v4494
        %v4496 = vrot.slane %v2632, %v4495
        %v4497 = vmul.f32 %v4492, %v4496
        %v4498 = vlaneseq
        %v4499 = vshrl.u32 %v4498, 7
        %v4500 = vsub.s32 3, %v4499
        %v4501 = vrot.slane %v2632, %v4500
        %v4502 = vadd.f32 %v4497, %v4501
        %v4503 = vlaneseq
        %v4504 = vshrl.u32 %v4503, 7
        %v4505 = vsub.s32 6, %v4504
        %v4506 = vrot.slane %v2632, %v4505
        %v4508 = vsel %vm561, %v4502, 0
        %4510 = vmatprep.subr.mxu0 0.0
        %4511 = vmatpush1.msra.mxu0 0.0
        %4512 = vmatprep.subr.mxu0 0.0
        %4513 = vmatpush1.msra.mxu0 0.0
        %4514 = vmatprep.subr.mxu0 0.0
        %4515 = vmatpush1.msra.mxu0 0.0
        %4516 = vmatprep.subr.mxu0 0.0
        %4517 = vmatpush1.msra.mxu0 0.0
        %4518 = vmatprep.subr.mxu0 0.0
        %4519 = vmatpush1.msra.mxu0 0.0
        %4520 = vmatprep.subr.mxu0 0.0
        %4521 = vmatpush1.msra.mxu0 0.0
        %4522 = vmatprep.subr.mxu0 0.0
        %4523 = vmatpush1.msra.mxu0 0.0
        %4524 = vmatprep.subr.mxu0 0.0
        %4525 = vmatpush1.msra.mxu0 0.0
        %4526 = vmatprep.subr.mxu0 0.0
        %4527 = vmatpush1.msra.mxu0 0.0
        %4528 = vmatprep.subr.mxu0 0.0
        %4529 = vmatpush1.msra.mxu0 0.0
        %4530 = vmatprep.subr.mxu0 0.0
        %4531 = vmatpush1.msra.mxu0 0.0
        %4532 = vmatprep.subr.mxu0 0.0
        %4533 = vmatpush1.msra.mxu0 0.0
        %4534 = vmatprep.subr.mxu0 0.0
        %4535 = vmatpush1.msra.mxu0 %v2613
        %4536 = vmatprep.subr.mxu0 0.0
        %4537 = vmatpush1.msra.mxu0 %v2612
        %4538 = vmatprep.subr.mxu0 0.0
        %4539 = vmatpush1.msra.mxu0 %v2611
        %4540 = vmatprep.subr.mxu0 0.0
        %4541 = vmatpush1.msra.mxu0 %v2610
        %4542 = vmatprep.subr.mxu0 0.0
        %4543 = vmatpush2.msra.mxu0 0.0
        %4544 = vmatprep.subr.mxu0 0.0
        %4545 = vmatpush2.msra.mxu0 0.0
        %4546 = vmatprep.subr.mxu0 0.0
        %4547 = vmatpush2.msra.mxu0 0.0
        %4548 = vmatprep.subr.mxu0 0.0
        %4549 = vmatpush2.msra.mxu0 0.0
        %4550 = vmatprep.subr.mxu0 0.0
        %4551 = vmatpush2.msra.mxu0 0.0
        %4552 = vmatprep.subr.mxu0 0.0
        %4553 = vmatpush2.msra.mxu0 0.0
        %4554 = vmatprep.subr.mxu0 0.0
        %4555 = vmatpush2.msra.mxu0 0.0
        %4556 = vmatprep.subr.mxu0 0.0
        %4557 = vmatpush2.msra.mxu0 0.0
        %4558 = vmatprep.subr.mxu0 0.0
        %4559 = vmatpush2.msra.mxu0 0.0
        %4560 = vmatprep.subr.mxu0 0.0
        %4561 = vmatpush2.msra.mxu0 0.0
        %4562 = vmatprep.subr.mxu0 0.0
        %4563 = vmatpush2.msra.mxu0 0.0
        %4564 = vmatprep.subr.mxu0 0.0
        %4565 = vmatpush2.msra.mxu0 0.0
        %4566 = vmatprep.subr.mxu0 0.0
        %4567 = vmatpush2.msra.mxu0 0.0
        %4568 = vmatprep.subr.mxu0 0.0
        %4569 = vmatpush2.msra.mxu0 0.0
        %4570 = vmatprep.subr.mxu0 0.0
        %4571 = vmatpush2.msra.mxu0 0.0
        %4572 = vmatprep.subr.mxu0 0.0
        %4573 = vmatpush2.msra.mxu0 0.0
        %4574 = vmatprep.mubr.f32.mxu0 0.0
        %4575 = vmatmul.mubr.f32.gmra.mxu0 %v4508
        %v4576 = vpop.f32.mrf.mxu0
        %v4577 = vadd.f32 %v4506, %v4576
        %v4578 = vpop.f32.mrf.mxu0
        %4579 = vdwg.mxu0
        %v4580 = vmul.f32 %v4577, 1.702
        %v4581 = vxor.u32 %v4580, 2147483648
        %v4582 = vmul.f32 %v4581, 1.442695
        %v4583 = vpow.pop %v4582
        %v4584 = vadd.f32 %v4583, 1.0
        %v4585 = vrcp.pop %v4584
        %v4586 = vmul.f32 1.0, %v4585
        %v4587 = vmul.f32 %v4577, %v4586
        %4588 = vmatprep.subr.mxu0 0.0
        %4589 = vmatpush1.msra.mxu0 %v2630
        %4590 = vmatprep.subr.mxu0 0.0
        %4591 = vmatpush1.msra.mxu0 %v2629
        %4592 = vmatprep.subr.mxu0 0.0
        %4593 = vmatpush1.msra.mxu0 %v2628
        %4594 = vmatprep.subr.mxu0 0.0
        %4595 = vmatpush1.msra.mxu0 %v2627
        %4596 = vmatprep.subr.mxu0 0.0
        %4597 = vmatpush1.msra.mxu0 %v2626
        %4598 = vmatprep.subr.mxu0 0.0
        %4599 = vmatpush1.msra.mxu0 %v2625
        %4600 = vmatprep.subr.mxu0 0.0
        %4601 = vmatpush1.msra.mxu0 %v2624
        %4602 = vmatprep.subr.mxu0 0.0
        %4603 = vmatpush1.msra.mxu0 %v2623
        %4604 = vmatprep.subr.mxu0 0.0
        %4605 = vmatpush1.msra.mxu0 %v2622
        %4606 = vmatprep.subr.mxu0 0.0
        %4607 = vmatpush1.msra.mxu0 %v2621
        %4608 = vmatprep.subr.mxu0 0.0
        %4609 = vmatpush1.msra.mxu0 %v2620
        %4610 = vmatprep.subr.mxu0 0.0
        %4611 = vmatpush1.msra.mxu0 %v2619
        %4612 = vmatprep.subr.mxu0 0.0
        %4613 = vmatpush1.msra.mxu0 %v2618
        %4614 = vmatprep.subr.mxu0 0.0
        %4615 = vmatpush1.msra.mxu0 %v2617
        %4616 = vmatprep.subr.mxu0 0.0
        %4617 = vmatpush1.msra.mxu0 %v2616
        %4618 = vmatprep.subr.mxu0 0.0
        %4619 = vmatpush1.msra.mxu0 %v2615
        %4620 = vmatprep.subr.mxu0 0.0
        %4621 = vmatpush2.msra.mxu0 0.0
        %4622 = vmatprep.subr.mxu0 0.0
        %4623 = vmatpush2.msra.mxu0 0.0
        %4624 = vmatprep.subr.mxu0 0.0
        %4625 = vmatpush2.msra.mxu0 0.0
        %4626 = vmatprep.subr.mxu0 0.0
        %4627 = vmatpush2.msra.mxu0 0.0
        %4628 = vmatprep.subr.mxu0 0.0
        %4629 = vmatpush2.msra.mxu0 0.0
        %4630 = vmatprep.subr.mxu0 0.0
        %4631 = vmatpush2.msra.mxu0 0.0
        %4632 = vmatprep.subr.mxu0 0.0
        %4633 = vmatpush2.msra.mxu0 0.0
        %4634 = vmatprep.subr.mxu0 0.0
        %4635 = vmatpush2.msra.mxu0 0.0
        %4636 = vmatprep.subr.mxu0 0.0
        %4637 = vmatpush2.msra.mxu0 0.0
        %4638 = vmatprep.subr.mxu0 0.0
        %4639 = vmatpush2.msra.mxu0 0.0
        %4640 = vmatprep.subr.mxu0 0.0
        %4641 = vmatpush2.msra.mxu0 0.0
        %4642 = vmatprep.subr.mxu0 0.0
        %4643 = vmatpush2.msra.mxu0 0.0
        %4644 = vmatprep.subr.mxu0 0.0
        %4645 = vmatpush2.msra.mxu0 0.0
        %4646 = vmatprep.subr.mxu0 0.0
        %4647 = vmatpush2.msra.mxu0 0.0
        %4648 = vmatprep.subr.mxu0 0.0
        %4649 = vmatpush2.msra.mxu0 0.0
        %4650 = vmatprep.subr.mxu0 0.0
        %4651 = vmatpush2.msra.mxu0 0.0
        %4652 = vmatprep.mubr.f32.mxu0 0.0
        %4653 = vmatmul.mubr.f32.gmra.mxu0 %v4587
        %v4654 = vpop.f32.mrf.mxu0
        %v4655 = vadd.f32 0.0, %v4654
        %v4656 = vpop.f32.mrf.mxu0
        %4657 = vdwg.mxu0
        %v4658 = vadd.f32 %v4479, %v4655
        %v4659 = vlaneseq
        %v4660 = vshrl.u32 %v4659, 7
        %v4661 = vsub.s32 5, %v4660
        %v4662 = vrot.slane %v2632, %v4661
        %v4663 = vadd.f32 %v4658, %v4662
        %s4664 = scalar_lea.vmem %s2, 768
        %v4665 = vld [vmem:[%s4664] sm:$0xff]
        %v4666 = vld [vmem:[%s4664 + $0x8] sm:$0xff]
        %v4667 = vld [vmem:[%s4664 + $0x10] sm:$0xff]
        %v4668 = vld [vmem:[%s4664 + $0x18] sm:$0xff]
        %v4669 = vld [vmem:[%s4664 + $0x20] sm:$0xff]
        %v4670 = vld [vmem:[%s4664 + $0x28] sm:$0xff]
        %v4671 = vld [vmem:[%s4664 + $0x30] sm:$0xff]
        %v4672 = vld [vmem:[%s4664 + $0x38] sm:$0xff]
        %v4673 = vld [vmem:[%s4664 + $0x40] sm:$0xff]
        %v4674 = vld [vmem:[%s4664 + $0x48] sm:$0xff]
        %v4675 = vld [vmem:[%s4664 + $0x50] sm:$0xff]
        %v4676 = vld [vmem:[%s4664 + $0x58] sm:$0xff]
        %v4677 = vld [vmem:[%s4664 + $0x60] sm:$0xff]
        %v4678 = vld [vmem:[%s4664 + $0x68] sm:$0xff]
        %v4679 = vld [vmem:[%s4664 + $0x70] sm:$0xff]
        %v4680 = vld [vmem:[%s4664 + $0x78] sm:$0xff]
        %v4681 = vld [vmem:[%s4664 + $0x80] sm:$0xff]
        %v4682 = vld [vmem:[%s4664 + $0x88] sm:$0xff]
        %v4683 = vld [vmem:[%s4664 + $0x90] sm:$0xff]
        %v4684 = vld [vmem:[%s4664 + $0x98] sm:$0xff]
        %v4685 = vld [vmem:[%s4664 + $0xa0] sm:$0xff]
        %v4686 = vld [vmem:[%s4664 + $0xa8] sm:$0xff]
        %v4687 = vld [vmem:[%s4664 + $0xb0] sm:$0xff]
        %v4688 = vld [vmem:[%s4664 + $0xb8] sm:$0xff]
        %v4689 = vld [vmem:[%s4664 + $0xc0] sm:$0xff]
        %v4690 = vld [vmem:[%s4664 + $0xc8] sm:$0xff]
        %v4691 = vld [vmem:[%s4664 + $0xd0] sm:$0xff]
        %v4692 = vld [vmem:[%s4664 + $0xd8] sm:$0xff]
        %v4693 = vld [vmem:[%s4664 + $0xe0] sm:$0xff]
        %v4694 = vld [vmem:[%s4664 + $0xe8] sm:$0xff]
        %v4695 = vld [vmem:[%s4664 + $0xf0] sm:$0xff]
        %v4696 = vld [vmem:[%s4664 + $0xf8] sm:$0xff]
        %v4697 = vld [vmem:[%s4664 + $0x100] sm:$0xff]
        %v4698 = vld [vmem:[%s4664 + $0x108] sm:$0xff]
        %v4699 = vld [vmem:[%s4664 + $0x110] sm:$0xff]
        %v4700 = vld [vmem:[%s4664 + $0x118] sm:$0xff]
        %v4701 = vld [vmem:[%s4664 + $0x120] sm:$0xff]
        %v4702 = vld [vmem:[%s4664 + $0x128] sm:$0xff]
        %v4703 = vld [vmem:[%s4664 + $0x130] sm:$0xff]
        %v4704 = vld [vmem:[%s4664 + $0x138] sm:$0xff]
        %v4705 = vld [vmem:[%s4664 + $0x140] sm:$0xff]
        %v4706 = vld [vmem:[%s4664 + $0x148] sm:$0xff]
        %v4707 = vld [vmem:[%s4664 + $0x150] sm:$0xff]
        %v4708 = vld [vmem:[%s4664 + $0x158] sm:$0xff]
        %v4709 = vld [vmem:[%s4664 + $0x160] sm:$0xff]
        %v4710 = vld [vmem:[%s4664 + $0x168] sm:$0xff]
        %v4711 = vld [vmem:[%s4664 + $0x170] sm:$0xff]
        %v4712 = vld [vmem:[%s4664 + $0x178] sm:$0xff]
        %s4713 = scalar_lea.vmem %s3, 8
        %v4714 = vld [vmem:[%s4713] sm:$0x1]
        %v4715 = vld [vmem:[%s4713 + $0x1] sm:$0x1]
        %v4716 = vld [vmem:[%s4713 + $0x2] sm:$0x1]
        %v4717 = vld [vmem:[%s4713 + $0x3] sm:$0x1]
        %s4718 = scalar_lea.vmem %s4, 64
        %v4719 = vld [vmem:[%s4718] sm:$0xff]
        %v4720 = vld [vmem:[%s4718 + $0x8] sm:$0xff]
        %v4721 = vld [vmem:[%s4718 + $0x10] sm:$0xff]
        %v4722 = vld [vmem:[%s4718 + $0x18] sm:$0xff]
        %s4723 = scalar_lea.vmem %s5, 64
        %v4724 = vld [vmem:[%s4723] sm:$0xff]
        %v4725 = vld [vmem:[%s4723 + $0x8] sm:$0xff]
        %v4726 = vld [vmem:[%s4723 + $0x10] sm:$0xff]
        %v4727 = vld [vmem:[%s4723 + $0x18] sm:$0xff]
        %s4728 = scalar_lea.vmem %s6, 256
        %v4729 = vld [vmem:[%s4728] sm:$0xff]
        %v4730 = vld [vmem:[%s4728 + $0x8] sm:$0xff]
        %v4731 = vld [vmem:[%s4728 + $0x10] sm:$0xff]
        %v4732 = vld [vmem:[%s4728 + $0x18] sm:$0xff]
        %v4733 = vld [vmem:[%s4728 + $0x20] sm:$0xff]
        %v4734 = vld [vmem:[%s4728 + $0x28] sm:$0xff]
        %v4735 = vld [vmem:[%s4728 + $0x30] sm:$0xff]
        %v4736 = vld [vmem:[%s4728 + $0x38] sm:$0xff]
        %v4737 = vld [vmem:[%s4728 + $0x40] sm:$0xff]
        %v4738 = vld [vmem:[%s4728 + $0x48] sm:$0xff]
        %v4739 = vld [vmem:[%s4728 + $0x50] sm:$0xff]
        %v4740 = vld [vmem:[%s4728 + $0x58] sm:$0xff]
        %v4741 = vld [vmem:[%s4728 + $0x60] sm:$0xff]
        %v4742 = vld [vmem:[%s4728 + $0x68] sm:$0xff]
        %v4743 = vld [vmem:[%s4728 + $0x70] sm:$0xff]
        %v4744 = vld [vmem:[%s4728 + $0x78] sm:$0xff]
        %s4745 = scalar_lea.vmem %s7, 16
        %v4746 = vld [vmem:[%s4745] sm:$0xff]
        %v4747 = vsel %vm412, %v4663, 0.0
        %4748 = vadd.xlane.f32.xlu0 %v4747
        %v4749 = vpop.xlane.xlu0 %4748
        %v4750 = vmul.f32 %v4749, %v416
        %v4751 = vsub.f32 %v4663, %v4750
        %v4752 = vmul.f32 %v4751, %v4751
        %v4753 = vsel %vm412, %v4752, 0.0
        %4754 = vadd.xlane.f32.xlu0 %v4753
        %v4755 = vpop.xlane.xlu0 %4754
        %v4756 = vmul.f32 %v4755, %v416
        %v4757 = vadd.f32 %v4756, 1e-05
        %v4758 = vrsqrt.pop %v4757
        %v4759 = vmul.f32 %v4751, %v4758
        %v4760 = vlaneseq
        %v4761 = vshrl.u32 %v4760, 7
        %v4762 = vsub.s32 0, %v4761
        %v4763 = vrot.slane %v4746, %v4762
        %v4764 = vmul.f32 %v4759, %v4763
        %v4765 = vlaneseq
        %v4766 = vshrl.u32 %v4765, 7
        %v4767 = vsub.s32 1, %v4766
        %v4768 = vrot.slane %v4746, %v4767
        %v4769 = vadd.f32 %v4764, %v4768
        %v4774 = vlaneseq
        %v4775 = vshrl.u32 %v4774, 7
        %v4776 = vsub.s32 0, %v4775
        %v4777 = vrot.slane %v4714, %v4776
        %v4778 = vlaneseq
        %v4779 = vshrl.u32 %v4778, 7
        %v4780 = vsub.s32 0, %v4779
        %v4781 = vrot.slane %v4715, %v4780
        %v4782 = vlaneseq
        %v4783 = vshrl.u32 %v4782, 7
        %v4784 = vsub.s32 0, %v4783
        %v4785 = vrot.slane %v4716, %v4784
        %v4786 = vlaneseq
        %v4787 = vshrl.u32 %v4786, 7
        %v4788 = vsub.s32 0, %v4787
        %v4789 = vrot.slane %v4717, %v4788
        %v4795 = vsel %vm561, %v4769, 0
        %4797 = vmatprep.subr.mxu0 0.0
        %4798 = vmatpush1.msra.mxu0 0.0
        %4799 = vmatprep.subr.mxu0 0.0
        %4800 = vmatpush1.msra.mxu0 0.0
        %4801 = vmatprep.subr.mxu0 0.0
        %4802 = vmatpush1.msra.mxu0 0.0
        %4803 = vmatprep.subr.mxu0 0.0
        %4804 = vmatpush1.msra.mxu0 0.0
        %4805 = vmatprep.subr.mxu0 0.0
        %4806 = vmatpush1.msra.mxu0 0.0
        %4807 = vmatprep.subr.mxu0 0.0
        %4808 = vmatpush1.msra.mxu0 0.0
        %4809 = vmatprep.subr.mxu0 0.0
        %4810 = vmatpush1.msra.mxu0 0.0
        %4811 = vmatprep.subr.mxu0 0.0
        %4812 = vmatpush1.msra.mxu0 0.0
        %4813 = vmatprep.subr.mxu0 0.0
        %4814 = vmatpush1.msra.mxu0 0.0
        %4815 = vmatprep.subr.mxu0 0.0
        %4816 = vmatpush1.msra.mxu0 0.0
        %4817 = vmatprep.subr.mxu0 0.0
        %4818 = vmatpush1.msra.mxu0 0.0
        %4819 = vmatprep.subr.mxu0 0.0
        %4820 = vmatpush1.msra.mxu0 0.0
        %4821 = vmatprep.subr.mxu0 0.0
        %4822 = vmatpush1.msra.mxu0 %v4668
        %4823 = vmatprep.subr.mxu0 0.0
        %4824 = vmatpush1.msra.mxu0 %v4667
        %4825 = vmatprep.subr.mxu0 0.0
        %4826 = vmatpush1.msra.mxu0 %v4666
        %4827 = vmatprep.subr.mxu0 0.0
        %4828 = vmatpush1.msra.mxu0 %v4665
        %4829 = vmatprep.subr.mxu0 0.0
        %4830 = vmatpush2.msra.mxu0 0.0
        %4831 = vmatprep.subr.mxu0 0.0
        %4832 = vmatpush2.msra.mxu0 0.0
        %4833 = vmatprep.subr.mxu0 0.0
        %4834 = vmatpush2.msra.mxu0 0.0
        %4835 = vmatprep.subr.mxu0 0.0
        %4836 = vmatpush2.msra.mxu0 0.0
        %4837 = vmatprep.subr.mxu0 0.0
        %4838 = vmatpush2.msra.mxu0 0.0
        %4839 = vmatprep.subr.mxu0 0.0
        %4840 = vmatpush2.msra.mxu0 0.0
        %4841 = vmatprep.subr.mxu0 0.0
        %4842 = vmatpush2.msra.mxu0 0.0
        %4843 = vmatprep.subr.mxu0 0.0
        %4844 = vmatpush2.msra.mxu0 0.0
        %4845 = vmatprep.subr.mxu0 0.0
        %4846 = vmatpush2.msra.mxu0 0.0
        %4847 = vmatprep.subr.mxu0 0.0
        %4848 = vmatpush2.msra.mxu0 0.0
        %4849 = vmatprep.subr.mxu0 0.0
        %4850 = vmatpush2.msra.mxu0 0.0
        %4851 = vmatprep.subr.mxu0 0.0
        %4852 = vmatpush2.msra.mxu0 0.0
        %4853 = vmatprep.subr.mxu0 0.0
        %4854 = vmatpush2.msra.mxu0 0.0
        %4855 = vmatprep.subr.mxu0 0.0
        %4856 = vmatpush2.msra.mxu0 0.0
        %4857 = vmatprep.subr.mxu0 0.0
        %4858 = vmatpush2.msra.mxu0 0.0
        %4859 = vmatprep.subr.mxu0 0.0
        %4860 = vmatpush2.msra.mxu0 0.0
        %4861 = vmatprep.mubr.f32.mxu0 0.0
        %4862 = vmatmul.mubr.f32.gmra.mxu0 %v4795
        %v4863 = vpop.f32.mrf.mxu0
        %v4864 = vadd.f32 %v4777, %v4863
        %v4865 = vpop.f32.mrf.mxu0
        %4866 = vdwg.mxu0
        %4867 = vmatprep.subr.mxu0 0.0
        %4868 = vmatpush1.msra.mxu0 0.0
        %4869 = vmatprep.subr.mxu0 0.0
        %4870 = vmatpush1.msra.mxu0 0.0
        %4871 = vmatprep.subr.mxu0 0.0
        %4872 = vmatpush1.msra.mxu0 0.0
        %4873 = vmatprep.subr.mxu0 0.0
        %4874 = vmatpush1.msra.mxu0 0.0
        %4875 = vmatprep.subr.mxu0 0.0
        %4876 = vmatpush1.msra.mxu0 0.0
        %4877 = vmatprep.subr.mxu0 0.0
        %4878 = vmatpush1.msra.mxu0 0.0
        %4879 = vmatprep.subr.mxu0 0.0
        %4880 = vmatpush1.msra.mxu0 0.0
        %4881 = vmatprep.subr.mxu0 0.0
        %4882 = vmatpush1.msra.mxu0 0.0
        %4883 = vmatprep.subr.mxu0 0.0
        %4884 = vmatpush1.msra.mxu0 0.0
        %4885 = vmatprep.subr.mxu0 0.0
        %4886 = vmatpush1.msra.mxu0 0.0
        %4887 = vmatprep.subr.mxu0 0.0
        %4888 = vmatpush1.msra.mxu0 0.0
        %4889 = vmatprep.subr.mxu0 0.0
        %4890 = vmatpush1.msra.mxu0 0.0
        %4891 = vmatprep.subr.mxu0 0.0
        %4892 = vmatpush1.msra.mxu0 %v4672
        %4893 = vmatprep.subr.mxu0 0.0
        %4894 = vmatpush1.msra.mxu0 %v4671
        %4895 = vmatprep.subr.mxu0 0.0
        %4896 = vmatpush1.msra.mxu0 %v4670
        %4897 = vmatprep.subr.mxu0 0.0
        %4898 = vmatpush1.msra.mxu0 %v4669
        %4899 = vmatprep.subr.mxu0 0.0
        %4900 = vmatpush2.msra.mxu0 0.0
        %4901 = vmatprep.subr.mxu0 0.0
        %4902 = vmatpush2.msra.mxu0 0.0
        %4903 = vmatprep.subr.mxu0 0.0
        %4904 = vmatpush2.msra.mxu0 0.0
        %4905 = vmatprep.subr.mxu0 0.0
        %4906 = vmatpush2.msra.mxu0 0.0
        %4907 = vmatprep.subr.mxu0 0.0
        %4908 = vmatpush2.msra.mxu0 0.0
        %4909 = vmatprep.subr.mxu0 0.0
        %4910 = vmatpush2.msra.mxu0 0.0
        %4911 = vmatprep.subr.mxu0 0.0
        %4912 = vmatpush2.msra.mxu0 0.0
        %4913 = vmatprep.subr.mxu0 0.0
        %4914 = vmatpush2.msra.mxu0 0.0
        %4915 = vmatprep.subr.mxu0 0.0
        %4916 = vmatpush2.msra.mxu0 0.0
        %4917 = vmatprep.subr.mxu0 0.0
        %4918 = vmatpush2.msra.mxu0 0.0
        %4919 = vmatprep.subr.mxu0 0.0
        %4920 = vmatpush2.msra.mxu0 0.0
        %4921 = vmatprep.subr.mxu0 0.0
        %4922 = vmatpush2.msra.mxu0 0.0
        %4923 = vmatprep.subr.mxu0 0.0
        %4924 = vmatpush2.msra.mxu0 0.0
        %4925 = vmatprep.subr.mxu0 0.0
        %4926 = vmatpush2.msra.mxu0 0.0
        %4927 = vmatprep.subr.mxu0 0.0
        %4928 = vmatpush2.msra.mxu0 0.0
        %4929 = vmatprep.subr.mxu0 0.0
        %4930 = vmatpush2.msra.mxu0 0.0
        %4931 = vmatprep.mubr.f32.mxu0 0.0
        %4932 = vmatmul.mubr.f32.gmra.mxu0 %v4795
        %v4933 = vpop.f32.mrf.mxu0
        %v4934 = vadd.f32 %v4781, %v4933
        %v4935 = vpop.f32.mrf.mxu0
        %4936 = vdwg.mxu0
        %4937 = vmatprep.subr.mxu0 0.0
        %4938 = vmatpush1.msra.mxu0 0.0
        %4939 = vmatprep.subr.mxu0 0.0
        %4940 = vmatpush1.msra.mxu0 0.0
        %4941 = vmatprep.subr.mxu0 0.0
        %4942 = vmatpush1.msra.mxu0 0.0
        %4943 = vmatprep.subr.mxu0 0.0
        %4944 = vmatpush1.msra.mxu0 0.0
        %4945 = vmatprep.subr.mxu0 0.0
        %4946 = vmatpush1.msra.mxu0 0.0
        %4947 = vmatprep.subr.mxu0 0.0
        %4948 = vmatpush1.msra.mxu0 0.0
        %4949 = vmatprep.subr.mxu0 0.0
        %4950 = vmatpush1.msra.mxu0 0.0
        %4951 = vmatprep.subr.mxu0 0.0
        %4952 = vmatpush1.msra.mxu0 0.0
        %4953 = vmatprep.subr.mxu0 0.0
        %4954 = vmatpush1.msra.mxu0 0.0
        %4955 = vmatprep.subr.mxu0 0.0
        %4956 = vmatpush1.msra.mxu0 0.0
        %4957 = vmatprep.subr.mxu0 0.0
        %4958 = vmatpush1.msra.mxu0 0.0
        %4959 = vmatprep.subr.mxu0 0.0
        %4960 = vmatpush1.msra.mxu0 0.0
        %4961 = vmatprep.subr.mxu0 0.0
        %4962 = vmatpush1.msra.mxu0 %v4676
        %4963 = vmatprep.subr.mxu0 0.0
        %4964 = vmatpush1.msra.mxu0 %v4675
        %4965 = vmatprep.subr.mxu0 0.0
        %4966 = vmatpush1.msra.mxu0 %v4674
        %4967 = vmatprep.subr.mxu0 0.0
        %4968 = vmatpush1.msra.mxu0 %v4673
        %4969 = vmatprep.subr.mxu0 0.0
        %4970 = vmatpush2.msra.mxu0 0.0
        %4971 = vmatprep.subr.mxu0 0.0
        %4972 = vmatpush2.msra.mxu0 0.0
        %4973 = vmatprep.subr.mxu0 0.0
        %4974 = vmatpush2.msra.mxu0 0.0
        %4975 = vmatprep.subr.mxu0 0.0
        %4976 = vmatpush2.msra.mxu0 0.0
        %4977 = vmatprep.subr.mxu0 0.0
        %4978 = vmatpush2.msra.mxu0 0.0
        %4979 = vmatprep.subr.mxu0 0.0
        %4980 = vmatpush2.msra.mxu0 0.0
        %4981 = vmatprep.subr.mxu0 0.0
        %4982 = vmatpush2.msra.mxu0 0.0
        %4983 = vmatprep.subr.mxu0 0.0
        %4984 = vmatpush2.msra.mxu0 0.0
        %4985 = vmatprep.subr.mxu0 0.0
        %4986 = vmatpush2.msra.mxu0 0.0
        %4987 = vmatprep.subr.mxu0 0.0
        %4988 = vmatpush2.msra.mxu0 0.0
        %4989 = vmatprep.subr.mxu0 0.0
        %4990 = vmatpush2.msra.mxu0 0.0
        %4991 = vmatprep.subr.mxu0 0.0
        %4992 = vmatpush2.msra.mxu0 0.0
        %4993 = vmatprep.subr.mxu0 0.0
        %4994 = vmatpush2.msra.mxu0 0.0
        %4995 = vmatprep.subr.mxu0 0.0
        %4996 = vmatpush2.msra.mxu0 0.0
        %4997 = vmatprep.subr.mxu0 0.0
        %4998 = vmatpush2.msra.mxu0 0.0
        %4999 = vmatprep.subr.mxu0 0.0
        %5000 = vmatpush2.msra.mxu0 0.0
        %5001 = vmatprep.mubr.f32.mxu0 0.0
        %5002 = vmatmul.mubr.f32.gmra.mxu0 %v4795
        %v5003 = vpop.f32.mrf.mxu0
        %v5004 = vadd.f32 %v4785, %v5003
        %v5005 = vpop.f32.mrf.mxu0
        %5006 = vdwg.mxu0
        %5007 = vmatprep.subr.mxu0 0.0
        %5008 = vmatpush1.msra.mxu0 0.0
        %5009 = vmatprep.subr.mxu0 0.0
        %5010 = vmatpush1.msra.mxu0 0.0
        %5011 = vmatprep.subr.mxu0 0.0
        %5012 = vmatpush1.msra.mxu0 0.0
        %5013 = vmatprep.subr.mxu0 0.0
        %5014 = vmatpush1.msra.mxu0 0.0
        %5015 = vmatprep.subr.mxu0 0.0
        %5016 = vmatpush1.msra.mxu0 0.0
        %5017 = vmatprep.subr.mxu0 0.0
        %5018 = vmatpush1.msra.mxu0 0.0
        %5019 = vmatprep.subr.mxu0 0.0
        %5020 = vmatpush1.msra.mxu0 0.0
        %5021 = vmatprep.subr.mxu0 0.0
        %5022 = vmatpush1.msra.mxu0 0.0
        %5023 = vmatprep.subr.mxu0 0.0
        %5024 = vmatpush1.msra.mxu0 0.0
        %5025 = vmatprep.subr.mxu0 0.0
        %5026 = vmatpush1.msra.mxu0 0.0
        %5027 = vmatprep.subr.mxu0 0.0
        %5028 = vmatpush1.msra.mxu0 0.0
        %5029 = vmatprep.subr.mxu0 0.0
        %5030 = vmatpush1.msra.mxu0 0.0
        %5031 = vmatprep.subr.mxu0 0.0
        %5032 = vmatpush1.msra.mxu0 %v4680
        %5033 = vmatprep.subr.mxu0 0.0
        %5034 = vmatpush1.msra.mxu0 %v4679
        %5035 = vmatprep.subr.mxu0 0.0
        %5036 = vmatpush1.msra.mxu0 %v4678
        %5037 = vmatprep.subr.mxu0 0.0
        %5038 = vmatpush1.msra.mxu0 %v4677
        %5039 = vmatprep.subr.mxu0 0.0
        %5040 = vmatpush2.msra.mxu0 0.0
        %5041 = vmatprep.subr.mxu0 0.0
        %5042 = vmatpush2.msra.mxu0 0.0
        %5043 = vmatprep.subr.mxu0 0.0
        %5044 = vmatpush2.msra.mxu0 0.0
        %5045 = vmatprep.subr.mxu0 0.0
        %5046 = vmatpush2.msra.mxu0 0.0
        %5047 = vmatprep.subr.mxu0 0.0
        %5048 = vmatpush2.msra.mxu0 0.0
        %5049 = vmatprep.subr.mxu0 0.0
        %5050 = vmatpush2.msra.mxu0 0.0
        %5051 = vmatprep.subr.mxu0 0.0
        %5052 = vmatpush2.msra.mxu0 0.0
        %5053 = vmatprep.subr.mxu0 0.0
        %5054 = vmatpush2.msra.mxu0 0.0
        %5055 = vmatprep.subr.mxu0 0.0
        %5056 = vmatpush2.msra.mxu0 0.0
        %5057 = vmatprep.subr.mxu0 0.0
        %5058 = vmatpush2.msra.mxu0 0.0
        %5059 = vmatprep.subr.mxu0 0.0
        %5060 = vmatpush2.msra.mxu0 0.0
        %5061 = vmatprep.subr.mxu0 0.0
        %5062 = vmatpush2.msra.mxu0 0.0
        %5063 = vmatprep.subr.mxu0 0.0
        %5064 = vmatpush2.msra.mxu0 0.0
        %5065 = vmatprep.subr.mxu0 0.0
        %5066 = vmatpush2.msra.mxu0 0.0
        %5067 = vmatprep.subr.mxu0 0.0
        %5068 = vmatpush2.msra.mxu0 0.0
        %5069 = vmatprep.subr.mxu0 0.0
        %5070 = vmatpush2.msra.mxu0 0.0
        %5071 = vmatprep.mubr.f32.mxu0 0.0
        %5072 = vmatmul.mubr.f32.gmra.mxu0 %v4795
        %v5073 = vpop.f32.mrf.mxu0
        %v5074 = vadd.f32 %v4789, %v5073
        %v5075 = vpop.f32.mrf.mxu0
        %5076 = vdwg.mxu0
        %5077 = vmatprep.subr.mxu0 0.0
        %5078 = vmatpush1.msra.mxu0 0.0
        %5079 = vmatprep.subr.mxu0 0.0
        %5080 = vmatpush1.msra.mxu0 0.0
        %5081 = vmatprep.subr.mxu0 0.0
        %5082 = vmatpush1.msra.mxu0 0.0
        %5083 = vmatprep.subr.mxu0 0.0
        %5084 = vmatpush1.msra.mxu0 0.0
        %5085 = vmatprep.subr.mxu0 0.0
        %5086 = vmatpush1.msra.mxu0 0.0
        %5087 = vmatprep.subr.mxu0 0.0
        %5088 = vmatpush1.msra.mxu0 0.0
        %5089 = vmatprep.subr.mxu0 0.0
        %5090 = vmatpush1.msra.mxu0 0.0
        %5091 = vmatprep.subr.mxu0 0.0
        %5092 = vmatpush1.msra.mxu0 0.0
        %5093 = vmatprep.subr.mxu0 0.0
        %5094 = vmatpush1.msra.mxu0 0.0
        %5095 = vmatprep.subr.mxu0 0.0
        %5096 = vmatpush1.msra.mxu0 0.0
        %5097 = vmatprep.subr.mxu0 0.0
        %5098 = vmatpush1.msra.mxu0 0.0
        %5099 = vmatprep.subr.mxu0 0.0
        %5100 = vmatpush1.msra.mxu0 0.0
        %5101 = vmatprep.subr.mxu0 0.0
        %5102 = vmatpush1.msra.mxu0 %v4684
        %5103 = vmatprep.subr.mxu0 0.0
        %5104 = vmatpush1.msra.mxu0 %v4683
        %5105 = vmatprep.subr.mxu0 0.0
        %5106 = vmatpush1.msra.mxu0 %v4682
        %5107 = vmatprep.subr.mxu0 0.0
        %5108 = vmatpush1.msra.mxu0 %v4681
        %5109 = vmatprep.subr.mxu0 0.0
        %5110 = vmatpush2.msra.mxu0 0.0
        %5111 = vmatprep.subr.mxu0 0.0
        %5112 = vmatpush2.msra.mxu0 0.0
        %5113 = vmatprep.subr.mxu0 0.0
        %5114 = vmatpush2.msra.mxu0 0.0
        %5115 = vmatprep.subr.mxu0 0.0
        %5116 = vmatpush2.msra.mxu0 0.0
        %5117 = vmatprep.subr.mxu0 0.0
        %5118 = vmatpush2.msra.mxu0 0.0
        %5119 = vmatprep.subr.mxu0 0.0
        %5120 = vmatpush2.msra.mxu0 0.0
        %5121 = vmatprep.subr.mxu0 0.0
        %5122 = vmatpush2.msra.mxu0 0.0
        %5123 = vmatprep.subr.mxu0 0.0
        %5124 = vmatpush2.msra.mxu0 0.0
        %5125 = vmatprep.subr.mxu0 0.0
        %5126 = vmatpush2.msra.mxu0 0.0
        %5127 = vmatprep.subr.mxu0 0.0
        %5128 = vmatpush2.msra.mxu0 0.0
        %5129 = vmatprep.subr.mxu0 0.0
        %5130 = vmatpush2.msra.mxu0 0.0
        %5131 = vmatprep.subr.mxu0 0.0
        %5132 = vmatpush2.msra.mxu0 0.0
        %5133 = vmatprep.subr.mxu0 0.0
        %5134 = vmatpush2.msra.mxu0 0.0
        %5135 = vmatprep.subr.mxu0 0.0
        %5136 = vmatpush2.msra.mxu0 0.0
        %5137 = vmatprep.subr.mxu0 0.0
        %5138 = vmatpush2.msra.mxu0 0.0
        %5139 = vmatprep.subr.mxu0 0.0
        %5140 = vmatpush2.msra.mxu0 0.0
        %5141 = vmatprep.mubr.f32.mxu0 0.0
        %5142 = vmatmul.mubr.f32.gmra.mxu0 %v4795
        %v5143 = vpop.f32.mrf.mxu0
        %v5144 = vadd.f32 0.0, %v5143
        %v5145 = vpop.f32.mrf.mxu0
        %5146 = vdwg.mxu0
        %5147 = vmatprep.subr.mxu0 0.0
        %5148 = vmatpush1.msra.mxu0 0.0
        %5149 = vmatprep.subr.mxu0 0.0
        %5150 = vmatpush1.msra.mxu0 0.0
        %5151 = vmatprep.subr.mxu0 0.0
        %5152 = vmatpush1.msra.mxu0 0.0
        %5153 = vmatprep.subr.mxu0 0.0
        %5154 = vmatpush1.msra.mxu0 0.0
        %5155 = vmatprep.subr.mxu0 0.0
        %5156 = vmatpush1.msra.mxu0 0.0
        %5157 = vmatprep.subr.mxu0 0.0
        %5158 = vmatpush1.msra.mxu0 0.0
        %5159 = vmatprep.subr.mxu0 0.0
        %5160 = vmatpush1.msra.mxu0 0.0
        %5161 = vmatprep.subr.mxu0 0.0
        %5162 = vmatpush1.msra.mxu0 0.0
        %5163 = vmatprep.subr.mxu0 0.0
        %5164 = vmatpush1.msra.mxu0 0.0
        %5165 = vmatprep.subr.mxu0 0.0
        %5166 = vmatpush1.msra.mxu0 0.0
        %5167 = vmatprep.subr.mxu0 0.0
        %5168 = vmatpush1.msra.mxu0 0.0
        %5169 = vmatprep.subr.mxu0 0.0
        %5170 = vmatpush1.msra.mxu0 0.0
        %5171 = vmatprep.subr.mxu0 0.0
        %5172 = vmatpush1.msra.mxu0 %v4688
        %5173 = vmatprep.subr.mxu0 0.0
        %5174 = vmatpush1.msra.mxu0 %v4687
        %5175 = vmatprep.subr.mxu0 0.0
        %5176 = vmatpush1.msra.mxu0 %v4686
        %5177 = vmatprep.subr.mxu0 0.0
        %5178 = vmatpush1.msra.mxu0 %v4685
        %5179 = vmatprep.subr.mxu0 0.0
        %5180 = vmatpush2.msra.mxu0 0.0
        %5181 = vmatprep.subr.mxu0 0.0
        %5182 = vmatpush2.msra.mxu0 0.0
        %5183 = vmatprep.subr.mxu0 0.0
        %5184 = vmatpush2.msra.mxu0 0.0
        %5185 = vmatprep.subr.mxu0 0.0
        %5186 = vmatpush2.msra.mxu0 0.0
        %5187 = vmatprep.subr.mxu0 0.0
        %5188 = vmatpush2.msra.mxu0 0.0
        %5189 = vmatprep.subr.mxu0 0.0
        %5190 = vmatpush2.msra.mxu0 0.0
        %5191 = vmatprep.subr.mxu0 0.0
        %5192 = vmatpush2.msra.mxu0 0.0
        %5193 = vmatprep.subr.mxu0 0.0
        %5194 = vmatpush2.msra.mxu0 0.0
        %5195 = vmatprep.subr.mxu0 0.0
        %5196 = vmatpush2.msra.mxu0 0.0
        %5197 = vmatprep.subr.mxu0 0.0
        %5198 = vmatpush2.msra.mxu0 0.0
        %5199 = vmatprep.subr.mxu0 0.0
        %5200 = vmatpush2.msra.mxu0 0.0
        %5201 = vmatprep.subr.mxu0 0.0
        %5202 = vmatpush2.msra.mxu0 0.0
        %5203 = vmatprep.subr.mxu0 0.0
        %5204 = vmatpush2.msra.mxu0 0.0
        %5205 = vmatprep.subr.mxu0 0.0
        %5206 = vmatpush2.msra.mxu0 0.0
        %5207 = vmatprep.subr.mxu0 0.0
        %5208 = vmatpush2.msra.mxu0 0.0
        %5209 = vmatprep.subr.mxu0 0.0
        %5210 = vmatpush2.msra.mxu0 0.0
        %5211 = vmatprep.mubr.f32.mxu0 0.0
        %5212 = vmatmul.mubr.f32.gmra.mxu0 %v4795
        %v5213 = vpop.f32.mrf.mxu0
        %v5214 = vadd.f32 0.0, %v5213
        %v5215 = vpop.f32.mrf.mxu0
        %5216 = vdwg.mxu0
        %5217 = vmatprep.subr.mxu0 0.0
        %5218 = vmatpush1.msra.mxu0 0.0
        %5219 = vmatprep.subr.mxu0 0.0
        %5220 = vmatpush1.msra.mxu0 0.0
        %5221 = vmatprep.subr.mxu0 0.0
        %5222 = vmatpush1.msra.mxu0 0.0
        %5223 = vmatprep.subr.mxu0 0.0
        %5224 = vmatpush1.msra.mxu0 0.0
        %5225 = vmatprep.subr.mxu0 0.0
        %5226 = vmatpush1.msra.mxu0 0.0
        %5227 = vmatprep.subr.mxu0 0.0
        %5228 = vmatpush1.msra.mxu0 0.0
        %5229 = vmatprep.subr.mxu0 0.0
        %5230 = vmatpush1.msra.mxu0 0.0
        %5231 = vmatprep.subr.mxu0 0.0
        %5232 = vmatpush1.msra.mxu0 0.0
        %5233 = vmatprep.subr.mxu0 0.0
        %5234 = vmatpush1.msra.mxu0 0.0
        %5235 = vmatprep.subr.mxu0 0.0
        %5236 = vmatpush1.msra.mxu0 0.0
        %5237 = vmatprep.subr.mxu0 0.0
        %5238 = vmatpush1.msra.mxu0 0.0
        %5239 = vmatprep.subr.mxu0 0.0
        %5240 = vmatpush1.msra.mxu0 0.0
        %5241 = vmatprep.subr.mxu0 0.0
        %5242 = vmatpush1.msra.mxu0 %v4692
        %5243 = vmatprep.subr.mxu0 0.0
        %5244 = vmatpush1.msra.mxu0 %v4691
        %5245 = vmatprep.subr.mxu0 0.0
        %5246 = vmatpush1.msra.mxu0 %v4690
        %5247 = vmatprep.subr.mxu0 0.0
        %5248 = vmatpush1.msra.mxu0 %v4689
        %5249 = vmatprep.subr.mxu0 0.0
        %5250 = vmatpush2.msra.mxu0 0.0
        %5251 = vmatprep.subr.mxu0 0.0
        %5252 = vmatpush2.msra.mxu0 0.0
        %5253 = vmatprep.subr.mxu0 0.0
        %5254 = vmatpush2.msra.mxu0 0.0
        %5255 = vmatprep.subr.mxu0 0.0
        %5256 = vmatpush2.msra.mxu0 0.0
        %5257 = vmatprep.subr.mxu0 0.0
        %5258 = vmatpush2.msra.mxu0 0.0
        %5259 = vmatprep.subr.mxu0 0.0
        %5260 = vmatpush2.msra.mxu0 0.0
        %5261 = vmatprep.subr.mxu0 0.0
        %5262 = vmatpush2.msra.mxu0 0.0
        %5263 = vmatprep.subr.mxu0 0.0
        %5264 = vmatpush2.msra.mxu0 0.0
        %5265 = vmatprep.subr.mxu0 0.0
        %5266 = vmatpush2.msra.mxu0 0.0
        %5267 = vmatprep.subr.mxu0 0.0
        %5268 = vmatpush2.msra.mxu0 0.0
        %5269 = vmatprep.subr.mxu0 0.0
        %5270 = vmatpush2.msra.mxu0 0.0
        %5271 = vmatprep.subr.mxu0 0.0
        %5272 = vmatpush2.msra.mxu0 0.0
        %5273 = vmatprep.subr.mxu0 0.0
        %5274 = vmatpush2.msra.mxu0 0.0
        %5275 = vmatprep.subr.mxu0 0.0
        %5276 = vmatpush2.msra.mxu0 0.0
        %5277 = vmatprep.subr.mxu0 0.0
        %5278 = vmatpush2.msra.mxu0 0.0
        %5279 = vmatprep.subr.mxu0 0.0
        %5280 = vmatpush2.msra.mxu0 0.0
        %5281 = vmatprep.mubr.f32.mxu0 0.0
        %5282 = vmatmul.mubr.f32.gmra.mxu0 %v4795
        %v5283 = vpop.f32.mrf.mxu0
        %v5284 = vadd.f32 0.0, %v5283
        %v5285 = vpop.f32.mrf.mxu0
        %5286 = vdwg.mxu0
        %5287 = vmatprep.subr.mxu0 0.0
        %5288 = vmatpush1.msra.mxu0 0.0
        %5289 = vmatprep.subr.mxu0 0.0
        %5290 = vmatpush1.msra.mxu0 0.0
        %5291 = vmatprep.subr.mxu0 0.0
        %5292 = vmatpush1.msra.mxu0 0.0
        %5293 = vmatprep.subr.mxu0 0.0
        %5294 = vmatpush1.msra.mxu0 0.0
        %5295 = vmatprep.subr.mxu0 0.0
        %5296 = vmatpush1.msra.mxu0 0.0
        %5297 = vmatprep.subr.mxu0 0.0
        %5298 = vmatpush1.msra.mxu0 0.0
        %5299 = vmatprep.subr.mxu0 0.0
        %5300 = vmatpush1.msra.mxu0 0.0
        %5301 = vmatprep.subr.mxu0 0.0
        %5302 = vmatpush1.msra.mxu0 0.0
        %5303 = vmatprep.subr.mxu0 0.0
        %5304 = vmatpush1.msra.mxu0 0.0
        %5305 = vmatprep.subr.mxu0 0.0
        %5306 = vmatpush1.msra.mxu0 0.0
        %5307 = vmatprep.subr.mxu0 0.0
        %5308 = vmatpush1.msra.mxu0 0.0
        %5309 = vmatprep.subr.mxu0 0.0
        %5310 = vmatpush1.msra.mxu0 0.0
        %5311 = vmatprep.subr.mxu0 0.0
        %5312 = vmatpush1.msra.mxu0 %v4696
        %5313 = vmatprep.subr.mxu0 0.0
        %5314 = vmatpush1.msra.mxu0 %v4695
        %5315 = vmatprep.subr.mxu0 0.0
        %5316 = vmatpush1.msra.mxu0 %v4694
        %5317 = vmatprep.subr.mxu0 0.0
        %5318 = vmatpush1.msra.mxu0 %v4693
        %5319 = vmatprep.subr.mxu0 0.0
        %5320 = vmatpush2.msra.mxu0 0.0
        %5321 = vmatprep.subr.mxu0 0.0
        %5322 = vmatpush2.msra.mxu0 0.0
        %5323 = vmatprep.subr.mxu0 0.0
        %5324 = vmatpush2.msra.mxu0 0.0
        %5325 = vmatprep.subr.mxu0 0.0
        %5326 = vmatpush2.msra.mxu0 0.0
        %5327 = vmatprep.subr.mxu0 0.0
        %5328 = vmatpush2.msra.mxu0 0.0
        %5329 = vmatprep.subr.mxu0 0.0
        %5330 = vmatpush2.msra.mxu0 0.0
        %5331 = vmatprep.subr.mxu0 0.0
        %5332 = vmatpush2.msra.mxu0 0.0
        %5333 = vmatprep.subr.mxu0 0.0
        %5334 = vmatpush2.msra.mxu0 0.0
        %5335 = vmatprep.subr.mxu0 0.0
        %5336 = vmatpush2.msra.mxu0 0.0
        %5337 = vmatprep.subr.mxu0 0.0
        %5338 = vmatpush2.msra.mxu0 0.0
        %5339 = vmatprep.subr.mxu0 0.0
        %5340 = vmatpush2.msra.mxu0 0.0
        %5341 = vmatprep.subr.mxu0 0.0
        %5342 = vmatpush2.msra.mxu0 0.0
        %5343 = vmatprep.subr.mxu0 0.0
        %5344 = vmatpush2.msra.mxu0 0.0
        %5345 = vmatprep.subr.mxu0 0.0
        %5346 = vmatpush2.msra.mxu0 0.0
        %5347 = vmatprep.subr.mxu0 0.0
        %5348 = vmatpush2.msra.mxu0 0.0
        %5349 = vmatprep.subr.mxu0 0.0
        %5350 = vmatpush2.msra.mxu0 0.0
        %5351 = vmatprep.mubr.f32.mxu0 0.0
        %5352 = vmatmul.mubr.f32.gmra.mxu0 %v4795
        %v5353 = vpop.f32.mrf.mxu0
        %v5354 = vadd.f32 0.0, %v5353
        %v5355 = vpop.f32.mrf.mxu0
        %5356 = vdwg.mxu0
        %5357 = vmatprep.subr.mxu0 0.0
        %5358 = vmatpush1.msra.mxu0 0.0
        %5359 = vmatprep.subr.mxu0 0.0
        %5360 = vmatpush1.msra.mxu0 0.0
        %5361 = vmatprep.subr.mxu0 0.0
        %5362 = vmatpush1.msra.mxu0 0.0
        %5363 = vmatprep.subr.mxu0 0.0
        %5364 = vmatpush1.msra.mxu0 0.0
        %5365 = vmatprep.subr.mxu0 0.0
        %5366 = vmatpush1.msra.mxu0 0.0
        %5367 = vmatprep.subr.mxu0 0.0
        %5368 = vmatpush1.msra.mxu0 0.0
        %5369 = vmatprep.subr.mxu0 0.0
        %5370 = vmatpush1.msra.mxu0 0.0
        %5371 = vmatprep.subr.mxu0 0.0
        %5372 = vmatpush1.msra.mxu0 0.0
        %5373 = vmatprep.subr.mxu0 0.0
        %5374 = vmatpush1.msra.mxu0 0.0
        %5375 = vmatprep.subr.mxu0 0.0
        %5376 = vmatpush1.msra.mxu0 0.0
        %5377 = vmatprep.subr.mxu0 0.0
        %5378 = vmatpush1.msra.mxu0 0.0
        %5379 = vmatprep.subr.mxu0 0.0
        %5380 = vmatpush1.msra.mxu0 0.0
        %5381 = vmatprep.subr.mxu0 0.0
        %5382 = vmatpush1.msra.mxu0 %v4700
        %5383 = vmatprep.subr.mxu0 0.0
        %5384 = vmatpush1.msra.mxu0 %v4699
        %5385 = vmatprep.subr.mxu0 0.0
        %5386 = vmatpush1.msra.mxu0 %v4698
        %5387 = vmatprep.subr.mxu0 0.0
        %5388 = vmatpush1.msra.mxu0 %v4697
        %5389 = vmatprep.subr.mxu0 0.0
        %5390 = vmatpush2.msra.mxu0 0.0
        %5391 = vmatprep.subr.mxu0 0.0
        %5392 = vmatpush2.msra.mxu0 0.0
        %5393 = vmatprep.subr.mxu0 0.0
        %5394 = vmatpush2.msra.mxu0 0.0
        %5395 = vmatprep.subr.mxu0 0.0
        %5396 = vmatpush2.msra.mxu0 0.0
        %5397 = vmatprep.subr.mxu0 0.0
        %5398 = vmatpush2.msra.mxu0 0.0
        %5399 = vmatprep.subr.mxu0 0.0
        %5400 = vmatpush2.msra.mxu0 0.0
        %5401 = vmatprep.subr.mxu0 0.0
        %5402 = vmatpush2.msra.mxu0 0.0
        %5403 = vmatprep.subr.mxu0 0.0
        %5404 = vmatpush2.msra.mxu0 0.0
        %5405 = vmatprep.subr.mxu0 0.0
        %5406 = vmatpush2.msra.mxu0 0.0
        %5407 = vmatprep.subr.mxu0 0.0
        %5408 = vmatpush2.msra.mxu0 0.0
        %5409 = vmatprep.subr.mxu0 0.0
        %5410 = vmatpush2.msra.mxu0 0.0
        %5411 = vmatprep.subr.mxu0 0.0
        %5412 = vmatpush2.msra.mxu0 0.0
        %5413 = vmatprep.subr.mxu0 0.0
        %5414 = vmatpush2.msra.mxu0 0.0
        %5415 = vmatprep.subr.mxu0 0.0
        %5416 = vmatpush2.msra.mxu0 0.0
        %5417 = vmatprep.subr.mxu0 0.0
        %5418 = vmatpush2.msra.mxu0 0.0
        %5419 = vmatprep.subr.mxu0 0.0
        %5420 = vmatpush2.msra.mxu0 0.0
        %5421 = vmatprep.mubr.f32.mxu0 0.0
        %5422 = vmatmul.mubr.f32.gmra.mxu0 %v4795
        %v5423 = vpop.f32.mrf.mxu0
        %v5424 = vadd.f32 0.0, %v5423
        %v5425 = vpop.f32.mrf.mxu0
        %5426 = vdwg.mxu0
        %5427 = vmatprep.subr.mxu0 0.0
        %5428 = vmatpush1.msra.mxu0 0.0
        %5429 = vmatprep.subr.mxu0 0.0
        %5430 = vmatpush1.msra.mxu0 0.0
        %5431 = vmatprep.subr.mxu0 0.0
        %5432 = vmatpush1.msra.mxu0 0.0
        %5433 = vmatprep.subr.mxu0 0.0
        %5434 = vmatpush1.msra.mxu0 0.0
        %5435 = vmatprep.subr.mxu0 0.0
        %5436 = vmatpush1.msra.mxu0 0.0
        %5437 = vmatprep.subr.mxu0 0.0
        %5438 = vmatpush1.msra.mxu0 0.0
        %5439 = vmatprep.subr.mxu0 0.0
        %5440 = vmatpush1.msra.mxu0 0.0
        %5441 = vmatprep.subr.mxu0 0.0
        %5442 = vmatpush1.msra.mxu0 0.0
        %5443 = vmatprep.subr.mxu0 0.0
        %5444 = vmatpush1.msra.mxu0 0.0
        %5445 = vmatprep.subr.mxu0 0.0
        %5446 = vmatpush1.msra.mxu0 0.0
        %5447 = vmatprep.subr.mxu0 0.0
        %5448 = vmatpush1.msra.mxu0 0.0
        %5449 = vmatprep.subr.mxu0 0.0
        %5450 = vmatpush1.msra.mxu0 0.0
        %5451 = vmatprep.subr.mxu0 0.0
        %5452 = vmatpush1.msra.mxu0 %v4704
        %5453 = vmatprep.subr.mxu0 0.0
        %5454 = vmatpush1.msra.mxu0 %v4703
        %5455 = vmatprep.subr.mxu0 0.0
        %5456 = vmatpush1.msra.mxu0 %v4702
        %5457 = vmatprep.subr.mxu0 0.0
        %5458 = vmatpush1.msra.mxu0 %v4701
        %5459 = vmatprep.subr.mxu0 0.0
        %5460 = vmatpush2.msra.mxu0 0.0
        %5461 = vmatprep.subr.mxu0 0.0
        %5462 = vmatpush2.msra.mxu0 0.0
        %5463 = vmatprep.subr.mxu0 0.0
        %5464 = vmatpush2.msra.mxu0 0.0
        %5465 = vmatprep.subr.mxu0 0.0
        %5466 = vmatpush2.msra.mxu0 0.0
        %5467 = vmatprep.subr.mxu0 0.0
        %5468 = vmatpush2.msra.mxu0 0.0
        %5469 = vmatprep.subr.mxu0 0.0
        %5470 = vmatpush2.msra.mxu0 0.0
        %5471 = vmatprep.subr.mxu0 0.0
        %5472 = vmatpush2.msra.mxu0 0.0
        %5473 = vmatprep.subr.mxu0 0.0
        %5474 = vmatpush2.msra.mxu0 0.0
        %5475 = vmatprep.subr.mxu0 0.0
        %5476 = vmatpush2.msra.mxu0 0.0
        %5477 = vmatprep.subr.mxu0 0.0
        %5478 = vmatpush2.msra.mxu0 0.0
        %5479 = vmatprep.subr.mxu0 0.0
        %5480 = vmatpush2.msra.mxu0 0.0
        %5481 = vmatprep.subr.mxu0 0.0
        %5482 = vmatpush2.msra.mxu0 0.0
        %5483 = vmatprep.subr.mxu0 0.0
        %5484 = vmatpush2.msra.mxu0 0.0
        %5485 = vmatprep.subr.mxu0 0.0
        %5486 = vmatpush2.msra.mxu0 0.0
        %5487 = vmatprep.subr.mxu0 0.0
        %5488 = vmatpush2.msra.mxu0 0.0
        %5489 = vmatprep.subr.mxu0 0.0
        %5490 = vmatpush2.msra.mxu0 0.0
        %5491 = vmatprep.mubr.f32.mxu0 0.0
        %5492 = vmatmul.mubr.f32.gmra.mxu0 %v4795
        %v5493 = vpop.f32.mrf.mxu0
        %v5494 = vadd.f32 0.0, %v5493
        %v5495 = vpop.f32.mrf.mxu0
        %5496 = vdwg.mxu0
        %5497 = vmatprep.subr.mxu0 0.0
        %5498 = vmatpush1.msra.mxu0 0.0
        %5499 = vmatprep.subr.mxu0 0.0
        %5500 = vmatpush1.msra.mxu0 0.0
        %5501 = vmatprep.subr.mxu0 0.0
        %5502 = vmatpush1.msra.mxu0 0.0
        %5503 = vmatprep.subr.mxu0 0.0
        %5504 = vmatpush1.msra.mxu0 0.0
        %5505 = vmatprep.subr.mxu0 0.0
        %5506 = vmatpush1.msra.mxu0 0.0
        %5507 = vmatprep.subr.mxu0 0.0
        %5508 = vmatpush1.msra.mxu0 0.0
        %5509 = vmatprep.subr.mxu0 0.0
        %5510 = vmatpush1.msra.mxu0 0.0
        %5511 = vmatprep.subr.mxu0 0.0
        %5512 = vmatpush1.msra.mxu0 0.0
        %5513 = vmatprep.subr.mxu0 0.0
        %5514 = vmatpush1.msra.mxu0 0.0
        %5515 = vmatprep.subr.mxu0 0.0
        %5516 = vmatpush1.msra.mxu0 0.0
        %5517 = vmatprep.subr.mxu0 0.0
        %5518 = vmatpush1.msra.mxu0 0.0
        %5519 = vmatprep.subr.mxu0 0.0
        %5520 = vmatpush1.msra.mxu0 0.0
        %5521 = vmatprep.subr.mxu0 0.0
        %5522 = vmatpush1.msra.mxu0 %v4708
        %5523 = vmatprep.subr.mxu0 0.0
        %5524 = vmatpush1.msra.mxu0 %v4707
        %5525 = vmatprep.subr.mxu0 0.0
        %5526 = vmatpush1.msra.mxu0 %v4706
        %5527 = vmatprep.subr.mxu0 0.0
        %5528 = vmatpush1.msra.mxu0 %v4705
        %5529 = vmatprep.subr.mxu0 0.0
        %5530 = vmatpush2.msra.mxu0 0.0
        %5531 = vmatprep.subr.mxu0 0.0
        %5532 = vmatpush2.msra.mxu0 0.0
        %5533 = vmatprep.subr.mxu0 0.0
        %5534 = vmatpush2.msra.mxu0 0.0
        %5535 = vmatprep.subr.mxu0 0.0
        %5536 = vmatpush2.msra.mxu0 0.0
        %5537 = vmatprep.subr.mxu0 0.0
        %5538 = vmatpush2.msra.mxu0 0.0
        %5539 = vmatprep.subr.mxu0 0.0
        %5540 = vmatpush2.msra.mxu0 0.0
        %5541 = vmatprep.subr.mxu0 0.0
        %5542 = vmatpush2.msra.mxu0 0.0
        %5543 = vmatprep.subr.mxu0 0.0
        %5544 = vmatpush2.msra.mxu0 0.0
        %5545 = vmatprep.subr.mxu0 0.0
        %5546 = vmatpush2.msra.mxu0 0.0
        %5547 = vmatprep.subr.mxu0 0.0
        %5548 = vmatpush2.msra.mxu0 0.0
        %5549 = vmatprep.subr.mxu0 0.0
        %5550 = vmatpush2.msra.mxu0 0.0
        %5551 = vmatprep.subr.mxu0 0.0
        %5552 = vmatpush2.msra.mxu0 0.0
        %5553 = vmatprep.subr.mxu0 0.0
        %5554 = vmatpush2.msra.mxu0 0.0
        %5555 = vmatprep.subr.mxu0 0.0
        %5556 = vmatpush2.msra.mxu0 0.0
        %5557 = vmatprep.subr.mxu0 0.0
        %5558 = vmatpush2.msra.mxu0 0.0
        %5559 = vmatprep.subr.mxu0 0.0
        %5560 = vmatpush2.msra.mxu0 0.0
        %5561 = vmatprep.mubr.f32.mxu0 0.0
        %5562 = vmatmul.mubr.f32.gmra.mxu0 %v4795
        %v5563 = vpop.f32.mrf.mxu0
        %v5564 = vadd.f32 0.0, %v5563
        %v5565 = vpop.f32.mrf.mxu0
        %5566 = vdwg.mxu0
        %5567 = vmatprep.subr.mxu0 0.0
        %5568 = vmatpush1.msra.mxu0 0.0
        %5569 = vmatprep.subr.mxu0 0.0
        %5570 = vmatpush1.msra.mxu0 0.0
        %5571 = vmatprep.subr.mxu0 0.0
        %5572 = vmatpush1.msra.mxu0 0.0
        %5573 = vmatprep.subr.mxu0 0.0
        %5574 = vmatpush1.msra.mxu0 0.0
        %5575 = vmatprep.subr.mxu0 0.0
        %5576 = vmatpush1.msra.mxu0 0.0
        %5577 = vmatprep.subr.mxu0 0.0
        %5578 = vmatpush1.msra.mxu0 0.0
        %5579 = vmatprep.subr.mxu0 0.0
        %5580 = vmatpush1.msra.mxu0 0.0
        %5581 = vmatprep.subr.mxu0 0.0
        %5582 = vmatpush1.msra.mxu0 0.0
        %5583 = vmatprep.subr.mxu0 0.0
        %5584 = vmatpush1.msra.mxu0 0.0
        %5585 = vmatprep.subr.mxu0 0.0
        %5586 = vmatpush1.msra.mxu0 0.0
        %5587 = vmatprep.subr.mxu0 0.0
        %5588 = vmatpush1.msra.mxu0 0.0
        %5589 = vmatprep.subr.mxu0 0.0
        %5590 = vmatpush1.msra.mxu0 0.0
        %5591 = vmatprep.subr.mxu0 0.0
        %5592 = vmatpush1.msra.mxu0 %v4712
        %5593 = vmatprep.subr.mxu0 0.0
        %5594 = vmatpush1.msra.mxu0 %v4711
        %5595 = vmatprep.subr.mxu0 0.0
        %5596 = vmatpush1.msra.mxu0 %v4710
        %5597 = vmatprep.subr.mxu0 0.0
        %5598 = vmatpush1.msra.mxu0 %v4709
        %5599 = vmatprep.subr.mxu0 0.0
        %5600 = vmatpush2.msra.mxu0 0.0
        %5601 = vmatprep.subr.mxu0 0.0
        %5602 = vmatpush2.msra.mxu0 0.0
        %5603 = vmatprep.subr.mxu0 0.0
        %5604 = vmatpush2.msra.mxu0 0.0
        %5605 = vmatprep.subr.mxu0 0.0
        %5606 = vmatpush2.msra.mxu0 0.0
        %5607 = vmatprep.subr.mxu0 0.0
        %5608 = vmatpush2.msra.mxu0 0.0
        %5609 = vmatprep.subr.mxu0 0.0
        %5610 = vmatpush2.msra.mxu0 0.0
        %5611 = vmatprep.subr.mxu0 0.0
        %5612 = vmatpush2.msra.mxu0 0.0
        %5613 = vmatprep.subr.mxu0 0.0
        %5614 = vmatpush2.msra.mxu0 0.0
        %5615 = vmatprep.subr.mxu0 0.0
        %5616 = vmatpush2.msra.mxu0 0.0
        %5617 = vmatprep.subr.mxu0 0.0
        %5618 = vmatpush2.msra.mxu0 0.0
        %5619 = vmatprep.subr.mxu0 0.0
        %5620 = vmatpush2.msra.mxu0 0.0
        %5621 = vmatprep.subr.mxu0 0.0
        %5622 = vmatpush2.msra.mxu0 0.0
        %5623 = vmatprep.subr.mxu0 0.0
        %5624 = vmatpush2.msra.mxu0 0.0
        %5625 = vmatprep.subr.mxu0 0.0
        %5626 = vmatpush2.msra.mxu0 0.0
        %5627 = vmatprep.subr.mxu0 0.0
        %5628 = vmatpush2.msra.mxu0 0.0
        %5629 = vmatprep.subr.mxu0 0.0
        %5630 = vmatpush2.msra.mxu0 0.0
        %5631 = vmatprep.mubr.f32.mxu0 0.0
        %5632 = vmatmul.mubr.f32.gmra.mxu0 %v4795
        %v5633 = vpop.f32.mrf.mxu0
        %v5634 = vadd.f32 0.0, %v5633
        %v5635 = vpop.f32.mrf.mxu0
        %5636 = vdwg.mxu0
        %v5638 = vsel %vm1405, %v4864, 0
        %v5641 = vsel %vm1405, %v5144, 0
        %5643 = vmatprep.subr.mxu0 0.0
        %5644 = vmatpush1.xpose.msra.mxu0 0.0
        %5645 = vmatprep.subr.mxu0 0.0
        %5646 = vmatpush1.xpose.msra.mxu0 0.0
        %5647 = vmatprep.subr.mxu0 0.0
        %5648 = vmatpush1.xpose.msra.mxu0 0.0
        %5649 = vmatprep.subr.mxu0 0.0
        %5650 = vmatpush1.xpose.msra.mxu0 0.0
        %5651 = vmatprep.subr.mxu0 0.0
        %5652 = vmatpush1.xpose.msra.mxu0 0.0
        %5653 = vmatprep.subr.mxu0 0.0
        %5654 = vmatpush1.xpose.msra.mxu0 0.0
        %5655 = vmatprep.subr.mxu0 0.0
        %5656 = vmatpush1.xpose.msra.mxu0 0.0
        %5657 = vmatprep.subr.mxu0 0.0
        %5658 = vmatpush1.xpose.msra.mxu0 0.0
        %5659 = vmatprep.subr.mxu0 0.0
        %5660 = vmatpush1.xpose.msra.mxu0 0.0
        %5661 = vmatprep.subr.mxu0 0.0
        %5662 = vmatpush1.xpose.msra.mxu0 0.0
        %5663 = vmatprep.subr.mxu0 0.0
        %5664 = vmatpush1.xpose.msra.mxu0 0.0
        %5665 = vmatprep.subr.mxu0 0.0
        %5666 = vmatpush1.xpose.msra.mxu0 0.0
        %5667 = vmatprep.subr.mxu0 0.0
        %5668 = vmatpush1.xpose.msra.mxu0 0.0
        %5669 = vmatprep.subr.mxu0 0.0
        %5670 = vmatpush1.xpose.msra.mxu0 0.0
        %5671 = vmatprep.subr.mxu0 0.0
        %5672 = vmatpush1.xpose.msra.mxu0 0.0
        %5673 = vmatprep.subr.mxu0 0.0
        %5674 = vmatpush1.xpose.msra.mxu0 %v5641
        %5675 = vmatprep.subr.mxu0 0.0
        %5676 = vmatpush2.xpose.msra.mxu0 0.0
        %5677 = vmatprep.subr.mxu0 0.0
        %5678 = vmatpush2.xpose.msra.mxu0 0.0
        %5679 = vmatprep.subr.mxu0 0.0
        %5680 = vmatpush2.xpose.msra.mxu0 0.0
        %5681 = vmatprep.subr.mxu0 0.0
        %5682 = vmatpush2.xpose.msra.mxu0 0.0
        %5683 = vmatprep.subr.mxu0 0.0
        %5684 = vmatpush2.xpose.msra.mxu0 0.0
        %5685 = vmatprep.subr.mxu0 0.0
        %5686 = vmatpush2.xpose.msra.mxu0 0.0
        %5687 = vmatprep.subr.mxu0 0.0
        %5688 = vmatpush2.xpose.msra.mxu0 0.0
        %5689 = vmatprep.subr.mxu0 0.0
        %5690 = vmatpush2.xpose.msra.mxu0 0.0
        %5691 = vmatprep.subr.mxu0 0.0
        %5692 = vmatpush2.xpose.msra.mxu0 0.0
        %5693 = vmatprep.subr.mxu0 0.0
        %5694 = vmatpush2.xpose.msra.mxu0 0.0
        %5695 = vmatprep.subr.mxu0 0.0
        %5696 = vmatpush2.xpose.msra.mxu0 0.0
        %5697 = vmatprep.subr.mxu0 0.0
        %5698 = vmatpush2.xpose.msra.mxu0 0.0
        %5699 = vmatprep.subr.mxu0 0.0
        %5700 = vmatpush2.xpose.msra.mxu0 0.0
        %5701 = vmatprep.subr.mxu0 0.0
        %5702 = vmatpush2.xpose.msra.mxu0 0.0
        %5703 = vmatprep.subr.mxu0 0.0
        %5704 = vmatpush2.xpose.msra.mxu0 0.0
        %5705 = vmatprep.subr.mxu0 0.0
        %5706 = vmatpush2.xpose.msra.mxu0 0.0
        %5707 = vmatprep.mubr.f32.mxu0 0.0
        %5708 = vmatmul.mubr.f32.gmra.mxu0 %v5638
        %v5709 = vpop.f32.mrf.mxu0
        %v5710 = vadd.f32 0.0, %v5709
        %v5711 = vpop.f32.mrf.mxu0
        %5712 = vdwg.mxu0
        %v5714 = vsel %vm1405, %v4934, 0
        %v5717 = vsel %vm1405, %v5214, 0
        %5719 = vmatprep.subr.mxu0 0.0
        %5720 = vmatpush1.xpose.msra.mxu0 0.0
        %5721 = vmatprep.subr.mxu0 0.0
        %5722 = vmatpush1.xpose.msra.mxu0 0.0
        %5723 = vmatprep.subr.mxu0 0.0
        %5724 = vmatpush1.xpose.msra.mxu0 0.0
        %5725 = vmatprep.subr.mxu0 0.0
        %5726 = vmatpush1.xpose.msra.mxu0 0.0
        %5727 = vmatprep.subr.mxu0 0.0
        %5728 = vmatpush1.xpose.msra.mxu0 0.0
        %5729 = vmatprep.subr.mxu0 0.0
        %5730 = vmatpush1.xpose.msra.mxu0 0.0
        %5731 = vmatprep.subr.mxu0 0.0
        %5732 = vmatpush1.xpose.msra.mxu0 0.0
        %5733 = vmatprep.subr.mxu0 0.0
        %5734 = vmatpush1.xpose.msra.mxu0 0.0
        %5735 = vmatprep.subr.mxu0 0.0
        %5736 = vmatpush1.xpose.msra.mxu0 0.0
        %5737 = vmatprep.subr.mxu0 0.0
        %5738 = vmatpush1.xpose.msra.mxu0 0.0
        %5739 = vmatprep.subr.mxu0 0.0
        %5740 = vmatpush1.xpose.msra.mxu0 0.0
        %5741 = vmatprep.subr.mxu0 0.0
        %5742 = vmatpush1.xpose.msra.mxu0 0.0
        %5743 = vmatprep.subr.mxu0 0.0
        %5744 = vmatpush1.xpose.msra.mxu0 0.0
        %5745 = vmatprep.subr.mxu0 0.0
        %5746 = vmatpush1.xpose.msra.mxu0 0.0
        %5747 = vmatprep.subr.mxu0 0.0
        %5748 = vmatpush1.xpose.msra.mxu0 0.0
        %5749 = vmatprep.subr.mxu0 0.0
        %5750 = vmatpush1.xpose.msra.mxu0 %v5717
        %5751 = vmatprep.subr.mxu0 0.0
        %5752 = vmatpush2.xpose.msra.mxu0 0.0
        %5753 = vmatprep.subr.mxu0 0.0
        %5754 = vmatpush2.xpose.msra.mxu0 0.0
        %5755 = vmatprep.subr.mxu0 0.0
        %5756 = vmatpush2.xpose.msra.mxu0 0.0
        %5757 = vmatprep.subr.mxu0 0.0
        %5758 = vmatpush2.xpose.msra.mxu0 0.0
        %5759 = vmatprep.subr.mxu0 0.0
        %5760 = vmatpush2.xpose.msra.mxu0 0.0
        %5761 = vmatprep.subr.mxu0 0.0
        %5762 = vmatpush2.xpose.msra.mxu0 0.0
        %5763 = vmatprep.subr.mxu0 0.0
        %5764 = vmatpush2.xpose.msra.mxu0 0.0
        %5765 = vmatprep.subr.mxu0 0.0
        %5766 = vmatpush2.xpose.msra.mxu0 0.0
        %5767 = vmatprep.subr.mxu0 0.0
        %5768 = vmatpush2.xpose.msra.mxu0 0.0
        %5769 = vmatprep.subr.mxu0 0.0
        %5770 = vmatpush2.xpose.msra.mxu0 0.0
        %5771 = vmatprep.subr.mxu0 0.0
        %5772 = vmatpush2.xpose.msra.mxu0 0.0
        %5773 = vmatprep.subr.mxu0 0.0
        %5774 = vmatpush2.xpose.msra.mxu0 0.0
        %5775 = vmatprep.subr.mxu0 0.0
        %5776 = vmatpush2.xpose.msra.mxu0 0.0
        %5777 = vmatprep.subr.mxu0 0.0
        %5778 = vmatpush2.xpose.msra.mxu0 0.0
        %5779 = vmatprep.subr.mxu0 0.0
        %5780 = vmatpush2.xpose.msra.mxu0 0.0
        %5781 = vmatprep.subr.mxu0 0.0
        %5782 = vmatpush2.xpose.msra.mxu0 0.0
        %5783 = vmatprep.mubr.f32.mxu0 0.0
        %5784 = vmatmul.mubr.f32.gmra.mxu0 %v5714
        %v5785 = vpop.f32.mrf.mxu0
        %v5786 = vadd.f32 0.0, %v5785
        %v5787 = vpop.f32.mrf.mxu0
        %5788 = vdwg.mxu0
        %v5790 = vsel %vm1405, %v5004, 0
        %v5793 = vsel %vm1405, %v5284, 0
        %5795 = vmatprep.subr.mxu0 0.0
        %5796 = vmatpush1.xpose.msra.mxu0 0.0
        %5797 = vmatprep.subr.mxu0 0.0
        %5798 = vmatpush1.xpose.msra.mxu0 0.0
        %5799 = vmatprep.subr.mxu0 0.0
        %5800 = vmatpush1.xpose.msra.mxu0 0.0
        %5801 = vmatprep.subr.mxu0 0.0
        %5802 = vmatpush1.xpose.msra.mxu0 0.0
        %5803 = vmatprep.subr.mxu0 0.0
        %5804 = vmatpush1.xpose.msra.mxu0 0.0
        %5805 = vmatprep.subr.mxu0 0.0
        %5806 = vmatpush1.xpose.msra.mxu0 0.0
        %5807 = vmatprep.subr.mxu0 0.0
        %5808 = vmatpush1.xpose.msra.mxu0 0.0
        %5809 = vmatprep.subr.mxu0 0.0
        %5810 = vmatpush1.xpose.msra.mxu0 0.0
        %5811 = vmatprep.subr.mxu0 0.0
        %5812 = vmatpush1.xpose.msra.mxu0 0.0
        %5813 = vmatprep.subr.mxu0 0.0
        %5814 = vmatpush1.xpose.msra.mxu0 0.0
        %5815 = vmatprep.subr.mxu0 0.0
        %5816 = vmatpush1.xpose.msra.mxu0 0.0
        %5817 = vmatprep.subr.mxu0 0.0
        %5818 = vmatpush1.xpose.msra.mxu0 0.0
        %5819 = vmatprep.subr.mxu0 0.0
        %5820 = vmatpush1.xpose.msra.mxu0 0.0
        %5821 = vmatprep.subr.mxu0 0.0
        %5822 = vmatpush1.xpose.msra.mxu0 0.0
        %5823 = vmatprep.subr.mxu0 0.0
        %5824 = vmatpush1.xpose.msra.mxu0 0.0
        %5825 = vmatprep.subr.mxu0 0.0
        %5826 = vmatpush1.xpose.msra.mxu0 %v5793
        %5827 = vmatprep.subr.mxu0 0.0
        %5828 = vmatpush2.xpose.msra.mxu0 0.0
        %5829 = vmatprep.subr.mxu0 0.0
        %5830 = vmatpush2.xpose.msra.mxu0 0.0
        %5831 = vmatprep.subr.mxu0 0.0
        %5832 = vmatpush2.xpose.msra.mxu0 0.0
        %5833 = vmatprep.subr.mxu0 0.0
        %5834 = vmatpush2.xpose.msra.mxu0 0.0
        %5835 = vmatprep.subr.mxu0 0.0
        %5836 = vmatpush2.xpose.msra.mxu0 0.0
        %5837 = vmatprep.subr.mxu0 0.0
        %5838 = vmatpush2.xpose.msra.mxu0 0.0
        %5839 = vmatprep.subr.mxu0 0.0
        %5840 = vmatpush2.xpose.msra.mxu0 0.0
        %5841 = vmatprep.subr.mxu0 0.0
        %5842 = vmatpush2.xpose.msra.mxu0 0.0
        %5843 = vmatprep.subr.mxu0 0.0
        %5844 = vmatpush2.xpose.msra.mxu0 0.0
        %5845 = vmatprep.subr.mxu0 0.0
        %5846 = vmatpush2.xpose.msra.mxu0 0.0
        %5847 = vmatprep.subr.mxu0 0.0
        %5848 = vmatpush2.xpose.msra.mxu0 0.0
        %5849 = vmatprep.subr.mxu0 0.0
        %5850 = vmatpush2.xpose.msra.mxu0 0.0
        %5851 = vmatprep.subr.mxu0 0.0
        %5852 = vmatpush2.xpose.msra.mxu0 0.0
        %5853 = vmatprep.subr.mxu0 0.0
        %5854 = vmatpush2.xpose.msra.mxu0 0.0
        %5855 = vmatprep.subr.mxu0 0.0
        %5856 = vmatpush2.xpose.msra.mxu0 0.0
        %5857 = vmatprep.subr.mxu0 0.0
        %5858 = vmatpush2.xpose.msra.mxu0 0.0
        %5859 = vmatprep.mubr.f32.mxu0 0.0
        %5860 = vmatmul.mubr.f32.gmra.mxu0 %v5790
        %v5861 = vpop.f32.mrf.mxu0
        %v5862 = vadd.f32 0.0, %v5861
        %v5863 = vpop.f32.mrf.mxu0
        %5864 = vdwg.mxu0
        %v5866 = vsel %vm1405, %v5074, 0
        %v5869 = vsel %vm1405, %v5354, 0
        %5871 = vmatprep.subr.mxu0 0.0
        %5872 = vmatpush1.xpose.msra.mxu0 0.0
        %5873 = vmatprep.subr.mxu0 0.0
        %5874 = vmatpush1.xpose.msra.mxu0 0.0
        %5875 = vmatprep.subr.mxu0 0.0
        %5876 = vmatpush1.xpose.msra.mxu0 0.0
        %5877 = vmatprep.subr.mxu0 0.0
        %5878 = vmatpush1.xpose.msra.mxu0 0.0
        %5879 = vmatprep.subr.mxu0 0.0
        %5880 = vmatpush1.xpose.msra.mxu0 0.0
        %5881 = vmatprep.subr.mxu0 0.0
        %5882 = vmatpush1.xpose.msra.mxu0 0.0
        %5883 = vmatprep.subr.mxu0 0.0
        %5884 = vmatpush1.xpose.msra.mxu0 0.0
        %5885 = vmatprep.subr.mxu0 0.0
        %5886 = vmatpush1.xpose.msra.mxu0 0.0
        %5887 = vmatprep.subr.mxu0 0.0
        %5888 = vmatpush1.xpose.msra.mxu0 0.0
        %5889 = vmatprep.subr.mxu0 0.0
        %5890 = vmatpush1.xpose.msra.mxu0 0.0
        %5891 = vmatprep.subr.mxu0 0.0
        %5892 = vmatpush1.xpose.msra.mxu0 0.0
        %5893 = vmatprep.subr.mxu0 0.0
        %5894 = vmatpush1.xpose.msra.mxu0 0.0
        %5895 = vmatprep.subr.mxu0 0.0
        %5896 = vmatpush1.xpose.msra.mxu0 0.0
        %5897 = vmatprep.subr.mxu0 0.0
        %5898 = vmatpush1.xpose.msra.mxu0 0.0
        %5899 = vmatprep.subr.mxu0 0.0
        %5900 = vmatpush1.xpose.msra.mxu0 0.0
        %5901 = vmatprep.subr.mxu0 0.0
        %5902 = vmatpush1.xpose.msra.mxu0 %v5869
        %5903 = vmatprep.subr.mxu0 0.0
        %5904 = vmatpush2.xpose.msra.mxu0 0.0
        %5905 = vmatprep.subr.mxu0 0.0
        %5906 = vmatpush2.xpose.msra.mxu0 0.0
        %5907 = vmatprep.subr.mxu0 0.0
        %5908 = vmatpush2.xpose.msra.mxu0 0.0
        %5909 = vmatprep.subr.mxu0 0.0
        %5910 = vmatpush2.xpose.msra.mxu0 0.0
        %5911 = vmatprep.subr.mxu0 0.0
        %5912 = vmatpush2.xpose.msra.mxu0 0.0
        %5913 = vmatprep.subr.mxu0 0.0
        %5914 = vmatpush2.xpose.msra.mxu0 0.0
        %5915 = vmatprep.subr.mxu0 0.0
        %5916 = vmatpush2.xpose.msra.mxu0 0.0
        %5917 = vmatprep.subr.mxu0 0.0
        %5918 = vmatpush2.xpose.msra.mxu0 0.0
        %5919 = vmatprep.subr.mxu0 0.0
        %5920 = vmatpush2.xpose.msra.mxu0 0.0
        %5921 = vmatprep.subr.mxu0 0.0
        %5922 = vmatpush2.xpose.msra.mxu0 0.0
        %5923 = vmatprep.subr.mxu0 0.0
        %5924 = vmatpush2.xpose.msra.mxu0 0.0
        %5925 = vmatprep.subr.mxu0 0.0
        %5926 = vmatpush2.xpose.msra.mxu0 0.0
        %5927 = vmatprep.subr.mxu0 0.0
        %5928 = vmatpush2.xpose.msra.mxu0 0.0
        %5929 = vmatprep.subr.mxu0 0.0
        %5930 = vmatpush2.xpose.msra.mxu0 0.0
        %5931 = vmatprep.subr.mxu0 0.0
        %5932 = vmatpush2.xpose.msra.mxu0 0.0
        %5933 = vmatprep.subr.mxu0 0.0
        %5934 = vmatpush2.xpose.msra.mxu0 0.0
        %5935 = vmatprep.mubr.f32.mxu0 0.0
        %5936 = vmatmul.mubr.f32.gmra.mxu0 %v5866
        %v5937 = vpop.f32.mrf.mxu0
        %v5938 = vadd.f32 0.0, %v5937
        %v5939 = vpop.f32.mrf.mxu0
        %5940 = vdwg.mxu0
        %v5941 = vsel %vm1710, %v5710, -inf
        %5942 = vmax.xlane.f32.xlu0 %v5941
        %v5943 = vpop.xlane.xlu0 %5942
        %v5944 = vsel %vm1710, %v5786, -inf
        %5945 = vmax.xlane.f32.xlu0 %v5944
        %v5946 = vpop.xlane.xlu0 %5945
        %v5947 = vsel %vm1710, %v5862, -inf
        %5948 = vmax.xlane.f32.xlu0 %v5947
        %v5949 = vpop.xlane.xlu0 %5948
        %v5950 = vsel %vm1710, %v5938, -inf
        %5951 = vmax.xlane.f32.xlu0 %v5950
        %v5952 = vpop.xlane.xlu0 %5951
        %v5953 = vsub.f32 %v5710, %v5943
        %v5954 = vsub.f32 %v5786, %v5946
        %v5955 = vsub.f32 %v5862, %v5949
        %v5956 = vsub.f32 %v5938, %v5952
        %v5957 = vmul.f32 %v5953, 1.442695
        %v5958 = vpow.pop %v5957
        %v5959 = vmul.f32 %v5954, 1.442695
        %v5960 = vpow.pop %v5959
        %v5961 = vmul.f32 %v5955, 1.442695
        %v5962 = vpow.pop %v5961
        %v5963 = vmul.f32 %v5956, 1.442695
        %v5964 = vpow.pop %v5963
        %v5965 = vsel %vm1710, %v5958, 0.0
        %5966 = vadd.xlane.f32.xlu0 %v5965
        %v5967 = vpop.xlane.xlu0 %5966
        %v5968 = vsel %vm1710, %v5960, 0.0
        %5969 = vadd.xlane.f32.xlu0 %v5968
        %v5970 = vpop.xlane.xlu0 %5969
        %v5971 = vsel %vm1710, %v5962, 0.0
        %5972 = vadd.xlane.f32.xlu0 %v5971
        %v5973 = vpop.xlane.xlu0 %5972
        %v5974 = vsel %vm1710, %v5964, 0.0
        %5975 = vadd.xlane.f32.xlu0 %v5974
        %v5976 = vpop.xlane.xlu0 %5975
        %v5977 = vrcp.pop %v5967
        %v5978 = vrcp.pop %v5970
        %v5979 = vrcp.pop %v5973
        %v5980 = vrcp.pop %v5976
        %v5981 = vmul.f32 %v5958, %v5977
        %v5982 = vmul.f32 %v5960, %v5978
        %v5983 = vmul.f32 %v5962, %v5979
        %v5984 = vmul.f32 %v5964, %v5980
        %v5986 = vsel %vm1755, %v5981, 0
        %v5989 = vsel %vm1759, %v5424, 0
        %5991 = vmatprep.subr.mxu0 0.0
        %5992 = vmatpush1.msra.mxu0 0.0
        %5993 = vmatprep.subr.mxu0 0.0
        %5994 = vmatpush1.msra.mxu0 0.0
        %5995 = vmatprep.subr.mxu0 0.0
        %5996 = vmatpush1.msra.mxu0 0.0
        %5997 = vmatprep.subr.mxu0 0.0
        %5998 = vmatpush1.msra.mxu0 0.0
        %5999 = vmatprep.subr.mxu0 0.0
        %6000 = vmatpush1.msra.mxu0 0.0
        %6001 = vmatprep.subr.mxu0 0.0
        %6002 = vmatpush1.msra.mxu0 0.0
        %6003 = vmatprep.subr.mxu0 0.0
        %6004 = vmatpush1.msra.mxu0 0.0
        %6005 = vmatprep.subr.mxu0 0.0
        %6006 = vmatpush1.msra.mxu0 0.0
        %6007 = vmatprep.subr.mxu0 0.0
        %6008 = vmatpush1.msra.mxu0 0.0
        %6009 = vmatprep.subr.mxu0 0.0
        %6010 = vmatpush1.msra.mxu0 0.0
        %6011 = vmatprep.subr.mxu0 0.0
        %6012 = vmatpush1.msra.mxu0 0.0
        %6013 = vmatprep.subr.mxu0 0.0
        %6014 = vmatpush1.msra.mxu0 0.0
        %6015 = vmatprep.subr.mxu0 0.0
        %6016 = vmatpush1.msra.mxu0 0.0
        %6017 = vmatprep.subr.mxu0 0.0
        %6018 = vmatpush1.msra.mxu0 0.0
        %6019 = vmatprep.subr.mxu0 0.0
        %6020 = vmatpush1.msra.mxu0 0.0
        %6021 = vmatprep.subr.mxu0 0.0
        %6022 = vmatpush1.msra.mxu0 %v5989
        %6023 = vmatprep.subr.mxu0 0.0
        %6024 = vmatpush2.msra.mxu0 0.0
        %6025 = vmatprep.subr.mxu0 0.0
        %6026 = vmatpush2.msra.mxu0 0.0
        %6027 = vmatprep.subr.mxu0 0.0
        %6028 = vmatpush2.msra.mxu0 0.0
        %6029 = vmatprep.subr.mxu0 0.0
        %6030 = vmatpush2.msra.mxu0 0.0
        %6031 = vmatprep.subr.mxu0 0.0
        %6032 = vmatpush2.msra.mxu0 0.0
        %6033 = vmatprep.subr.mxu0 0.0
        %6034 = vmatpush2.msra.mxu0 0.0
        %6035 = vmatprep.subr.mxu0 0.0
        %6036 = vmatpush2.msra.mxu0 0.0
        %6037 = vmatprep.subr.mxu0 0.0
        %6038 = vmatpush2.msra.mxu0 0.0
        %6039 = vmatprep.subr.mxu0 0.0
        %6040 = vmatpush2.msra.mxu0 0.0
        %6041 = vmatprep.subr.mxu0 0.0
        %6042 = vmatpush2.msra.mxu0 0.0
        %6043 = vmatprep.subr.mxu0 0.0
        %6044 = vmatpush2.msra.mxu0 0.0
        %6045 = vmatprep.subr.mxu0 0.0
        %6046 = vmatpush2.msra.mxu0 0.0
        %6047 = vmatprep.subr.mxu0 0.0
        %6048 = vmatpush2.msra.mxu0 0.0
        %6049 = vmatprep.subr.mxu0 0.0
        %6050 = vmatpush2.msra.mxu0 0.0
        %6051 = vmatprep.subr.mxu0 0.0
        %6052 = vmatpush2.msra.mxu0 0.0
        %6053 = vmatprep.subr.mxu0 0.0
        %6054 = vmatpush2.msra.mxu0 0.0
        %6055 = vmatprep.mubr.f32.mxu0 0.0
        %6056 = vmatmul.mubr.f32.gmra.mxu0 %v5986
        %v6057 = vpop.f32.mrf.mxu0
        %v6058 = vadd.f32 0.0, %v6057
        %v6059 = vpop.f32.mrf.mxu0
        %6060 = vdwg.mxu0
        %v6062 = vsel %vm1755, %v5982, 0
        %v6065 = vsel %vm1759, %v5494, 0
        %6067 = vmatprep.subr.mxu0 0.0
        %6068 = vmatpush1.msra.mxu0 0.0
        %6069 = vmatprep.subr.mxu0 0.0
        %6070 = vmatpush1.msra.mxu0 0.0
        %6071 = vmatprep.subr.mxu0 0.0
        %6072 = vmatpush1.msra.mxu0 0.0
        %6073 = vmatprep.subr.mxu0 0.0
        %6074 = vmatpush1.msra.mxu0 0.0
        %6075 = vmatprep.subr.mxu0 0.0
        %6076 = vmatpush1.msra.mxu0 0.0
        %6077 = vmatprep.subr.mxu0 0.0
        %6078 = vmatpush1.msra.mxu0 0.0
        %6079 = vmatprep.subr.mxu0 0.0
        %6080 = vmatpush1.msra.mxu0 0.0
        %6081 = vmatprep.subr.mxu0 0.0
        %6082 = vmatpush1.msra.mxu0 0.0
        %6083 = vmatprep.subr.mxu0 0.0
        %6084 = vmatpush1.msra.mxu0 0.0
        %6085 = vmatprep.subr.mxu0 0.0
        %6086 = vmatpush1.msra.mxu0 0.0
        %6087 = vmatprep.subr.mxu0 0.0
        %6088 = vmatpush1.msra.mxu0 0.0
        %6089 = vmatprep.subr.mxu0 0.0
        %6090 = vmatpush1.msra.mxu0 0.0
        %6091 = vmatprep.subr.mxu0 0.0
        %6092 = vmatpush1.msra.mxu0 0.0
        %6093 = vmatprep.subr.mxu0 0.0
        %6094 = vmatpush1.msra.mxu0 0.0
        %6095 = vmatprep.subr.mxu0 0.0
        %6096 = vmatpush1.msra.mxu0 0.0
        %6097 = vmatprep.subr.mxu0 0.0
        %6098 = vmatpush1.msra.mxu0 %v6065
        %6099 = vmatprep.subr.mxu0 0.0
        %6100 = vmatpush2.msra.mxu0 0.0
        %6101 = vmatprep.subr.mxu0 0.0
        %6102 = vmatpush2.msra.mxu0 0.0
        %6103 = vmatprep.subr.mxu0 0.0
        %6104 = vmatpush2.msra.mxu0 0.0
        %6105 = vmatprep.subr.mxu0 0.0
        %6106 = vmatpush2.msra.mxu0 0.0
        %6107 = vmatprep.subr.mxu0 0.0
        %6108 = vmatpush2.msra.mxu0 0.0
        %6109 = vmatprep.subr.mxu0 0.0
        %6110 = vmatpush2.msra.mxu0 0.0
        %6111 = vmatprep.subr.mxu0 0.0
        %6112 = vmatpush2.msra.mxu0 0.0
        %6113 = vmatprep.subr.mxu0 0.0
        %6114 = vmatpush2.msra.mxu0 0.0
        %6115 = vmatprep.subr.mxu0 0.0
        %6116 = vmatpush2.msra.mxu0 0.0
        %6117 = vmatprep.subr.mxu0 0.0
        %6118 = vmatpush2.msra.mxu0 0.0
        %6119 = vmatprep.subr.mxu0 0.0
        %6120 = vmatpush2.msra.mxu0 0.0
        %6121 = vmatprep.subr.mxu0 0.0
        %6122 = vmatpush2.msra.mxu0 0.0
        %6123 = vmatprep.subr.mxu0 0.0
        %6124 = vmatpush2.msra.mxu0 0.0
        %6125 = vmatprep.subr.mxu0 0.0
        %6126 = vmatpush2.msra.mxu0 0.0
        %6127 = vmatprep.subr.mxu0 0.0
        %6128 = vmatpush2.msra.mxu0 0.0
        %6129 = vmatprep.subr.mxu0 0.0
        %6130 = vmatpush2.msra.mxu0 0.0
        %6131 = vmatprep.mubr.f32.mxu0 0.0
        %6132 = vmatmul.mubr.f32.gmra.mxu0 %v6062
        %v6133 = vpop.f32.mrf.mxu0
        %v6134 = vadd.f32 0.0, %v6133
        %v6135 = vpop.f32.mrf.mxu0
        %6136 = vdwg.mxu0
        %v6138 = vsel %vm1755, %v5983, 0
        %v6141 = vsel %vm1759, %v5564, 0
        %6143 = vmatprep.subr.mxu0 0.0
        %6144 = vmatpush1.msra.mxu0 0.0
        %6145 = vmatprep.subr.mxu0 0.0
        %6146 = vmatpush1.msra.mxu0 0.0
        %6147 = vmatprep.subr.mxu0 0.0
        %6148 = vmatpush1.msra.mxu0 0.0
        %6149 = vmatprep.subr.mxu0 0.0
        %6150 = vmatpush1.msra.mxu0 0.0
        %6151 = vmatprep.subr.mxu0 0.0
        %6152 = vmatpush1.msra.mxu0 0.0
        %6153 = vmatprep.subr.mxu0 0.0
        %6154 = vmatpush1.msra.mxu0 0.0
        %6155 = vmatprep.subr.mxu0 0.0
        %6156 = vmatpush1.msra.mxu0 0.0
        %6157 = vmatprep.subr.mxu0 0.0
        %6158 = vmatpush1.msra.mxu0 0.0
        %6159 = vmatprep.subr.mxu0 0.0
        %6160 = vmatpush1.msra.mxu0 0.0
        %6161 = vmatprep.subr.mxu0 0.0
        %6162 = vmatpush1.msra.mxu0 0.0
        %6163 = vmatprep.subr.mxu0 0.0
        %6164 = vmatpush1.msra.mxu0 0.0
        %6165 = vmatprep.subr.mxu0 0.0
        %6166 = vmatpush1.msra.mxu0 0.0
        %6167 = vmatprep.subr.mxu0 0.0
        %6168 = vmatpush1.msra.mxu0 0.0
        %6169 = vmatprep.subr.mxu0 0.0
        %6170 = vmatpush1.msra.mxu0 0.0
        %6171 = vmatprep.subr.mxu0 0.0
        %6172 = vmatpush1.msra.mxu0 0.0
        %6173 = vmatprep.subr.mxu0 0.0
        %6174 = vmatpush1.msra.mxu0 %v6141
        %6175 = vmatprep.subr.mxu0 0.0
        %6176 = vmatpush2.msra.mxu0 0.0
        %6177 = vmatprep.subr.mxu0 0.0
        %6178 = vmatpush2.msra.mxu0 0.0
        %6179 = vmatprep.subr.mxu0 0.0
        %6180 = vmatpush2.msra.mxu0 0.0
        %6181 = vmatprep.subr.mxu0 0.0
        %6182 = vmatpush2.msra.mxu0 0.0
        %6183 = vmatprep.subr.mxu0 0.0
        %6184 = vmatpush2.msra.mxu0 0.0
        %6185 = vmatprep.subr.mxu0 0.0
        %6186 = vmatpush2.msra.mxu0 0.0
        %6187 = vmatprep.subr.mxu0 0.0
        %6188 = vmatpush2.msra.mxu0 0.0
        %6189 = vmatprep.subr.mxu0 0.0
        %6190 = vmatpush2.msra.mxu0 0.0
        %6191 = vmatprep.subr.mxu0 0.0
        %6192 = vmatpush2.msra.mxu0 0.0
        %6193 = vmatprep.subr.mxu0 0.0
        %6194 = vmatpush2.msra.mxu0 0.0
        %6195 = vmatprep.subr.mxu0 0.0
        %6196 = vmatpush2.msra.mxu0 0.0
        %6197 = vmatprep.subr.mxu0 0.0
        %6198 = vmatpush2.msra.mxu0 0.0
        %6199 = vmatprep.subr.mxu0 0.0
        %6200 = vmatpush2.msra.mxu0 0.0
        %6201 = vmatprep.subr.mxu0 0.0
        %6202 = vmatpush2.msra.mxu0 0.0
        %6203 = vmatprep.subr.mxu0 0.0
        %6204 = vmatpush2.msra.mxu0 0.0
        %6205 = vmatprep.subr.mxu0 0.0
        %6206 = vmatpush2.msra.mxu0 0.0
        %6207 = vmatprep.mubr.f32.mxu0 0.0
        %6208 = vmatmul.mubr.f32.gmra.mxu0 %v6138
        %v6209 = vpop.f32.mrf.mxu0
        %v6210 = vadd.f32 0.0, %v6209
        %v6211 = vpop.f32.mrf.mxu0
        %6212 = vdwg.mxu0
        %v6214 = vsel %vm1755, %v5984, 0
        %v6217 = vsel %vm1759, %v5634, 0
        %6219 = vmatprep.subr.mxu0 0.0
        %6220 = vmatpush1.msra.mxu0 0.0
        %6221 = vmatprep.subr.mxu0 0.0
        %6222 = vmatpush1.msra.mxu0 0.0
        %6223 = vmatprep.subr.mxu0 0.0
        %6224 = vmatpush1.msra.mxu0 0.0
        %6225 = vmatprep.subr.mxu0 0.0
        %6226 = vmatpush1.msra.mxu0 0.0
        %6227 = vmatprep.subr.mxu0 0.0
        %6228 = vmatpush1.msra.mxu0 0.0
        %6229 = vmatprep.subr.mxu0 0.0
        %6230 = vmatpush1.msra.mxu0 0.0
        %6231 = vmatprep.subr.mxu0 0.0
        %6232 = vmatpush1.msra.mxu0 0.0
        %6233 = vmatprep.subr.mxu0 0.0
        %6234 = vmatpush1.msra.mxu0 0.0
        %6235 = vmatprep.subr.mxu0 0.0
        %6236 = vmatpush1.msra.mxu0 0.0
        %6237 = vmatprep.subr.mxu0 0.0
        %6238 = vmatpush1.msra.mxu0 0.0
        %6239 = vmatprep.subr.mxu0 0.0
        %6240 = vmatpush1.msra.mxu0 0.0
        %6241 = vmatprep.subr.mxu0 0.0
        %6242 = vmatpush1.msra.mxu0 0.0
        %6243 = vmatprep.subr.mxu0 0.0
        %6244 = vmatpush1.msra.mxu0 0.0
        %6245 = vmatprep.subr.mxu0 0.0
        %6246 = vmatpush1.msra.mxu0 0.0
        %6247 = vmatprep.subr.mxu0 0.0
        %6248 = vmatpush1.msra.mxu0 0.0
        %6249 = vmatprep.subr.mxu0 0.0
        %6250 = vmatpush1.msra.mxu0 %v6217
        %6251 = vmatprep.subr.mxu0 0.0
        %6252 = vmatpush2.msra.mxu0 0.0
        %6253 = vmatprep.subr.mxu0 0.0
        %6254 = vmatpush2.msra.mxu0 0.0
        %6255 = vmatprep.subr.mxu0 0.0
        %6256 = vmatpush2.msra.mxu0 0.0
        %6257 = vmatprep.subr.mxu0 0.0
        %6258 = vmatpush2.msra.mxu0 0.0
        %6259 = vmatprep.subr.mxu0 0.0
        %6260 = vmatpush2.msra.mxu0 0.0
        %6261 = vmatprep.subr.mxu0 0.0
        %6262 = vmatpush2.msra.mxu0 0.0
        %6263 = vmatprep.subr.mxu0 0.0
        %6264 = vmatpush2.msra.mxu0 0.0
        %6265 = vmatprep.subr.mxu0 0.0
        %6266 = vmatpush2.msra.mxu0 0.0
        %6267 = vmatprep.subr.mxu0 0.0
        %6268 = vmatpush2.msra.mxu0 0.0
        %6269 = vmatprep.subr.mxu0 0.0
        %6270 = vmatpush2.msra.mxu0 0.0
        %6271 = vmatprep.subr.mxu0 0.0
        %6272 = vmatpush2.msra.mxu0 0.0
        %6273 = vmatprep.subr.mxu0 0.0
        %6274 = vmatpush2.msra.mxu0 0.0
        %6275 = vmatprep.subr.mxu0 0.0
        %6276 = vmatpush2.msra.mxu0 0.0
        %6277 = vmatprep.subr.mxu0 0.0
        %6278 = vmatpush2.msra.mxu0 0.0
        %6279 = vmatprep.subr.mxu0 0.0
        %6280 = vmatpush2.msra.mxu0 0.0
        %6281 = vmatprep.subr.mxu0 0.0
        %6282 = vmatpush2.msra.mxu0 0.0
        %6283 = vmatprep.mubr.f32.mxu0 0.0
        %6284 = vmatmul.mubr.f32.gmra.mxu0 %v6214
        %v6285 = vpop.f32.mrf.mxu0
        %v6286 = vadd.f32 0.0, %v6285
        %v6287 = vpop.f32.mrf.mxu0
        %6288 = vdwg.mxu0
        %v6290 = vsel %vm1405, %v6058, 0
        %6292 = vmatprep.subr.mxu0 0.0
        %6293 = vmatpush1.msra.mxu0 0.0
        %6294 = vmatprep.subr.mxu0 0.0
        %6295 = vmatpush1.msra.mxu0 0.0
        %6296 = vmatprep.subr.mxu0 0.0
        %6297 = vmatpush1.msra.mxu0 0.0
        %6298 = vmatprep.subr.mxu0 0.0
        %6299 = vmatpush1.msra.mxu0 0.0
        %6300 = vmatprep.subr.mxu0 0.0
        %6301 = vmatpush1.msra.mxu0 0.0
        %6302 = vmatprep.subr.mxu0 0.0
        %6303 = vmatpush1.msra.mxu0 0.0
        %6304 = vmatprep.subr.mxu0 0.0
        %6305 = vmatpush1.msra.mxu0 0.0
        %6306 = vmatprep.subr.mxu0 0.0
        %6307 = vmatpush1.msra.mxu0 0.0
        %6308 = vmatprep.subr.mxu0 0.0
        %6309 = vmatpush1.msra.mxu0 0.0
        %6310 = vmatprep.subr.mxu0 0.0
        %6311 = vmatpush1.msra.mxu0 0.0
        %6312 = vmatprep.subr.mxu0 0.0
        %6313 = vmatpush1.msra.mxu0 0.0
        %6314 = vmatprep.subr.mxu0 0.0
        %6315 = vmatpush1.msra.mxu0 0.0
        %6316 = vmatprep.subr.mxu0 0.0
        %6317 = vmatpush1.msra.mxu0 0.0
        %6318 = vmatprep.subr.mxu0 0.0
        %6319 = vmatpush1.msra.mxu0 0.0
        %6320 = vmatprep.subr.mxu0 0.0
        %6321 = vmatpush1.msra.mxu0 0.0
        %6322 = vmatprep.subr.mxu0 0.0
        %6323 = vmatpush1.msra.mxu0 %v4719
        %6324 = vmatprep.subr.mxu0 0.0
        %6325 = vmatpush2.msra.mxu0 0.0
        %6326 = vmatprep.subr.mxu0 0.0
        %6327 = vmatpush2.msra.mxu0 0.0
        %6328 = vmatprep.subr.mxu0 0.0
        %6329 = vmatpush2.msra.mxu0 0.0
        %6330 = vmatprep.subr.mxu0 0.0
        %6331 = vmatpush2.msra.mxu0 0.0
        %6332 = vmatprep.subr.mxu0 0.0
        %6333 = vmatpush2.msra.mxu0 0.0
        %6334 = vmatprep.subr.mxu0 0.0
        %6335 = vmatpush2.msra.mxu0 0.0
        %6336 = vmatprep.subr.mxu0 0.0
        %6337 = vmatpush2.msra.mxu0 0.0
        %6338 = vmatprep.subr.mxu0 0.0
        %6339 = vmatpush2.msra.mxu0 0.0
        %6340 = vmatprep.subr.mxu0 0.0
        %6341 = vmatpush2.msra.mxu0 0.0
        %6342 = vmatprep.subr.mxu0 0.0
        %6343 = vmatpush2.msra.mxu0 0.0
        %6344 = vmatprep.subr.mxu0 0.0
        %6345 = vmatpush2.msra.mxu0 0.0
        %6346 = vmatprep.subr.mxu0 0.0
        %6347 = vmatpush2.msra.mxu0 0.0
        %6348 = vmatprep.subr.mxu0 0.0
        %6349 = vmatpush2.msra.mxu0 0.0
        %6350 = vmatprep.subr.mxu0 0.0
        %6351 = vmatpush2.msra.mxu0 0.0
        %6352 = vmatprep.subr.mxu0 0.0
        %6353 = vmatpush2.msra.mxu0 0.0
        %6354 = vmatprep.subr.mxu0 0.0
        %6355 = vmatpush2.msra.mxu0 0.0
        %6356 = vmatprep.mubr.f32.mxu0 0.0
        %6357 = vmatmul.mubr.f32.gmra.mxu0 %v6290
        %v6358 = vpop.f32.mrf.mxu0
        %v6359 = vadd.f32 0.0, %v6358
        %v6360 = vpop.f32.mrf.mxu0
        %6361 = vdwg.mxu0
        %v6363 = vsel %vm1405, %v6134, 0
        %6365 = vmatprep.subr.mxu0 0.0
        %6366 = vmatpush1.msra.mxu0 0.0
        %6367 = vmatprep.subr.mxu0 0.0
        %6368 = vmatpush1.msra.mxu0 0.0
        %6369 = vmatprep.subr.mxu0 0.0
        %6370 = vmatpush1.msra.mxu0 0.0
        %6371 = vmatprep.subr.mxu0 0.0
        %6372 = vmatpush1.msra.mxu0 0.0
        %6373 = vmatprep.subr.mxu0 0.0
        %6374 = vmatpush1.msra.mxu0 0.0
        %6375 = vmatprep.subr.mxu0 0.0
        %6376 = vmatpush1.msra.mxu0 0.0
        %6377 = vmatprep.subr.mxu0 0.0
        %6378 = vmatpush1.msra.mxu0 0.0
        %6379 = vmatprep.subr.mxu0 0.0
        %6380 = vmatpush1.msra.mxu0 0.0
        %6381 = vmatprep.subr.mxu0 0.0
        %6382 = vmatpush1.msra.mxu0 0.0
        %6383 = vmatprep.subr.mxu0 0.0
        %6384 = vmatpush1.msra.mxu0 0.0
        %6385 = vmatprep.subr.mxu0 0.0
        %6386 = vmatpush1.msra.mxu0 0.0
        %6387 = vmatprep.subr.mxu0 0.0
        %6388 = vmatpush1.msra.mxu0 0.0
        %6389 = vmatprep.subr.mxu0 0.0
        %6390 = vmatpush1.msra.mxu0 0.0
        %6391 = vmatprep.subr.mxu0 0.0
        %6392 = vmatpush1.msra.mxu0 0.0
        %6393 = vmatprep.subr.mxu0 0.0
        %6394 = vmatpush1.msra.mxu0 0.0
        %6395 = vmatprep.subr.mxu0 0.0
        %6396 = vmatpush1.msra.mxu0 %v4720
        %6397 = vmatprep.subr.mxu0 0.0
        %6398 = vmatpush2.msra.mxu0 0.0
        %6399 = vmatprep.subr.mxu0 0.0
        %6400 = vmatpush2.msra.mxu0 0.0
        %6401 = vmatprep.subr.mxu0 0.0
        %6402 = vmatpush2.msra.mxu0 0.0
        %6403 = vmatprep.subr.mxu0 0.0
        %6404 = vmatpush2.msra.mxu0 0.0
        %6405 = vmatprep.subr.mxu0 0.0
        %6406 = vmatpush2.msra.mxu0 0.0
        %6407 = vmatprep.subr.mxu0 0.0
        %6408 = vmatpush2.msra.mxu0 0.0
        %6409 = vmatprep.subr.mxu0 0.0
        %6410 = vmatpush2.msra.mxu0 0.0
        %6411 = vmatprep.subr.mxu0 0.0
        %6412 = vmatpush2.msra.mxu0 0.0
        %6413 = vmatprep.subr.mxu0 0.0
        %6414 = vmatpush2.msra.mxu0 0.0
        %6415 = vmatprep.subr.mxu0 0.0
        %6416 = vmatpush2.msra.mxu0 0.0
        %6417 = vmatprep.subr.mxu0 0.0
        %6418 = vmatpush2.msra.mxu0 0.0
        %6419 = vmatprep.subr.mxu0 0.0
        %6420 = vmatpush2.msra.mxu0 0.0
        %6421 = vmatprep.subr.mxu0 0.0
        %6422 = vmatpush2.msra.mxu0 0.0
        %6423 = vmatprep.subr.mxu0 0.0
        %6424 = vmatpush2.msra.mxu0 0.0
        %6425 = vmatprep.subr.mxu0 0.0
        %6426 = vmatpush2.msra.mxu0 0.0
        %6427 = vmatprep.subr.mxu0 0.0
        %6428 = vmatpush2.msra.mxu0 0.0
        %6429 = vmatprep.mubr.f32.mxu0 0.0
        %6430 = vmatmul.mubr.f32.gmra.mxu0 %v6363
        %v6431 = vpop.f32.mrf.mxu0
        %v6432 = vadd.f32 0.0, %v6431
        %v6433 = vpop.f32.mrf.mxu0
        %6434 = vdwg.mxu0
        %v6436 = vsel %vm1405, %v6210, 0
        %6438 = vmatprep.subr.mxu0 0.0
        %6439 = vmatpush1.msra.mxu0 0.0
        %6440 = vmatprep.subr.mxu0 0.0
        %6441 = vmatpush1.msra.mxu0 0.0
        %6442 = vmatprep.subr.mxu0 0.0
        %6443 = vmatpush1.msra.mxu0 0.0
        %6444 = vmatprep.subr.mxu0 0.0
        %6445 = vmatpush1.msra.mxu0 0.0
        %6446 = vmatprep.subr.mxu0 0.0
        %6447 = vmatpush1.msra.mxu0 0.0
        %6448 = vmatprep.subr.mxu0 0.0
        %6449 = vmatpush1.msra.mxu0 0.0
        %6450 = vmatprep.subr.mxu0 0.0
        %6451 = vmatpush1.msra.mxu0 0.0
        %6452 = vmatprep.subr.mxu0 0.0
        %6453 = vmatpush1.msra.mxu0 0.0
        %6454 = vmatprep.subr.mxu0 0.0
        %6455 = vmatpush1.msra.mxu0 0.0
        %6456 = vmatprep.subr.mxu0 0.0
        %6457 = vmatpush1.msra.mxu0 0.0
        %6458 = vmatprep.subr.mxu0 0.0
        %6459 = vmatpush1.msra.mxu0 0.0
        %6460 = vmatprep.subr.mxu0 0.0
        %6461 = vmatpush1.msra.mxu0 0.0
        %6462 = vmatprep.subr.mxu0 0.0
        %6463 = vmatpush1.msra.mxu0 0.0
        %6464 = vmatprep.subr.mxu0 0.0
        %6465 = vmatpush1.msra.mxu0 0.0
        %6466 = vmatprep.subr.mxu0 0.0
        %6467 = vmatpush1.msra.mxu0 0.0
        %6468 = vmatprep.subr.mxu0 0.0
        %6469 = vmatpush1.msra.mxu0 %v4721
        %6470 = vmatprep.subr.mxu0 0.0
        %6471 = vmatpush2.msra.mxu0 0.0
        %6472 = vmatprep.subr.mxu0 0.0
        %6473 = vmatpush2.msra.mxu0 0.0
        %6474 = vmatprep.subr.mxu0 0.0
        %6475 = vmatpush2.msra.mxu0 0.0
        %6476 = vmatprep.subr.mxu0 0.0
        %6477 = vmatpush2.msra.mxu0 0.0
        %6478 = vmatprep.subr.mxu0 0.0
        %6479 = vmatpush2.msra.mxu0 0.0
        %6480 = vmatprep.subr.mxu0 0.0
        %6481 = vmatpush2.msra.mxu0 0.0
        %6482 = vmatprep.subr.mxu0 0.0
        %6483 = vmatpush2.msra.mxu0 0.0
        %6484 = vmatprep.subr.mxu0 0.0
        %6485 = vmatpush2.msra.mxu0 0.0
        %6486 = vmatprep.subr.mxu0 0.0
        %6487 = vmatpush2.msra.mxu0 0.0
        %6488 = vmatprep.subr.mxu0 0.0
        %6489 = vmatpush2.msra.mxu0 0.0
        %6490 = vmatprep.subr.mxu0 0.0
        %6491 = vmatpush2.msra.mxu0 0.0
        %6492 = vmatprep.subr.mxu0 0.0
        %6493 = vmatpush2.msra.mxu0 0.0
        %6494 = vmatprep.subr.mxu0 0.0
        %6495 = vmatpush2.msra.mxu0 0.0
        %6496 = vmatprep.subr.mxu0 0.0
        %6497 = vmatpush2.msra.mxu0 0.0
        %6498 = vmatprep.subr.mxu0 0.0
        %6499 = vmatpush2.msra.mxu0 0.0
        %6500 = vmatprep.subr.mxu0 0.0
        %6501 = vmatpush2.msra.mxu0 0.0
        %6502 = vmatprep.mubr.f32.mxu0 0.0
        %6503 = vmatmul.mubr.f32.gmra.mxu0 %v6436
        %v6504 = vpop.f32.mrf.mxu0
        %v6505 = vadd.f32 0.0, %v6504
        %v6506 = vpop.f32.mrf.mxu0
        %6507 = vdwg.mxu0
        %v6509 = vsel %vm1405, %v6286, 0
        %6511 = vmatprep.subr.mxu0 0.0
        %6512 = vmatpush1.msra.mxu0 0.0
        %6513 = vmatprep.subr.mxu0 0.0
        %6514 = vmatpush1.msra.mxu0 0.0
        %6515 = vmatprep.subr.mxu0 0.0
        %6516 = vmatpush1.msra.mxu0 0.0
        %6517 = vmatprep.subr.mxu0 0.0
        %6518 = vmatpush1.msra.mxu0 0.0
        %6519 = vmatprep.subr.mxu0 0.0
        %6520 = vmatpush1.msra.mxu0 0.0
        %6521 = vmatprep.subr.mxu0 0.0
        %6522 = vmatpush1.msra.mxu0 0.0
        %6523 = vmatprep.subr.mxu0 0.0
        %6524 = vmatpush1.msra.mxu0 0.0
        %6525 = vmatprep.subr.mxu0 0.0
        %6526 = vmatpush1.msra.mxu0 0.0
        %6527 = vmatprep.subr.mxu0 0.0
        %6528 = vmatpush1.msra.mxu0 0.0
        %6529 = vmatprep.subr.mxu0 0.0
        %6530 = vmatpush1.msra.mxu0 0.0
        %6531 = vmatprep.subr.mxu0 0.0
        %6532 = vmatpush1.msra.mxu0 0.0
        %6533 = vmatprep.subr.mxu0 0.0
        %6534 = vmatpush1.msra.mxu0 0.0
        %6535 = vmatprep.subr.mxu0 0.0
        %6536 = vmatpush1.msra.mxu0 0.0
        %6537 = vmatprep.subr.mxu0 0.0
        %6538 = vmatpush1.msra.mxu0 0.0
        %6539 = vmatprep.subr.mxu0 0.0
        %6540 = vmatpush1.msra.mxu0 0.0
        %6541 = vmatprep.subr.mxu0 0.0
        %6542 = vmatpush1.msra.mxu0 %v4722
        %6543 = vmatprep.subr.mxu0 0.0
        %6544 = vmatpush2.msra.mxu0 0.0
        %6545 = vmatprep.subr.mxu0 0.0
        %6546 = vmatpush2.msra.mxu0 0.0
        %6547 = vmatprep.subr.mxu0 0.0
        %6548 = vmatpush2.msra.mxu0 0.0
        %6549 = vmatprep.subr.mxu0 0.0
        %6550 = vmatpush2.msra.mxu0 0.0
        %6551 = vmatprep.subr.mxu0 0.0
        %6552 = vmatpush2.msra.mxu0 0.0
        %6553 = vmatprep.subr.mxu0 0.0
        %6554 = vmatpush2.msra.mxu0 0.0
        %6555 = vmatprep.subr.mxu0 0.0
        %6556 = vmatpush2.msra.mxu0 0.0
        %6557 = vmatprep.subr.mxu0 0.0
        %6558 = vmatpush2.msra.mxu0 0.0
        %6559 = vmatprep.subr.mxu0 0.0
        %6560 = vmatpush2.msra.mxu0 0.0
        %6561 = vmatprep.subr.mxu0 0.0
        %6562 = vmatpush2.msra.mxu0 0.0
        %6563 = vmatprep.subr.mxu0 0.0
        %6564 = vmatpush2.msra.mxu0 0.0
        %6565 = vmatprep.subr.mxu0 0.0
        %6566 = vmatpush2.msra.mxu0 0.0
        %6567 = vmatprep.subr.mxu0 0.0
        %6568 = vmatpush2.msra.mxu0 0.0
        %6569 = vmatprep.subr.mxu0 0.0
        %6570 = vmatpush2.msra.mxu0 0.0
        %6571 = vmatprep.subr.mxu0 0.0
        %6572 = vmatpush2.msra.mxu0 0.0
        %6573 = vmatprep.subr.mxu0 0.0
        %6574 = vmatpush2.msra.mxu0 0.0
        %6575 = vmatprep.mubr.f32.mxu0 0.0
        %6576 = vmatmul.mubr.f32.gmra.mxu0 %v6509
        %v6577 = vpop.f32.mrf.mxu0
        %v6578 = vadd.f32 0.0, %v6577
        %v6579 = vpop.f32.mrf.mxu0
        %6580 = vdwg.mxu0
        %v6581 = vsel %vm412, %v6359, 0.0
        %v6582 = vsel %vm412, %v6432, 0.0
        %v6583 = vadd.f32 %v6581, %v6582
        %v6584 = vsel %vm412, %v6505, 0.0
        %v6585 = vadd.f32 %v6583, %v6584
        %v6586 = vsel %vm412, %v6578, 0.0
        %v6587 = vadd.f32 %v6585, %v6586
        %v6588 = vadd.f32 %v4663, %v6587
        %v6589 = vlaneseq
        %v6590 = vshrl.u32 %v6589, 7
        %v6591 = vsub.s32 4, %v6590
        %v6592 = vrot.slane %v4746, %v6591
        %v6593 = vadd.f32 %v6588, %v6592
        %v6594 = vsel %vm412, %v6593, 0.0
        %6595 = vadd.xlane.f32.xlu0 %v6594
        %v6596 = vpop.xlane.xlu0 %6595
        %v6597 = vmul.f32 %v6596, %v416
        %v6598 = vsub.f32 %v6593, %v6597
        %v6599 = vmul.f32 %v6598, %v6598
        %v6600 = vsel %vm412, %v6599, 0.0
        %6601 = vadd.xlane.f32.xlu0 %v6600
        %v6602 = vpop.xlane.xlu0 %6601
        %v6603 = vmul.f32 %v6602, %v416
        %v6604 = vadd.f32 %v6603, 1e-05
        %v6605 = vrsqrt.pop %v6604
        %v6606 = vmul.f32 %v6598, %v6605
        %v6607 = vlaneseq
        %v6608 = vshrl.u32 %v6607, 7
        %v6609 = vsub.s32 2, %v6608
        %v6610 = vrot.slane %v4746, %v6609
        %v6611 = vmul.f32 %v6606, %v6610
        %v6612 = vlaneseq
        %v6613 = vshrl.u32 %v6612, 7
        %v6614 = vsub.s32 3, %v6613
        %v6615 = vrot.slane %v4746, %v6614
        %v6616 = vadd.f32 %v6611, %v6615
        %v6617 = vlaneseq
        %v6618 = vshrl.u32 %v6617, 7
        %v6619 = vsub.s32 6, %v6618
        %v6620 = vrot.slane %v4746, %v6619
        %v6622 = vsel %vm561, %v6616, 0
        %6624 = vmatprep.subr.mxu0 0.0
        %6625 = vmatpush1.msra.mxu0 0.0
        %6626 = vmatprep.subr.mxu0 0.0
        %6627 = vmatpush1.msra.mxu0 0.0
        %6628 = vmatprep.subr.mxu0 0.0
        %6629 = vmatpush1.msra.mxu0 0.0
        %6630 = vmatprep.subr.mxu0 0.0
        %6631 = vmatpush1.msra.mxu0 0.0
        %6632 = vmatprep.subr.mxu0 0.0
        %6633 = vmatpush1.msra.mxu0 0.0
        %6634 = vmatprep.subr.mxu0 0.0
        %6635 = vmatpush1.msra.mxu0 0.0
        %6636 = vmatprep.subr.mxu0 0.0
        %6637 = vmatpush1.msra.mxu0 0.0
        %6638 = vmatprep.subr.mxu0 0.0
        %6639 = vmatpush1.msra.mxu0 0.0
        %6640 = vmatprep.subr.mxu0 0.0
        %6641 = vmatpush1.msra.mxu0 0.0
        %6642 = vmatprep.subr.mxu0 0.0
        %6643 = vmatpush1.msra.mxu0 0.0
        %6644 = vmatprep.subr.mxu0 0.0
        %6645 = vmatpush1.msra.mxu0 0.0
        %6646 = vmatprep.subr.mxu0 0.0
        %6647 = vmatpush1.msra.mxu0 0.0
        %6648 = vmatprep.subr.mxu0 0.0
        %6649 = vmatpush1.msra.mxu0 %v4727
        %6650 = vmatprep.subr.mxu0 0.0
        %6651 = vmatpush1.msra.mxu0 %v4726
        %6652 = vmatprep.subr.mxu0 0.0
        %6653 = vmatpush1.msra.mxu0 %v4725
        %6654 = vmatprep.subr.mxu0 0.0
        %6655 = vmatpush1.msra.mxu0 %v4724
        %6656 = vmatprep.subr.mxu0 0.0
        %6657 = vmatpush2.msra.mxu0 0.0
        %6658 = vmatprep.subr.mxu0 0.0
        %6659 = vmatpush2.msra.mxu0 0.0
        %6660 = vmatprep.subr.mxu0 0.0
        %6661 = vmatpush2.msra.mxu0 0.0
        %6662 = vmatprep.subr.mxu0 0.0
        %6663 = vmatpush2.msra.mxu0 0.0
        %6664 = vmatprep.subr.mxu0 0.0
        %6665 = vmatpush2.msra.mxu0 0.0
        %6666 = vmatprep.subr.mxu0 0.0
        %6667 = vmatpush2.msra.mxu0 0.0
        %6668 = vmatprep.subr.mxu0 0.0
        %6669 = vmatpush2.msra.mxu0 0.0
        %6670 = vmatprep.subr.mxu0 0.0
        %6671 = vmatpush2.msra.mxu0 0.0
        %6672 = vmatprep.subr.mxu0 0.0
        %6673 = vmatpush2.msra.mxu0 0.0
        %6674 = vmatprep.subr.mxu0 0.0
        %6675 = vmatpush2.msra.mxu0 0.0
        %6676 = vmatprep.subr.mxu0 0.0
        %6677 = vmatpush2.msra.mxu0 0.0
        %6678 = vmatprep.subr.mxu0 0.0
        %6679 = vmatpush2.msra.mxu0 0.0
        %6680 = vmatprep.subr.mxu0 0.0
        %6681 = vmatpush2.msra.mxu0 0.0
        %6682 = vmatprep.subr.mxu0 0.0
        %6683 = vmatpush2.msra.mxu0 0.0
        %6684 = vmatprep.subr.mxu0 0.0
        %6685 = vmatpush2.msra.mxu0 0.0
        %6686 = vmatprep.subr.mxu0 0.0
        %6687 = vmatpush2.msra.mxu0 0.0
        %6688 = vmatprep.mubr.f32.mxu0 0.0
        %6689 = vmatmul.mubr.f32.gmra.mxu0 %v6622
        %v6690 = vpop.f32.mrf.mxu0
        %v6691 = vadd.f32 %v6620, %v6690
        %v6692 = vpop.f32.mrf.mxu0
        %6693 = vdwg.mxu0
        %v6694 = vmul.f32 %v6691, 1.702
        %v6695 = vxor.u32 %v6694, 2147483648
        %v6696 = vmul.f32 %v6695, 1.442695
        %v6697 = vpow.pop %v6696
        %v6698 = vadd.f32 %v6697, 1.0
        %v6699 = vrcp.pop %v6698
        %v6700 = vmul.f32 1.0, %v6699
        %v6701 = vmul.f32 %v6691, %v6700
        %6702 = vmatprep.subr.mxu0 0.0
        %6703 = vmatpush1.msra.mxu0 %v4744
        %6704 = vmatprep.subr.mxu0 0.0
        %6705 = vmatpush1.msra.mxu0 %v4743
        %6706 = vmatprep.subr.mxu0 0.0
        %6707 = vmatpush1.msra.mxu0 %v4742
        %6708 = vmatprep.subr.mxu0 0.0
        %6709 = vmatpush1.msra.mxu0 %v4741
        %6710 = vmatprep.subr.mxu0 0.0
        %6711 = vmatpush1.msra.mxu0 %v4740
        %6712 = vmatprep.subr.mxu0 0.0
        %6713 = vmatpush1.msra.mxu0 %v4739
        %6714 = vmatprep.subr.mxu0 0.0
        %6715 = vmatpush1.msra.mxu0 %v4738
        %6716 = vmatprep.subr.mxu0 0.0
        %6717 = vmatpush1.msra.mxu0 %v4737
        %6718 = vmatprep.subr.mxu0 0.0
        %6719 = vmatpush1.msra.mxu0 %v4736
        %6720 = vmatprep.subr.mxu0 0.0
        %6721 = vmatpush1.msra.mxu0 %v4735
        %6722 = vmatprep.subr.mxu0 0.0
        %6723 = vmatpush1.msra.mxu0 %v4734
        %6724 = vmatprep.subr.mxu0 0.0
        %6725 = vmatpush1.msra.mxu0 %v4733
        %6726 = vmatprep.subr.mxu0 0.0
        %6727 = vmatpush1.msra.mxu0 %v4732
        %6728 = vmatprep.subr.mxu0 0.0
        %6729 = vmatpush1.msra.mxu0 %v4731
        %6730 = vmatprep.subr.mxu0 0.0
        %6731 = vmatpush1.msra.mxu0 %v4730
        %6732 = vmatprep.subr.mxu0 0.0
        %6733 = vmatpush1.msra.mxu0 %v4729
        %6734 = vmatprep.subr.mxu0 0.0
        %6735 = vmatpush2.msra.mxu0 0.0
        %6736 = vmatprep.subr.mxu0 0.0
        %6737 = vmatpush2.msra.mxu0 0.0
        %6738 = vmatprep.subr.mxu0 0.0
        %6739 = vmatpush2.msra.mxu0 0.0
        %6740 = vmatprep.subr.mxu0 0.0
        %6741 = vmatpush2.msra.mxu0 0.0
        %6742 = vmatprep.subr.mxu0 0.0
        %6743 = vmatpush2.msra.mxu0 0.0
        %6744 = vmatprep.subr.mxu0 0.0
        %6745 = vmatpush2.msra.mxu0 0.0
        %6746 = vmatprep.subr.mxu0 0.0
        %6747 = vmatpush2.msra.mxu0 0.0
        %6748 = vmatprep.subr.mxu0 0.0
        %6749 = vmatpush2.msra.mxu0 0.0
        %6750 = vmatprep.subr.mxu0 0.0
        %6751 = vmatpush2.msra.mxu0 0.0
        %6752 = vmatprep.subr.mxu0 0.0
        %6753 = vmatpush2.msra.mxu0 0.0
        %6754 = vmatprep.subr.mxu0 0.0
        %6755 = vmatpush2.msra.mxu0 0.0
        %6756 = vmatprep.subr.mxu0 0.0
        %6757 = vmatpush2.msra.mxu0 0.0
        %6758 = vmatprep.subr.mxu0 0.0
        %6759 = vmatpush2.msra.mxu0 0.0
        %6760 = vmatprep.subr.mxu0 0.0
        %6761 = vmatpush2.msra.mxu0 0.0
        %6762 = vmatprep.subr.mxu0 0.0
        %6763 = vmatpush2.msra.mxu0 0.0
        %6764 = vmatprep.subr.mxu0 0.0
        %6765 = vmatpush2.msra.mxu0 0.0
        %6766 = vmatprep.mubr.f32.mxu0 0.0
        %6767 = vmatmul.mubr.f32.gmra.mxu0 %v6701
        %v6768 = vpop.f32.mrf.mxu0
        %v6769 = vadd.f32 0.0, %v6768
        %v6770 = vpop.f32.mrf.mxu0
        %6771 = vdwg.mxu0
        %v6772 = vadd.f32 %v6593, %v6769
        %v6773 = vlaneseq
        %v6774 = vshrl.u32 %v6773, 7
        %v6775 = vsub.s32 5, %v6774
        %v6776 = vrot.slane %v4746, %v6775
        %v6777 = vadd.f32 %v6772, %v6776
        %vm6778 = vcmask 253952
        %v6779 = vsel %vm6778, %v6777, 0.0
        %6780 = vadd.xlane.f32.xlu0 %v6779
        %v6781 = vpop.xlane.xlu0 %6780
        %v6782 = vmul.f32 %v6781, %v416
        %v6783 = vsub.f32 %v6777, %v6782
        %v6784 = vmul.f32 %v6783, %v6783
        %v6785 = vsel %vm6778, %v6784, 0.0
        %6786 = vadd.xlane.f32.xlu0 %v6785
        %v6787 = vpop.xlane.xlu0 %6786
        %v6788 = vmul.f32 %v6787, %v416
        %v6789 = vadd.f32 %v6788, 1e-05
        %v6790 = vrsqrt.pop %v6789
        %v6791 = vmul.f32 %v6783, %v6790
        %v6792 = vmul.f32 %v6791, %v330
        %v6793 = vadd.f32 %v6792, %v331
        %v6795 = vsel %vm561, %v6793, 0
        %6797 = vmatprep.subr.mxu0 0.0
        %6798 = vmatpush1.msra.mxu0 0.0
        %6799 = vmatprep.subr.mxu0 0.0
        %6800 = vmatpush1.msra.mxu0 0.0
        %6801 = vmatprep.subr.mxu0 0.0
        %6802 = vmatpush1.msra.mxu0 0.0
        %6803 = vmatprep.subr.mxu0 0.0
        %6804 = vmatpush1.msra.mxu0 0.0
        %6805 = vmatprep.subr.mxu0 0.0
        %6806 = vmatpush1.msra.mxu0 0.0
        %6807 = vmatprep.subr.mxu0 0.0
        %6808 = vmatpush1.msra.mxu0 0.0
        %6809 = vmatprep.subr.mxu0 0.0
        %6810 = vmatpush1.msra.mxu0 0.0
        %6811 = vmatprep.subr.mxu0 0.0
        %6812 = vmatpush1.msra.mxu0 0.0
        %6813 = vmatprep.subr.mxu0 0.0
        %6814 = vmatpush1.msra.mxu0 0.0
        %6815 = vmatprep.subr.mxu0 0.0
        %6816 = vmatpush1.msra.mxu0 0.0
        %6817 = vmatprep.subr.mxu0 0.0
        %6818 = vmatpush1.msra.mxu0 0.0
        %6819 = vmatprep.subr.mxu0 0.0
        %6820 = vmatpush1.msra.mxu0 0.0
        %6821 = vmatprep.subr.mxu0 0.0
        %6822 = vmatpush1.msra.mxu0 %v335
        %6823 = vmatprep.subr.mxu0 0.0
        %6824 = vmatpush1.msra.mxu0 %v334
        %6825 = vmatprep.subr.mxu0 0.0
        %6826 = vmatpush1.msra.mxu0 %v333
        %6827 = vmatprep.subr.mxu0 0.0
        %6828 = vmatpush1.msra.mxu0 %v332
        %6829 = vmatprep.subr.mxu0 0.0
        %6830 = vmatpush2.msra.mxu0 0.0
        %6831 = vmatprep.subr.mxu0 0.0
        %6832 = vmatpush2.msra.mxu0 0.0
        %6833 = vmatprep.subr.mxu0 0.0
        %6834 = vmatpush2.msra.mxu0 0.0
        %6835 = vmatprep.subr.mxu0 0.0
        %6836 = vmatpush2.msra.mxu0 0.0
        %6837 = vmatprep.subr.mxu0 0.0
        %6838 = vmatpush2.msra.mxu0 0.0
        %6839 = vmatprep.subr.mxu0 0.0
        %6840 = vmatpush2.msra.mxu0 0.0
        %6841 = vmatprep.subr.mxu0 0.0
        %6842 = vmatpush2.msra.mxu0 0.0
        %6843 = vmatprep.subr.mxu0 0.0
        %6844 = vmatpush2.msra.mxu0 0.0
        %6845 = vmatprep.subr.mxu0 0.0
        %6846 = vmatpush2.msra.mxu0 0.0
        %6847 = vmatprep.subr.mxu0 0.0
        %6848 = vmatpush2.msra.mxu0 0.0
        %6849 = vmatprep.subr.mxu0 0.0
        %6850 = vmatpush2.msra.mxu0 0.0
        %6851 = vmatprep.subr.mxu0 0.0
        %6852 = vmatpush2.msra.mxu0 0.0
        %6853 = vmatprep.subr.mxu0 0.0
        %6854 = vmatpush2.msra.mxu0 0.0
        %6855 = vmatprep.subr.mxu0 0.0
        %6856 = vmatpush2.msra.mxu0 0.0
        %6857 = vmatprep.subr.mxu0 0.0
        %6858 = vmatpush2.msra.mxu0 0.0
        %6859 = vmatprep.subr.mxu0 0.0
        %6860 = vmatpush2.msra.mxu0 0.0
        %6861 = vmatprep.mubr.f32.mxu0 0.0
        %6862 = vmatmul.mubr.f32.gmra.mxu0 %v6795
        %v6863 = vpop.f32.mrf.mxu0
        %v6864 = vadd.f32 0.0, %v6863
        %v6865 = vpop.f32.mrf.mxu0
        %6866 = vdwg.mxu0
        %6867 = vst.msk [vmem:[%s297] sm:$0x1] %vm6778, %v6864
        %s6868 = sand.u32 %s203, 1
        %s6869 = scalar_lea.sflag [#allocation3], %s6868
        %s6870 = sand.u32 %s203, 1
        %s6871 = scalar_lea.vmem [#allocation2], %s6870
        // Predicated region
        $region53: #{fungi_embedder_forward.1} parent=51 // pred_check
          %p6872 = pneg %p213
        $region54: #{fungi_embedder_forward.1} parent=51 // pred_check_branch
          %6874 = sbr.rel (%p6872) target = $region56
        $region55: #{fungi_embedder_forward.1} parent=51 // pred_region
          %s6876 = ssub.s32 16, 16
          %6877 = vsyncadd %s6869, %s6876
          %s6878 = smul.addr %s22, 16
          %s6879 = scalar_lea.hbm %s8, %s6878
          %s6881 = sshll.u32 %s6871, 4
          %s6882 = int_to_ptr.vmem [resolvable:$true] %s6881
          %6884 = dma.vmem_to_hbm [thread:$0]  %s6882, 16, %s6879, %s6869
        $region56: #{fungi_embedder_forward.1} parent=51 // pred_fallthru
          _
      $region52: #{fungi_embedder_forward.1} parent=5 // pred_fallthru
        _
      %p6885 = scmp.le.s32.totalorder 2, %s17
      // Predicated region
      $region57: #{fungi_embedder_forward.1} parent=5 // pred_check
        %p6886 = pneg %p6885
      $region58: #{fungi_embedder_forward.1} parent=5 // pred_check_branch
        %6888 = sbr.rel (%p6886) target = $region60
      $region59: #{fungi_embedder_forward.1} parent=5 // pred_region
        %s6889 = ssub.s32 %s17, 2
        // Predicated region
        $region61: #{fungi_embedder_forward.1} parent=59 // pred_check
          %p6890 = pneg %p219
        $region62: #{fungi_embedder_forward.1} parent=59 // pred_check_branch
          %6892 = sbr.rel (%p6890) target = $region64
        $region63: #{fungi_embedder_forward.1} parent=59 // pred_region
          %s6893 = sand.u32 %s204, 1
          %s6894 = scalar_lea.sflag [#allocation3], %s6893
          %s6895 = sand.u32 %s204, 1
          %s6896 = scalar_lea.vmem [#allocation2], %s6895
          %6897 = dma.done %s6894, 16
        $region64: #{fungi_embedder_forward.1} parent=59 // pred_fallthru
          _
      $region60: #{fungi_embedder_forward.1} parent=5 // pred_fallthru
        _
    $region6: #{fungi_embedder_forward.1} parent=1 // loop_footer
      %s21 = sadd.s32 1, %s17
    $region7: #{fungi_embedder_forward.1} parent=1 // loop_footer_branch
      %16 = sbr.rel target = $region3
    $region8: #{fungi_embedder_forward.1} parent=1 // loop_exit
      _
    %6898 = vsyncpa [#allocation3], 1
    %s6899 = scalar_lea.sflag [#allocation3], 1
    %6900 = vsyncpa %s6899, 1

</llo_original>
